<compile_context>
chip_gen: v6e
topology: v6e:2x2x1
jax: 0.10.0
libtpu: 0.0.40
codegen_flags: <defaults>
</compile_context>

<pallas_src>
import math

import jax
import jax.numpy as jnp
from jax import lax
from jax.experimental import pallas as pl
from jax.experimental.pallas import tpu as pltpu


def _make_kernel(Lt, Ls, E, H, TQ):
    HD = E // H
    inv_scale = 1.0 / math.sqrt(float(E))   # PyTorch divides by sqrt(embed_size)
    bf16 = jnp.bfloat16
    f32 = jnp.float32

    def layernorm(h, g_ref, b_ref):
        mu = jnp.mean(h, axis=-1, keepdims=True)
        var = jnp.mean(jnp.square(h - mu), axis=-1, keepdims=True)
        return (h - mu) * lax.rsqrt(var + 1e-5) * g_ref[...] + b_ref[...]

    def mha(values, keys, queries, mask, wq_ref, wk_ref, wv_ref, fcw_ref, fcb_ref):
        # Full-width block-diagonal projections (weights are kron(I_H, W) built
        # in the wrapper): one (L,E)@(E,E) bf16 matmul each, f32 accumulation.
        v = jnp.dot(values.astype(bf16), wv_ref[...], preferred_element_type=f32)
        k = jnp.dot(keys.astype(bf16), wk_ref[...], preferred_element_type=f32)
        q = jnp.dot(queries.astype(bf16), wq_ref[...], preferred_element_type=f32)

        Lq = queries.shape[0]
        acc = jnp.zeros((Lq, E), f32)
        # Per-head scores/softmax/context; each head's context is folded straight
        # into the output projection (block-row decomposition), so there is no
        # lane-axis concatenate and only one head's tiles are live at a time.
        for h in range(H):
            lo = h * HD
            qh = q[:, lo:lo + HD].astype(bf16)
            kh = k[:, lo:lo + HD].astype(bf16)
            vh = v[:, lo:lo + HD].astype(bf16)
            # contract the last dim of both operands (no explicit transpose)
            energy = lax.dot_general(qh, kh, (((1,), (1,)), ((), ())),
                                     preferred_element_type=f32)
            # masked_fill(mask == 0, -1e20) happens BEFORE the 1/sqrt(E) scale,
            # all in f32.
            s = jnp.where(mask, energy, f32(-1e20)) * inv_scale
            m = jnp.max(s, axis=-1, keepdims=True)
            e = jnp.exp(s - m)
            p = e * pl.reciprocal(jnp.sum(e, axis=-1, keepdims=True), approx=True)
            ctx = jnp.dot(p.astype(bf16), vh, preferred_element_type=f32)
            acc = acc + jnp.dot(ctx.astype(bf16), fcw_ref[lo:lo + HD, :],
                                preferred_element_type=f32)
        return acc + fcb_ref[...]

    def kernel(lens_ref,
               x_ref, v_ref, k_ref,
               wq1_ref, wk1_ref, wv1_ref, fc1w_ref, fc1b_ref, g0_ref, b0_ref,
               wq2_ref, wk2_ref, wv2_ref, fc2w_ref, fc2b_ref, g1_ref, b1_ref,
               ff1w_ref, ff1b_ref, ff2w_ref, ff2b_ref, g2_ref, b2_ref,
               out_ref):
        b = pl.program_id(0)
        q_start = pl.multiple_of(pl.program_id(1) * TQ, TQ)

        x_full = x_ref[...]                              # (Lt, E) keys/values
        x_q = x_ref[pl.ds(q_start, TQ), :]               # (TQ, E) query rows
        enc_v = v_ref[...]                               # (Ls, E)
        enc_k = k_ref[...]                               # (Ls, E)

        # Masks built in-kernel (no O(N*L^2) f32 mask traffic from HBM).
        row = lax.broadcasted_iota(jnp.int32, (TQ, Lt), 0) + q_start
        col = lax.broadcasted_iota(jnp.int32, (TQ, Lt), 1)
        causal_mask = row >= col                         # target (causal) mask
        src_len = lens_ref[b]
        src_mask = lax.broadcasted_iota(jnp.int32, (TQ, Ls), 1) < src_len

        # 1) masked self-attention over the target sequence
        attn1 = mha(x_full, x_full, x_q, causal_mask,
                    wq1_ref, wk1_ref, wv1_ref, fc1w_ref, fc1b_ref)
        # dropout == identity in eval mode
        query = layernorm(attn1 + x_q, g0_ref, b0_ref)

        # 2) TransformerBlock: cross-attention (encoder value/key, decoder query)
        attn2 = mha(enc_v, enc_k, query, src_mask,
                    wq2_ref, wk2_ref, wv2_ref, fc2w_ref, fc2b_ref)
        h1 = layernorm(attn2 + query, g1_ref, b1_ref)

        # 3) feed-forward: Linear(E,F) -> ReLU -> Linear(F,E)
        hid = jnp.maximum(
            jnp.dot(h1.astype(bf16), ff1w_ref[...], preferred_element_type=f32)
            + ff1b_ref[...], 0.0)
        ff = jnp.dot(hid.astype(bf16), ff2w_ref[...], preferred_element_type=f32) \
            + ff2b_ref[...]
        out_ref[...] = layernorm(ff + h1, g2_ref, b2_ref).astype(out_ref.dtype)

    return kernel


def decoder_block(x, value, key, src_lens, params, heads, *, q_block=None):
    """x: (N, Lt, E); value/key: (N, Ls, E); src_lens: (N,) int32 valid lengths.

    Target mask is the standard causal mask; source mask is a padding mask
    derived from `src_lens` (both generated inside the kernel).
    """
    N, Lt, E = x.shape
    Ls = value.shape[1]
    assert E % heads == 0
    TQ = q_block if q_block is not None else min(Lt, 128)
    assert Lt % TQ == 0 and (TQ % 8 == 0 or TQ == Lt)

    bf16 = jnp.bfloat16
    eye = jnp.eye(heads, dtype=jnp.float32)

    def block_diag(w):  # shared per-head (HD,HD) weight -> block-diagonal (E,E)
        return jnp.kron(eye, w.astype(jnp.float32)).astype(bf16)

    weights = [
        block_diag(params["wq1"]), block_diag(params["wk1"]), block_diag(params["wv1"]),
        params["fc1_w"].astype(bf16), params["fc1_b"],
        params["g0"], params["b0"],
        block_diag(params["wq2"]), block_diag(params["wk2"]), block_diag(params["wv2"]),
        params["fc2_w"].astype(bf16), params["fc2_b"],
        params["g1"], params["b1"],
        params["ff1_w"].astype(bf16), params["ff1_b"],
        params["ff2_w"].astype(bf16), params["ff2_b"],
        params["g2"], params["b2"],
    ]

    def per_batch(L):
        return pl.BlockSpec((pl.Squeezed(), L, E), lambda b, qi, lens: (b, 0, 0))

    def shared2d(arr):
        return pl.BlockSpec(arr.shape, lambda b, qi, lens: (0, 0))

    in_specs = ([per_batch(Lt), per_batch(Ls), per_batch(Ls)]
                + [shared2d(w) for w in weights])
    out_spec = pl.BlockSpec((pl.Squeezed(), TQ, E), lambda b, qi, lens: (b, qi, 0))

    # Explicit VMEM budget: weights + double-buffered activation blocks + slack,
    # clamped to stay within v7x's 64 MiB physical VMEM.
    def _nbytes(a):
        return int(a.size) * a.dtype.itemsize
    weight_bytes = sum(_nbytes(w) for w in weights)
    act_block_bytes = 4 * (Lt * E + 2 * Ls * E + TQ * E)
    vmem_limit = int(min(max(2 * (weight_bytes + act_block_bytes) + (16 << 20),
                             32 << 20), 56 << 20))

    kernel = _make_kernel(Lt, Ls, E, heads, TQ)
    return pl.pallas_call(
        kernel,
        out_shape=jax.ShapeDtypeStruct((N, Lt, E), x.dtype),
        grid_spec=pltpu.PrefetchScalarGridSpec(
            num_scalar_prefetch=1,
            grid=(N, Lt // TQ),
            in_specs=in_specs,
            out_specs=out_spec,
        ),
        compiler_params=pltpu.CompilerParams(
            dimension_semantics=("parallel", "parallel"),
            vmem_limit_bytes=vmem_limit),
    )(src_lens.astype(jnp.int32), x, value, key, *weights)


def init_params(rng, E, H, F):
    hd = E // H
    ks = list(jax.random.split(rng, 20))

    def nrm(k, shape, scale=0.1):
        return (scale * jax.random.normal(k, shape)).astype(jnp.float32)

    return {
        # masked self-attention (shared per-head weights, PyTorch-style)
        "wq1": nrm(ks[0], (hd, hd)), "wk1": nrm(ks[1], (hd, hd)),
        "wv1": nrm(ks[2], (hd, hd)),
        "fc1_w": nrm(ks[3], (E, E)), "fc1_b": nrm(ks[4], (1, E)),
        "g0": (1.0 + nrm(ks[5], (1, E))).astype(jnp.float32),
        "b0": nrm(ks[6], (1, E)),
        # cross attention (inside TransformerBlock)
        "wq2": nrm(ks[7], (hd, hd)), "wk2": nrm(ks[8], (hd, hd)),
        "wv2": nrm(ks[9], (hd, hd)),
        "fc2_w": nrm(ks[10], (E, E)), "fc2_b": nrm(ks[11], (1, E)),
        "g1": (1.0 + nrm(ks[12], (1, E))).astype(jnp.float32),
        "b1": nrm(ks[13], (1, E)),
        # feed-forward
        "ff1_w": nrm(ks[14], (E, F)), "ff1_b": nrm(ks[15], (1, F)),
        "ff2_w": nrm(ks[16], (F, E)), "ff2_b": nrm(ks[17], (1, E)),
        "g2": (1.0 + nrm(ks[18], (1, E))).astype(jnp.float32),
        "b2": nrm(ks[19], (1, E)),
    }


def reference(x, value, key, trg_mask, src_mask, params, H,
              matmul_dtype=jnp.float32):
    """Pure-JAX replica of the PyTorch forward (dropout = identity).

    `matmul_dtype=bf16` mirrors the kernel's mixed precision (bf16 matmul
    operands, f32 accumulation) for a tight element-wise comparison.
    """
    N, Lt, E = x.shape
    hd = E // H
    f32 = jnp.float32
    dt = matmul_dtype

    def attn(values, keys, queries, mask, wq, wk, wv, fcw, fcb):
        Lk, Lq = keys.shape[1], queries.shape[1]
        v = jnp.einsum("nkhd,de->nkhe", values.reshape(N, Lk, H, hd).astype(dt),
                       wv.astype(dt), preferred_element_type=f32)
        k = jnp.einsum("nkhd,de->nkhe", keys.reshape(N, Lk, H, hd).astype(dt),
                       wk.astype(dt), preferred_element_type=f32)
        q = jnp.einsum("nqhd,de->nqhe", queries.reshape(N, Lq, H, hd).astype(dt),
                       wq.astype(dt), preferred_element_type=f32)
        energy = jnp.einsum("nqhd,nkhd->nhqk", q.astype(dt), k.astype(dt),
                            preferred_element_type=f32)
        energy = jnp.where(mask[:, None, :, :] == 0, f32(-1e20), energy)
        p = jax.nn.softmax(energy / jnp.sqrt(f32(E)), axis=-1)
        o = jnp.einsum("nhqk,nkhd->nqhd", p.astype(dt), v.astype(dt),
                       preferred_element_type=f32).reshape(N, Lq, E)
        return jnp.einsum("nqe,ef->nqf", o.astype(dt), fcw.astype(dt),
                          preferred_element_type=f32) + fcb

    def ln(h, g, b):
        mu = jnp.mean(h, -1, keepdims=True)
        var = jnp.mean((h - mu) ** 2, -1, keepdims=True)
        return (h - mu) / jnp.sqrt(var + 1e-5) * g + b

    a1 = attn(x, x, x, trg_mask, params["wq1"], params["wk1"], params["wv1"],
              params["fc1_w"], params["fc1_b"])
    query = ln(a1 + x, params["g0"], params["b0"])
    a2 = attn(value, key, query, src_mask, params["wq2"], params["wk2"],
              params["wv2"], params["fc2_w"], params["fc2_b"])
    h1 = ln(a2 + query, params["g1"], params["b1"])
    hid = jnp.maximum(
        jnp.einsum("nqe,ef->nqf", h1.astype(dt), params["ff1_w"].astype(dt),
                   preferred_element_type=f32) + params["ff1_b"], 0.0)
    ff = jnp.einsum("nqf,fe->nqe", hid.astype(dt), params["ff2_w"].astype(dt),
                    preferred_element_type=f32) + params["ff2_b"]
    return ln(ff + h1, params["g2"], params["b2"])


if __name__ == "__main__":
    # lane-dense small config: E multiple of 128, two query tiles per batch row
    N, Lt, Ls, E, H, FE = 2, 128, 128, 4, 4, 4
    E = 128
    F = FE * E
    TQ = 64

    rng = jax.random.PRNGKey(0)
    k_x, k_v, k_k, k_p = jax.random.split(rng, 4)
    x = jax.random.normal(k_x, (N, Lt, E), dtype=jnp.float32)
    value = jax.random.normal(k_v, (N, Ls, E), dtype=jnp.float32)
    key = jax.random.normal(k_k, (N, Ls, E), dtype=jnp.float32)
    params = init_params(k_p, E, H, F)

    # source valid lengths (padding mask); target mask is causal
    src_lens = jnp.array([Ls, Ls - 32], dtype=jnp.int32)

    out = decoder_block(x, value, key, src_lens, params, H, q_block=TQ)
    jax.block_until_ready(out)

    # Reference masks carry the exact semantics the kernel builds in-VMEM.
    causal = jnp.tril(jnp.ones((Lt, Lt), jnp.float32))
    trg_mask = jnp.broadcast_to(causal, (N, Lt, Lt))
    pad = (jnp.arange(Ls)[None, :] < src_lens[:, None]).astype(jnp.float32)
    src_mask = jnp.broadcast_to(pad[:, None, :], (N, Lt, Ls))

    ref_bf16 = reference(x, value, key, trg_mask, src_mask, params, H,
                         matmul_dtype=jnp.bfloat16)
    ref_f32 = reference(x, value, key, trg_mask, src_mask, params, H,
                        matmul_dtype=jnp.float32)

    assert out.shape == (N, Lt, E) and out.dtype == jnp.float32
    # tight structural check vs. a like-for-like mixed-precision reference
    err_bf16 = float(jnp.max(jnp.abs(out - ref_bf16)))
    assert jnp.allclose(out, ref_bf16, atol=1e-2, rtol=1e-2), \
        f"max abs err vs bf16 ref {err_bf16}"
    # coarse sanity vs. full-f32 reference (bf16 MXU operands -> looser tol)
    err_f32 = float(jnp.max(jnp.abs(out - ref_f32)))
    assert jnp.allclose(out, ref_f32, atol=8e-2, rtol=8e-2), \
        f"max abs err vs f32 ref {err_f32}"
    print("KERNEL_OK")
</pallas_src>

<mosaic_0001>
module attributes {stable_mosaic.version = 11 : i64} {
  func.func @kernel(%arg0: i32, %arg1: i32, %arg2: memref<2xi32, #tpu.memory_space<smem>>, %arg3: memref<1x128x128xf32, #tpu.memory_space<vmem>>, %arg4: memref<1x128x128xf32, #tpu.memory_space<vmem>>, %arg5: memref<1x128x128xf32, #tpu.memory_space<vmem>>, %arg6: memref<128x128xbf16, #tpu.memory_space<vmem>>, %arg7: memref<128x128xbf16, #tpu.memory_space<vmem>>, %arg8: memref<128x128xbf16, #tpu.memory_space<vmem>>, %arg9: memref<128x128xbf16, #tpu.memory_space<vmem>>, %arg10: memref<1x128xf32, #tpu.memory_space<vmem>>, %arg11: memref<1x128xf32, #tpu.memory_space<vmem>>, %arg12: memref<1x128xf32, #tpu.memory_space<vmem>>, %arg13: memref<128x128xbf16, #tpu.memory_space<vmem>>, %arg14: memref<128x128xbf16, #tpu.memory_space<vmem>>, %arg15: memref<128x128xbf16, #tpu.memory_space<vmem>>, %arg16: memref<128x128xbf16, #tpu.memory_space<vmem>>, %arg17: memref<1x128xf32, #tpu.memory_space<vmem>>, %arg18: memref<1x128xf32, #tpu.memory_space<vmem>>, %arg19: memref<1x128xf32, #tpu.memory_space<vmem>>, %arg20: memref<128x512xbf16, #tpu.memory_space<vmem>>, %arg21: memref<1x512xf32, #tpu.memory_space<vmem>>, %arg22: memref<512x128xbf16, #tpu.memory_space<vmem>>, %arg23: memref<1x128xf32, #tpu.memory_space<vmem>>, %arg24: memref<1x128xf32, #tpu.memory_space<vmem>>, %arg25: memref<1x128xf32, #tpu.memory_space<vmem>>, %arg26: memref<1x64x128xf32, #tpu.memory_space<vmem>>) attributes {dimension_semantics = [#tpu.dimension_semantics<parallel>, #tpu.dimension_semantics<parallel>], iteration_bounds = array<i64: 2, 2>, scalar_prefetch = 1 : i64, scratch_operands = 0 : i64, tpu.core_type = #tpu.core_type<tc>, window_params = [{transform_indices = @transform_0, window_bounds = array<i64: 1, 128, 128>}, {transform_indices = @transform_1, window_bounds = array<i64: 1, 128, 128>}, {transform_indices = @transform_2, window_bounds = array<i64: 1, 128, 128>}, {pipeline_mode = #tpu.pipeline_mode<synchronous>, transform_indices = @transform_3, window_bounds = array<i64: 128, 128>}, {pipeline_mode = #tpu.pipeline_mode<synchronous>, transform_indices = @transform_4, window_bounds = array<i64: 128, 128>}, {pipeline_mode = #tpu.pipeline_mode<synchronous>, transform_indices = @transform_5, window_bounds = array<i64: 128, 128>}, {pipeline_mode = #tpu.pipeline_mode<synchronous>, transform_indices = @transform_6, window_bounds = array<i64: 128, 128>}, {pipeline_mode = #tpu.pipeline_mode<synchronous>, transform_indices = @transform_7, window_bounds = array<i64: 1, 128>}, {pipeline_mode = #tpu.pipeline_mode<synchronous>, transform_indices = @transform_8, window_bounds = array<i64: 1, 128>}, {pipeline_mode = #tpu.pipeline_mode<synchronous>, transform_indices = @transform_9, window_bounds = array<i64: 1, 128>}, {pipeline_mode = #tpu.pipeline_mode<synchronous>, transform_indices = @transform_10, window_bounds = array<i64: 128, 128>}, {pipeline_mode = #tpu.pipeline_mode<synchronous>, transform_indices = @transform_11, window_bounds = array<i64: 128, 128>}, {pipeline_mode = #tpu.pipeline_mode<synchronous>, transform_indices = @transform_12, window_bounds = array<i64: 128, 128>}, {pipeline_mode = #tpu.pipeline_mode<synchronous>, transform_indices = @transform_13, window_bounds = array<i64: 128, 128>}, {pipeline_mode = #tpu.pipeline_mode<synchronous>, transform_indices = @transform_14, window_bounds = array<i64: 1, 128>}, {pipeline_mode = #tpu.pipeline_mode<synchronous>, transform_indices = @transform_15, window_bounds = array<i64: 1, 128>}, {pipeline_mode = #tpu.pipeline_mode<synchronous>, transform_indices = @transform_16, window_bounds = array<i64: 1, 128>}, {pipeline_mode = #tpu.pipeline_mode<synchronous>, transform_indices = @transform_17, window_bounds = array<i64: 128, 512>}, {pipeline_mode = #tpu.pipeline_mode<synchronous>, transform_indices = @transform_18, window_bounds = array<i64: 1, 512>}, {pipeline_mode = #tpu.pipeline_mode<synchronous>, transform_indices = @transform_19, window_bounds = array<i64: 512, 128>}, {pipeline_mode = #tpu.pipeline_mode<synchronous>, transform_indices = @transform_20, window_bounds = array<i64: 1, 128>}, {pipeline_mode = #tpu.pipeline_mode<synchronous>, transform_indices = @transform_21, window_bounds = array<i64: 1, 128>}, {pipeline_mode = #tpu.pipeline_mode<synchronous>, transform_indices = @transform_22, window_bounds = array<i64: 1, 128>}, {transform_indices = @transform_23, window_bounds = array<i64: 1, 64, 128>}]} {
    %c64_i32 = arith.constant 64 : i32
    %0 = arith.muli %arg1, %c64_i32 : i32
    %1 = tpu.assume_multiple %0, 64 : i32
    %c0 = arith.constant 0 : index
    %c0_0 = arith.constant 0 : index
    %c0_1 = arith.constant 0 : index
    %2 = vector.load %arg3[%c0, %c0_0, %c0_1] : memref<1x128x128xf32, #tpu.memory_space<vmem>>, vector<1x128x128xf32>
    %3 = vector.shape_cast %2 : vector<1x128x128xf32> to vector<128x128xf32>
    %c0_2 = arith.constant 0 : index
    %4 = arith.index_cast %1 : i32 to index
    %c0_3 = arith.constant 0 : index
    %5 = vector.load %arg3[%c0_2, %4, %c0_3] : memref<1x128x128xf32, #tpu.memory_space<vmem>>, vector<1x64x128xf32>
    %6 = vector.shape_cast %5 : vector<1x64x128xf32> to vector<64x128xf32>
    %c0_4 = arith.constant 0 : index
    %c0_5 = arith.constant 0 : index
    %c0_6 = arith.constant 0 : index
    %7 = vector.load %arg4[%c0_4, %c0_5, %c0_6] : memref<1x128x128xf32, #tpu.memory_space<vmem>>, vector<1x128x128xf32>
    %8 = vector.shape_cast %7 : vector<1x128x128xf32> to vector<128x128xf32>
    %c0_7 = arith.constant 0 : index
    %c0_8 = arith.constant 0 : index
    %c0_9 = arith.constant 0 : index
    %9 = vector.load %arg5[%c0_7, %c0_8, %c0_9] : memref<1x128x128xf32, #tpu.memory_space<vmem>>, vector<1x128x128xf32>
    %10 = vector.shape_cast %9 : vector<1x128x128xf32> to vector<128x128xf32>
    %11 = tpu.iota {dimensions = array<i32: 0>} : vector<64x128xi32>
    %12 = vector.broadcast %1 : i32 to vector<64x128xi32>
    %13 = arith.addi %11, %12 : vector<64x128xi32>
    %14 = tpu.iota {dimensions = array<i32: 1>} : vector<64x128xi32>
    %15 = arith.cmpi sge, %13, %14 : vector<64x128xi32>
    %16 = arith.index_cast %arg0 : i32 to index
    %17 = memref.load %arg2[%16] : memref<2xi32, #tpu.memory_space<smem>>
    %18 = tpu.iota {dimensions = array<i32: 1>} : vector<64x128xi32>
    %19 = vector.broadcast %17 : i32 to vector<64x128xi32>
    %20 = arith.cmpi slt, %18, %19 : vector<64x128xi32>
    %21 = arith.truncf %3 : vector<128x128xf32> to vector<128x128xbf16>
    %c0_10 = arith.constant 0 : index
    %c0_11 = arith.constant 0 : index
    %22 = vector.load %arg8[%c0_10, %c0_11] : memref<128x128xbf16, #tpu.memory_space<vmem>>, vector<128x128xbf16>
    %cst = arith.constant dense<0.000000e+00> : vector<128x128xf32>
    %23 = tpu.matmul %21, %22, %cst {dimension_numbers = #tpu.dot_dimension_numbers<[1], [0], [0], [1], [0, 0, 1, 1], [], []>} : vector<128x128xbf16>, vector<128x128xbf16>, vector<128x128xf32> -> vector<128x128xf32>
    %24 = arith.truncf %3 : vector<128x128xf32> to vector<128x128xbf16>
    %c0_12 = arith.constant 0 : index
    %c0_13 = arith.constant 0 : index
    %25 = vector.load %arg7[%c0_12, %c0_13] : memref<128x128xbf16, #tpu.memory_space<vmem>>, vector<128x128xbf16>
    %cst_14 = arith.constant dense<0.000000e+00> : vector<128x128xf32>
    %26 = tpu.matmul %24, %25, %cst_14 {dimension_numbers = #tpu.dot_dimension_numbers<[1], [0], [0], [1], [0, 0, 1, 1], [], []>} : vector<128x128xbf16>, vector<128x128xbf16>, vector<128x128xf32> -> vector<128x128xf32>
    %27 = arith.truncf %6 : vector<64x128xf32> to vector<64x128xbf16>
    %c0_15 = arith.constant 0 : index
    %c0_16 = arith.constant 0 : index
    %28 = vector.load %arg6[%c0_15, %c0_16] : memref<128x128xbf16, #tpu.memory_space<vmem>>, vector<128x128xbf16>
    %cst_17 = arith.constant dense<0.000000e+00> : vector<64x128xf32>
    %29 = tpu.matmul %27, %28, %cst_17 {dimension_numbers = #tpu.dot_dimension_numbers<[1], [0], [0], [1], [0, 0, 1, 1], [], []>} : vector<64x128xbf16>, vector<128x128xbf16>, vector<64x128xf32> -> vector<64x128xf32>
    %cst_18 = arith.constant 0.000000e+00 : f32
    %30 = vector.broadcast %cst_18 : f32 to vector<64x128xf32>
    %31 = vector.extract_strided_slice %29 {offsets = [0, 0], sizes = [64, 32], strides = [1, 1]} : vector<64x128xf32> to vector<64x32xf32>
    %32 = arith.truncf %31 : vector<64x32xf32> to vector<64x32xbf16>
    %33 = vector.extract_strided_slice %26 {offsets = [0, 0], sizes = [128, 32], strides = [1, 1]} : vector<128x128xf32> to vector<128x32xf32>
    %34 = arith.truncf %33 : vector<128x32xf32> to vector<128x32xbf16>
    %35 = vector.extract_strided_slice %23 {offsets = [0, 0], sizes = [128, 32], strides = [1, 1]} : vector<128x128xf32> to vector<128x32xf32>
    %36 = arith.truncf %35 : vector<128x32xf32> to vector<128x32xbf16>
    %cst_19 = arith.constant dense<0.000000e+00> : vector<64x128xf32>
    %37 = tpu.matmul %32, %34, %cst_19 {dimension_numbers = #tpu.dot_dimension_numbers<[1], [1], [0], [0], [0, 0, 1, 0], [], []>} : vector<64x32xbf16>, vector<128x32xbf16>, vector<64x128xf32> -> vector<64x128xf32>
    %cst_20 = arith.constant -1.000000e+20 : f32
    %38 = vector.broadcast %cst_20 : f32 to vector<64x128xf32>
    %39 = arith.select %15, %37, %38 : vector<64x128xi1>, vector<64x128xf32>
    %cst_21 = arith.constant 0.0883883461 : f32
    %40 = vector.broadcast %cst_21 : f32 to vector<64x128xf32>
    %41 = arith.mulf %39, %40 : vector<64x128xf32>
    %cst_22 = arith.constant dense<0xFF800000> : vector<64xf32>
    %42 = vector.multi_reduction <maximumf>, %41, %cst_22 [1] : vector<64x128xf32> to vector<64xf32>
    %43 = vector.shape_cast %42 : vector<64xf32> to vector<64x1xf32>
    %44 = vector.broadcast %43 : vector<64x1xf32> to vector<64x128xf32>
    %45 = arith.subf %41, %44 : vector<64x128xf32>
    %46 = math.exp %45 : vector<64x128xf32>
    %cst_23 = arith.constant dense<0.000000e+00> : vector<64xf32>
    %47 = vector.multi_reduction <add>, %46, %cst_23 [1] : vector<64x128xf32> to vector<64xf32>
    %48 = vector.shape_cast %47 : vector<64xf32> to vector<64x1xf32>
    %49 = tpu.reciprocal %48 {approx = true} : vector<64x1xf32> -> vector<64x1xf32>
    %50 = vector.broadcast %49 : vector<64x1xf32> to vector<64x128xf32>
    %51 = arith.mulf %46, %50 : vector<64x128xf32>
    %52 = arith.truncf %51 : vector<64x128xf32> to vector<64x128xbf16>
    %cst_24 = arith.constant dense<0.000000e+00> : vector<64x32xf32>
    %53 = tpu.matmul %52, %36, %cst_24 {dimension_numbers = #tpu.dot_dimension_numbers<[1], [0], [0], [1], [0, 0, 1, 1], [], []>} : vector<64x128xbf16>, vector<128x32xbf16>, vector<64x32xf32> -> vector<64x32xf32>
    %54 = arith.truncf %53 : vector<64x32xf32> to vector<64x32xbf16>
    %c0_25 = arith.constant 0 : index
    %c0_26 = arith.constant 0 : index
    %55 = vector.load %arg9[%c0_25, %c0_26] : memref<128x128xbf16, #tpu.memory_space<vmem>>, vector<32x128xbf16>
    %cst_27 = arith.constant dense<0.000000e+00> : vector<64x128xf32>
    %56 = tpu.matmul %54, %55, %cst_27 {dimension_numbers = #tpu.dot_dimension_numbers<[1], [0], [0], [1], [0, 0, 1, 1], [], []>} : vector<64x32xbf16>, vector<32x128xbf16>, vector<64x128xf32> -> vector<64x128xf32>
    %57 = arith.addf %30, %56 : vector<64x128xf32>
    %58 = vector.extract_strided_slice %29 {offsets = [0, 32], sizes = [64, 32], strides = [1, 1]} : vector<64x128xf32> to vector<64x32xf32>
    %59 = arith.truncf %58 : vector<64x32xf32> to vector<64x32xbf16>
    %60 = vector.extract_strided_slice %26 {offsets = [0, 32], sizes = [128, 32], strides = [1, 1]} : vector<128x128xf32> to vector<128x32xf32>
    %61 = arith.truncf %60 : vector<128x32xf32> to vector<128x32xbf16>
    %62 = vector.extract_strided_slice %23 {offsets = [0, 32], sizes = [128, 32], strides = [1, 1]} : vector<128x128xf32> to vector<128x32xf32>
    %63 = arith.truncf %62 : vector<128x32xf32> to vector<128x32xbf16>
    %cst_28 = arith.constant dense<0.000000e+00> : vector<64x128xf32>
    %64 = tpu.matmul %59, %61, %cst_28 {dimension_numbers = #tpu.dot_dimension_numbers<[1], [1], [0], [0], [0, 0, 1, 0], [], []>} : vector<64x32xbf16>, vector<128x32xbf16>, vector<64x128xf32> -> vector<64x128xf32>
    %cst_29 = arith.constant -1.000000e+20 : f32
    %65 = vector.broadcast %cst_29 : f32 to vector<64x128xf32>
    %66 = arith.select %15, %64, %65 : vector<64x128xi1>, vector<64x128xf32>
    %cst_30 = arith.constant 0.0883883461 : f32
    %67 = vector.broadcast %cst_30 : f32 to vector<64x128xf32>
    %68 = arith.mulf %66, %67 : vector<64x128xf32>
    %cst_31 = arith.constant dense<0xFF800000> : vector<64xf32>
    %69 = vector.multi_reduction <maximumf>, %68, %cst_31 [1] : vector<64x128xf32> to vector<64xf32>
    %70 = vector.shape_cast %69 : vector<64xf32> to vector<64x1xf32>
    %71 = vector.broadcast %70 : vector<64x1xf32> to vector<64x128xf32>
    %72 = arith.subf %68, %71 : vector<64x128xf32>
    %73 = math.exp %72 : vector<64x128xf32>
    %cst_32 = arith.constant dense<0.000000e+00> : vector<64xf32>
    %74 = vector.multi_reduction <add>, %73, %cst_32 [1] : vector<64x128xf32> to vector<64xf32>
    %75 = vector.shape_cast %74 : vector<64xf32> to vector<64x1xf32>
    %76 = tpu.reciprocal %75 {approx = true} : vector<64x1xf32> -> vector<64x1xf32>
    %77 = vector.broadcast %76 : vector<64x1xf32> to vector<64x128xf32>
    %78 = arith.mulf %73, %77 : vector<64x128xf32>
    %79 = arith.truncf %78 : vector<64x128xf32> to vector<64x128xbf16>
    %cst_33 = arith.constant dense<0.000000e+00> : vector<64x32xf32>
    %80 = tpu.matmul %79, %63, %cst_33 {dimension_numbers = #tpu.dot_dimension_numbers<[1], [0], [0], [1], [0, 0, 1, 1], [], []>} : vector<64x128xbf16>, vector<128x32xbf16>, vector<64x32xf32> -> vector<64x32xf32>
    %81 = arith.truncf %80 : vector<64x32xf32> to vector<64x32xbf16>
    %c32 = arith.constant 32 : index
    %c0_34 = arith.constant 0 : index
    %82 = vector.load %arg9[%c32, %c0_34] : memref<128x128xbf16, #tpu.memory_space<vmem>>, vector<32x128xbf16>
    %cst_35 = arith.constant dense<0.000000e+00> : vector<64x128xf32>
    %83 = tpu.matmul %81, %82, %cst_35 {dimension_numbers = #tpu.dot_dimension_numbers<[1], [0], [0], [1], [0, 0, 1, 1], [], []>} : vector<64x32xbf16>, vector<32x128xbf16>, vector<64x128xf32> -> vector<64x128xf32>
    %84 = arith.addf %57, %83 : vector<64x128xf32>
    %85 = vector.extract_strided_slice %29 {offsets = [0, 64], sizes = [64, 32], strides = [1, 1]} : vector<64x128xf32> to vector<64x32xf32>
    %86 = arith.truncf %85 : vector<64x32xf32> to vector<64x32xbf16>
    %87 = vector.extract_strided_slice %26 {offsets = [0, 64], sizes = [128, 32], strides = [1, 1]} : vector<128x128xf32> to vector<128x32xf32>
    %88 = arith.truncf %87 : vector<128x32xf32> to vector<128x32xbf16>
    %89 = vector.extract_strided_slice %23 {offsets = [0, 64], sizes = [128, 32], strides = [1, 1]} : vector<128x128xf32> to vector<128x32xf32>
    %90 = arith.truncf %89 : vector<128x32xf32> to vector<128x32xbf16>
    %cst_36 = arith.constant dense<0.000000e+00> : vector<64x128xf32>
    %91 = tpu.matmul %86, %88, %cst_36 {dimension_numbers = #tpu.dot_dimension_numbers<[1], [1], [0], [0], [0, 0, 1, 0], [], []>} : vector<64x32xbf16>, vector<128x32xbf16>, vector<64x128xf32> -> vector<64x128xf32>
    %cst_37 = arith.constant -1.000000e+20 : f32
    %92 = vector.broadcast %cst_37 : f32 to vector<64x128xf32>
    %93 = arith.select %15, %91, %92 : vector<64x128xi1>, vector<64x128xf32>
    %cst_38 = arith.constant 0.0883883461 : f32
    %94 = vector.broadcast %cst_38 : f32 to vector<64x128xf32>
    %95 = arith.mulf %93, %94 : vector<64x128xf32>
    %cst_39 = arith.constant dense<0xFF800000> : vector<64xf32>
    %96 = vector.multi_reduction <maximumf>, %95, %cst_39 [1] : vector<64x128xf32> to vector<64xf32>
    %97 = vector.shape_cast %96 : vector<64xf32> to vector<64x1xf32>
    %98 = vector.broadcast %97 : vector<64x1xf32> to vector<64x128xf32>
    %99 = arith.subf %95, %98 : vector<64x128xf32>
    %100 = math.exp %99 : vector<64x128xf32>
    %cst_40 = arith.constant dense<0.000000e+00> : vector<64xf32>
    %101 = vector.multi_reduction <add>, %100, %cst_40 [1] : vector<64x128xf32> to vector<64xf32>
    %102 = vector.shape_cast %101 : vector<64xf32> to vector<64x1xf32>
    %103 = tpu.reciprocal %102 {approx = true} : vector<64x1xf32> -> vector<64x1xf32>
    %104 = vector.broadcast %103 : vector<64x1xf32> to vector<64x128xf32>
    %105 = arith.mulf %100, %104 : vector<64x128xf32>
    %106 = arith.truncf %105 : vector<64x128xf32> to vector<64x128xbf16>
    %cst_41 = arith.constant dense<0.000000e+00> : vector<64x32xf32>
    %107 = tpu.matmul %106, %90, %cst_41 {dimension_numbers = #tpu.dot_dimension_numbers<[1], [0], [0], [1], [0, 0, 1, 1], [], []>} : vector<64x128xbf16>, vector<128x32xbf16>, vector<64x32xf32> -> vector<64x32xf32>
    %108 = arith.truncf %107 : vector<64x32xf32> to vector<64x32xbf16>
    %c64 = arith.constant 64 : index
    %c0_42 = arith.constant 0 : index
    %109 = vector.load %arg9[%c64, %c0_42] : memref<128x128xbf16, #tpu.memory_space<vmem>>, vector<32x128xbf16>
    %cst_43 = arith.constant dense<0.000000e+00> : vector<64x128xf32>
    %110 = tpu.matmul %108, %109, %cst_43 {dimension_numbers = #tpu.dot_dimension_numbers<[1], [0], [0], [1], [0, 0, 1, 1], [], []>} : vector<64x32xbf16>, vector<32x128xbf16>, vector<64x128xf32> -> vector<64x128xf32>
    %111 = arith.addf %84, %110 : vector<64x128xf32>
    %112 = vector.extract_strided_slice %29 {offsets = [0, 96], sizes = [64, 32], strides = [1, 1]} : vector<64x128xf32> to vector<64x32xf32>
    %113 = arith.truncf %112 : vector<64x32xf32> to vector<64x32xbf16>
    %114 = vector.extract_strided_slice %26 {offsets = [0, 96], sizes = [128, 32], strides = [1, 1]} : vector<128x128xf32> to vector<128x32xf32>
    %115 = arith.truncf %114 : vector<128x32xf32> to vector<128x32xbf16>
    %116 = vector.extract_strided_slice %23 {offsets = [0, 96], sizes = [128, 32], strides = [1, 1]} : vector<128x128xf32> to vector<128x32xf32>
    %117 = arith.truncf %116 : vector<128x32xf32> to vector<128x32xbf16>
    %cst_44 = arith.constant dense<0.000000e+00> : vector<64x128xf32>
    %118 = tpu.matmul %113, %115, %cst_44 {dimension_numbers = #tpu.dot_dimension_numbers<[1], [1], [0], [0], [0, 0, 1, 0], [], []>} : vector<64x32xbf16>, vector<128x32xbf16>, vector<64x128xf32> -> vector<64x128xf32>
    %cst_45 = arith.constant -1.000000e+20 : f32
    %119 = vector.broadcast %cst_45 : f32 to vector<64x128xf32>
    %120 = arith.select %15, %118, %119 : vector<64x128xi1>, vector<64x128xf32>
    %cst_46 = arith.constant 0.0883883461 : f32
    %121 = vector.broadcast %cst_46 : f32 to vector<64x128xf32>
    %122 = arith.mulf %120, %121 : vector<64x128xf32>
    %cst_47 = arith.constant dense<0xFF800000> : vector<64xf32>
    %123 = vector.multi_reduction <maximumf>, %122, %cst_47 [1] : vector<64x128xf32> to vector<64xf32>
    %124 = vector.shape_cast %123 : vector<64xf32> to vector<64x1xf32>
    %125 = vector.broadcast %124 : vector<64x1xf32> to vector<64x128xf32>
    %126 = arith.subf %122, %125 : vector<64x128xf32>
    %127 = math.exp %126 : vector<64x128xf32>
    %cst_48 = arith.constant dense<0.000000e+00> : vector<64xf32>
    %128 = vector.multi_reduction <add>, %127, %cst_48 [1] : vector<64x128xf32> to vector<64xf32>
    %129 = vector.shape_cast %128 : vector<64xf32> to vector<64x1xf32>
    %130 = tpu.reciprocal %129 {approx = true} : vector<64x1xf32> -> vector<64x1xf32>
    %131 = vector.broadcast %130 : vector<64x1xf32> to vector<64x128xf32>
    %132 = arith.mulf %127, %131 : vector<64x128xf32>
    %133 = arith.truncf %132 : vector<64x128xf32> to vector<64x128xbf16>
    %cst_49 = arith.constant dense<0.000000e+00> : vector<64x32xf32>
    %134 = tpu.matmul %133, %117, %cst_49 {dimension_numbers = #tpu.dot_dimension_numbers<[1], [0], [0], [1], [0, 0, 1, 1], [], []>} : vector<64x128xbf16>, vector<128x32xbf16>, vector<64x32xf32> -> vector<64x32xf32>
    %135 = arith.truncf %134 : vector<64x32xf32> to vector<64x32xbf16>
    %c96 = arith.constant 96 : index
    %c0_50 = arith.constant 0 : index
    %136 = vector.load %arg9[%c96, %c0_50] : memref<128x128xbf16, #tpu.memory_space<vmem>>, vector<32x128xbf16>
    %cst_51 = arith.constant dense<0.000000e+00> : vector<64x128xf32>
    %137 = tpu.matmul %135, %136, %cst_51 {dimension_numbers = #tpu.dot_dimension_numbers<[1], [0], [0], [1], [0, 0, 1, 1], [], []>} : vector<64x32xbf16>, vector<32x128xbf16>, vector<64x128xf32> -> vector<64x128xf32>
    %138 = arith.addf %111, %137 : vector<64x128xf32>
    %c0_52 = arith.constant 0 : index
    %c0_53 = arith.constant 0 : index
    %139 = vector.load %arg10[%c0_52, %c0_53] : memref<1x128xf32, #tpu.memory_space<vmem>>, vector<1x128xf32>
    %140 = vector.broadcast %139 : vector<1x128xf32> to vector<64x128xf32>
    %141 = arith.addf %138, %140 : vector<64x128xf32>
    %142 = arith.addf %141, %6 : vector<64x128xf32>
    %cst_54 = arith.constant dense<0.000000e+00> : vector<64xf32>
    %143 = vector.multi_reduction <add>, %142, %cst_54 [1] : vector<64x128xf32> to vector<64xf32>
    %144 = vector.shape_cast %143 : vector<64xf32> to vector<64x1xf32>
    %cst_55 = arith.constant 1.280000e+02 : f32
    %145 = vector.broadcast %cst_55 : f32 to vector<64x1xf32>
    %146 = arith.divf %144, %145 : vector<64x1xf32>
    %147 = vector.broadcast %146 : vector<64x1xf32> to vector<64x128xf32>
    %148 = arith.subf %142, %147 : vector<64x128xf32>
    %149 = arith.mulf %148, %148 : vector<64x128xf32>
    %cst_56 = arith.constant dense<0.000000e+00> : vector<64xf32>
    %150 = vector.multi_reduction <add>, %149, %cst_56 [1] : vector<64x128xf32> to vector<64xf32>
    %151 = vector.shape_cast %150 : vector<64xf32> to vector<64x1xf32>
    %cst_57 = arith.constant 1.280000e+02 : f32
    %152 = vector.broadcast %cst_57 : f32 to vector<64x1xf32>
    %153 = arith.divf %151, %152 : vector<64x1xf32>
    %154 = vector.broadcast %146 : vector<64x1xf32> to vector<64x128xf32>
    %155 = arith.subf %142, %154 : vector<64x128xf32>
    %cst_58 = arith.constant 9.99999974E-6 : f32
    %156 = vector.broadcast %cst_58 : f32 to vector<64x1xf32>
    %157 = arith.addf %153, %156 : vector<64x1xf32>
    %158 = math.rsqrt %157 : vector<64x1xf32>
    %159 = vector.broadcast %158 : vector<64x1xf32> to vector<64x128xf32>
    %160 = arith.mulf %155, %159 : vector<64x128xf32>
    %c0_59 = arith.constant 0 : index
    %c0_60 = arith.constant 0 : index
    %161 = vector.load %arg11[%c0_59, %c0_60] : memref<1x128xf32, #tpu.memory_space<vmem>>, vector<1x128xf32>
    %162 = vector.broadcast %161 : vector<1x128xf32> to vector<64x128xf32>
    %163 = arith.mulf %160, %162 : vector<64x128xf32>
    %c0_61 = arith.constant 0 : index
    %c0_62 = arith.constant 0 : index
    %164 = vector.load %arg12[%c0_61, %c0_62] : memref<1x128xf32, #tpu.memory_space<vmem>>, vector<1x128xf32>
    %165 = vector.broadcast %164 : vector<1x128xf32> to vector<64x128xf32>
    %166 = arith.addf %163, %165 : vector<64x128xf32>
    %167 = arith.truncf %8 : vector<128x128xf32> to vector<128x128xbf16>
    %c0_63 = arith.constant 0 : index
    %c0_64 = arith.constant 0 : index
    %168 = vector.load %arg15[%c0_63, %c0_64] : memref<128x128xbf16, #tpu.memory_space<vmem>>, vector<128x128xbf16>
    %cst_65 = arith.constant dense<0.000000e+00> : vector<128x128xf32>
    %169 = tpu.matmul %167, %168, %cst_65 {dimension_numbers = #tpu.dot_dimension_numbers<[1], [0], [0], [1], [0, 0, 1, 1], [], []>} : vector<128x128xbf16>, vector<128x128xbf16>, vector<128x128xf32> -> vector<128x128xf32>
    %170 = arith.truncf %10 : vector<128x128xf32> to vector<128x128xbf16>
    %c0_66 = arith.constant 0 : index
    %c0_67 = arith.constant 0 : index
    %171 = vector.load %arg14[%c0_66, %c0_67] : memref<128x128xbf16, #tpu.memory_space<vmem>>, vector<128x128xbf16>
    %cst_68 = arith.constant dense<0.000000e+00> : vector<128x128xf32>
    %172 = tpu.matmul %170, %171, %cst_68 {dimension_numbers = #tpu.dot_dimension_numbers<[1], [0], [0], [1], [0, 0, 1, 1], [], []>} : vector<128x128xbf16>, vector<128x128xbf16>, vector<128x128xf32> -> vector<128x128xf32>
    %173 = arith.truncf %166 : vector<64x128xf32> to vector<64x128xbf16>
    %c0_69 = arith.constant 0 : index
    %c0_70 = arith.constant 0 : index
    %174 = vector.load %arg13[%c0_69, %c0_70] : memref<128x128xbf16, #tpu.memory_space<vmem>>, vector<128x128xbf16>
    %cst_71 = arith.constant dense<0.000000e+00> : vector<64x128xf32>
    %175 = tpu.matmul %173, %174, %cst_71 {dimension_numbers = #tpu.dot_dimension_numbers<[1], [0], [0], [1], [0, 0, 1, 1], [], []>} : vector<64x128xbf16>, vector<128x128xbf16>, vector<64x128xf32> -> vector<64x128xf32>
    %cst_72 = arith.constant 0.000000e+00 : f32
    %176 = vector.broadcast %cst_72 : f32 to vector<64x128xf32>
    %177 = vector.extract_strided_slice %175 {offsets = [0, 0], sizes = [64, 32], strides = [1, 1]} : vector<64x128xf32> to vector<64x32xf32>
    %178 = arith.truncf %177 : vector<64x32xf32> to vector<64x32xbf16>
    %179 = vector.extract_strided_slice %172 {offsets = [0, 0], sizes = [128, 32], strides = [1, 1]} : vector<128x128xf32> to vector<128x32xf32>
    %180 = arith.truncf %179 : vector<128x32xf32> to vector<128x32xbf16>
    %181 = vector.extract_strided_slice %169 {offsets = [0, 0], sizes = [128, 32], strides = [1, 1]} : vector<128x128xf32> to vector<128x32xf32>
    %182 = arith.truncf %181 : vector<128x32xf32> to vector<128x32xbf16>
    %cst_73 = arith.constant dense<0.000000e+00> : vector<64x128xf32>
    %183 = tpu.matmul %178, %180, %cst_73 {dimension_numbers = #tpu.dot_dimension_numbers<[1], [1], [0], [0], [0, 0, 1, 0], [], []>} : vector<64x32xbf16>, vector<128x32xbf16>, vector<64x128xf32> -> vector<64x128xf32>
    %cst_74 = arith.constant -1.000000e+20 : f32
    %184 = vector.broadcast %cst_74 : f32 to vector<64x128xf32>
    %185 = arith.select %20, %183, %184 : vector<64x128xi1>, vector<64x128xf32>
    %cst_75 = arith.constant 0.0883883461 : f32
    %186 = vector.broadcast %cst_75 : f32 to vector<64x128xf32>
    %187 = arith.mulf %185, %186 : vector<64x128xf32>
    %cst_76 = arith.constant dense<0xFF800000> : vector<64xf32>
    %188 = vector.multi_reduction <maximumf>, %187, %cst_76 [1] : vector<64x128xf32> to vector<64xf32>
    %189 = vector.shape_cast %188 : vector<64xf32> to vector<64x1xf32>
    %190 = vector.broadcast %189 : vector<64x1xf32> to vector<64x128xf32>
    %191 = arith.subf %187, %190 : vector<64x128xf32>
    %192 = math.exp %191 : vector<64x128xf32>
    %cst_77 = arith.constant dense<0.000000e+00> : vector<64xf32>
    %193 = vector.multi_reduction <add>, %192, %cst_77 [1] : vector<64x128xf32> to vector<64xf32>
    %194 = vector.shape_cast %193 : vector<64xf32> to vector<64x1xf32>
    %195 = tpu.reciprocal %194 {approx = true} : vector<64x1xf32> -> vector<64x1xf32>
    %196 = vector.broadcast %195 : vector<64x1xf32> to vector<64x128xf32>
    %197 = arith.mulf %192, %196 : vector<64x128xf32>
    %198 = arith.truncf %197 : vector<64x128xf32> to vector<64x128xbf16>
    %cst_78 = arith.constant dense<0.000000e+00> : vector<64x32xf32>
    %199 = tpu.matmul %198, %182, %cst_78 {dimension_numbers = #tpu.dot_dimension_numbers<[1], [0], [0], [1], [0, 0, 1, 1], [], []>} : vector<64x128xbf16>, vector<128x32xbf16>, vector<64x32xf32> -> vector<64x32xf32>
    %200 = arith.truncf %199 : vector<64x32xf32> to vector<64x32xbf16>
    %c0_79 = arith.constant 0 : index
    %c0_80 = arith.constant 0 : index
    %201 = vector.load %arg16[%c0_79, %c0_80] : memref<128x128xbf16, #tpu.memory_space<vmem>>, vector<32x128xbf16>
    %cst_81 = arith.constant dense<0.000000e+00> : vector<64x128xf32>
    %202 = tpu.matmul %200, %201, %cst_81 {dimension_numbers = #tpu.dot_dimension_numbers<[1], [0], [0], [1], [0, 0, 1, 1], [], []>} : vector<64x32xbf16>, vector<32x128xbf16>, vector<64x128xf32> -> vector<64x128xf32>
    %203 = arith.addf %176, %202 : vector<64x128xf32>
    %204 = vector.extract_strided_slice %175 {offsets = [0, 32], sizes = [64, 32], strides = [1, 1]} : vector<64x128xf32> to vector<64x32xf32>
    %205 = arith.truncf %204 : vector<64x32xf32> to vector<64x32xbf16>
    %206 = vector.extract_strided_slice %172 {offsets = [0, 32], sizes = [128, 32], strides = [1, 1]} : vector<128x128xf32> to vector<128x32xf32>
    %207 = arith.truncf %206 : vector<128x32xf32> to vector<128x32xbf16>
    %208 = vector.extract_strided_slice %169 {offsets = [0, 32], sizes = [128, 32], strides = [1, 1]} : vector<128x128xf32> to vector<128x32xf32>
    %209 = arith.truncf %208 : vector<128x32xf32> to vector<128x32xbf16>
    %cst_82 = arith.constant dense<0.000000e+00> : vector<64x128xf32>
    %210 = tpu.matmul %205, %207, %cst_82 {dimension_numbers = #tpu.dot_dimension_numbers<[1], [1], [0], [0], [0, 0, 1, 0], [], []>} : vector<64x32xbf16>, vector<128x32xbf16>, vector<64x128xf32> -> vector<64x128xf32>
    %cst_83 = arith.constant -1.000000e+20 : f32
    %211 = vector.broadcast %cst_83 : f32 to vector<64x128xf32>
    %212 = arith.select %20, %210, %211 : vector<64x128xi1>, vector<64x128xf32>
    %cst_84 = arith.constant 0.0883883461 : f32
    %213 = vector.broadcast %cst_84 : f32 to vector<64x128xf32>
    %214 = arith.mulf %212, %213 : vector<64x128xf32>
    %cst_85 = arith.constant dense<0xFF800000> : vector<64xf32>
    %215 = vector.multi_reduction <maximumf>, %214, %cst_85 [1] : vector<64x128xf32> to vector<64xf32>
    %216 = vector.shape_cast %215 : vector<64xf32> to vector<64x1xf32>
    %217 = vector.broadcast %216 : vector<64x1xf32> to vector<64x128xf32>
    %218 = arith.subf %214, %217 : vector<64x128xf32>
    %219 = math.exp %218 : vector<64x128xf32>
    %cst_86 = arith.constant dense<0.000000e+00> : vector<64xf32>
    %220 = vector.multi_reduction <add>, %219, %cst_86 [1] : vector<64x128xf32> to vector<64xf32>
    %221 = vector.shape_cast %220 : vector<64xf32> to vector<64x1xf32>
    %222 = tpu.reciprocal %221 {approx = true} : vector<64x1xf32> -> vector<64x1xf32>
    %223 = vector.broadcast %222 : vector<64x1xf32> to vector<64x128xf32>
    %224 = arith.mulf %219, %223 : vector<64x128xf32>
    %225 = arith.truncf %224 : vector<64x128xf32> to vector<64x128xbf16>
    %cst_87 = arith.constant dense<0.000000e+00> : vector<64x32xf32>
    %226 = tpu.matmul %225, %209, %cst_87 {dimension_numbers = #tpu.dot_dimension_numbers<[1], [0], [0], [1], [0, 0, 1, 1], [], []>} : vector<64x128xbf16>, vector<128x32xbf16>, vector<64x32xf32> -> vector<64x32xf32>
    %227 = arith.truncf %226 : vector<64x32xf32> to vector<64x32xbf16>
    %c32_88 = arith.constant 32 : index
    %c0_89 = arith.constant 0 : index
    %228 = vector.load %arg16[%c32_88, %c0_89] : memref<128x128xbf16, #tpu.memory_space<vmem>>, vector<32x128xbf16>
    %cst_90 = arith.constant dense<0.000000e+00> : vector<64x128xf32>
    %229 = tpu.matmul %227, %228, %cst_90 {dimension_numbers = #tpu.dot_dimension_numbers<[1], [0], [0], [1], [0, 0, 1, 1], [], []>} : vector<64x32xbf16>, vector<32x128xbf16>, vector<64x128xf32> -> vector<64x128xf32>
    %230 = arith.addf %203, %229 : vector<64x128xf32>
    %231 = vector.extract_strided_slice %175 {offsets = [0, 64], sizes = [64, 32], strides = [1, 1]} : vector<64x128xf32> to vector<64x32xf32>
    %232 = arith.truncf %231 : vector<64x32xf32> to vector<64x32xbf16>
    %233 = vector.extract_strided_slice %172 {offsets = [0, 64], sizes = [128, 32], strides = [1, 1]} : vector<128x128xf32> to vector<128x32xf32>
    %234 = arith.truncf %233 : vector<128x32xf32> to vector<128x32xbf16>
    %235 = vector.extract_strided_slice %169 {offsets = [0, 64], sizes = [128, 32], strides = [1, 1]} : vector<128x128xf32> to vector<128x32xf32>
    %236 = arith.truncf %235 : vector<128x32xf32> to vector<128x32xbf16>
    %cst_91 = arith.constant dense<0.000000e+00> : vector<64x128xf32>
    %237 = tpu.matmul %232, %234, %cst_91 {dimension_numbers = #tpu.dot_dimension_numbers<[1], [1], [0], [0], [0, 0, 1, 0], [], []>} : vector<64x32xbf16>, vector<128x32xbf16>, vector<64x128xf32> -> vector<64x128xf32>
    %cst_92 = arith.constant -1.000000e+20 : f32
    %238 = vector.broadcast %cst_92 : f32 to vector<64x128xf32>
    %239 = arith.select %20, %237, %238 : vector<64x128xi1>, vector<64x128xf32>
    %cst_93 = arith.constant 0.0883883461 : f32
    %240 = vector.broadcast %cst_93 : f32 to vector<64x128xf32>
    %241 = arith.mulf %239, %240 : vector<64x128xf32>
    %cst_94 = arith.constant dense<0xFF800000> : vector<64xf32>
    %242 = vector.multi_reduction <maximumf>, %241, %cst_94 [1] : vector<64x128xf32> to vector<64xf32>
    %243 = vector.shape_cast %242 : vector<64xf32> to vector<64x1xf32>
    %244 = vector.broadcast %243 : vector<64x1xf32> to vector<64x128xf32>
    %245 = arith.subf %241, %244 : vector<64x128xf32>
    %246 = math.exp %245 : vector<64x128xf32>
    %cst_95 = arith.constant dense<0.000000e+00> : vector<64xf32>
    %247 = vector.multi_reduction <add>, %246, %cst_95 [1] : vector<64x128xf32> to vector<64xf32>
    %248 = vector.shape_cast %247 : vector<64xf32> to vector<64x1xf32>
    %249 = tpu.reciprocal %248 {approx = true} : vector<64x1xf32> -> vector<64x1xf32>
    %250 = vector.broadcast %249 : vector<64x1xf32> to vector<64x128xf32>
    %251 = arith.mulf %246, %250 : vector<64x128xf32>
    %252 = arith.truncf %251 : vector<64x128xf32> to vector<64x128xbf16>
    %cst_96 = arith.constant dense<0.000000e+00> : vector<64x32xf32>
    %253 = tpu.matmul %252, %236, %cst_96 {dimension_numbers = #tpu.dot_dimension_numbers<[1], [0], [0], [1], [0, 0, 1, 1], [], []>} : vector<64x128xbf16>, vector<128x32xbf16>, vector<64x32xf32> -> vector<64x32xf32>
    %254 = arith.truncf %253 : vector<64x32xf32> to vector<64x32xbf16>
    %c64_97 = arith.constant 64 : index
    %c0_98 = arith.constant 0 : index
    %255 = vector.load %arg16[%c64_97, %c0_98] : memref<128x128xbf16, #tpu.memory_space<vmem>>, vector<32x128xbf16>
    %cst_99 = arith.constant dense<0.000000e+00> : vector<64x128xf32>
    %256 = tpu.matmul %254, %255, %cst_99 {dimension_numbers = #tpu.dot_dimension_numbers<[1], [0], [0], [1], [0, 0, 1, 1], [], []>} : vector<64x32xbf16>, vector<32x128xbf16>, vector<64x128xf32> -> vector<64x128xf32>
    %257 = arith.addf %230, %256 : vector<64x128xf32>
    %258 = vector.extract_strided_slice %175 {offsets = [0, 96], sizes = [64, 32], strides = [1, 1]} : vector<64x128xf32> to vector<64x32xf32>
    %259 = arith.truncf %258 : vector<64x32xf32> to vector<64x32xbf16>
    %260 = vector.extract_strided_slice %172 {offsets = [0, 96], sizes = [128, 32], strides = [1, 1]} : vector<128x128xf32> to vector<128x32xf32>
    %261 = arith.truncf %260 : vector<128x32xf32> to vector<128x32xbf16>
    %262 = vector.extract_strided_slice %169 {offsets = [0, 96], sizes = [128, 32], strides = [1, 1]} : vector<128x128xf32> to vector<128x32xf32>
    %263 = arith.truncf %262 : vector<128x32xf32> to vector<128x32xbf16>
    %cst_100 = arith.constant dense<0.000000e+00> : vector<64x128xf32>
    %264 = tpu.matmul %259, %261, %cst_100 {dimension_numbers = #tpu.dot_dimension_numbers<[1], [1], [0], [0], [0, 0, 1, 0], [], []>} : vector<64x32xbf16>, vector<128x32xbf16>, vector<64x128xf32> -> vector<64x128xf32>
    %cst_101 = arith.constant -1.000000e+20 : f32
    %265 = vector.broadcast %cst_101 : f32 to vector<64x128xf32>
    %266 = arith.select %20, %264, %265 : vector<64x128xi1>, vector<64x128xf32>
    %cst_102 = arith.constant 0.0883883461 : f32
    %267 = vector.broadcast %cst_102 : f32 to vector<64x128xf32>
    %268 = arith.mulf %266, %267 : vector<64x128xf32>
    %cst_103 = arith.constant dense<0xFF800000> : vector<64xf32>
    %269 = vector.multi_reduction <maximumf>, %268, %cst_103 [1] : vector<64x128xf32> to vector<64xf32>
    %270 = vector.shape_cast %269 : vector<64xf32> to vector<64x1xf32>
    %271 = vector.broadcast %270 : vector<64x1xf32> to vector<64x128xf32>
    %272 = arith.subf %268, %271 : vector<64x128xf32>
    %273 = math.exp %272 : vector<64x128xf32>
    %cst_104 = arith.constant dense<0.000000e+00> : vector<64xf32>
    %274 = vector.multi_reduction <add>, %273, %cst_104 [1] : vector<64x128xf32> to vector<64xf32>
    %275 = vector.shape_cast %274 : vector<64xf32> to vector<64x1xf32>
    %276 = tpu.reciprocal %275 {approx = true} : vector<64x1xf32> -> vector<64x1xf32>
    %277 = vector.broadcast %276 : vector<64x1xf32> to vector<64x128xf32>
    %278 = arith.mulf %273, %277 : vector<64x128xf32>
    %279 = arith.truncf %278 : vector<64x128xf32> to vector<64x128xbf16>
    %cst_105 = arith.constant dense<0.000000e+00> : vector<64x32xf32>
    %280 = tpu.matmul %279, %263, %cst_105 {dimension_numbers = #tpu.dot_dimension_numbers<[1], [0], [0], [1], [0, 0, 1, 1], [], []>} : vector<64x128xbf16>, vector<128x32xbf16>, vector<64x32xf32> -> vector<64x32xf32>
    %281 = arith.truncf %280 : vector<64x32xf32> to vector<64x32xbf16>
    %c96_106 = arith.constant 96 : index
    %c0_107 = arith.constant 0 : index
    %282 = vector.load %arg16[%c96_106, %c0_107] : memref<128x128xbf16, #tpu.memory_space<vmem>>, vector<32x128xbf16>
    %cst_108 = arith.constant dense<0.000000e+00> : vector<64x128xf32>
    %283 = tpu.matmul %281, %282, %cst_108 {dimension_numbers = #tpu.dot_dimension_numbers<[1], [0], [0], [1], [0, 0, 1, 1], [], []>} : vector<64x32xbf16>, vector<32x128xbf16>, vector<64x128xf32> -> vector<64x128xf32>
    %284 = arith.addf %257, %283 : vector<64x128xf32>
    %c0_109 = arith.constant 0 : index
    %c0_110 = arith.constant 0 : index
    %285 = vector.load %arg17[%c0_109, %c0_110] : memref<1x128xf32, #tpu.memory_space<vmem>>, vector<1x128xf32>
    %286 = vector.broadcast %285 : vector<1x128xf32> to vector<64x128xf32>
    %287 = arith.addf %284, %286 : vector<64x128xf32>
    %288 = arith.addf %287, %166 : vector<64x128xf32>
    %cst_111 = arith.constant dense<0.000000e+00> : vector<64xf32>
    %289 = vector.multi_reduction <add>, %288, %cst_111 [1] : vector<64x128xf32> to vector<64xf32>
    %290 = vector.shape_cast %289 : vector<64xf32> to vector<64x1xf32>
    %cst_112 = arith.constant 1.280000e+02 : f32
    %291 = vector.broadcast %cst_112 : f32 to vector<64x1xf32>
    %292 = arith.divf %290, %291 : vector<64x1xf32>
    %293 = vector.broadcast %292 : vector<64x1xf32> to vector<64x128xf32>
    %294 = arith.subf %288, %293 : vector<64x128xf32>
    %295 = arith.mulf %294, %294 : vector<64x128xf32>
    %cst_113 = arith.constant dense<0.000000e+00> : vector<64xf32>
    %296 = vector.multi_reduction <add>, %295, %cst_113 [1] : vector<64x128xf32> to vector<64xf32>
    %297 = vector.shape_cast %296 : vector<64xf32> to vector<64x1xf32>
    %cst_114 = arith.constant 1.280000e+02 : f32
    %298 = vector.broadcast %cst_114 : f32 to vector<64x1xf32>
    %299 = arith.divf %297, %298 : vector<64x1xf32>
    %300 = vector.broadcast %292 : vector<64x1xf32> to vector<64x128xf32>
    %301 = arith.subf %288, %300 : vector<64x128xf32>
    %cst_115 = arith.constant 9.99999974E-6 : f32
    %302 = vector.broadcast %cst_115 : f32 to vector<64x1xf32>
    %303 = arith.addf %299, %302 : vector<64x1xf32>
    %304 = math.rsqrt %303 : vector<64x1xf32>
    %305 = vector.broadcast %304 : vector<64x1xf32> to vector<64x128xf32>
    %306 = arith.mulf %301, %305 : vector<64x128xf32>
    %c0_116 = arith.constant 0 : index
    %c0_117 = arith.constant 0 : index
    %307 = vector.load %arg18[%c0_116, %c0_117] : memref<1x128xf32, #tpu.memory_space<vmem>>, vector<1x128xf32>
    %308 = vector.broadcast %307 : vector<1x128xf32> to vector<64x128xf32>
    %309 = arith.mulf %306, %308 : vector<64x128xf32>
    %c0_118 = arith.constant 0 : index
    %c0_119 = arith.constant 0 : index
    %310 = vector.load %arg19[%c0_118, %c0_119] : memref<1x128xf32, #tpu.memory_space<vmem>>, vector<1x128xf32>
    %311 = vector.broadcast %310 : vector<1x128xf32> to vector<64x128xf32>
    %312 = arith.addf %309, %311 : vector<64x128xf32>
    %313 = arith.truncf %312 : vector<64x128xf32> to vector<64x128xbf16>
    %c0_120 = arith.constant 0 : index
    %c0_121 = arith.constant 0 : index
    %314 = vector.load %arg20[%c0_120, %c0_121] : memref<128x512xbf16, #tpu.memory_space<vmem>>, vector<128x512xbf16>
    %cst_122 = arith.constant dense<0.000000e+00> : vector<64x512xf32>
    %315 = tpu.matmul %313, %314, %cst_122 {dimension_numbers = #tpu.dot_dimension_numbers<[1], [0], [0], [1], [0, 0, 1, 1], [], []>} : vector<64x128xbf16>, vector<128x512xbf16>, vector<64x512xf32> -> vector<64x512xf32>
    %c0_123 = arith.constant 0 : index
    %c0_124 = arith.constant 0 : index
    %316 = vector.load %arg21[%c0_123, %c0_124] : memref<1x512xf32, #tpu.memory_space<vmem>>, vector<1x512xf32>
    %317 = vector.broadcast %316 : vector<1x512xf32> to vector<64x512xf32>
    %318 = arith.addf %315, %317 : vector<64x512xf32>
    %cst_125 = arith.constant 0.000000e+00 : f32
    %319 = vector.broadcast %cst_125 : f32 to vector<64x512xf32>
    %320 = arith.maximumf %318, %319 : vector<64x512xf32>
    %321 = arith.truncf %320 : vector<64x512xf32> to vector<64x512xbf16>
    %c0_126 = arith.constant 0 : index
    %c0_127 = arith.constant 0 : index
    %322 = vector.load %arg22[%c0_126, %c0_127] : memref<512x128xbf16, #tpu.memory_space<vmem>>, vector<512x128xbf16>
    %cst_128 = arith.constant dense<0.000000e+00> : vector<64x128xf32>
    %323 = tpu.matmul %321, %322, %cst_128 {dimension_numbers = #tpu.dot_dimension_numbers<[1], [0], [0], [1], [0, 0, 1, 1], [], []>} : vector<64x512xbf16>, vector<512x128xbf16>, vector<64x128xf32> -> vector<64x128xf32>
    %c0_129 = arith.constant 0 : index
    %c0_130 = arith.constant 0 : index
    %324 = vector.load %arg23[%c0_129, %c0_130] : memref<1x128xf32, #tpu.memory_space<vmem>>, vector<1x128xf32>
    %325 = vector.broadcast %324 : vector<1x128xf32> to vector<64x128xf32>
    %326 = arith.addf %323, %325 : vector<64x128xf32>
    %327 = arith.addf %326, %312 : vector<64x128xf32>
    %cst_131 = arith.constant dense<0.000000e+00> : vector<64xf32>
    %328 = vector.multi_reduction <add>, %327, %cst_131 [1] : vector<64x128xf32> to vector<64xf32>
    %329 = vector.shape_cast %328 : vector<64xf32> to vector<64x1xf32>
    %cst_132 = arith.constant 1.280000e+02 : f32
    %330 = vector.broadcast %cst_132 : f32 to vector<64x1xf32>
    %331 = arith.divf %329, %330 : vector<64x1xf32>
    %332 = vector.broadcast %331 : vector<64x1xf32> to vector<64x128xf32>
    %333 = arith.subf %327, %332 : vector<64x128xf32>
    %334 = arith.mulf %333, %333 : vector<64x128xf32>
    %cst_133 = arith.constant dense<0.000000e+00> : vector<64xf32>
    %335 = vector.multi_reduction <add>, %334, %cst_133 [1] : vector<64x128xf32> to vector<64xf32>
    %336 = vector.shape_cast %335 : vector<64xf32> to vector<64x1xf32>
    %cst_134 = arith.constant 1.280000e+02 : f32
    %337 = vector.broadcast %cst_134 : f32 to vector<64x1xf32>
    %338 = arith.divf %336, %337 : vector<64x1xf32>
    %339 = vector.broadcast %331 : vector<64x1xf32> to vector<64x128xf32>
    %340 = arith.subf %327, %339 : vector<64x128xf32>
    %cst_135 = arith.constant 9.99999974E-6 : f32
    %341 = vector.broadcast %cst_135 : f32 to vector<64x1xf32>
    %342 = arith.addf %338, %341 : vector<64x1xf32>
    %343 = math.rsqrt %342 : vector<64x1xf32>
    %344 = vector.broadcast %343 : vector<64x1xf32> to vector<64x128xf32>
    %345 = arith.mulf %340, %344 : vector<64x128xf32>
    %c0_136 = arith.constant 0 : index
    %c0_137 = arith.constant 0 : index
    %346 = vector.load %arg24[%c0_136, %c0_137] : memref<1x128xf32, #tpu.memory_space<vmem>>, vector<1x128xf32>
    %347 = vector.broadcast %346 : vector<1x128xf32> to vector<64x128xf32>
    %348 = arith.mulf %345, %347 : vector<64x128xf32>
    %c0_138 = arith.constant 0 : index
    %c0_139 = arith.constant 0 : index
    %349 = vector.load %arg25[%c0_138, %c0_139] : memref<1x128xf32, #tpu.memory_space<vmem>>, vector<1x128xf32>
    %350 = vector.broadcast %349 : vector<1x128xf32> to vector<64x128xf32>
    %351 = arith.addf %348, %350 : vector<64x128xf32>
    %c0_140 = arith.constant 0 : index
    %c0_141 = arith.constant 0 : index
    %c0_142 = arith.constant 0 : index
    %352 = vector.load %arg26[%c0_140, %c0_141, %c0_142] : memref<1x64x128xf32, #tpu.memory_space<vmem>>, vector<1x64x128xf32>
    %353 = vector.shape_cast %352 : vector<1x64x128xf32> to vector<64x128xf32>
    %354 = vector.shape_cast %351 : vector<64x128xf32> to vector<1x64x128xf32>
    tpu.vector_store %arg26[%c0_140, %c0_141, %c0_142], %354 {strides = array<i32>} : memref<1x64x128xf32, #tpu.memory_space<vmem>>, vector<1x64x128xf32>,
    return
  }
  func.func @transform_0(%arg0: i32, %arg1: i32, %arg2: memref<2xi32, #tpu.memory_space<smem>>) -> (i32, i32, i32) {
    %c0_i32 = arith.constant 0 : i32
    %c0_i32_0 = arith.constant 0 : i32
    %c0_i32_1 = arith.constant 0 : i32
    return %arg0, %c0_i32, %c0_i32_0 : i32, i32, i32
  }
  func.func @transform_1(%arg0: i32, %arg1: i32, %arg2: memref<2xi32, #tpu.memory_space<smem>>) -> (i32, i32, i32) {
    %c0_i32 = arith.constant 0 : i32
    %c0_i32_0 = arith.constant 0 : i32
    %c0_i32_1 = arith.constant 0 : i32
    return %arg0, %c0_i32, %c0_i32_0 : i32, i32, i32
  }
  func.func @transform_2(%arg0: i32, %arg1: i32, %arg2: memref<2xi32, #tpu.memory_space<smem>>) -> (i32, i32, i32) {
    %c0_i32 = arith.constant 0 : i32
    %c0_i32_0 = arith.constant 0 : i32
    %c0_i32_1 = arith.constant 0 : i32
    return %arg0, %c0_i32, %c0_i32_0 : i32, i32, i32
  }
  func.func @transform_3(%arg0: i32, %arg1: i32, %arg2: memref<2xi32, #tpu.memory_space<smem>>) -> (i32, i32) {
    %c0_i32 = arith.constant 0 : i32
    %c0_i32_0 = arith.constant 0 : i32
    %c0_i32_1 = arith.constant 0 : i32
    return %c0_i32, %c0_i32_0 : i32, i32
  }
  func.func @transform_4(%arg0: i32, %arg1: i32, %arg2: memref<2xi32, #tpu.memory_space<smem>>) -> (i32, i32) {
    %c0_i32 = arith.constant 0 : i32
    %c0_i32_0 = arith.constant 0 : i32
    %c0_i32_1 = arith.constant 0 : i32
    return %c0_i32, %c0_i32_0 : i32, i32
  }
  func.func @transform_5(%arg0: i32, %arg1: i32, %arg2: memref<2xi32, #tpu.memory_space<smem>>) -> (i32, i32) {
    %c0_i32 = arith.constant 0 : i32
    %c0_i32_0 = arith.constant 0 : i32
    %c0_i32_1 = arith.constant 0 : i32
    return %c0_i32, %c0_i32_0 : i32, i32
  }
  func.func @transform_6(%arg0: i32, %arg1: i32, %arg2: memref<2xi32, #tpu.memory_space<smem>>) -> (i32, i32) {
    %c0_i32 = arith.constant 0 : i32
    %c0_i32_0 = arith.constant 0 : i32
    %c0_i32_1 = arith.constant 0 : i32
    return %c0_i32, %c0_i32_0 : i32, i32
  }
  func.func @transform_7(%arg0: i32, %arg1: i32, %arg2: memref<2xi32, #tpu.memory_space<smem>>) -> (i32, i32) {
    %c0_i32 = arith.constant 0 : i32
    %c0_i32_0 = arith.constant 0 : i32
    %c0_i32_1 = arith.constant 0 : i32
    return %c0_i32, %c0_i32_0 : i32, i32
  }
  func.func @transform_8(%arg0: i32, %arg1: i32, %arg2: memref<2xi32, #tpu.memory_space<smem>>) -> (i32, i32) {
    %c0_i32 = arith.constant 0 : i32
    %c0_i32_0 = arith.constant 0 : i32
    %c0_i32_1 = arith.constant 0 : i32
    return %c0_i32, %c0_i32_0 : i32, i32
  }
  func.func @transform_9(%arg0: i32, %arg1: i32, %arg2: memref<2xi32, #tpu.memory_space<smem>>) -> (i32, i32) {
    %c0_i32 = arith.constant 0 : i32
    %c0_i32_0 = arith.constant 0 : i32
    %c0_i32_1 = arith.constant 0 : i32
    return %c0_i32, %c0_i32_0 : i32, i32
  }
  func.func @transform_10(%arg0: i32, %arg1: i32, %arg2: memref<2xi32, #tpu.memory_space<smem>>) -> (i32, i32) {
    %c0_i32 = arith.constant 0 : i32
    %c0_i32_0 = arith.constant 0 : i32
    %c0_i32_1 = arith.constant 0 : i32
    return %c0_i32, %c0_i32_0 : i32, i32
  }
  func.func @transform_11(%arg0: i32, %arg1: i32, %arg2: memref<2xi32, #tpu.memory_space<smem>>) -> (i32, i32) {
    %c0_i32 = arith.constant 0 : i32
    %c0_i32_0 = arith.constant 0 : i32
    %c0_i32_1 = arith.constant 0 : i32
    return %c0_i32, %c0_i32_0 : i32, i32
  }
  func.func @transform_12(%arg0: i32, %arg1: i32, %arg2: memref<2xi32, #tpu.memory_space<smem>>) -> (i32, i32) {
    %c0_i32 = arith.constant 0 : i32
    %c0_i32_0 = arith.constant 0 : i32
    %c0_i32_1 = arith.constant 0 : i32
    return %c0_i32, %c0_i32_0 : i32, i32
  }
  func.func @transform_13(%arg0: i32, %arg1: i32, %arg2: memref<2xi32, #tpu.memory_space<smem>>) -> (i32, i32) {
    %c0_i32 = arith.constant 0 : i32
    %c0_i32_0 = arith.constant 0 : i32
    %c0_i32_1 = arith.constant 0 : i32
    return %c0_i32, %c0_i32_0 : i32, i32
  }
  func.func @transform_14(%arg0: i32, %arg1: i32, %arg2: memref<2xi32, #tpu.memory_space<smem>>) -> (i32, i32) {
    %c0_i32 = arith.constant 0 : i32
    %c0_i32_0 = arith.constant 0 : i32
    %c0_i32_1 = arith.constant 0 : i32
    return %c0_i32, %c0_i32_0 : i32, i32
  }
  func.func @transform_15(%arg0: i32, %arg1: i32, %arg2: memref<2xi32, #tpu.memory_space<smem>>) -> (i32, i32) {
    %c0_i32 = arith.constant 0 : i32
    %c0_i32_0 = arith.constant 0 : i32
    %c0_i32_1 = arith.constant 0 : i32
    return %c0_i32, %c0_i32_0 : i32, i32
  }
  func.func @transform_16(%arg0: i32, %arg1: i32, %arg2: memref<2xi32, #tpu.memory_space<smem>>) -> (i32, i32) {
    %c0_i32 = arith.constant 0 : i32
    %c0_i32_0 = arith.constant 0 : i32
    %c0_i32_1 = arith.constant 0 : i32
    return %c0_i32, %c0_i32_0 : i32, i32
  }
  func.func @transform_17(%arg0: i32, %arg1: i32, %arg2: memref<2xi32, #tpu.memory_space<smem>>) -> (i32, i32) {
    %c0_i32 = arith.constant 0 : i32
    %c0_i32_0 = arith.constant 0 : i32
    %c0_i32_1 = arith.constant 0 : i32
    return %c0_i32, %c0_i32_0 : i32, i32
  }
  func.func @transform_18(%arg0: i32, %arg1: i32, %arg2: memref<2xi32, #tpu.memory_space<smem>>) -> (i32, i32) {
    %c0_i32 = arith.constant 0 : i32
    %c0_i32_0 = arith.constant 0 : i32
    %c0_i32_1 = arith.constant 0 : i32
    return %c0_i32, %c0_i32_0 : i32, i32
  }
  func.func @transform_19(%arg0: i32, %arg1: i32, %arg2: memref<2xi32, #tpu.memory_space<smem>>) -> (i32, i32) {
    %c0_i32 = arith.constant 0 : i32
    %c0_i32_0 = arith.constant 0 : i32
    %c0_i32_1 = arith.constant 0 : i32
    return %c0_i32, %c0_i32_0 : i32, i32
  }
  func.func @transform_20(%arg0: i32, %arg1: i32, %arg2: memref<2xi32, #tpu.memory_space<smem>>) -> (i32, i32) {
    %c0_i32 = arith.constant 0 : i32
    %c0_i32_0 = arith.constant 0 : i32
    %c0_i32_1 = arith.constant 0 : i32
    return %c0_i32, %c0_i32_0 : i32, i32
  }
  func.func @transform_21(%arg0: i32, %arg1: i32, %arg2: memref<2xi32, #tpu.memory_space<smem>>) -> (i32, i32) {
    %c0_i32 = arith.constant 0 : i32
    %c0_i32_0 = arith.constant 0 : i32
    %c0_i32_1 = arith.constant 0 : i32
    return %c0_i32, %c0_i32_0 : i32, i32
  }
  func.func @transform_22(%arg0: i32, %arg1: i32, %arg2: memref<2xi32, #tpu.memory_space<smem>>) -> (i32, i32) {
    %c0_i32 = arith.constant 0 : i32
    %c0_i32_0 = arith.constant 0 : i32
    %c0_i32_1 = arith.constant 0 : i32
    return %c0_i32, %c0_i32_0 : i32, i32
  }
  func.func @transform_23(%arg0: i32, %arg1: i32, %arg2: memref<2xi32, #tpu.memory_space<smem>>) -> (i32, i32, i32) {
    %c0_i32 = arith.constant 0 : i32
    %c0_i32_0 = arith.constant 0 : i32
    return %arg0, %arg1, %c0_i32 : i32, i32, i32
  }
}

</mosaic_0001>

<llo_original>
// kernel: tpu_custom_call.1
$region0: #{tpu_custom_call.1}
  #allocation0 [shape = 'u32[]', space=smem, size = 0x4, offset = 0x4, fixed_abs, tag = 'smem constant byte address 0x4 - core index']
  #allocation1 [shape = 'u32[144,128]{1,0:T(1,128)}', space=vmem, size = 0x12000, scoped, tag = 'internal scratch']
  #allocation2 [shape = 's32[1]{0}', space=sflag, size = 0x4, scoped, tag = 'scoped memory for tpu_custom_call.1']
  #allocation3 [shape = 'u8[512]{0}', space=smem, size = 0x200, scoped, tag = 'prefetched SMEM operand 0']
  %s0 = inlined_call_operand.hbm [shape: s32[2], index: 0, kind: input, shape index: {}]
  %s1 = inlined_call_operand.hbm [shape: f32[2,128,128], index: 1, kind: input, shape index: {}]
  %s2 = inlined_call_operand.hbm [shape: f32[2,128,128], index: 2, kind: input, shape index: {}]
  %s3 = inlined_call_operand.hbm [shape: f32[2,128,128], index: 3, kind: input, shape index: {}]
  %s4 = inlined_call_operand.hbm [shape: bf16[128,128], index: 4, kind: input, shape index: {}]
  %s5 = inlined_call_operand.hbm [shape: bf16[128,128], index: 5, kind: input, shape index: {}]
  %s6 = inlined_call_operand.hbm [shape: bf16[128,128], index: 6, kind: input, shape index: {}]
  %s7 = inlined_call_operand.hbm [shape: bf16[128,128], index: 7, kind: input, shape index: {}]
  %s8 = inlined_call_operand.vmem [shape: f32[1,128], index: 8, kind: input, shape index: {}]
  %s9 = inlined_call_operand.vmem [shape: f32[1,128], index: 9, kind: input, shape index: {}]
  %s10 = inlined_call_operand.vmem [shape: f32[1,128], index: 10, kind: input, shape index: {}]
  %s11 = inlined_call_operand.hbm [shape: bf16[128,128], index: 11, kind: input, shape index: {}]
  %s12 = inlined_call_operand.hbm [shape: bf16[128,128], index: 12, kind: input, shape index: {}]
  %s13 = inlined_call_operand.hbm [shape: bf16[128,128], index: 13, kind: input, shape index: {}]
  %s14 = inlined_call_operand.hbm [shape: bf16[128,128], index: 14, kind: input, shape index: {}]
  %s15 = inlined_call_operand.vmem [shape: f32[1,128], index: 15, kind: input, shape index: {}]
  %s16 = inlined_call_operand.vmem [shape: f32[1,128], index: 16, kind: input, shape index: {}]
  %s17 = inlined_call_operand.vmem [shape: f32[1,128], index: 17, kind: input, shape index: {}]
  %s18 = inlined_call_operand.hbm [shape: bf16[128,512], index: 18, kind: input, shape index: {}]
  %s19 = inlined_call_operand.vmem [shape: f32[1,512], index: 19, kind: input, shape index: {}]
  %s20 = inlined_call_operand.hbm [shape: bf16[512,128], index: 20, kind: input, shape index: {}]
  %s21 = inlined_call_operand.vmem [shape: f32[1,128], index: 21, kind: input, shape index: {}]
  %s22 = inlined_call_operand.vmem [shape: f32[1,128], index: 22, kind: input, shape index: {}]
  %s23 = inlined_call_operand.vmem [shape: f32[1,128], index: 23, kind: input, shape index: {}]
  %s24 = inlined_call_operand.hbm [shape: f32[2,128,128], index: 24, kind: output, shape index: {}]
  %s25 = sld [smem:[#allocation0]]
  $region177: #{tpu_custom_call.1} parent=0
    _
  %s27 = ssub.s32 1, %s25
  %s28 = scalar_select 0, %s27, %s25
  %30 = dma.hbm_to_smem %s0, 16, [#allocation3], [#allocation2]
  %31 = dma.done [#allocation2], 16
  %32 = sfence
  $region1: #{tpu_custom_call.1} parent=0
    #allocation4 [shape = 'u8[131072]{0}', space=vmem, size = 0x20000, scoped, tag = 'input window, operand 1']
    #allocation5 [shape = 's32[2]{0}', space=sflag, size = 0x8, scoped, tag = 'scoped memory for tpu_custom_call.1']
    #allocation6 [shape = 's32[2]{0}', space=sflag, size = 0x8, scoped, tag = 'scoped memory for tpu_custom_call.1']
    #allocation7 [shape = 'u8[131072]{0}', space=vmem, size = 0x20000, scoped, tag = 'input window, operand 2']
    #allocation8 [shape = 's32[2]{0}', space=sflag, size = 0x8, scoped, tag = 'scoped memory for tpu_custom_call.1']
    #allocation9 [shape = 'u8[131072]{0}', space=vmem, size = 0x20000, scoped, tag = 'input window, operand 3']
    #allocation10 [shape = 'u8[32768]{0}', space=vmem, size = 0x8000, scoped, tag = 'input window, operand 4, single buffered']
    #allocation11 [shape = 's32[1]{0}', space=sflag, size = 0x4, scoped, tag = 'scoped memory for tpu_custom_call.1']
    #allocation12 [shape = 'u8[32768]{0}', space=vmem, size = 0x8000, scoped, tag = 'input window, operand 5, single buffered']
    #allocation13 [shape = 'u8[32768]{0}', space=vmem, size = 0x8000, scoped, tag = 'input window, operand 6, single buffered']
    #allocation14 [shape = 's32[1]{0}', space=sflag, size = 0x4, scoped, tag = 'scoped memory for tpu_custom_call.1']
    #allocation15 [shape = 'u8[32768]{0}', space=vmem, size = 0x8000, scoped, tag = 'input window, operand 7, single buffered']
    #allocation16 [shape = 'u8[32768]{0}', space=vmem, size = 0x8000, scoped, tag = 'input window, operand 11, single buffered']
    #allocation17 [shape = 's32[1]{0}', space=sflag, size = 0x4, scoped, tag = 'scoped memory for tpu_custom_call.1']
    #allocation18 [shape = 'u8[32768]{0}', space=vmem, size = 0x8000, scoped, tag = 'input window, operand 12, single buffered']
    #allocation19 [shape = 'u8[32768]{0}', space=vmem, size = 0x8000, scoped, tag = 'input window, operand 13, single buffered']
    #allocation20 [shape = 's32[1]{0}', space=sflag, size = 0x4, scoped, tag = 'scoped memory for tpu_custom_call.1']
    #allocation21 [shape = 'u8[32768]{0}', space=vmem, size = 0x8000, scoped, tag = 'input window, operand 14, single buffered']
    #allocation22 [shape = 'u8[131072]{0}', space=vmem, size = 0x20000, scoped, tag = 'input window, operand 18, single buffered']
    #allocation23 [shape = 's32[1]{0}', space=sflag, size = 0x4, scoped, tag = 'scoped memory for tpu_custom_call.1']
    #allocation24 [shape = 'u8[131072]{0}', space=vmem, size = 0x20000, scoped, tag = 'input window, operand 20, single buffered']
    #allocation25 [shape = 'u8[65536]{0}', space=vmem, size = 0x10000, scoped, tag = 'output window, operand 0']
    %33 = vsyncpa [#allocation5], 0
    %s34 = scalar_lea.sflag [#allocation5], 1
    %35 = vsyncpa %s34, 0
    %36 = vsyncpa [#allocation8], 0
    %s37 = scalar_lea.sflag [#allocation8], 1
    %38 = vsyncpa %s37, 0
    %39 = vsyncpa [#allocation11], 0
    %40 = vsyncpa [#allocation14], 0
    %41 = vsyncpa [#allocation17], 0
    %42 = vsyncpa [#allocation20], 0
    %43 = vsyncpa [#allocation23], 0
    %44 = vsyncpa [#allocation6], 0
    %s45 = scalar_lea.sflag [#allocation6], 1
    %46 = vsyncpa %s45, 0
    loop: start=0, step=1, limit=6
    $region2: #{tpu_custom_call.1} parent=1 // loop_pre_header
      _
    $region3: #{tpu_custom_call.1} parent=1 // loop_header
      %s48 = sphi 0, %s52
      %p49 = scmp.ge.s32.totalorder %s48, 6
      %s55 = sphi 0, %s67
      %s56 = sphi 0, %s63
      %s57 = sphi 0, %s55
      %s58 = sphi 0, %s56
      %s59 = sphi 0, %s57
      %s60 = sphi 0, %s58
      %s70 = sphi 0, %s72
      %s73 = sphi 0, %s70
      %s74 = sphi 0, %s73
      %s90 = sphi 0, %s74
      %s96 = sphi 0, %s98
      %s99 = sphi 0, %s96
      %s100 = sphi 0, %s99
      %s116 = sphi 0, %s100
      %s122 = sphi 0, %s124
      %s125 = sphi 0, %s122
      %s126 = sphi 0, %s125
      %s142 = sphi 0, %s126
      %s146 = sphi 0, %s146
      %s148 = sphi 0, %s146
      %s149 = sphi 0, %s148
      %s163 = sphi 0, %s149
      %s167 = sphi 0, %s167
      %s169 = sphi 0, %s167
      %s170 = sphi 0, %s169
      %s184 = sphi 0, %s170
      %s188 = sphi 0, %s188
      %s190 = sphi 0, %s188
      %s191 = sphi 0, %s190
      %s205 = sphi 0, %s191
      %s209 = sphi 0, %s209
      %s211 = sphi 0, %s209
      %s212 = sphi 0, %s211
      %s226 = sphi 0, %s212
      %s230 = sphi 0, %s230
      %s232 = sphi 0, %s230
      %s233 = sphi 0, %s232
      %s247 = sphi 0, %s233
      %s251 = sphi 0, %s251
      %s253 = sphi 0, %s251
      %s254 = sphi 0, %s253
      %s268 = sphi 0, %s254
      %s272 = sphi 0, %s272
      %s274 = sphi 0, %s272
      %s275 = sphi 0, %s274
      %s289 = sphi 0, %s275
      %s293 = sphi 0, %s293
      %s295 = sphi 0, %s293
      %s296 = sphi 0, %s295
      %s310 = sphi 0, %s296
      %s314 = sphi 0, %s314
      %s316 = sphi 0, %s314
      %s317 = sphi 0, %s316
      %s331 = sphi 0, %s317
      %s335 = sphi 0, %s335
      %s337 = sphi 0, %s335
      %s338 = sphi 0, %s337
      %s352 = sphi 0, %s338
      %s356 = sphi 0, %s356
      %s358 = sphi 0, %s356
      %s359 = sphi 0, %s358
      %s373 = sphi 0, %s359
      %s377 = sphi 0, %s377
      %s379 = sphi 0, %s377
      %s380 = sphi 0, %s379
      %s394 = sphi 0, %s380
      %s398 = sphi 0, %s398
      %s400 = sphi 0, %s398
      %s401 = sphi 0, %s400
      %s415 = sphi 0, %s401
      %s419 = sphi 0, %s419
      %s421 = sphi 0, %s419
      %s422 = sphi 0, %s421
      %s436 = sphi 0, %s422
      %s440 = sphi 0, %s440
      %s442 = sphi 0, %s440
      %s443 = sphi 0, %s442
      %s457 = sphi 0, %s443
      %s461 = sphi 0, %s461
      %s463 = sphi 0, %s461
      %s464 = sphi 0, %s463
      %s478 = sphi 0, %s464
      %s482 = sphi 0, %s482
      %s484 = sphi 0, %s482
      %s485 = sphi 0, %s484
      %s499 = sphi 0, %s485
      %s503 = sphi 0, %s503
      %s505 = sphi 0, %s503
      %s506 = sphi 0, %s505
      %s520 = sphi 0, %s506
      %s524 = sphi 0, %s524
      %s526 = sphi 0, %s524
      %s527 = sphi 0, %s526
      %s541 = sphi 0, %s527
      %s545 = sphi 0, %s545
      %s547 = sphi 0, %s545
      %s548 = sphi 0, %s547
      %s562 = sphi 0, %s548
      %s570 = sphi 0, %s572
      %s573 = sphi 0, %s570
      %s574 = sphi 0, %s573
      %s590 = sphi 0, %s574
    $region4: #{tpu_custom_call.1} parent=1 // loop_header_branch
      %51 = sbr.rel (%p49) target = $region8
    $region5: #{tpu_custom_call.1} parent=1 // loop_body
      %s53 = ssub.s32 %s48, 1
      %s54 = ssub.s32 %s48, 2
      %s61 = sadd.s32 1, %s56
      %p62 = scmp.ge.s32.totalorder %s61, 2
      %s63 = scalar_select %p62, 0, %s61
      %s64 = sadd.s32 1, %s55
      %s65 = scalar_select %p62, %s64, %s55
      %p66 = scmp.ge.s32.totalorder %s65, 2
      %s67 = scalar_select %p66, 0, %s65
      %s68 = ssub.s32 %s55, %s67
      %p69 = scmp.eq.s32.totalorder %s68, 0
      %s71 = sadd.s32 %s70, 1
      %s72 = scalar_select %p69, %s70, %s71
      %p75 = pneg %p69
      %p76 = scmp.eq.s32.totalorder %s48, 3
      %p77 = por %p75, %p76
      %p78 = scmp.ne.s32.totalorder %s70, %s73
      %p79 = scmp.eq.s32.totalorder %s48, 0
      %p80 = por %p78, %p79
      %p81 = scmp.ne.s32.totalorder %s70, %s73
      %p82 = scmp.eq.s32.totalorder %s53, 3
      %p83 = por %p81, %p82
      %p84 = scmp.ne.s32.totalorder %s73, %s74
      %p85 = scmp.eq.s32.totalorder %s53, 0
      %p86 = por %p84, %p85
      %p87 = scmp.ne.s32.totalorder %s73, %s74
      %p88 = scmp.eq.s32.totalorder %s54, 3
      %p89 = por %p87, %p88
      %p91 = scmp.ne.s32.totalorder %s74, %s90
      %p92 = scmp.eq.s32.totalorder %s54, 0
      %p93 = por %p91, %p92
      %s94 = ssub.s32 %s55, %s67
      %p95 = scmp.eq.s32.totalorder %s94, 0
      %s97 = sadd.s32 %s96, 1
      %s98 = scalar_select %p95, %s96, %s97
      %p101 = pneg %p95
      %p102 = scmp.eq.s32.totalorder %s48, 3
      %p103 = por %p101, %p102
      %p104 = scmp.ne.s32.totalorder %s96, %s99
      %p105 = scmp.eq.s32.totalorder %s48, 0
      %p106 = por %p104, %p105
      %p107 = scmp.ne.s32.totalorder %s96, %s99
      %p108 = scmp.eq.s32.totalorder %s53, 3
      %p109 = por %p107, %p108
      %p110 = scmp.ne.s32.totalorder %s99, %s100
      %p111 = scmp.eq.s32.totalorder %s53, 0
      %p112 = por %p110, %p111
      %p113 = scmp.ne.s32.totalorder %s99, %s100
      %p114 = scmp.eq.s32.totalorder %s54, 3
      %p115 = por %p113, %p114
      %p117 = scmp.ne.s32.totalorder %s100, %s116
      %p118 = scmp.eq.s32.totalorder %s54, 0
      %p119 = por %p117, %p118
      %s120 = ssub.s32 %s55, %s67
      %p121 = scmp.eq.s32.totalorder %s120, 0
      %s123 = sadd.s32 %s122, 1
      %s124 = scalar_select %p121, %s122, %s123
      %p127 = pneg %p121
      %p128 = scmp.eq.s32.totalorder %s48, 3
      %p129 = por %p127, %p128
      %p130 = scmp.ne.s32.totalorder %s122, %s125
      %p131 = scmp.eq.s32.totalorder %s48, 0
      %p132 = por %p130, %p131
      %p133 = scmp.ne.s32.totalorder %s122, %s125
      %p134 = scmp.eq.s32.totalorder %s53, 3
      %p135 = por %p133, %p134
      %p136 = scmp.ne.s32.totalorder %s125, %s126
      %p137 = scmp.eq.s32.totalorder %s53, 0
      %p138 = por %p136, %p137
      %p139 = scmp.ne.s32.totalorder %s125, %s126
      %p140 = scmp.eq.s32.totalorder %s54, 3
      %p141 = por %p139, %p140
      %p143 = scmp.ne.s32.totalorder %s126, %s142
      %p144 = scmp.eq.s32.totalorder %s54, 0
      %p145 = por %p143, %p144
      %s147 = sadd.s32 %s146, 1
      %p150 = scmp.eq.s32.totalorder %s48, 3
      %p151 = scmp.ne.s32.totalorder %s146, %s148
      %p152 = scmp.eq.s32.totalorder %s48, 0
      %p153 = por %p151, %p152
      %p154 = scmp.ne.s32.totalorder %s146, %s148
      %p155 = scmp.eq.s32.totalorder %s53, 3
      %p156 = por %p154, %p155
      %p157 = scmp.ne.s32.totalorder %s148, %s149
      %p158 = scmp.eq.s32.totalorder %s53, 0
      %p159 = por %p157, %p158
      %p160 = scmp.ne.s32.totalorder %s148, %s149
      %p161 = scmp.eq.s32.totalorder %s54, 3
      %p162 = por %p160, %p161
      %p164 = scmp.ne.s32.totalorder %s149, %s163
      %p165 = scmp.eq.s32.totalorder %s54, 0
      %p166 = por %p164, %p165
      %s168 = sadd.s32 %s167, 1
      %p171 = scmp.eq.s32.totalorder %s48, 3
      %p172 = scmp.ne.s32.totalorder %s167, %s169
      %p173 = scmp.eq.s32.totalorder %s48, 0
      %p174 = por %p172, %p173
      %p175 = scmp.ne.s32.totalorder %s167, %s169
      %p176 = scmp.eq.s32.totalorder %s53, 3
      %p177 = por %p175, %p176
      %p178 = scmp.ne.s32.totalorder %s169, %s170
      %p179 = scmp.eq.s32.totalorder %s53, 0
      %p180 = por %p178, %p179
      %p181 = scmp.ne.s32.totalorder %s169, %s170
      %p182 = scmp.eq.s32.totalorder %s54, 3
      %p183 = por %p181, %p182
      %p185 = scmp.ne.s32.totalorder %s170, %s184
      %p186 = scmp.eq.s32.totalorder %s54, 0
      %p187 = por %p185, %p186
      %s189 = sadd.s32 %s188, 1
      %p192 = scmp.eq.s32.totalorder %s48, 3
      %p193 = scmp.ne.s32.totalorder %s188, %s190
      %p194 = scmp.eq.s32.totalorder %s48, 0
      %p195 = por %p193, %p194
      %p196 = scmp.ne.s32.totalorder %s188, %s190
      %p197 = scmp.eq.s32.totalorder %s53, 3
      %p198 = por %p196, %p197
      %p199 = scmp.ne.s32.totalorder %s190, %s191
      %p200 = scmp.eq.s32.totalorder %s53, 0
      %p201 = por %p199, %p200
      %p202 = scmp.ne.s32.totalorder %s190, %s191
      %p203 = scmp.eq.s32.totalorder %s54, 3
      %p204 = por %p202, %p203
      %p206 = scmp.ne.s32.totalorder %s191, %s205
      %p207 = scmp.eq.s32.totalorder %s54, 0
      %p208 = por %p206, %p207
      %s210 = sadd.s32 %s209, 1
      %p213 = scmp.eq.s32.totalorder %s48, 3
      %p214 = scmp.ne.s32.totalorder %s209, %s211
      %p215 = scmp.eq.s32.totalorder %s48, 0
      %p216 = por %p214, %p215
      %p217 = scmp.ne.s32.totalorder %s209, %s211
      %p218 = scmp.eq.s32.totalorder %s53, 3
      %p219 = por %p217, %p218
      %p220 = scmp.ne.s32.totalorder %s211, %s212
      %p221 = scmp.eq.s32.totalorder %s53, 0
      %p222 = por %p220, %p221
      %p223 = scmp.ne.s32.totalorder %s211, %s212
      %p224 = scmp.eq.s32.totalorder %s54, 3
      %p225 = por %p223, %p224
      %p227 = scmp.ne.s32.totalorder %s212, %s226
      %p228 = scmp.eq.s32.totalorder %s54, 0
      %p229 = por %p227, %p228
      %s231 = sadd.s32 %s230, 1
      %p234 = scmp.eq.s32.totalorder %s48, 3
      %p235 = scmp.ne.s32.totalorder %s230, %s232
      %p236 = scmp.eq.s32.totalorder %s48, 0
      %p237 = por %p235, %p236
      %p238 = scmp.ne.s32.totalorder %s230, %s232
      %p239 = scmp.eq.s32.totalorder %s53, 3
      %p240 = por %p238, %p239
      %p241 = scmp.ne.s32.totalorder %s232, %s233
      %p242 = scmp.eq.s32.totalorder %s53, 0
      %p243 = por %p241, %p242
      %p244 = scmp.ne.s32.totalorder %s232, %s233
      %p245 = scmp.eq.s32.totalorder %s54, 3
      %p246 = por %p244, %p245
      %p248 = scmp.ne.s32.totalorder %s233, %s247
      %p249 = scmp.eq.s32.totalorder %s54, 0
      %p250 = por %p248, %p249
      %s252 = sadd.s32 %s251, 1
      %p255 = scmp.eq.s32.totalorder %s48, 3
      %p256 = scmp.ne.s32.totalorder %s251, %s253
      %p257 = scmp.eq.s32.totalorder %s48, 0
      %p258 = por %p256, %p257
      %p259 = scmp.ne.s32.totalorder %s251, %s253
      %p260 = scmp.eq.s32.totalorder %s53, 3
      %p261 = por %p259, %p260
      %p262 = scmp.ne.s32.totalorder %s253, %s254
      %p263 = scmp.eq.s32.totalorder %s53, 0
      %p264 = por %p262, %p263
      %p265 = scmp.ne.s32.totalorder %s253, %s254
      %p266 = scmp.eq.s32.totalorder %s54, 3
      %p267 = por %p265, %p266
      %p269 = scmp.ne.s32.totalorder %s254, %s268
      %p270 = scmp.eq.s32.totalorder %s54, 0
      %p271 = por %p269, %p270
      %s273 = sadd.s32 %s272, 1
      %p276 = scmp.eq.s32.totalorder %s48, 3
      %p277 = scmp.ne.s32.totalorder %s272, %s274
      %p278 = scmp.eq.s32.totalorder %s48, 0
      %p279 = por %p277, %p278
      %p280 = scmp.ne.s32.totalorder %s272, %s274
      %p281 = scmp.eq.s32.totalorder %s53, 3
      %p282 = por %p280, %p281
      %p283 = scmp.ne.s32.totalorder %s274, %s275
      %p284 = scmp.eq.s32.totalorder %s53, 0
      %p285 = por %p283, %p284
      %p286 = scmp.ne.s32.totalorder %s274, %s275
      %p287 = scmp.eq.s32.totalorder %s54, 3
      %p288 = por %p286, %p287
      %p290 = scmp.ne.s32.totalorder %s275, %s289
      %p291 = scmp.eq.s32.totalorder %s54, 0
      %p292 = por %p290, %p291
      %s294 = sadd.s32 %s293, 1
      %p297 = scmp.eq.s32.totalorder %s48, 3
      %p298 = scmp.ne.s32.totalorder %s293, %s295
      %p299 = scmp.eq.s32.totalorder %s48, 0
      %p300 = por %p298, %p299
      %p301 = scmp.ne.s32.totalorder %s293, %s295
      %p302 = scmp.eq.s32.totalorder %s53, 3
      %p303 = por %p301, %p302
      %p304 = scmp.ne.s32.totalorder %s295, %s296
      %p305 = scmp.eq.s32.totalorder %s53, 0
      %p306 = por %p304, %p305
      %p307 = scmp.ne.s32.totalorder %s295, %s296
      %p308 = scmp.eq.s32.totalorder %s54, 3
      %p309 = por %p307, %p308
      %p311 = scmp.ne.s32.totalorder %s296, %s310
      %p312 = scmp.eq.s32.totalorder %s54, 0
      %p313 = por %p311, %p312
      %s315 = sadd.s32 %s314, 1
      %p318 = scmp.eq.s32.totalorder %s48, 3
      %p319 = scmp.ne.s32.totalorder %s314, %s316
      %p320 = scmp.eq.s32.totalorder %s48, 0
      %p321 = por %p319, %p320
      %p322 = scmp.ne.s32.totalorder %s314, %s316
      %p323 = scmp.eq.s32.totalorder %s53, 3
      %p324 = por %p322, %p323
      %p325 = scmp.ne.s32.totalorder %s316, %s317
      %p326 = scmp.eq.s32.totalorder %s53, 0
      %p327 = por %p325, %p326
      %p328 = scmp.ne.s32.totalorder %s316, %s317
      %p329 = scmp.eq.s32.totalorder %s54, 3
      %p330 = por %p328, %p329
      %p332 = scmp.ne.s32.totalorder %s317, %s331
      %p333 = scmp.eq.s32.totalorder %s54, 0
      %p334 = por %p332, %p333
      %s336 = sadd.s32 %s335, 1
      %p339 = scmp.eq.s32.totalorder %s48, 3
      %p340 = scmp.ne.s32.totalorder %s335, %s337
      %p341 = scmp.eq.s32.totalorder %s48, 0
      %p342 = por %p340, %p341
      %p343 = scmp.ne.s32.totalorder %s335, %s337
      %p344 = scmp.eq.s32.totalorder %s53, 3
      %p345 = por %p343, %p344
      %p346 = scmp.ne.s32.totalorder %s337, %s338
      %p347 = scmp.eq.s32.totalorder %s53, 0
      %p348 = por %p346, %p347
      %p349 = scmp.ne.s32.totalorder %s337, %s338
      %p350 = scmp.eq.s32.totalorder %s54, 3
      %p351 = por %p349, %p350
      %p353 = scmp.ne.s32.totalorder %s338, %s352
      %p354 = scmp.eq.s32.totalorder %s54, 0
      %p355 = por %p353, %p354
      %s357 = sadd.s32 %s356, 1
      %p360 = scmp.eq.s32.totalorder %s48, 3
      %p361 = scmp.ne.s32.totalorder %s356, %s358
      %p362 = scmp.eq.s32.totalorder %s48, 0
      %p363 = por %p361, %p362
      %p364 = scmp.ne.s32.totalorder %s356, %s358
      %p365 = scmp.eq.s32.totalorder %s53, 3
      %p366 = por %p364, %p365
      %p367 = scmp.ne.s32.totalorder %s358, %s359
      %p368 = scmp.eq.s32.totalorder %s53, 0
      %p369 = por %p367, %p368
      %p370 = scmp.ne.s32.totalorder %s358, %s359
      %p371 = scmp.eq.s32.totalorder %s54, 3
      %p372 = por %p370, %p371
      %p374 = scmp.ne.s32.totalorder %s359, %s373
      %p375 = scmp.eq.s32.totalorder %s54, 0
      %p376 = por %p374, %p375
      %s378 = sadd.s32 %s377, 1
      %p381 = scmp.eq.s32.totalorder %s48, 3
      %p382 = scmp.ne.s32.totalorder %s377, %s379
      %p383 = scmp.eq.s32.totalorder %s48, 0
      %p384 = por %p382, %p383
      %p385 = scmp.ne.s32.totalorder %s377, %s379
      %p386 = scmp.eq.s32.totalorder %s53, 3
      %p387 = por %p385, %p386
      %p388 = scmp.ne.s32.totalorder %s379, %s380
      %p389 = scmp.eq.s32.totalorder %s53, 0
      %p390 = por %p388, %p389
      %p391 = scmp.ne.s32.totalorder %s379, %s380
      %p392 = scmp.eq.s32.totalorder %s54, 3
      %p393 = por %p391, %p392
      %p395 = scmp.ne.s32.totalorder %s380, %s394
      %p396 = scmp.eq.s32.totalorder %s54, 0
      %p397 = por %p395, %p396
      %s399 = sadd.s32 %s398, 1
      %p402 = scmp.eq.s32.totalorder %s48, 3
      %p403 = scmp.ne.s32.totalorder %s398, %s400
      %p404 = scmp.eq.s32.totalorder %s48, 0
      %p405 = por %p403, %p404
      %p406 = scmp.ne.s32.totalorder %s398, %s400
      %p407 = scmp.eq.s32.totalorder %s53, 3
      %p408 = por %p406, %p407
      %p409 = scmp.ne.s32.totalorder %s400, %s401
      %p410 = scmp.eq.s32.totalorder %s53, 0
      %p411 = por %p409, %p410
      %p412 = scmp.ne.s32.totalorder %s400, %s401
      %p413 = scmp.eq.s32.totalorder %s54, 3
      %p414 = por %p412, %p413
      %p416 = scmp.ne.s32.totalorder %s401, %s415
      %p417 = scmp.eq.s32.totalorder %s54, 0
      %p418 = por %p416, %p417
      %s420 = sadd.s32 %s419, 1
      %p423 = scmp.eq.s32.totalorder %s48, 3
      %p424 = scmp.ne.s32.totalorder %s419, %s421
      %p425 = scmp.eq.s32.totalorder %s48, 0
      %p426 = por %p424, %p425
      %p427 = scmp.ne.s32.totalorder %s419, %s421
      %p428 = scmp.eq.s32.totalorder %s53, 3
      %p429 = por %p427, %p428
      %p430 = scmp.ne.s32.totalorder %s421, %s422
      %p431 = scmp.eq.s32.totalorder %s53, 0
      %p432 = por %p430, %p431
      %p433 = scmp.ne.s32.totalorder %s421, %s422
      %p434 = scmp.eq.s32.totalorder %s54, 3
      %p435 = por %p433, %p434
      %p437 = scmp.ne.s32.totalorder %s422, %s436
      %p438 = scmp.eq.s32.totalorder %s54, 0
      %p439 = por %p437, %p438
      %s441 = sadd.s32 %s440, 1
      %p444 = scmp.eq.s32.totalorder %s48, 3
      %p445 = scmp.ne.s32.totalorder %s440, %s442
      %p446 = scmp.eq.s32.totalorder %s48, 0
      %p447 = por %p445, %p446
      %p448 = scmp.ne.s32.totalorder %s440, %s442
      %p449 = scmp.eq.s32.totalorder %s53, 3
      %p450 = por %p448, %p449
      %p451 = scmp.ne.s32.totalorder %s442, %s443
      %p452 = scmp.eq.s32.totalorder %s53, 0
      %p453 = por %p451, %p452
      %p454 = scmp.ne.s32.totalorder %s442, %s443
      %p455 = scmp.eq.s32.totalorder %s54, 3
      %p456 = por %p454, %p455
      %p458 = scmp.ne.s32.totalorder %s443, %s457
      %p459 = scmp.eq.s32.totalorder %s54, 0
      %p460 = por %p458, %p459
      %s462 = sadd.s32 %s461, 1
      %p465 = scmp.eq.s32.totalorder %s48, 3
      %p466 = scmp.ne.s32.totalorder %s461, %s463
      %p467 = scmp.eq.s32.totalorder %s48, 0
      %p468 = por %p466, %p467
      %p469 = scmp.ne.s32.totalorder %s461, %s463
      %p470 = scmp.eq.s32.totalorder %s53, 3
      %p471 = por %p469, %p470
      %p472 = scmp.ne.s32.totalorder %s463, %s464
      %p473 = scmp.eq.s32.totalorder %s53, 0
      %p474 = por %p472, %p473
      %p475 = scmp.ne.s32.totalorder %s463, %s464
      %p476 = scmp.eq.s32.totalorder %s54, 3
      %p477 = por %p475, %p476
      %p479 = scmp.ne.s32.totalorder %s464, %s478
      %p480 = scmp.eq.s32.totalorder %s54, 0
      %p481 = por %p479, %p480
      %s483 = sadd.s32 %s482, 1
      %p486 = scmp.eq.s32.totalorder %s48, 3
      %p487 = scmp.ne.s32.totalorder %s482, %s484
      %p488 = scmp.eq.s32.totalorder %s48, 0
      %p489 = por %p487, %p488
      %p490 = scmp.ne.s32.totalorder %s482, %s484
      %p491 = scmp.eq.s32.totalorder %s53, 3
      %p492 = por %p490, %p491
      %p493 = scmp.ne.s32.totalorder %s484, %s485
      %p494 = scmp.eq.s32.totalorder %s53, 0
      %p495 = por %p493, %p494
      %p496 = scmp.ne.s32.totalorder %s484, %s485
      %p497 = scmp.eq.s32.totalorder %s54, 3
      %p498 = por %p496, %p497
      %p500 = scmp.ne.s32.totalorder %s485, %s499
      %p501 = scmp.eq.s32.totalorder %s54, 0
      %p502 = por %p500, %p501
      %s504 = sadd.s32 %s503, 1
      %p507 = scmp.eq.s32.totalorder %s48, 3
      %p508 = scmp.ne.s32.totalorder %s503, %s505
      %p509 = scmp.eq.s32.totalorder %s48, 0
      %p510 = por %p508, %p509
      %p511 = scmp.ne.s32.totalorder %s503, %s505
      %p512 = scmp.eq.s32.totalorder %s53, 3
      %p513 = por %p511, %p512
      %p514 = scmp.ne.s32.totalorder %s505, %s506
      %p515 = scmp.eq.s32.totalorder %s53, 0
      %p516 = por %p514, %p515
      %p517 = scmp.ne.s32.totalorder %s505, %s506
      %p518 = scmp.eq.s32.totalorder %s54, 3
      %p519 = por %p517, %p518
      %p521 = scmp.ne.s32.totalorder %s506, %s520
      %p522 = scmp.eq.s32.totalorder %s54, 0
      %p523 = por %p521, %p522
      %s525 = sadd.s32 %s524, 1
      %p528 = scmp.eq.s32.totalorder %s48, 3
      %p529 = scmp.ne.s32.totalorder %s524, %s526
      %p530 = scmp.eq.s32.totalorder %s48, 0
      %p531 = por %p529, %p530
      %p532 = scmp.ne.s32.totalorder %s524, %s526
      %p533 = scmp.eq.s32.totalorder %s53, 3
      %p534 = por %p532, %p533
      %p535 = scmp.ne.s32.totalorder %s526, %s527
      %p536 = scmp.eq.s32.totalorder %s53, 0
      %p537 = por %p535, %p536
      %p538 = scmp.ne.s32.totalorder %s526, %s527
      %p539 = scmp.eq.s32.totalorder %s54, 3
      %p540 = por %p538, %p539
      %p542 = scmp.ne.s32.totalorder %s527, %s541
      %p543 = scmp.eq.s32.totalorder %s54, 0
      %p544 = por %p542, %p543
      %s546 = sadd.s32 %s545, 1
      %p549 = scmp.eq.s32.totalorder %s48, 3
      %p550 = scmp.ne.s32.totalorder %s545, %s547
      %p551 = scmp.eq.s32.totalorder %s48, 0
      %p552 = por %p550, %p551
      %p553 = scmp.ne.s32.totalorder %s545, %s547
      %p554 = scmp.eq.s32.totalorder %s53, 3
      %p555 = por %p553, %p554
      %p556 = scmp.ne.s32.totalorder %s547, %s548
      %p557 = scmp.eq.s32.totalorder %s53, 0
      %p558 = por %p556, %p557
      %p559 = scmp.ne.s32.totalorder %s547, %s548
      %p560 = scmp.eq.s32.totalorder %s54, 3
      %p561 = por %p559, %p560
      %p563 = scmp.ne.s32.totalorder %s548, %s562
      %p564 = scmp.eq.s32.totalorder %s54, 0
      %p565 = por %p563, %p564
      %s566 = ssub.s32 %s55, %s67
      %s567 = ssub.s32 %s56, %s63
      %s568 = sor.u32 %s566, %s567
      %p569 = scmp.eq.s32.totalorder %s568, 0
      %s571 = sadd.s32 %s570, 1
      %s572 = scalar_select %p569, %s570, %s571
      %p575 = pneg %p569
      %p576 = scmp.eq.s32.totalorder %s48, 3
      %p577 = por %p575, %p576
      %p578 = scmp.ne.s32.totalorder %s570, %s573
      %p579 = scmp.eq.s32.totalorder %s48, 0
      %p580 = por %p578, %p579
      %p581 = scmp.ne.s32.totalorder %s570, %s573
      %p582 = scmp.eq.s32.totalorder %s53, 3
      %p583 = por %p581, %p582
      %p584 = scmp.ne.s32.totalorder %s573, %s574
      %p585 = scmp.eq.s32.totalorder %s53, 0
      %p586 = por %p584, %p585
      %p587 = scmp.ne.s32.totalorder %s573, %s574
      %p588 = scmp.eq.s32.totalorder %s54, 3
      %p589 = por %p587, %p588
      %p591 = scmp.ne.s32.totalorder %s574, %s590
      %p592 = scmp.eq.s32.totalorder %s54, 0
      %p593 = por %p591, %p592
      %p594 = scmp.le.s32.totalorder 1, %s48
      %p595 = scmp.lt.s32.totalorder %s48, 5
      %p596 = pnand %p594, %p595
      %p597 = pneg %p596
      // Predicated region
      $region9: #{tpu_custom_call.1} parent=5 // pred_check
        _
      $region10: #{tpu_custom_call.1} parent=5 // pred_check_branch
        %599 = sbr.rel (%p596) target = $region12
      $region11: #{tpu_custom_call.1} parent=5 // pred_region
        %s600 = ssub.s32 %s48, 1
        // Predicated region
        $region13: #{tpu_custom_call.1} parent=11 // pred_check
          %p601 = pneg %p159
        $region14: #{tpu_custom_call.1} parent=11 // pred_check_branch
          %603 = sbr.rel (%p601) target = $region16
        $region15: #{tpu_custom_call.1} parent=11 // pred_region
          %s605 = ssub.s32 1024, 1024
          %606 = vsyncadd [#allocation11], %s605
          %s607 = sshll.u32 [#allocation10], 4
          %s608 = int_to_ptr.vmem [resolvable:$true] %s607
          %613 = dma.hbm_to_vmem [thread:$0]  %s4, 1024, %s608, [#allocation11], 64, 64, 4
        $region16: #{tpu_custom_call.1} parent=11 // pred_fallthru
          _
        // Predicated region
        $region17: #{tpu_custom_call.1} parent=11 // pred_check
          %p614 = pneg %p180
        $region18: #{tpu_custom_call.1} parent=11 // pred_check_branch
          %616 = sbr.rel (%p614) target = $region20
        $region19: #{tpu_custom_call.1} parent=11 // pred_region
          %s618 = ssub.s32 1024, 1024
          %619 = vsyncadd [#allocation11], %s618
          %s620 = sshll.u32 [#allocation12], 4
          %s621 = int_to_ptr.vmem [resolvable:$true] %s620
          %626 = dma.hbm_to_vmem [thread:$0]  %s5, 1024, %s621, [#allocation11], 64, 64, 4
        $region20: #{tpu_custom_call.1} parent=11 // pred_fallthru
          _
        // Predicated region
        $region21: #{tpu_custom_call.1} parent=11 // pred_check
          %p627 = pneg %p201
        $region22: #{tpu_custom_call.1} parent=11 // pred_check_branch
          %629 = sbr.rel (%p627) target = $region24
        $region23: #{tpu_custom_call.1} parent=11 // pred_region
          %s631 = ssub.s32 1024, 1024
          %632 = vsyncadd [#allocation14], %s631
          %s633 = sshll.u32 [#allocation13], 4
          %s634 = int_to_ptr.vmem [resolvable:$true] %s633
          %639 = dma.hbm_to_vmem [thread:$0]  %s6, 1024, %s634, [#allocation14], 64, 64, 4
        $region24: #{tpu_custom_call.1} parent=11 // pred_fallthru
          _
        // Predicated region
        $region25: #{tpu_custom_call.1} parent=11 // pred_check
          %p640 = pneg %p222
        $region26: #{tpu_custom_call.1} parent=11 // pred_check_branch
          %642 = sbr.rel (%p640) target = $region28
        $region27: #{tpu_custom_call.1} parent=11 // pred_region
          %s644 = ssub.s32 1024, 1024
          %645 = vsyncadd [#allocation14], %s644
          %s646 = sshll.u32 [#allocation15], 4
          %s647 = int_to_ptr.vmem [resolvable:$true] %s646
          %652 = dma.hbm_to_vmem [thread:$0]  %s7, 1024, %s647, [#allocation14], 64, 64, 4
        $region28: #{tpu_custom_call.1} parent=11 // pred_fallthru
          _
        // Predicated region
        $region29: #{tpu_custom_call.1} parent=11 // pred_check
          %p653 = pneg %p243
        $region30: #{tpu_custom_call.1} parent=11 // pred_check_branch
          %655 = sbr.rel (%p653) target = $region32
        $region31: #{tpu_custom_call.1} parent=11 // pred_region
          _
        $region32: #{tpu_custom_call.1} parent=11 // pred_fallthru
          _
        // Predicated region
        $region33: #{tpu_custom_call.1} parent=11 // pred_check
          %p656 = pneg %p264
        $region34: #{tpu_custom_call.1} parent=11 // pred_check_branch
          %658 = sbr.rel (%p656) target = $region36
        $region35: #{tpu_custom_call.1} parent=11 // pred_region
          _
        $region36: #{tpu_custom_call.1} parent=11 // pred_fallthru
          _
        // Predicated region
        $region37: #{tpu_custom_call.1} parent=11 // pred_check
          %p659 = pneg %p285
        $region38: #{tpu_custom_call.1} parent=11 // pred_check_branch
          %661 = sbr.rel (%p659) target = $region40
        $region39: #{tpu_custom_call.1} parent=11 // pred_region
          _
        $region40: #{tpu_custom_call.1} parent=11 // pred_fallthru
          _
        // Predicated region
        $region41: #{tpu_custom_call.1} parent=11 // pred_check
          %p662 = pneg %p306
        $region42: #{tpu_custom_call.1} parent=11 // pred_check_branch
          %664 = sbr.rel (%p662) target = $region44
        $region43: #{tpu_custom_call.1} parent=11 // pred_region
          %s666 = ssub.s32 1024, 1024
          %667 = vsyncadd [#allocation17], %s666
          %s668 = sshll.u32 [#allocation16], 4
          %s669 = int_to_ptr.vmem [resolvable:$true] %s668
          %674 = dma.hbm_to_vmem [thread:$0]  %s11, 1024, %s669, [#allocation17], 64, 64, 4
        $region44: #{tpu_custom_call.1} parent=11 // pred_fallthru
          _
        // Predicated region
        $region45: #{tpu_custom_call.1} parent=11 // pred_check
          %p675 = pneg %p327
        $region46: #{tpu_custom_call.1} parent=11 // pred_check_branch
          %677 = sbr.rel (%p675) target = $region48
        $region47: #{tpu_custom_call.1} parent=11 // pred_region
          %s679 = ssub.s32 1024, 1024
          %680 = vsyncadd [#allocation17], %s679
          %s681 = sshll.u32 [#allocation18], 4
          %s682 = int_to_ptr.vmem [resolvable:$true] %s681
          %687 = dma.hbm_to_vmem [thread:$0]  %s12, 1024, %s682, [#allocation17], 64, 64, 4
        $region48: #{tpu_custom_call.1} parent=11 // pred_fallthru
          _
        // Predicated region
        $region49: #{tpu_custom_call.1} parent=11 // pred_check
          %p688 = pneg %p348
        $region50: #{tpu_custom_call.1} parent=11 // pred_check_branch
          %690 = sbr.rel (%p688) target = $region52
        $region51: #{tpu_custom_call.1} parent=11 // pred_region
          %s692 = ssub.s32 1024, 1024
          %693 = vsyncadd [#allocation20], %s692
          %s694 = sshll.u32 [#allocation19], 4
          %s695 = int_to_ptr.vmem [resolvable:$true] %s694
          %700 = dma.hbm_to_vmem [thread:$0]  %s13, 1024, %s695, [#allocation20], 64, 64, 4
        $region52: #{tpu_custom_call.1} parent=11 // pred_fallthru
          _
        // Predicated region
        $region53: #{tpu_custom_call.1} parent=11 // pred_check
          %p701 = pneg %p369
        $region54: #{tpu_custom_call.1} parent=11 // pred_check_branch
          %703 = sbr.rel (%p701) target = $region56
        $region55: #{tpu_custom_call.1} parent=11 // pred_region
          %s705 = ssub.s32 1024, 1024
          %706 = vsyncadd [#allocation20], %s705
          %s707 = sshll.u32 [#allocation21], 4
          %s708 = int_to_ptr.vmem [resolvable:$true] %s707
          %713 = dma.hbm_to_vmem [thread:$0]  %s14, 1024, %s708, [#allocation20], 64, 64, 4
        $region56: #{tpu_custom_call.1} parent=11 // pred_fallthru
          _
        // Predicated region
        $region57: #{tpu_custom_call.1} parent=11 // pred_check
          %p714 = pneg %p390
        $region58: #{tpu_custom_call.1} parent=11 // pred_check_branch
          %716 = sbr.rel (%p714) target = $region60
        $region59: #{tpu_custom_call.1} parent=11 // pred_region
          _
        $region60: #{tpu_custom_call.1} parent=11 // pred_fallthru
          _
        // Predicated region
        $region61: #{tpu_custom_call.1} parent=11 // pred_check
          %p717 = pneg %p411
        $region62: #{tpu_custom_call.1} parent=11 // pred_check_branch
          %719 = sbr.rel (%p717) target = $region64
        $region63: #{tpu_custom_call.1} parent=11 // pred_region
          _
        $region64: #{tpu_custom_call.1} parent=11 // pred_fallthru
          _
        // Predicated region
        $region65: #{tpu_custom_call.1} parent=11 // pred_check
          %p720 = pneg %p432
        $region66: #{tpu_custom_call.1} parent=11 // pred_check_branch
          %722 = sbr.rel (%p720) target = $region68
        $region67: #{tpu_custom_call.1} parent=11 // pred_region
          _
        $region68: #{tpu_custom_call.1} parent=11 // pred_fallthru
          _
        // Predicated region
        $region69: #{tpu_custom_call.1} parent=11 // pred_check
          %p723 = pneg %p453
        $region70: #{tpu_custom_call.1} parent=11 // pred_check_branch
          %725 = sbr.rel (%p723) target = $region72
        $region71: #{tpu_custom_call.1} parent=11 // pred_region
          %s727 = ssub.s32 4096, 4096
          %728 = vsyncadd [#allocation23], %s727
          %s729 = sshll.u32 [#allocation22], 4
          %s730 = int_to_ptr.vmem [resolvable:$true] %s729
          %735 = dma.hbm_to_vmem [thread:$0]  %s18, 4096, %s730, [#allocation23], 256, 256, 16
        $region72: #{tpu_custom_call.1} parent=11 // pred_fallthru
          _
        // Predicated region
        $region73: #{tpu_custom_call.1} parent=11 // pred_check
          %p736 = pneg %p474
        $region74: #{tpu_custom_call.1} parent=11 // pred_check_branch
          %738 = sbr.rel (%p736) target = $region76
        $region75: #{tpu_custom_call.1} parent=11 // pred_region
          _
        $region76: #{tpu_custom_call.1} parent=11 // pred_fallthru
          _
        // Predicated region
        $region77: #{tpu_custom_call.1} parent=11 // pred_check
          %p739 = pneg %p495
        $region78: #{tpu_custom_call.1} parent=11 // pred_check_branch
          %741 = sbr.rel (%p739) target = $region80
        $region79: #{tpu_custom_call.1} parent=11 // pred_region
          %s743 = ssub.s32 4096, 4096
          %744 = vsyncadd [#allocation23], %s743
          %s745 = sshll.u32 [#allocation24], 4
          %s746 = int_to_ptr.vmem [resolvable:$true] %s745
          %751 = dma.hbm_to_vmem [thread:$0]  %s20, 4096, %s746, [#allocation23], 64, 64, 4
        $region80: #{tpu_custom_call.1} parent=11 // pred_fallthru
          _
        // Predicated region
        $region81: #{tpu_custom_call.1} parent=11 // pred_check
          %p752 = pneg %p516
        $region82: #{tpu_custom_call.1} parent=11 // pred_check_branch
          %754 = sbr.rel (%p752) target = $region84
        $region83: #{tpu_custom_call.1} parent=11 // pred_region
          _
        $region84: #{tpu_custom_call.1} parent=11 // pred_fallthru
          _
        // Predicated region
        $region85: #{tpu_custom_call.1} parent=11 // pred_check
          %p755 = pneg %p537
        $region86: #{tpu_custom_call.1} parent=11 // pred_check_branch
          %757 = sbr.rel (%p755) target = $region88
        $region87: #{tpu_custom_call.1} parent=11 // pred_region
          _
        $region88: #{tpu_custom_call.1} parent=11 // pred_fallthru
          _
        // Predicated region
        $region89: #{tpu_custom_call.1} parent=11 // pred_check
          %p758 = pneg %p558
        $region90: #{tpu_custom_call.1} parent=11 // pred_check_branch
          %760 = sbr.rel (%p758) target = $region92
        $region91: #{tpu_custom_call.1} parent=11 // pred_region
          _
        $region92: #{tpu_custom_call.1} parent=11 // pred_fallthru
          _
      $region12: #{tpu_custom_call.1} parent=5 // pred_fallthru
        _
      %p761 = scmp.lt.s32.totalorder %s48, 4
      // Predicated region
      $region93: #{tpu_custom_call.1} parent=5 // pred_check
        %p762 = pneg %p761
      $region94: #{tpu_custom_call.1} parent=5 // pred_check_branch
        %764 = sbr.rel (%p762) target = $region96
      $region95: #{tpu_custom_call.1} parent=5 // pred_region
        // Predicated region
        $region97: #{tpu_custom_call.1} parent=95 // pred_check
          %p765 = pneg %p80
        $region98: #{tpu_custom_call.1} parent=95 // pred_check_branch
          %767 = sbr.rel (%p765) target = $region100
        $region99: #{tpu_custom_call.1} parent=95 // pred_region
          %s768 = sand.u32 %s70, 1
          %s769 = scalar_lea.sflag [#allocation5], %s768
          %s770 = sand.u32 %s70, 1
          %s771 = smul.addr %s770, 128
          %s772 = scalar_lea.vmem [#allocation4], %s771
          %s774 = ssub.s32 2048, 2048
          %775 = vsyncadd %s769, %s774
          %s776 = smul.addr %s55, 16
          %s777 = smul.addr %s776, 128
          %s778 = scalar_lea.hbm %s1, %s777
          %s779 = sshll.u32 %s772, 4
          %s780 = int_to_ptr.vmem [resolvable:$true] %s779
          %785 = dma.hbm_to_vmem [thread:$0]  %s778, 2048, %s780, %s769, 128, 128, 8
        $region100: #{tpu_custom_call.1} parent=95 // pred_fallthru
          _
        // Predicated region
        $region101: #{tpu_custom_call.1} parent=95 // pred_check
          %p786 = pneg %p106
        $region102: #{tpu_custom_call.1} parent=95 // pred_check_branch
          %788 = sbr.rel (%p786) target = $region104
        $region103: #{tpu_custom_call.1} parent=95 // pred_region
          %s789 = sand.u32 %s48, 1
          %s790 = scalar_lea.sflag [#allocation8], %s789
          %s791 = sand.u32 %s96, 1
          %s792 = smul.addr %s791, 128
          %s793 = scalar_lea.vmem [#allocation7], %s792
          %s795 = ssub.s32 2048, 2048
          %796 = vsyncadd %s790, %s795
          %s797 = smul.addr %s55, 16
          %s798 = smul.addr %s797, 128
          %s799 = scalar_lea.hbm %s2, %s798
          %s800 = sshll.u32 %s793, 4
          %s801 = int_to_ptr.vmem [resolvable:$true] %s800
          %806 = dma.hbm_to_vmem [thread:$0]  %s799, 2048, %s801, %s790, 128, 128, 8
        $region104: #{tpu_custom_call.1} parent=95 // pred_fallthru
          _
        // Predicated region
        $region105: #{tpu_custom_call.1} parent=95 // pred_check
          %p807 = pneg %p132
        $region106: #{tpu_custom_call.1} parent=95 // pred_check_branch
          %809 = sbr.rel (%p807) target = $region108
        $region107: #{tpu_custom_call.1} parent=95 // pred_region
          %s810 = sand.u32 %s48, 1
          %s811 = scalar_lea.sflag [#allocation8], %s810
          %s812 = sand.u32 %s122, 1
          %s813 = smul.addr %s812, 128
          %s814 = scalar_lea.vmem [#allocation9], %s813
          %s816 = ssub.s32 2048, 2048
          %817 = vsyncadd %s811, %s816
          %s818 = smul.addr %s55, 16
          %s819 = smul.addr %s818, 128
          %s820 = scalar_lea.hbm %s3, %s819
          %s821 = sshll.u32 %s814, 4
          %s822 = int_to_ptr.vmem [resolvable:$true] %s821
          %827 = dma.hbm_to_vmem [thread:$0]  %s820, 2048, %s822, %s811, 128, 128, 8
        $region108: #{tpu_custom_call.1} parent=95 // pred_fallthru
          _
      $region96: #{tpu_custom_call.1} parent=5 // pred_fallthru
        _
      %p828 = scmp.le.s32.totalorder 1, %s48
      %p829 = scmp.lt.s32.totalorder %s48, 5
      %p830 = pnand %p828, %p829
      %p831 = pneg %p830
      // Predicated region
      $region109: #{tpu_custom_call.1} parent=5 // pred_check
        _
      $region110: #{tpu_custom_call.1} parent=5 // pred_check_branch
        %833 = sbr.rel (%p830) target = $region112
      $region111: #{tpu_custom_call.1} parent=5 // pred_region
        %s834 = ssub.s32 %s48, 1
        %s835 = sand.u32 %s73, 1
        %s836 = scalar_lea.sflag [#allocation5], %s835
        %s837 = sand.u32 %s73, 1
        %s838 = smul.addr %s837, 128
        %s839 = scalar_lea.vmem [#allocation4], %s838
        // Predicated region
        $region113: #{tpu_custom_call.1} parent=111 // pred_check
          %p840 = pneg %p86
        $region114: #{tpu_custom_call.1} parent=111 // pred_check_branch
          %842 = sbr.rel (%p840) target = $region116
        $region115: #{tpu_custom_call.1} parent=111 // pred_region
          %843 = dma.done %s836, 2048
        $region116: #{tpu_custom_call.1} parent=111 // pred_fallthru
          _
        %s844 = sand.u32 %s53, 1
        %s845 = scalar_lea.sflag [#allocation8], %s844
        %s846 = sand.u32 %s99, 1
        %s847 = smul.addr %s846, 128
        %s848 = scalar_lea.vmem [#allocation7], %s847
        // Predicated region
        $region117: #{tpu_custom_call.1} parent=111 // pred_check
          %p849 = pneg %p112
        $region118: #{tpu_custom_call.1} parent=111 // pred_check_branch
          %851 = sbr.rel (%p849) target = $region120
        $region119: #{tpu_custom_call.1} parent=111 // pred_region
          %852 = dma.done %s845, 2048
        $region120: #{tpu_custom_call.1} parent=111 // pred_fallthru
          _
        %s853 = sand.u32 %s53, 1
        %s854 = scalar_lea.sflag [#allocation8], %s853
        %s855 = sand.u32 %s125, 1
        %s856 = smul.addr %s855, 128
        %s857 = scalar_lea.vmem [#allocation9], %s856
        // Predicated region
        $region121: #{tpu_custom_call.1} parent=111 // pred_check
          %p858 = pneg %p138
        $region122: #{tpu_custom_call.1} parent=111 // pred_check_branch
          %860 = sbr.rel (%p858) target = $region124
        $region123: #{tpu_custom_call.1} parent=111 // pred_region
          %861 = dma.done %s854, 2048
        $region124: #{tpu_custom_call.1} parent=111 // pred_fallthru
          _
        // Predicated region
        $region125: #{tpu_custom_call.1} parent=111 // pred_check
          %p862 = pneg %p159
        $region126: #{tpu_custom_call.1} parent=111 // pred_check_branch
          %864 = sbr.rel (%p862) target = $region128
        $region127: #{tpu_custom_call.1} parent=111 // pred_region
          %865 = dma.done [#allocation11], 1024
        $region128: #{tpu_custom_call.1} parent=111 // pred_fallthru
          _
        // Predicated region
        $region129: #{tpu_custom_call.1} parent=111 // pred_check
          %p866 = pneg %p180
        $region130: #{tpu_custom_call.1} parent=111 // pred_check_branch
          %868 = sbr.rel (%p866) target = $region132
        $region131: #{tpu_custom_call.1} parent=111 // pred_region
          %869 = dma.done [#allocation11], 1024
        $region132: #{tpu_custom_call.1} parent=111 // pred_fallthru
          _
        // Predicated region
        $region133: #{tpu_custom_call.1} parent=111 // pred_check
          %p870 = pneg %p201
        $region134: #{tpu_custom_call.1} parent=111 // pred_check_branch
          %872 = sbr.rel (%p870) target = $region136
        $region135: #{tpu_custom_call.1} parent=111 // pred_region
          %873 = dma.done [#allocation14], 1024
        $region136: #{tpu_custom_call.1} parent=111 // pred_fallthru
          _
        // Predicated region
        $region137: #{tpu_custom_call.1} parent=111 // pred_check
          %p874 = pneg %p222
        $region138: #{tpu_custom_call.1} parent=111 // pred_check_branch
          %876 = sbr.rel (%p874) target = $region140
        $region139: #{tpu_custom_call.1} parent=111 // pred_region
          %877 = dma.done [#allocation14], 1024
        $region140: #{tpu_custom_call.1} parent=111 // pred_fallthru
          _
        // Predicated region
        $region141: #{tpu_custom_call.1} parent=111 // pred_check
          %p878 = pneg %p306
        $region142: #{tpu_custom_call.1} parent=111 // pred_check_branch
          %880 = sbr.rel (%p878) target = $region144
        $region143: #{tpu_custom_call.1} parent=111 // pred_region
          %881 = dma.done [#allocation17], 1024
        $region144: #{tpu_custom_call.1} parent=111 // pred_fallthru
          _
        // Predicated region
        $region145: #{tpu_custom_call.1} parent=111 // pred_check
          %p882 = pneg %p327
        $region146: #{tpu_custom_call.1} parent=111 // pred_check_branch
          %884 = sbr.rel (%p882) target = $region148
        $region147: #{tpu_custom_call.1} parent=111 // pred_region
          %885 = dma.done [#allocation17], 1024
        $region148: #{tpu_custom_call.1} parent=111 // pred_fallthru
          _
        // Predicated region
        $region149: #{tpu_custom_call.1} parent=111 // pred_check
          %p886 = pneg %p348
        $region150: #{tpu_custom_call.1} parent=111 // pred_check_branch
          %888 = sbr.rel (%p886) target = $region152
        $region151: #{tpu_custom_call.1} parent=111 // pred_region
          %889 = dma.done [#allocation20], 1024
        $region152: #{tpu_custom_call.1} parent=111 // pred_fallthru
          _
        // Predicated region
        $region153: #{tpu_custom_call.1} parent=111 // pred_check
          %p890 = pneg %p369
        $region154: #{tpu_custom_call.1} parent=111 // pred_check_branch
          %892 = sbr.rel (%p890) target = $region156
        $region155: #{tpu_custom_call.1} parent=111 // pred_region
          %893 = dma.done [#allocation20], 1024
        $region156: #{tpu_custom_call.1} parent=111 // pred_fallthru
          _
        // Predicated region
        $region157: #{tpu_custom_call.1} parent=111 // pred_check
          %p894 = pneg %p453
        $region158: #{tpu_custom_call.1} parent=111 // pred_check_branch
          %896 = sbr.rel (%p894) target = $region160
        $region159: #{tpu_custom_call.1} parent=111 // pred_region
          %897 = dma.done [#allocation23], 4096
        $region160: #{tpu_custom_call.1} parent=111 // pred_fallthru
          _
        // Predicated region
        $region161: #{tpu_custom_call.1} parent=111 // pred_check
          %p898 = pneg %p495
        $region162: #{tpu_custom_call.1} parent=111 // pred_check_branch
          %900 = sbr.rel (%p898) target = $region164
        $region163: #{tpu_custom_call.1} parent=111 // pred_region
          %901 = dma.done [#allocation23], 4096
        $region164: #{tpu_custom_call.1} parent=111 // pred_fallthru
          _
        %s902 = sand.u32 %s73, 1
        %s903 = scalar_lea.sflag [#allocation5], %s902
        %s904 = sand.u32 %s73, 1
        %s905 = smul.addr %s904, 128
        %s906 = scalar_lea.vmem [#allocation4], %s905
        %p907 = pneg %p86
        %p908 = pneg %p83
        %s909 = sand.u32 %s53, 1
        %s910 = scalar_lea.sflag [#allocation8], %s909
        %s911 = sand.u32 %s99, 1
        %s912 = smul.addr %s911, 128
        %s913 = scalar_lea.vmem [#allocation7], %s912
        %p914 = pneg %p112
        %p915 = pneg %p109
        %s916 = sand.u32 %s53, 1
        %s917 = scalar_lea.sflag [#allocation8], %s916
        %s918 = sand.u32 %s125, 1
        %s919 = smul.addr %s918, 128
        %s920 = scalar_lea.vmem [#allocation9], %s919
        %p921 = pneg %p138
        %p922 = pneg %p135
        %p923 = pneg %p159
        %p924 = pneg %p156
        %p925 = pneg %p180
        %p926 = pneg %p177
        %p927 = pneg %p201
        %p928 = pneg %p198
        %p929 = pneg %p222
        %p930 = pneg %p219
        %p931 = pneg %p243
        %p932 = pneg %p240
        %p933 = pneg %p264
        %p934 = pneg %p261
        %p935 = pneg %p285
        %p936 = pneg %p282
        %p937 = pneg %p306
        %p938 = pneg %p303
        %p939 = pneg %p327
        %p940 = pneg %p324
        %p941 = pneg %p348
        %p942 = pneg %p345
        %p943 = pneg %p369
        %p944 = pneg %p366
        %p945 = pneg %p390
        %p946 = pneg %p387
        %p947 = pneg %p411
        %p948 = pneg %p408
        %p949 = pneg %p432
        %p950 = pneg %p429
        %p951 = pneg %p453
        %p952 = pneg %p450
        %p953 = pneg %p474
        %p954 = pneg %p471
        %p955 = pneg %p495
        %p956 = pneg %p492
        %p957 = pneg %p516
        %p958 = pneg %p513
        %p959 = pneg %p537
        %p960 = pneg %p534
        %p961 = pneg %p558
        %p962 = pneg %p555
        %p963 = pneg %p586
        %p964 = pneg %p583
        %s965 = sand.u32 %s573, 1
        %s966 = scalar_lea.sflag [#allocation6], %s965
        %s967 = sand.u32 %s573, 1
        %s968 = smul.addr %s967, 64
        %s969 = scalar_lea.vmem [#allocation25], %s968
        %s970 = smul.u32 8, %s58
        %s972 = smul.u32 %s58, 64
        %v973 = vld [vmem:[%s839] sm:$0xff]
        %v974 = vld [vmem:[%s839 + $0x8] sm:$0xff]
        %v975 = vld [vmem:[%s839 + $0x10] sm:$0xff]
        %v976 = vld [vmem:[%s839 + $0x18] sm:$0xff]
        %v977 = vld [vmem:[%s839 + $0x20] sm:$0xff]
        %v978 = vld [vmem:[%s839 + $0x28] sm:$0xff]
        %v979 = vld [vmem:[%s839 + $0x30] sm:$0xff]
        %v980 = vld [vmem:[%s839 + $0x38] sm:$0xff]
        %v981 = vld [vmem:[%s839 + $0x40] sm:$0xff]
        %v982 = vld [vmem:[%s839 + $0x48] sm:$0xff]
        %v983 = vld [vmem:[%s839 + $0x50] sm:$0xff]
        %v984 = vld [vmem:[%s839 + $0x58] sm:$0xff]
        %v985 = vld [vmem:[%s839 + $0x60] sm:$0xff]
        %v986 = vld [vmem:[%s839 + $0x68] sm:$0xff]
        %v987 = vld [vmem:[%s839 + $0x70] sm:$0xff]
        %v988 = vld [vmem:[%s839 + $0x78] sm:$0xff]
        %s989 = scalar_lea.vmem %s839, %s972 [#allocation4]
        %v990 = vld [vmem:[%s989] sm:$0xff]
        %v991 = vld [vmem:[%s989 + $0x8] sm:$0xff]
        %v992 = vld [vmem:[%s989 + $0x10] sm:$0xff]
        %v993 = vld [vmem:[%s989 + $0x18] sm:$0xff]
        %v994 = vld [vmem:[%s989 + $0x20] sm:$0xff]
        %v995 = vld [vmem:[%s989 + $0x28] sm:$0xff]
        %v996 = vld [vmem:[%s989 + $0x30] sm:$0xff]
        %v997 = vld [vmem:[%s989 + $0x38] sm:$0xff]
        %v998 = vld [vmem:[%s848] sm:$0xff]
        %v999 = vld [vmem:[%s848 + $0x8] sm:$0xff]
        %v1000 = vld [vmem:[%s848 + $0x10] sm:$0xff]
        %v1001 = vld [vmem:[%s848 + $0x18] sm:$0xff]
        %v1002 = vld [vmem:[%s848 + $0x20] sm:$0xff]
        %v1003 = vld [vmem:[%s848 + $0x28] sm:$0xff]
        %v1004 = vld [vmem:[%s848 + $0x30] sm:$0xff]
        %v1005 = vld [vmem:[%s848 + $0x38] sm:$0xff]
        %v1006 = vld [vmem:[%s848 + $0x40] sm:$0xff]
        %v1007 = vld [vmem:[%s848 + $0x48] sm:$0xff]
        %v1008 = vld [vmem:[%s848 + $0x50] sm:$0xff]
        %v1009 = vld [vmem:[%s848 + $0x58] sm:$0xff]
        %v1010 = vld [vmem:[%s848 + $0x60] sm:$0xff]
        %v1011 = vld [vmem:[%s848 + $0x68] sm:$0xff]
        %v1012 = vld [vmem:[%s848 + $0x70] sm:$0xff]
        %v1013 = vld [vmem:[%s848 + $0x78] sm:$0xff]
        %v1014 = vld [vmem:[%s857] sm:$0xff]
        %v1015 = vld [vmem:[%s857 + $0x8] sm:$0xff]
        %v1016 = vld [vmem:[%s857 + $0x10] sm:$0xff]
        %v1017 = vld [vmem:[%s857 + $0x18] sm:$0xff]
        %v1018 = vld [vmem:[%s857 + $0x20] sm:$0xff]
        %v1019 = vld [vmem:[%s857 + $0x28] sm:$0xff]
        %v1020 = vld [vmem:[%s857 + $0x30] sm:$0xff]
        %v1021 = vld [vmem:[%s857 + $0x38] sm:$0xff]
        %v1022 = vld [vmem:[%s857 + $0x40] sm:$0xff]
        %v1023 = vld [vmem:[%s857 + $0x48] sm:$0xff]
        %v1024 = vld [vmem:[%s857 + $0x50] sm:$0xff]
        %v1025 = vld [vmem:[%s857 + $0x58] sm:$0xff]
        %v1026 = vld [vmem:[%s857 + $0x60] sm:$0xff]
        %v1027 = vld [vmem:[%s857 + $0x68] sm:$0xff]
        %v1028 = vld [vmem:[%s857 + $0x70] sm:$0xff]
        %v1029 = vld [vmem:[%s857 + $0x78] sm:$0xff]
        %v1030 = vlaneseq
        %v1031 = vshrl.u32 %v1030, 7
        %v1032 = vadd.s32 %v1031, 8
        %v1033 = vadd.s32 %v1031, 16
        %v1034 = vadd.s32 %v1031, 24
        %v1035 = vadd.s32 %v1031, 32
        %v1036 = vadd.s32 %v1031, 40
        %v1037 = vadd.s32 %v1031, 48
        %v1038 = vadd.s32 %v1031, 56
        %v1039 = vstv %s972
        %v1040 = vadd.s32 %v1031, %v1039
        %v1041 = vadd.s32 %v1032, %v1039
        %v1042 = vadd.s32 %v1033, %v1039
        %v1043 = vadd.s32 %v1034, %v1039
        %v1044 = vadd.s32 %v1035, %v1039
        %v1045 = vadd.s32 %v1036, %v1039
        %v1046 = vadd.s32 %v1037, %v1039
        %v1047 = vadd.s32 %v1038, %v1039
        %v1048 = vlaneseq
        %v1049 = vand.u32 %v1048, 127
        %vm1050 = vcmp.ge.s32.totalorder %v1040, %v1049
        %vm1051 = vcmp.ge.s32.totalorder %v1041, %v1049
        %vm1052 = vcmp.ge.s32.totalorder %v1042, %v1049
        %vm1053 = vcmp.ge.s32.totalorder %v1043, %v1049
        %vm1054 = vcmp.ge.s32.totalorder %v1044, %v1049
        %vm1055 = vcmp.ge.s32.totalorder %v1045, %v1049
        %vm1056 = vcmp.ge.s32.totalorder %v1046, %v1049
        %vm1057 = vcmp.ge.s32.totalorder %v1047, %v1049
        %s1058 = sld [smem:[#allocation3 + %s57]]
        %v1059 = vstv %s1058
        %vm1060 = vcmp.lt.s32.totalorder %v1049, %v1059
        %v1061 = vpack.c.bf16 %v974, %v973
        %v1062 = vpack.c.bf16 %v976, %v975
        %v1063 = vpack.c.bf16 %v978, %v977
        %v1064 = vpack.c.bf16 %v980, %v979
        %v1065 = vpack.c.bf16 %v982, %v981
        %v1066 = vpack.c.bf16 %v984, %v983
        %v1067 = vpack.c.bf16 %v986, %v985
        %v1068 = vpack.c.bf16 %v988, %v987
        %v1069 = vld [vmem:[#allocation13] sm:$0xf]
        %v1070 = vld [vmem:[#allocation13 + $0x4] sm:$0xf]
        %v1071 = vld [vmem:[#allocation13 + $0x8] sm:$0xf]
        %v1072 = vld [vmem:[#allocation13 + $0xc] sm:$0xf]
        %v1073 = vld [vmem:[#allocation13 + $0x10] sm:$0xf]
        %v1074 = vld [vmem:[#allocation13 + $0x14] sm:$0xf]
        %v1075 = vld [vmem:[#allocation13 + $0x18] sm:$0xf]
        %v1076 = vld [vmem:[#allocation13 + $0x1c] sm:$0xf]
        %v1077 = vld [vmem:[#allocation13 + $0x20] sm:$0xf]
        %v1078 = vld [vmem:[#allocation13 + $0x24] sm:$0xf]
        %v1079 = vld [vmem:[#allocation13 + $0x28] sm:$0xf]
        %v1080 = vld [vmem:[#allocation13 + $0x2c] sm:$0xf]
        %v1081 = vld [vmem:[#allocation13 + $0x30] sm:$0xf]
        %v1082 = vld [vmem:[#allocation13 + $0x34] sm:$0xf]
        %v1083 = vld [vmem:[#allocation13 + $0x38] sm:$0xf]
        %v1084 = vld [vmem:[#allocation13 + $0x3c] sm:$0xf]
        %v1101 = vunpack.c.l.b16 %v1069
        %v1102 = vunpack.c.l.b16 %v1070
        %v1103 = vunpack.c.l.b16 %v1071
        %v1104 = vunpack.c.l.b16 %v1072
        %v1105 = vunpack.c.l.b16 %v1073
        %v1106 = vunpack.c.l.b16 %v1074
        %v1107 = vunpack.c.l.b16 %v1075
        %v1108 = vunpack.c.l.b16 %v1076
        %v1109 = vunpack.c.l.b16 %v1077
        %v1110 = vunpack.c.l.b16 %v1078
        %v1111 = vunpack.c.l.b16 %v1079
        %v1112 = vunpack.c.l.b16 %v1080
        %v1113 = vunpack.c.l.b16 %v1081
        %v1114 = vunpack.c.l.b16 %v1082
        %v1115 = vunpack.c.l.b16 %v1083
        %v1116 = vunpack.c.l.b16 %v1084
        %v1117 = vpack.c.b16 %v1102, %v1101
        %v1118 = vpack.c.b16 %v1104, %v1103
        %v1119 = vpack.c.b16 %v1106, %v1105
        %v1120 = vpack.c.b16 %v1108, %v1107
        %v1121 = vpack.c.b16 %v1110, %v1109
        %v1122 = vpack.c.b16 %v1112, %v1111
        %v1123 = vpack.c.b16 %v1114, %v1113
        %v1124 = vpack.c.b16 %v1116, %v1115
        %1133 = vmatprep.subr.bf16.mxu0 0
        %1134 = vmatpush1.bf16.msra.mxu0 %v1124
        %1135 = vmatprep.subr.bf16.mxu0 0
        %1136 = vmatpush1.bf16.msra.mxu0 %v1123
        %1137 = vmatprep.subr.bf16.mxu0 0
        %1138 = vmatpush1.bf16.msra.mxu0 %v1122
        %1139 = vmatprep.subr.bf16.mxu0 0
        %1140 = vmatpush1.bf16.msra.mxu0 %v1121
        %1141 = vmatprep.subr.bf16.mxu0 0
        %1142 = vmatpush1.bf16.msra.mxu0 %v1120
        %1143 = vmatprep.subr.bf16.mxu0 0
        %1144 = vmatpush1.bf16.msra.mxu0 %v1119
        %1145 = vmatprep.subr.bf16.mxu0 0
        %1146 = vmatpush1.bf16.msra.mxu0 %v1118
        %1147 = vmatprep.subr.bf16.mxu0 0
        %1148 = vmatpush1.bf16.msra.mxu0 %v1117
        %1149 = vmatprep.subr.bf16.mxu0 0
        %1150 = vmatpush2.bf16.msra.mxu0 0
        %1151 = vmatprep.subr.bf16.mxu0 0
        %1152 = vmatpush2.bf16.msra.mxu0 0
        %1153 = vmatprep.subr.bf16.mxu0 0
        %1154 = vmatpush2.bf16.msra.mxu0 0
        %1155 = vmatprep.subr.bf16.mxu0 0
        %1156 = vmatpush2.bf16.msra.mxu0 0
        %1157 = vmatprep.subr.bf16.mxu0 0
        %1158 = vmatpush2.bf16.msra.mxu0 0
        %1159 = vmatprep.subr.bf16.mxu0 0
        %1160 = vmatpush2.bf16.msra.mxu0 0
        %1161 = vmatprep.subr.bf16.mxu0 0
        %1162 = vmatpush2.bf16.msra.mxu0 0
        %1163 = vmatprep.subr.bf16.mxu0 0
        %1164 = vmatpush2.bf16.msra.mxu0 0
        %1165 = vmatprep.mubr.bf16.mxu0 0
        %1166 = vmatmul.mubr.bf16.gmra.mxu0 %v1061
        %v1167 = vpop.f32.mrf.mxu0
        %v1168 = vadd.f32 0.0, %v1167
        %v1169 = vpop.f32.mrf.mxu0
        %v1170 = vpop.f32.mrf.mxu0
        %v1171 = vadd.f32 0.0, %v1170
        %v1172 = vpop.f32.mrf.mxu0
        %1173 = vmatprep.mubr.bf16.mxu0 0
        %1174 = vmatmul.mubr.bf16.gmra.mxu0 %v1062
        %v1175 = vpop.f32.mrf.mxu0
        %v1176 = vadd.f32 0.0, %v1175
        %v1177 = vpop.f32.mrf.mxu0
        %v1178 = vpop.f32.mrf.mxu0
        %v1179 = vadd.f32 0.0, %v1178
        %v1180 = vpop.f32.mrf.mxu0
        %1181 = vmatprep.mubr.bf16.mxu0 0
        %1182 = vmatmul.mubr.bf16.gmra.mxu0 %v1063
        %v1183 = vpop.f32.mrf.mxu0
        %v1184 = vadd.f32 0.0, %v1183
        %v1185 = vpop.f32.mrf.mxu0
        %v1186 = vpop.f32.mrf.mxu0
        %v1187 = vadd.f32 0.0, %v1186
        %v1188 = vpop.f32.mrf.mxu0
        %1189 = vmatprep.mubr.bf16.mxu0 0
        %1190 = vmatmul.mubr.bf16.gmra.mxu0 %v1064
        %v1191 = vpop.f32.mrf.mxu0
        %v1192 = vadd.f32 0.0, %v1191
        %v1193 = vpop.f32.mrf.mxu0
        %v1194 = vpop.f32.mrf.mxu0
        %v1195 = vadd.f32 0.0, %v1194
        %v1196 = vpop.f32.mrf.mxu0
        %1197 = vmatprep.mubr.bf16.mxu0 0
        %1198 = vmatmul.mubr.bf16.gmra.mxu0 %v1065
        %v1199 = vpop.f32.mrf.mxu0
        %v1200 = vadd.f32 0.0, %v1199
        %v1201 = vpop.f32.mrf.mxu0
        %v1202 = vpop.f32.mrf.mxu0
        %v1203 = vadd.f32 0.0, %v1202
        %v1204 = vpop.f32.mrf.mxu0
        %1205 = vmatprep.mubr.bf16.mxu0 0
        %1206 = vmatmul.mubr.bf16.gmra.mxu0 %v1066
        %v1207 = vpop.f32.mrf.mxu0
        %v1208 = vadd.f32 0.0, %v1207
        %v1209 = vpop.f32.mrf.mxu0
        %v1210 = vpop.f32.mrf.mxu0
        %v1211 = vadd.f32 0.0, %v1210
        %v1212 = vpop.f32.mrf.mxu0
        %1213 = vmatprep.mubr.bf16.mxu0 0
        %1214 = vmatmul.mubr.bf16.gmra.mxu0 %v1067
        %v1215 = vpop.f32.mrf.mxu0
        %v1216 = vadd.f32 0.0, %v1215
        %v1217 = vpop.f32.mrf.mxu0
        %v1218 = vpop.f32.mrf.mxu0
        %v1219 = vadd.f32 0.0, %v1218
        %v1220 = vpop.f32.mrf.mxu0
        %1221 = vmatprep.mubr.bf16.mxu0 0
        %1222 = vmatmul.mubr.bf16.gmra.mxu0 %v1068
        %v1223 = vpop.f32.mrf.mxu0
        %v1224 = vadd.f32 0.0, %v1223
        %v1225 = vpop.f32.mrf.mxu0
        %v1226 = vpop.f32.mrf.mxu0
        %v1227 = vadd.f32 0.0, %v1226
        %v1228 = vpop.f32.mrf.mxu0
        %1229 = vdwg.mxu0
        %v1230 = vld [vmem:[#allocation12] sm:$0xf]
        %v1231 = vld [vmem:[#allocation12 + $0x4] sm:$0xf]
        %v1232 = vld [vmem:[#allocation12 + $0x8] sm:$0xf]
        %v1233 = vld [vmem:[#allocation12 + $0xc] sm:$0xf]
        %v1234 = vld [vmem:[#allocation12 + $0x10] sm:$0xf]
        %v1235 = vld [vmem:[#allocation12 + $0x14] sm:$0xf]
        %v1236 = vld [vmem:[#allocation12 + $0x18] sm:$0xf]
        %v1237 = vld [vmem:[#allocation12 + $0x1c] sm:$0xf]
        %v1238 = vld [vmem:[#allocation12 + $0x20] sm:$0xf]
        %v1239 = vld [vmem:[#allocation12 + $0x24] sm:$0xf]
        %v1240 = vld [vmem:[#allocation12 + $0x28] sm:$0xf]
        %v1241 = vld [vmem:[#allocation12 + $0x2c] sm:$0xf]
        %v1242 = vld [vmem:[#allocation12 + $0x30] sm:$0xf]
        %v1243 = vld [vmem:[#allocation12 + $0x34] sm:$0xf]
        %v1244 = vld [vmem:[#allocation12 + $0x38] sm:$0xf]
        %v1245 = vld [vmem:[#allocation12 + $0x3c] sm:$0xf]
        %v1262 = vunpack.c.l.b16 %v1230
        %v1263 = vunpack.c.l.b16 %v1231
        %v1264 = vunpack.c.l.b16 %v1232
        %v1265 = vunpack.c.l.b16 %v1233
        %v1266 = vunpack.c.l.b16 %v1234
        %v1267 = vunpack.c.l.b16 %v1235
        %v1268 = vunpack.c.l.b16 %v1236
        %v1269 = vunpack.c.l.b16 %v1237
        %v1270 = vunpack.c.l.b16 %v1238
        %v1271 = vunpack.c.l.b16 %v1239
        %v1272 = vunpack.c.l.b16 %v1240
        %v1273 = vunpack.c.l.b16 %v1241
        %v1274 = vunpack.c.l.b16 %v1242
        %v1275 = vunpack.c.l.b16 %v1243
        %v1276 = vunpack.c.l.b16 %v1244
        %v1277 = vunpack.c.l.b16 %v1245
        %v1278 = vpack.c.b16 %v1263, %v1262
        %v1279 = vpack.c.b16 %v1265, %v1264
        %v1280 = vpack.c.b16 %v1267, %v1266
        %v1281 = vpack.c.b16 %v1269, %v1268
        %v1282 = vpack.c.b16 %v1271, %v1270
        %v1283 = vpack.c.b16 %v1273, %v1272
        %v1284 = vpack.c.b16 %v1275, %v1274
        %v1285 = vpack.c.b16 %v1277, %v1276
        %1294 = vmatprep.subr.bf16.mxu0 0
        %1295 = vmatpush1.bf16.msra.mxu0 %v1285
        %1296 = vmatprep.subr.bf16.mxu0 0
        %1297 = vmatpush1.bf16.msra.mxu0 %v1284
        %1298 = vmatprep.subr.bf16.mxu0 0
        %1299 = vmatpush1.bf16.msra.mxu0 %v1283
        %1300 = vmatprep.subr.bf16.mxu0 0
        %1301 = vmatpush1.bf16.msra.mxu0 %v1282
        %1302 = vmatprep.subr.bf16.mxu0 0
        %1303 = vmatpush1.bf16.msra.mxu0 %v1281
        %1304 = vmatprep.subr.bf16.mxu0 0
        %1305 = vmatpush1.bf16.msra.mxu0 %v1280
        %1306 = vmatprep.subr.bf16.mxu0 0
        %1307 = vmatpush1.bf16.msra.mxu0 %v1279
        %1308 = vmatprep.subr.bf16.mxu0 0
        %1309 = vmatpush1.bf16.msra.mxu0 %v1278
        %1310 = vmatprep.subr.bf16.mxu0 0
        %1311 = vmatpush2.bf16.msra.mxu0 0
        %1312 = vmatprep.subr.bf16.mxu0 0
        %1313 = vmatpush2.bf16.msra.mxu0 0
        %1314 = vmatprep.subr.bf16.mxu0 0
        %1315 = vmatpush2.bf16.msra.mxu0 0
        %1316 = vmatprep.subr.bf16.mxu0 0
        %1317 = vmatpush2.bf16.msra.mxu0 0
        %1318 = vmatprep.subr.bf16.mxu0 0
        %1319 = vmatpush2.bf16.msra.mxu0 0
        %1320 = vmatprep.subr.bf16.mxu0 0
        %1321 = vmatpush2.bf16.msra.mxu0 0
        %1322 = vmatprep.subr.bf16.mxu0 0
        %1323 = vmatpush2.bf16.msra.mxu0 0
        %1324 = vmatprep.subr.bf16.mxu0 0
        %1325 = vmatpush2.bf16.msra.mxu0 0
        %1326 = vmatprep.mubr.bf16.mxu0 0
        %1327 = vmatmul.mubr.bf16.gmra.mxu0 %v1061
        %v1328 = vpop.f32.mrf.mxu0
        %v1329 = vadd.f32 0.0, %v1328
        %v1330 = vpop.f32.mrf.mxu0
        %v1331 = vpop.f32.mrf.mxu0
        %v1332 = vadd.f32 0.0, %v1331
        %v1333 = vpop.f32.mrf.mxu0
        %1334 = vmatprep.mubr.bf16.mxu0 0
        %1335 = vmatmul.mubr.bf16.gmra.mxu0 %v1062
        %v1336 = vpop.f32.mrf.mxu0
        %v1337 = vadd.f32 0.0, %v1336
        %v1338 = vpop.f32.mrf.mxu0
        %v1339 = vpop.f32.mrf.mxu0
        %v1340 = vadd.f32 0.0, %v1339
        %v1341 = vpop.f32.mrf.mxu0
        %1342 = vmatprep.mubr.bf16.mxu0 0
        %1343 = vmatmul.mubr.bf16.gmra.mxu0 %v1063
        %v1344 = vpop.f32.mrf.mxu0
        %v1345 = vadd.f32 0.0, %v1344
        %v1346 = vpop.f32.mrf.mxu0
        %v1347 = vpop.f32.mrf.mxu0
        %v1348 = vadd.f32 0.0, %v1347
        %v1349 = vpop.f32.mrf.mxu0
        %1350 = vmatprep.mubr.bf16.mxu0 0
        %1351 = vmatmul.mubr.bf16.gmra.mxu0 %v1064
        %v1352 = vpop.f32.mrf.mxu0
        %v1353 = vadd.f32 0.0, %v1352
        %v1354 = vpop.f32.mrf.mxu0
        %v1355 = vpop.f32.mrf.mxu0
        %v1356 = vadd.f32 0.0, %v1355
        %v1357 = vpop.f32.mrf.mxu0
        %1358 = vmatprep.mubr.bf16.mxu0 0
        %1359 = vmatmul.mubr.bf16.gmra.mxu0 %v1065
        %v1360 = vpop.f32.mrf.mxu0
        %v1361 = vadd.f32 0.0, %v1360
        %v1362 = vpop.f32.mrf.mxu0
        %v1363 = vpop.f32.mrf.mxu0
        %v1364 = vadd.f32 0.0, %v1363
        %v1365 = vpop.f32.mrf.mxu0
        %1366 = vmatprep.mubr.bf16.mxu0 0
        %1367 = vmatmul.mubr.bf16.gmra.mxu0 %v1066
        %v1368 = vpop.f32.mrf.mxu0
        %v1369 = vadd.f32 0.0, %v1368
        %v1370 = vpop.f32.mrf.mxu0
        %v1371 = vpop.f32.mrf.mxu0
        %v1372 = vadd.f32 0.0, %v1371
        %v1373 = vpop.f32.mrf.mxu0
        %1374 = vmatprep.mubr.bf16.mxu0 0
        %1375 = vmatmul.mubr.bf16.gmra.mxu0 %v1067
        %v1376 = vpop.f32.mrf.mxu0
        %v1377 = vadd.f32 0.0, %v1376
        %v1378 = vpop.f32.mrf.mxu0
        %v1379 = vpop.f32.mrf.mxu0
        %v1380 = vadd.f32 0.0, %v1379
        %v1381 = vpop.f32.mrf.mxu0
        %1382 = vmatprep.mubr.bf16.mxu0 0
        %1383 = vmatmul.mubr.bf16.gmra.mxu0 %v1068
        %v1384 = vpop.f32.mrf.mxu0
        %v1385 = vadd.f32 0.0, %v1384
        %v1386 = vpop.f32.mrf.mxu0
        %v1387 = vpop.f32.mrf.mxu0
        %v1388 = vadd.f32 0.0, %v1387
        %v1389 = vpop.f32.mrf.mxu0
        %1390 = vdwg.mxu0
        %v1391 = vpack.c.bf16 %v991, %v990
        %v1392 = vpack.c.bf16 %v993, %v992
        %v1393 = vpack.c.bf16 %v995, %v994
        %v1394 = vpack.c.bf16 %v997, %v996
        %v1395 = vld [vmem:[#allocation10] sm:$0xf]
        %v1396 = vld [vmem:[#allocation10 + $0x4] sm:$0xf]
        %v1397 = vld [vmem:[#allocation10 + $0x8] sm:$0xf]
        %v1398 = vld [vmem:[#allocation10 + $0xc] sm:$0xf]
        %v1399 = vld [vmem:[#allocation10 + $0x10] sm:$0xf]
        %v1400 = vld [vmem:[#allocation10 + $0x14] sm:$0xf]
        %v1401 = vld [vmem:[#allocation10 + $0x18] sm:$0xf]
        %v1402 = vld [vmem:[#allocation10 + $0x1c] sm:$0xf]
        %v1403 = vld [vmem:[#allocation10 + $0x20] sm:$0xf]
        %v1404 = vld [vmem:[#allocation10 + $0x24] sm:$0xf]
        %v1405 = vld [vmem:[#allocation10 + $0x28] sm:$0xf]
        %v1406 = vld [vmem:[#allocation10 + $0x2c] sm:$0xf]
        %v1407 = vld [vmem:[#allocation10 + $0x30] sm:$0xf]
        %v1408 = vld [vmem:[#allocation10 + $0x34] sm:$0xf]
        %v1409 = vld [vmem:[#allocation10 + $0x38] sm:$0xf]
        %v1410 = vld [vmem:[#allocation10 + $0x3c] sm:$0xf]
        %v1427 = vunpack.c.l.b16 %v1395
        %v1428 = vunpack.c.l.b16 %v1396
        %v1429 = vunpack.c.l.b16 %v1397
        %v1430 = vunpack.c.l.b16 %v1398
        %v1431 = vunpack.c.l.b16 %v1399
        %v1432 = vunpack.c.l.b16 %v1400
        %v1433 = vunpack.c.l.b16 %v1401
        %v1434 = vunpack.c.l.b16 %v1402
        %v1435 = vunpack.c.l.b16 %v1403
        %v1436 = vunpack.c.l.b16 %v1404
        %v1437 = vunpack.c.l.b16 %v1405
        %v1438 = vunpack.c.l.b16 %v1406
        %v1439 = vunpack.c.l.b16 %v1407
        %v1440 = vunpack.c.l.b16 %v1408
        %v1441 = vunpack.c.l.b16 %v1409
        %v1442 = vunpack.c.l.b16 %v1410
        %v1443 = vpack.c.b16 %v1428, %v1427
        %v1444 = vpack.c.b16 %v1430, %v1429
        %v1445 = vpack.c.b16 %v1432, %v1431
        %v1446 = vpack.c.b16 %v1434, %v1433
        %v1447 = vpack.c.b16 %v1436, %v1435
        %v1448 = vpack.c.b16 %v1438, %v1437
        %v1449 = vpack.c.b16 %v1440, %v1439
        %v1450 = vpack.c.b16 %v1442, %v1441
        %1459 = vmatprep.subr.bf16.mxu0 0
        %1460 = vmatpush1.bf16.msra.mxu0 %v1450
        %1461 = vmatprep.subr.bf16.mxu0 0
        %1462 = vmatpush1.bf16.msra.mxu0 %v1449
        %1463 = vmatprep.subr.bf16.mxu0 0
        %1464 = vmatpush1.bf16.msra.mxu0 %v1448
        %1465 = vmatprep.subr.bf16.mxu0 0
        %1466 = vmatpush1.bf16.msra.mxu0 %v1447
        %1467 = vmatprep.subr.bf16.mxu0 0
        %1468 = vmatpush1.bf16.msra.mxu0 %v1446
        %1469 = vmatprep.subr.bf16.mxu0 0
        %1470 = vmatpush1.bf16.msra.mxu0 %v1445
        %1471 = vmatprep.subr.bf16.mxu0 0
        %1472 = vmatpush1.bf16.msra.mxu0 %v1444
        %1473 = vmatprep.subr.bf16.mxu0 0
        %1474 = vmatpush1.bf16.msra.mxu0 %v1443
        %1475 = vmatprep.subr.bf16.mxu0 0
        %1476 = vmatpush2.bf16.msra.mxu0 0
        %1477 = vmatprep.subr.bf16.mxu0 0
        %1478 = vmatpush2.bf16.msra.mxu0 0
        %1479 = vmatprep.subr.bf16.mxu0 0
        %1480 = vmatpush2.bf16.msra.mxu0 0
        %1481 = vmatprep.subr.bf16.mxu0 0
        %1482 = vmatpush2.bf16.msra.mxu0 0
        %1483 = vmatprep.subr.bf16.mxu0 0
        %1484 = vmatpush2.bf16.msra.mxu0 0
        %1485 = vmatprep.subr.bf16.mxu0 0
        %1486 = vmatpush2.bf16.msra.mxu0 0
        %1487 = vmatprep.subr.bf16.mxu0 0
        %1488 = vmatpush2.bf16.msra.mxu0 0
        %1489 = vmatprep.subr.bf16.mxu0 0
        %1490 = vmatpush2.bf16.msra.mxu0 0
        %1491 = vmatprep.mubr.bf16.mxu0 0
        %1492 = vmatmul.mubr.bf16.gmra.mxu0 %v1391
        %v1493 = vpop.f32.mrf.mxu0
        %v1494 = vadd.f32 0.0, %v1493
        %v1495 = vpop.f32.mrf.mxu0
        %v1496 = vpop.f32.mrf.mxu0
        %v1497 = vadd.f32 0.0, %v1496
        %v1498 = vpop.f32.mrf.mxu0
        %1499 = vmatprep.mubr.bf16.mxu0 0
        %1500 = vmatmul.mubr.bf16.gmra.mxu0 %v1392
        %v1501 = vpop.f32.mrf.mxu0
        %v1502 = vadd.f32 0.0, %v1501
        %v1503 = vpop.f32.mrf.mxu0
        %v1504 = vpop.f32.mrf.mxu0
        %v1505 = vadd.f32 0.0, %v1504
        %v1506 = vpop.f32.mrf.mxu0
        %1507 = vmatprep.mubr.bf16.mxu0 0
        %1508 = vmatmul.mubr.bf16.gmra.mxu0 %v1393
        %v1509 = vpop.f32.mrf.mxu0
        %v1510 = vadd.f32 0.0, %v1509
        %v1511 = vpop.f32.mrf.mxu0
        %v1512 = vpop.f32.mrf.mxu0
        %v1513 = vadd.f32 0.0, %v1512
        %v1514 = vpop.f32.mrf.mxu0
        %1515 = vmatprep.mubr.bf16.mxu0 0
        %1516 = vmatmul.mubr.bf16.gmra.mxu0 %v1394
        %v1517 = vpop.f32.mrf.mxu0
        %v1518 = vadd.f32 0.0, %v1517
        %v1519 = vpop.f32.mrf.mxu0
        %v1520 = vpop.f32.mrf.mxu0
        %v1521 = vadd.f32 0.0, %v1520
        %v1522 = vpop.f32.mrf.mxu0
        %1523 = vdwg.mxu0
        %v1524 = vpack.c.bf16 %v1497, %v1494
        %v1525 = vpack.c.bf16 %v1505, %v1502
        %v1526 = vpack.c.bf16 %v1513, %v1510
        %v1527 = vpack.c.bf16 %v1521, %v1518
        %v1528 = vpack.c.bf16 %v1332, %v1329
        %v1529 = vpack.c.bf16 %v1340, %v1337
        %v1530 = vpack.c.bf16 %v1348, %v1345
        %v1531 = vpack.c.bf16 %v1356, %v1353
        %v1532 = vpack.c.bf16 %v1364, %v1361
        %v1533 = vpack.c.bf16 %v1372, %v1369
        %v1534 = vpack.c.bf16 %v1380, %v1377
        %v1535 = vpack.c.bf16 %v1388, %v1385
        %v1536 = vpack.c.bf16 %v1171, %v1168
        %v1537 = vpack.c.bf16 %v1179, %v1176
        %v1538 = vpack.c.bf16 %v1187, %v1184
        %v1539 = vpack.c.bf16 %v1195, %v1192
        %v1540 = vpack.c.bf16 %v1203, %v1200
        %v1541 = vpack.c.bf16 %v1211, %v1208
        %v1542 = vpack.c.bf16 %v1219, %v1216
        %v1543 = vpack.c.bf16 %v1227, %v1224
        %vm1544 = vcmask 261120
        %v1546 = vsel %vm1544, %v1524, 0
        %v1549 = vsel %vm1544, %v1525, 0
        %v1552 = vsel %vm1544, %v1526, 0
        %v1555 = vsel %vm1544, %v1527, 0
        %v1558 = vsel %vm1544, %v1528, 0
        %v1561 = vsel %vm1544, %v1529, 0
        %v1564 = vsel %vm1544, %v1530, 0
        %v1567 = vsel %vm1544, %v1531, 0
        %v1570 = vsel %vm1544, %v1532, 0
        %v1573 = vsel %vm1544, %v1533, 0
        %v1576 = vsel %vm1544, %v1534, 0
        %v1579 = vsel %vm1544, %v1535, 0
        %1581 = vmatprep.subr.bf16.mxu0 0
        %1582 = vmatpush1.bf16.xpose.msra.mxu0 %v1579
        %1583 = vmatprep.subr.bf16.mxu0 0
        %1584 = vmatpush1.bf16.xpose.msra.mxu0 %v1576
        %1585 = vmatprep.subr.bf16.mxu0 0
        %1586 = vmatpush1.bf16.xpose.msra.mxu0 %v1573
        %1587 = vmatprep.subr.bf16.mxu0 0
        %1588 = vmatpush1.bf16.xpose.msra.mxu0 %v1570
        %1589 = vmatprep.subr.bf16.mxu0 0
        %1590 = vmatpush1.bf16.xpose.msra.mxu0 %v1567
        %1591 = vmatprep.subr.bf16.mxu0 0
        %1592 = vmatpush1.bf16.xpose.msra.mxu0 %v1564
        %1593 = vmatprep.subr.bf16.mxu0 0
        %1594 = vmatpush1.bf16.xpose.msra.mxu0 %v1561
        %1595 = vmatprep.subr.bf16.mxu0 0
        %1596 = vmatpush1.bf16.xpose.msra.mxu0 %v1558
        %1597 = vmatprep.subr.bf16.mxu0 0
        %1598 = vmatpush2.bf16.xpose.msra.mxu0 0
        %1599 = vmatprep.subr.bf16.mxu0 0
        %1600 = vmatpush2.bf16.xpose.msra.mxu0 0
        %1601 = vmatprep.subr.bf16.mxu0 0
        %1602 = vmatpush2.bf16.xpose.msra.mxu0 0
        %1603 = vmatprep.subr.bf16.mxu0 0
        %1604 = vmatpush2.bf16.xpose.msra.mxu0 0
        %1605 = vmatprep.subr.bf16.mxu0 0
        %1606 = vmatpush2.bf16.xpose.msra.mxu0 0
        %1607 = vmatprep.subr.bf16.mxu0 0
        %1608 = vmatpush2.bf16.xpose.msra.mxu0 0
        %1609 = vmatprep.subr.bf16.mxu0 0
        %1610 = vmatpush2.bf16.xpose.msra.mxu0 0
        %1611 = vmatprep.subr.bf16.mxu0 0
        %1612 = vmatpush2.bf16.xpose.msra.mxu0 0
        %1613 = vmatprep.mubr.bf16.mxu0 0
        %1614 = vmatmul.mubr.bf16.gmra.mxu0 %v1546
        %v1615 = vpop.f32.mrf.mxu0
        %v1616 = vadd.f32 0.0, %v1615
        %v1617 = vpop.f32.mrf.mxu0
        %v1618 = vpop.f32.mrf.mxu0
        %v1619 = vadd.f32 0.0, %v1618
        %v1620 = vpop.f32.mrf.mxu0
        %1621 = vmatprep.mubr.bf16.mxu0 0
        %1622 = vmatmul.mubr.bf16.gmra.mxu0 %v1549
        %v1623 = vpop.f32.mrf.mxu0
        %v1624 = vadd.f32 0.0, %v1623
        %v1625 = vpop.f32.mrf.mxu0
        %v1626 = vpop.f32.mrf.mxu0
        %v1627 = vadd.f32 0.0, %v1626
        %v1628 = vpop.f32.mrf.mxu0
        %1629 = vmatprep.mubr.bf16.mxu0 0
        %1630 = vmatmul.mubr.bf16.gmra.mxu0 %v1552
        %v1631 = vpop.f32.mrf.mxu0
        %v1632 = vadd.f32 0.0, %v1631
        %v1633 = vpop.f32.mrf.mxu0
        %v1634 = vpop.f32.mrf.mxu0
        %v1635 = vadd.f32 0.0, %v1634
        %v1636 = vpop.f32.mrf.mxu0
        %1637 = vmatprep.mubr.bf16.mxu0 0
        %1638 = vmatmul.mubr.bf16.gmra.mxu0 %v1555
        %v1639 = vpop.f32.mrf.mxu0
        %v1640 = vadd.f32 0.0, %v1639
        %v1641 = vpop.f32.mrf.mxu0
        %v1642 = vpop.f32.mrf.mxu0
        %v1643 = vadd.f32 0.0, %v1642
        %v1644 = vpop.f32.mrf.mxu0
        %1645 = vdwg.mxu0
        %v1646 = vsel %vm1050, %v1616, -1e+20
        %v1647 = vsel %vm1051, %v1619, -1e+20
        %v1648 = vsel %vm1052, %v1624, -1e+20
        %v1649 = vsel %vm1053, %v1627, -1e+20
        %v1650 = vsel %vm1054, %v1632, -1e+20
        %v1651 = vsel %vm1055, %v1635, -1e+20
        %v1652 = vsel %vm1056, %v1640, -1e+20
        %v1653 = vsel %vm1057, %v1643, -1e+20
        %v1654 = vmul.f32 %v1646, 0.088388346
        %v1655 = vmul.f32 %v1647, 0.088388346
        %v1656 = vmul.f32 %v1648, 0.088388346
        %v1657 = vmul.f32 %v1649, 0.088388346
        %v1658 = vmul.f32 %v1650, 0.088388346
        %v1659 = vmul.f32 %v1651, 0.088388346
        %v1660 = vmul.f32 %v1652, 0.088388346
        %v1661 = vmul.f32 %v1653, 0.088388346
        %1662 = vmax.xlane.f32.xlu0 %v1654
        %v1663 = vpop.xlane.xlu0 %1662
        %1664 = vmax.xlane.f32.xlu0 %v1655
        %v1665 = vpop.xlane.xlu0 %1664
        %1666 = vmax.xlane.f32.xlu0 %v1656
        %v1667 = vpop.xlane.xlu0 %1666
        %1668 = vmax.xlane.f32.xlu0 %v1657
        %v1669 = vpop.xlane.xlu0 %1668
        %1670 = vmax.xlane.f32.xlu0 %v1658
        %v1671 = vpop.xlane.xlu0 %1670
        %1672 = vmax.xlane.f32.xlu0 %v1659
        %v1673 = vpop.xlane.xlu0 %1672
        %1674 = vmax.xlane.f32.xlu0 %v1660
        %v1675 = vpop.xlane.xlu0 %1674
        %1676 = vmax.xlane.f32.xlu0 %v1661
        %v1677 = vpop.xlane.xlu0 %1676
        %v1678 = vsub.f32 %v1654, %v1663
        %v1679 = vsub.f32 %v1655, %v1665
        %v1680 = vsub.f32 %v1656, %v1667
        %v1681 = vsub.f32 %v1657, %v1669
        %v1682 = vsub.f32 %v1658, %v1671
        %v1683 = vsub.f32 %v1659, %v1673
        %v1684 = vsub.f32 %v1660, %v1675
        %v1685 = vsub.f32 %v1661, %v1677
        %v1686 = vmul.f32 %v1678, 1.442695
        %v1687 = vpow.pop %v1686
        %v1688 = vmul.f32 %v1679, 1.442695
        %v1689 = vpow.pop %v1688
        %v1690 = vmul.f32 %v1680, 1.442695
        %v1691 = vpow.pop %v1690
        %v1692 = vmul.f32 %v1681, 1.442695
        %v1693 = vpow.pop %v1692
        %v1694 = vmul.f32 %v1682, 1.442695
        %v1695 = vpow.pop %v1694
        %v1696 = vmul.f32 %v1683, 1.442695
        %v1697 = vpow.pop %v1696
        %v1698 = vmul.f32 %v1684, 1.442695
        %v1699 = vpow.pop %v1698
        %v1700 = vmul.f32 %v1685, 1.442695
        %v1701 = vpow.pop %v1700
        %1702 = vadd.xlane.f32.xlu0 %v1687
        %v1703 = vpop.xlane.xlu0 %1702
        %1704 = vadd.xlane.f32.xlu0 %v1689
        %v1705 = vpop.xlane.xlu0 %1704
        %1706 = vadd.xlane.f32.xlu0 %v1691
        %v1707 = vpop.xlane.xlu0 %1706
        %1708 = vadd.xlane.f32.xlu0 %v1693
        %v1709 = vpop.xlane.xlu0 %1708
        %1710 = vadd.xlane.f32.xlu0 %v1695
        %v1711 = vpop.xlane.xlu0 %1710
        %1712 = vadd.xlane.f32.xlu0 %v1697
        %v1713 = vpop.xlane.xlu0 %1712
        %1714 = vadd.xlane.f32.xlu0 %v1699
        %v1715 = vpop.xlane.xlu0 %1714
        %1716 = vadd.xlane.f32.xlu0 %v1701
        %v1717 = vpop.xlane.xlu0 %1716
        %v1718 = vrcp.pop %v1703
        %v1719 = vrcp.pop %v1705
        %v1720 = vrcp.pop %v1707
        %v1721 = vrcp.pop %v1709
        %v1722 = vrcp.pop %v1711
        %v1723 = vrcp.pop %v1713
        %v1724 = vrcp.pop %v1715
        %v1725 = vrcp.pop %v1717
        %v1726 = vmul.f32 %v1687, %v1718
        %v1727 = vmul.f32 %v1689, %v1719
        %v1728 = vmul.f32 %v1691, %v1720
        %v1729 = vmul.f32 %v1693, %v1721
        %v1730 = vmul.f32 %v1695, %v1722
        %v1731 = vmul.f32 %v1697, %v1723
        %v1732 = vmul.f32 %v1699, %v1724
        %v1733 = vmul.f32 %v1701, %v1725
        %v1734 = vpack.c.bf16 %v1727, %v1726
        %v1735 = vpack.c.bf16 %v1729, %v1728
        %v1736 = vpack.c.bf16 %v1731, %v1730
        %v1737 = vpack.c.bf16 %v1733, %v1732
        %1738 = vmatprep.subr.bf16.mxu0 0
        %1739 = vmatpush1.bf16.msra.mxu0 %v1543
        %1740 = vmatprep.subr.bf16.mxu0 0
        %1741 = vmatpush1.bf16.msra.mxu0 %v1542
        %1742 = vmatprep.subr.bf16.mxu0 0
        %1743 = vmatpush1.bf16.msra.mxu0 %v1541
        %1744 = vmatprep.subr.bf16.mxu0 0
        %1745 = vmatpush1.bf16.msra.mxu0 %v1540
        %1746 = vmatprep.subr.bf16.mxu0 0
        %1747 = vmatpush1.bf16.msra.mxu0 %v1539
        %1748 = vmatprep.subr.bf16.mxu0 0
        %1749 = vmatpush1.bf16.msra.mxu0 %v1538
        %1750 = vmatprep.subr.bf16.mxu0 0
        %1751 = vmatpush1.bf16.msra.mxu0 %v1537
        %1752 = vmatprep.subr.bf16.mxu0 0
        %1753 = vmatpush1.bf16.msra.mxu0 %v1536
        %1754 = vmatprep.subr.bf16.mxu0 0
        %1755 = vmatpush2.bf16.msra.mxu0 0
        %1756 = vmatprep.subr.bf16.mxu0 0
        %1757 = vmatpush2.bf16.msra.mxu0 0
        %1758 = vmatprep.subr.bf16.mxu0 0
        %1759 = vmatpush2.bf16.msra.mxu0 0
        %1760 = vmatprep.subr.bf16.mxu0 0
        %1761 = vmatpush2.bf16.msra.mxu0 0
        %1762 = vmatprep.subr.bf16.mxu0 0
        %1763 = vmatpush2.bf16.msra.mxu0 0
        %1764 = vmatprep.subr.bf16.mxu0 0
        %1765 = vmatpush2.bf16.msra.mxu0 0
        %1766 = vmatprep.subr.bf16.mxu0 0
        %1767 = vmatpush2.bf16.msra.mxu0 0
        %1768 = vmatprep.subr.bf16.mxu0 0
        %1769 = vmatpush2.bf16.msra.mxu0 0
        %1770 = vmatprep.mubr.bf16.mxu0 0
        %1771 = vmatmul.mubr.bf16.gmra.mxu0 %v1734
        %v1772 = vpop.f32.mrf.mxu0
        %v1773 = vadd.f32 0.0, %v1772
        %v1774 = vpop.f32.mrf.mxu0
        %v1775 = vpop.f32.mrf.mxu0
        %v1776 = vadd.f32 0.0, %v1775
        %v1777 = vpop.f32.mrf.mxu0
        %1778 = vmatprep.mubr.bf16.mxu0 0
        %1779 = vmatmul.mubr.bf16.gmra.mxu0 %v1735
        %v1780 = vpop.f32.mrf.mxu0
        %v1781 = vadd.f32 0.0, %v1780
        %v1782 = vpop.f32.mrf.mxu0
        %v1783 = vpop.f32.mrf.mxu0
        %v1784 = vadd.f32 0.0, %v1783
        %v1785 = vpop.f32.mrf.mxu0
        %1786 = vmatprep.mubr.bf16.mxu0 0
        %1787 = vmatmul.mubr.bf16.gmra.mxu0 %v1736
        %v1788 = vpop.f32.mrf.mxu0
        %v1789 = vadd.f32 0.0, %v1788
        %v1790 = vpop.f32.mrf.mxu0
        %v1791 = vpop.f32.mrf.mxu0
        %v1792 = vadd.f32 0.0, %v1791
        %v1793 = vpop.f32.mrf.mxu0
        %1794 = vmatprep.mubr.bf16.mxu0 0
        %1795 = vmatmul.mubr.bf16.gmra.mxu0 %v1737
        %v1796 = vpop.f32.mrf.mxu0
        %v1797 = vadd.f32 0.0, %v1796
        %v1798 = vpop.f32.mrf.mxu0
        %v1799 = vpop.f32.mrf.mxu0
        %v1800 = vadd.f32 0.0, %v1799
        %v1801 = vpop.f32.mrf.mxu0
        %1802 = vdwg.mxu0
        %v1803 = vpack.c.bf16 %v1776, %v1773
        %v1804 = vpack.c.bf16 %v1784, %v1781
        %v1805 = vpack.c.bf16 %v1792, %v1789
        %v1806 = vpack.c.bf16 %v1800, %v1797
        %v1807 = vld [vmem:[#allocation15] sm:$0xf]
        %v1808 = vld [vmem:[#allocation15 + $0x4] sm:$0xf]
        %v1809 = vld [vmem:[#allocation15 + $0x8] sm:$0xf]
        %v1810 = vld [vmem:[#allocation15 + $0xc] sm:$0xf]
        %1815 = vrot.lane.b32.xlu0 %v1524, 96
        %v1816 = vpop.permute.xlu0 %1815
        %1817 = vrot.lane.b32.xlu0 %v1525, 96
        %v1818 = vpop.permute.xlu0 %1817
        %1819 = vrot.lane.b32.xlu0 %v1526, 96
        %v1820 = vpop.permute.xlu0 %1819
        %1821 = vrot.lane.b32.xlu0 %v1527, 96
        %v1822 = vpop.permute.xlu0 %1821
        %1831 = vrot.lane.b32.xlu0 %v1528, 96
        %v1832 = vpop.permute.xlu0 %1831
        %1833 = vrot.lane.b32.xlu0 %v1529, 96
        %v1834 = vpop.permute.xlu0 %1833
        %1835 = vrot.lane.b32.xlu0 %v1530, 96
        %v1836 = vpop.permute.xlu0 %1835
        %1837 = vrot.lane.b32.xlu0 %v1531, 96
        %v1838 = vpop.permute.xlu0 %1837
        %1839 = vrot.lane.b32.xlu0 %v1532, 96
        %v1840 = vpop.permute.xlu0 %1839
        %1841 = vrot.lane.b32.xlu0 %v1533, 96
        %v1842 = vpop.permute.xlu0 %1841
        %1843 = vrot.lane.b32.xlu0 %v1534, 96
        %v1844 = vpop.permute.xlu0 %1843
        %1845 = vrot.lane.b32.xlu0 %v1535, 96
        %v1846 = vpop.permute.xlu0 %1845
        %v1848 = vsel %vm1544, %v1816, 0
        %v1851 = vsel %vm1544, %v1818, 0
        %v1854 = vsel %vm1544, %v1820, 0
        %v1857 = vsel %vm1544, %v1822, 0
        %v1860 = vsel %vm1544, %v1832, 0
        %v1863 = vsel %vm1544, %v1834, 0
        %v1866 = vsel %vm1544, %v1836, 0
        %v1869 = vsel %vm1544, %v1838, 0
        %v1872 = vsel %vm1544, %v1840, 0
        %v1875 = vsel %vm1544, %v1842, 0
        %v1878 = vsel %vm1544, %v1844, 0
        %v1881 = vsel %vm1544, %v1846, 0
        %1883 = vmatprep.subr.bf16.mxu0 0
        %1884 = vmatpush1.bf16.xpose.msra.mxu0 %v1881
        %1885 = vmatprep.subr.bf16.mxu0 0
        %1886 = vmatpush1.bf16.xpose.msra.mxu0 %v1878
        %1887 = vmatprep.subr.bf16.mxu0 0
        %1888 = vmatpush1.bf16.xpose.msra.mxu0 %v1875
        %1889 = vmatprep.subr.bf16.mxu0 0
        %1890 = vmatpush1.bf16.xpose.msra.mxu0 %v1872
        %1891 = vmatprep.subr.bf16.mxu0 0
        %1892 = vmatpush1.bf16.xpose.msra.mxu0 %v1869
        %1893 = vmatprep.subr.bf16.mxu0 0
        %1894 = vmatpush1.bf16.xpose.msra.mxu0 %v1866
        %1895 = vmatprep.subr.bf16.mxu0 0
        %1896 = vmatpush1.bf16.xpose.msra.mxu0 %v1863
        %1897 = vmatprep.subr.bf16.mxu0 0
        %1898 = vmatpush1.bf16.xpose.msra.mxu0 %v1860
        %1899 = vmatprep.subr.bf16.mxu0 0
        %1900 = vmatpush2.bf16.xpose.msra.mxu0 0
        %1901 = vmatprep.subr.bf16.mxu0 0
        %1902 = vmatpush2.bf16.xpose.msra.mxu0 0
        %1903 = vmatprep.subr.bf16.mxu0 0
        %1904 = vmatpush2.bf16.xpose.msra.mxu0 0
        %1905 = vmatprep.subr.bf16.mxu0 0
        %1906 = vmatpush2.bf16.xpose.msra.mxu0 0
        %1907 = vmatprep.subr.bf16.mxu0 0
        %1908 = vmatpush2.bf16.xpose.msra.mxu0 0
        %1909 = vmatprep.subr.bf16.mxu0 0
        %1910 = vmatpush2.bf16.xpose.msra.mxu0 0
        %1911 = vmatprep.subr.bf16.mxu0 0
        %1912 = vmatpush2.bf16.xpose.msra.mxu0 0
        %1913 = vmatprep.subr.bf16.mxu0 0
        %1914 = vmatpush2.bf16.xpose.msra.mxu0 0
        %1915 = vmatprep.mubr.bf16.mxu0 0
        %1916 = vmatmul.mubr.bf16.gmra.mxu0 %v1848
        %v1917 = vpop.f32.mrf.mxu0
        %v1918 = vadd.f32 0.0, %v1917
        %v1919 = vpop.f32.mrf.mxu0
        %v1920 = vpop.f32.mrf.mxu0
        %v1921 = vadd.f32 0.0, %v1920
        %v1922 = vpop.f32.mrf.mxu0
        %1923 = vmatprep.mubr.bf16.mxu0 0
        %1924 = vmatmul.mubr.bf16.gmra.mxu0 %v1851
        %v1925 = vpop.f32.mrf.mxu0
        %v1926 = vadd.f32 0.0, %v1925
        %v1927 = vpop.f32.mrf.mxu0
        %v1928 = vpop.f32.mrf.mxu0
        %v1929 = vadd.f32 0.0, %v1928
        %v1930 = vpop.f32.mrf.mxu0
        %1931 = vmatprep.mubr.bf16.mxu0 0
        %1932 = vmatmul.mubr.bf16.gmra.mxu0 %v1854
        %v1933 = vpop.f32.mrf.mxu0
        %v1934 = vadd.f32 0.0, %v1933
        %v1935 = vpop.f32.mrf.mxu0
        %v1936 = vpop.f32.mrf.mxu0
        %v1937 = vadd.f32 0.0, %v1936
        %v1938 = vpop.f32.mrf.mxu0
        %1939 = vmatprep.mubr.bf16.mxu0 0
        %1940 = vmatmul.mubr.bf16.gmra.mxu0 %v1857
        %v1941 = vpop.f32.mrf.mxu0
        %v1942 = vadd.f32 0.0, %v1941
        %v1943 = vpop.f32.mrf.mxu0
        %v1944 = vpop.f32.mrf.mxu0
        %v1945 = vadd.f32 0.0, %v1944
        %v1946 = vpop.f32.mrf.mxu0
        %1947 = vdwg.mxu0
        %v1948 = vsel %vm1050, %v1918, -1e+20
        %v1949 = vsel %vm1051, %v1921, -1e+20
        %v1950 = vsel %vm1052, %v1926, -1e+20
        %v1951 = vsel %vm1053, %v1929, -1e+20
        %v1952 = vsel %vm1054, %v1934, -1e+20
        %v1953 = vsel %vm1055, %v1937, -1e+20
        %v1954 = vsel %vm1056, %v1942, -1e+20
        %v1955 = vsel %vm1057, %v1945, -1e+20
        %v1956 = vmul.f32 %v1948, 0.088388346
        %v1957 = vmul.f32 %v1949, 0.088388346
        %v1958 = vmul.f32 %v1950, 0.088388346
        %v1959 = vmul.f32 %v1951, 0.088388346
        %v1960 = vmul.f32 %v1952, 0.088388346
        %v1961 = vmul.f32 %v1953, 0.088388346
        %v1962 = vmul.f32 %v1954, 0.088388346
        %v1963 = vmul.f32 %v1955, 0.088388346
        %1964 = vmax.xlane.f32.xlu0 %v1956
        %v1965 = vpop.xlane.xlu0 %1964
        %1966 = vmax.xlane.f32.xlu0 %v1957
        %v1967 = vpop.xlane.xlu0 %1966
        %1968 = vmax.xlane.f32.xlu0 %v1958
        %v1969 = vpop.xlane.xlu0 %1968
        %1970 = vmax.xlane.f32.xlu0 %v1959
        %v1971 = vpop.xlane.xlu0 %1970
        %1972 = vmax.xlane.f32.xlu0 %v1960
        %v1973 = vpop.xlane.xlu0 %1972
        %1974 = vmax.xlane.f32.xlu0 %v1961
        %v1975 = vpop.xlane.xlu0 %1974
        %1976 = vmax.xlane.f32.xlu0 %v1962
        %v1977 = vpop.xlane.xlu0 %1976
        %1978 = vmax.xlane.f32.xlu0 %v1963
        %v1979 = vpop.xlane.xlu0 %1978
        %v1980 = vsub.f32 %v1956, %v1965
        %v1981 = vsub.f32 %v1957, %v1967
        %v1982 = vsub.f32 %v1958, %v1969
        %v1983 = vsub.f32 %v1959, %v1971
        %v1984 = vsub.f32 %v1960, %v1973
        %v1985 = vsub.f32 %v1961, %v1975
        %v1986 = vsub.f32 %v1962, %v1977
        %v1987 = vsub.f32 %v1963, %v1979
        %v1988 = vmul.f32 %v1980, 1.442695
        %v1989 = vpow.pop %v1988
        %v1990 = vmul.f32 %v1981, 1.442695
        %v1991 = vpow.pop %v1990
        %v1992 = vmul.f32 %v1982, 1.442695
        %v1993 = vpow.pop %v1992
        %v1994 = vmul.f32 %v1983, 1.442695
        %v1995 = vpow.pop %v1994
        %v1996 = vmul.f32 %v1984, 1.442695
        %v1997 = vpow.pop %v1996
        %v1998 = vmul.f32 %v1985, 1.442695
        %v1999 = vpow.pop %v1998
        %v2000 = vmul.f32 %v1986, 1.442695
        %v2001 = vpow.pop %v2000
        %v2002 = vmul.f32 %v1987, 1.442695
        %v2003 = vpow.pop %v2002
        %2004 = vadd.xlane.f32.xlu0 %v1989
        %v2005 = vpop.xlane.xlu0 %2004
        %2006 = vadd.xlane.f32.xlu0 %v1991
        %v2007 = vpop.xlane.xlu0 %2006
        %2008 = vadd.xlane.f32.xlu0 %v1993
        %v2009 = vpop.xlane.xlu0 %2008
        %2010 = vadd.xlane.f32.xlu0 %v1995
        %v2011 = vpop.xlane.xlu0 %2010
        %2012 = vadd.xlane.f32.xlu0 %v1997
        %v2013 = vpop.xlane.xlu0 %2012
        %2014 = vadd.xlane.f32.xlu0 %v1999
        %v2015 = vpop.xlane.xlu0 %2014
        %2016 = vadd.xlane.f32.xlu0 %v2001
        %v2017 = vpop.xlane.xlu0 %2016
        %2018 = vadd.xlane.f32.xlu0 %v2003
        %v2019 = vpop.xlane.xlu0 %2018
        %v2020 = vrcp.pop %v2005
        %v2021 = vrcp.pop %v2007
        %v2022 = vrcp.pop %v2009
        %v2023 = vrcp.pop %v2011
        %v2024 = vrcp.pop %v2013
        %v2025 = vrcp.pop %v2015
        %v2026 = vrcp.pop %v2017
        %v2027 = vrcp.pop %v2019
        %v2028 = vmul.f32 %v1989, %v2020
        %v2029 = vmul.f32 %v1991, %v2021
        %v2030 = vmul.f32 %v1993, %v2022
        %v2031 = vmul.f32 %v1995, %v2023
        %v2032 = vmul.f32 %v1997, %v2024
        %v2033 = vmul.f32 %v1999, %v2025
        %v2034 = vmul.f32 %v2001, %v2026
        %v2035 = vmul.f32 %v2003, %v2027
        %v2036 = vpack.c.bf16 %v2029, %v2028
        %v2037 = vpack.c.bf16 %v2031, %v2030
        %v2038 = vpack.c.bf16 %v2033, %v2032
        %v2039 = vpack.c.bf16 %v2035, %v2034
        %2048 = vrot.lane.b32.xlu0 %v1536, 96
        %v2049 = vpop.permute.xlu0 %2048
        %2050 = vrot.lane.b32.xlu0 %v1537, 96
        %v2051 = vpop.permute.xlu0 %2050
        %2052 = vrot.lane.b32.xlu0 %v1538, 96
        %v2053 = vpop.permute.xlu0 %2052
        %2054 = vrot.lane.b32.xlu0 %v1539, 96
        %v2055 = vpop.permute.xlu0 %2054
        %2056 = vrot.lane.b32.xlu0 %v1540, 96
        %v2057 = vpop.permute.xlu0 %2056
        %2058 = vrot.lane.b32.xlu0 %v1541, 96
        %v2059 = vpop.permute.xlu0 %2058
        %2060 = vrot.lane.b32.xlu0 %v1542, 96
        %v2061 = vpop.permute.xlu0 %2060
        %2062 = vrot.lane.b32.xlu0 %v1543, 96
        %v2063 = vpop.permute.xlu0 %2062
        %2072 = vmatprep.subr.bf16.mxu0 0
        %2073 = vmatpush1.bf16.msra.mxu0 %v2063
        %2074 = vmatprep.subr.bf16.mxu0 0
        %2075 = vmatpush1.bf16.msra.mxu0 %v2061
        %2076 = vmatprep.subr.bf16.mxu0 0
        %2077 = vmatpush1.bf16.msra.mxu0 %v2059
        %2078 = vmatprep.subr.bf16.mxu0 0
        %2079 = vmatpush1.bf16.msra.mxu0 %v2057
        %2080 = vmatprep.subr.bf16.mxu0 0
        %2081 = vmatpush1.bf16.msra.mxu0 %v2055
        %2082 = vmatprep.subr.bf16.mxu0 0
        %2083 = vmatpush1.bf16.msra.mxu0 %v2053
        %2084 = vmatprep.subr.bf16.mxu0 0
        %2085 = vmatpush1.bf16.msra.mxu0 %v2051
        %2086 = vmatprep.subr.bf16.mxu0 0
        %2087 = vmatpush1.bf16.msra.mxu0 %v2049
        %2088 = vmatprep.subr.bf16.mxu0 0
        %2089 = vmatpush2.bf16.msra.mxu0 0
        %2090 = vmatprep.subr.bf16.mxu0 0
        %2091 = vmatpush2.bf16.msra.mxu0 0
        %2092 = vmatprep.subr.bf16.mxu0 0
        %2093 = vmatpush2.bf16.msra.mxu0 0
        %2094 = vmatprep.subr.bf16.mxu0 0
        %2095 = vmatpush2.bf16.msra.mxu0 0
        %2096 = vmatprep.subr.bf16.mxu0 0
        %2097 = vmatpush2.bf16.msra.mxu0 0
        %2098 = vmatprep.subr.bf16.mxu0 0
        %2099 = vmatpush2.bf16.msra.mxu0 0
        %2100 = vmatprep.subr.bf16.mxu0 0
        %2101 = vmatpush2.bf16.msra.mxu0 0
        %2102 = vmatprep.subr.bf16.mxu0 0
        %2103 = vmatpush2.bf16.msra.mxu0 0
        %2104 = vmatprep.mubr.bf16.mxu0 0
        %2105 = vmatmul.mubr.bf16.gmra.mxu0 %v2036
        %v2106 = vpop.f32.mrf.mxu0
        %v2107 = vadd.f32 0.0, %v2106
        %v2108 = vpop.f32.mrf.mxu0
        %v2109 = vpop.f32.mrf.mxu0
        %v2110 = vadd.f32 0.0, %v2109
        %v2111 = vpop.f32.mrf.mxu0
        %2112 = vmatprep.mubr.bf16.mxu0 0
        %2113 = vmatmul.mubr.bf16.gmra.mxu0 %v2037
        %v2114 = vpop.f32.mrf.mxu0
        %v2115 = vadd.f32 0.0, %v2114
        %v2116 = vpop.f32.mrf.mxu0
        %v2117 = vpop.f32.mrf.mxu0
        %v2118 = vadd.f32 0.0, %v2117
        %v2119 = vpop.f32.mrf.mxu0
        %2120 = vmatprep.mubr.bf16.mxu0 0
        %2121 = vmatmul.mubr.bf16.gmra.mxu0 %v2038
        %v2122 = vpop.f32.mrf.mxu0
        %v2123 = vadd.f32 0.0, %v2122
        %v2124 = vpop.f32.mrf.mxu0
        %v2125 = vpop.f32.mrf.mxu0
        %v2126 = vadd.f32 0.0, %v2125
        %v2127 = vpop.f32.mrf.mxu0
        %2128 = vmatprep.mubr.bf16.mxu0 0
        %2129 = vmatmul.mubr.bf16.gmra.mxu0 %v2039
        %v2130 = vpop.f32.mrf.mxu0
        %v2131 = vadd.f32 0.0, %v2130
        %v2132 = vpop.f32.mrf.mxu0
        %v2133 = vpop.f32.mrf.mxu0
        %v2134 = vadd.f32 0.0, %v2133
        %v2135 = vpop.f32.mrf.mxu0
        %2136 = vdwg.mxu0
        %v2137 = vpack.c.bf16 %v2110, %v2107
        %v2138 = vpack.c.bf16 %v2118, %v2115
        %v2139 = vpack.c.bf16 %v2126, %v2123
        %v2140 = vpack.c.bf16 %v2134, %v2131
        %v2141 = vld [vmem:[#allocation15 + $0x10] sm:$0xf]
        %v2142 = vld [vmem:[#allocation15 + $0x14] sm:$0xf]
        %v2143 = vld [vmem:[#allocation15 + $0x18] sm:$0xf]
        %v2144 = vld [vmem:[#allocation15 + $0x1c] sm:$0xf]
        %v2149 = vunpack.c.l.b16 %v2141
        %v2150 = vunpack.c.l.b16 %v2142
        %v2151 = vunpack.c.l.b16 %v2143
        %v2152 = vunpack.c.l.b16 %v2144
        %v2153 = vpack.c.b16 %v2150, %v2149
        %v2154 = vpack.c.b16 %v2152, %v2151
        %v2158 = vsel %vm1544, %v2137, 0
        %v2161 = vsel %vm1544, %v2138, 0
        %v2164 = vsel %vm1544, %v2139, 0
        %v2167 = vsel %vm1544, %v2140, 0
        %2169 = vmatprep.subr.bf16.mxu0 0
        %2170 = vmatpush1.bf16.msra.mxu0 0
        %2171 = vmatprep.subr.bf16.mxu0 0
        %2172 = vmatpush1.bf16.msra.mxu0 0
        %2173 = vmatprep.subr.bf16.mxu0 0
        %2174 = vmatpush1.bf16.msra.mxu0 0
        %2175 = vmatprep.subr.bf16.mxu0 0
        %2176 = vmatpush1.bf16.msra.mxu0 0
        %2177 = vmatprep.subr.bf16.mxu0 0
        %2178 = vmatpush1.bf16.msra.mxu0 0
        %2179 = vmatprep.subr.bf16.mxu0 0
        %2180 = vmatpush1.bf16.msra.mxu0 0
        %2181 = vmatprep.subr.bf16.mxu0 0
        %2182 = vmatpush1.bf16.msra.mxu0 %v2154
        %2183 = vmatprep.subr.bf16.mxu0 0
        %2184 = vmatpush1.bf16.msra.mxu0 %v2153
        %2185 = vmatprep.subr.bf16.mxu0 0
        %2186 = vmatpush2.bf16.msra.mxu0 0
        %2187 = vmatprep.subr.bf16.mxu0 0
        %2188 = vmatpush2.bf16.msra.mxu0 0
        %2189 = vmatprep.subr.bf16.mxu0 0
        %2190 = vmatpush2.bf16.msra.mxu0 0
        %2191 = vmatprep.subr.bf16.mxu0 0
        %2192 = vmatpush2.bf16.msra.mxu0 0
        %2193 = vmatprep.subr.bf16.mxu0 0
        %2194 = vmatpush2.bf16.msra.mxu0 0
        %2195 = vmatprep.subr.bf16.mxu0 0
        %2196 = vmatpush2.bf16.msra.mxu0 0
        %2197 = vmatprep.subr.bf16.mxu0 0
        %2198 = vmatpush2.bf16.msra.mxu0 0
        %2199 = vmatprep.subr.bf16.mxu0 0
        %2200 = vmatpush2.bf16.msra.mxu0 0
        %2201 = vmatprep.mubr.bf16.mxu0 0
        %2202 = vmatmul.mubr.bf16.gmra.mxu0 %v2158
        %v2203 = vpop.f32.mrf.mxu0
        %v2204 = vadd.f32 0.0, %v2203
        %v2205 = vpop.f32.mrf.mxu0
        %v2206 = vpop.f32.mrf.mxu0
        %v2207 = vadd.f32 0.0, %v2206
        %v2208 = vpop.f32.mrf.mxu0
        %2209 = vmatprep.mubr.bf16.mxu0 0
        %2210 = vmatmul.mubr.bf16.gmra.mxu0 %v2161
        %v2211 = vpop.f32.mrf.mxu0
        %v2212 = vadd.f32 0.0, %v2211
        %v2213 = vpop.f32.mrf.mxu0
        %v2214 = vpop.f32.mrf.mxu0
        %v2215 = vadd.f32 0.0, %v2214
        %v2216 = vpop.f32.mrf.mxu0
        %2217 = vmatprep.mubr.bf16.mxu0 0
        %2218 = vmatmul.mubr.bf16.gmra.mxu0 %v2164
        %v2219 = vpop.f32.mrf.mxu0
        %v2220 = vadd.f32 0.0, %v2219
        %v2221 = vpop.f32.mrf.mxu0
        %v2222 = vpop.f32.mrf.mxu0
        %v2223 = vadd.f32 0.0, %v2222
        %v2224 = vpop.f32.mrf.mxu0
        %2225 = vmatprep.mubr.bf16.mxu0 0
        %2226 = vmatmul.mubr.bf16.gmra.mxu0 %v2167
        %v2227 = vpop.f32.mrf.mxu0
        %v2228 = vadd.f32 0.0, %v2227
        %v2229 = vpop.f32.mrf.mxu0
        %v2230 = vpop.f32.mrf.mxu0
        %v2231 = vadd.f32 0.0, %v2230
        %v2232 = vpop.f32.mrf.mxu0
        %2233 = vdwg.mxu0
        %v2238 = vunpack.c.l.b16 %v1807
        %v2239 = vunpack.c.l.b16 %v1808
        %v2240 = vunpack.c.l.b16 %v1809
        %v2241 = vunpack.c.l.b16 %v1810
        %v2242 = vpack.c.b16 %v2239, %v2238
        %v2243 = vpack.c.b16 %v2241, %v2240
        %v2247 = vsel %vm1544, %v1803, 0
        %v2250 = vsel %vm1544, %v1804, 0
        %v2253 = vsel %vm1544, %v1805, 0
        %v2256 = vsel %vm1544, %v1806, 0
        %2258 = vmatprep.subr.bf16.mxu0 0
        %2259 = vmatpush1.bf16.msra.mxu0 0
        %2260 = vmatprep.subr.bf16.mxu0 0
        %2261 = vmatpush1.bf16.msra.mxu0 0
        %2262 = vmatprep.subr.bf16.mxu0 0
        %2263 = vmatpush1.bf16.msra.mxu0 0
        %2264 = vmatprep.subr.bf16.mxu0 0
        %2265 = vmatpush1.bf16.msra.mxu0 0
        %2266 = vmatprep.subr.bf16.mxu0 0
        %2267 = vmatpush1.bf16.msra.mxu0 0
        %2268 = vmatprep.subr.bf16.mxu0 0
        %2269 = vmatpush1.bf16.msra.mxu0 0
        %2270 = vmatprep.subr.bf16.mxu0 0
        %2271 = vmatpush1.bf16.msra.mxu0 %v2243
        %2272 = vmatprep.subr.bf16.mxu0 0
        %2273 = vmatpush1.bf16.msra.mxu0 %v2242
        %2274 = vmatprep.subr.bf16.mxu0 0
        %2275 = vmatpush2.bf16.msra.mxu0 0
        %2276 = vmatprep.subr.bf16.mxu0 0
        %2277 = vmatpush2.bf16.msra.mxu0 0
        %2278 = vmatprep.subr.bf16.mxu0 0
        %2279 = vmatpush2.bf16.msra.mxu0 0
        %2280 = vmatprep.subr.bf16.mxu0 0
        %2281 = vmatpush2.bf16.msra.mxu0 0
        %2282 = vmatprep.subr.bf16.mxu0 0
        %2283 = vmatpush2.bf16.msra.mxu0 0
        %2284 = vmatprep.subr.bf16.mxu0 0
        %2285 = vmatpush2.bf16.msra.mxu0 0
        %2286 = vmatprep.subr.bf16.mxu0 0
        %2287 = vmatpush2.bf16.msra.mxu0 0
        %2288 = vmatprep.subr.bf16.mxu0 0
        %2289 = vmatpush2.bf16.msra.mxu0 0
        %2290 = vmatprep.mubr.bf16.mxu0 0
        %2291 = vmatmul.mubr.bf16.gmra.mxu0 %v2247
        %v2292 = vpop.f32.mrf.mxu0
        %v2293 = vadd.f32 %v2204, %v2292
        %v2294 = vpop.f32.mrf.mxu0
        %v2295 = vpop.f32.mrf.mxu0
        %v2296 = vadd.f32 %v2207, %v2295
        %v2297 = vpop.f32.mrf.mxu0
        %2298 = vmatprep.mubr.bf16.mxu0 0
        %2299 = vmatmul.mubr.bf16.gmra.mxu0 %v2250
        %v2300 = vpop.f32.mrf.mxu0
        %v2301 = vadd.f32 %v2212, %v2300
        %v2302 = vpop.f32.mrf.mxu0
        %v2303 = vpop.f32.mrf.mxu0
        %v2304 = vadd.f32 %v2215, %v2303
        %v2305 = vpop.f32.mrf.mxu0
        %2306 = vmatprep.mubr.bf16.mxu0 0
        %2307 = vmatmul.mubr.bf16.gmra.mxu0 %v2253
        %v2308 = vpop.f32.mrf.mxu0
        %v2309 = vadd.f32 %v2220, %v2308
        %v2310 = vpop.f32.mrf.mxu0
        %v2311 = vpop.f32.mrf.mxu0
        %v2312 = vadd.f32 %v2223, %v2311
        %v2313 = vpop.f32.mrf.mxu0
        %2314 = vmatprep.mubr.bf16.mxu0 0
        %2315 = vmatmul.mubr.bf16.gmra.mxu0 %v2256
        %v2316 = vpop.f32.mrf.mxu0
        %v2317 = vadd.f32 %v2228, %v2316
        %v2318 = vpop.f32.mrf.mxu0
        %v2319 = vpop.f32.mrf.mxu0
        %v2320 = vadd.f32 %v2231, %v2319
        %v2321 = vpop.f32.mrf.mxu0
        %2322 = vdwg.mxu0
        %2323 = vrot.lane.b32.xlu0 %v1524, 64
        %v2324 = vpop.permute.xlu0 %2323
        %2325 = vrot.lane.b32.xlu0 %v1525, 64
        %v2326 = vpop.permute.xlu0 %2325
        %2327 = vrot.lane.b32.xlu0 %v1526, 64
        %v2328 = vpop.permute.xlu0 %2327
        %2329 = vrot.lane.b32.xlu0 %v1527, 64
        %v2330 = vpop.permute.xlu0 %2329
        %2331 = vrot.lane.b32.xlu0 %v1528, 64
        %v2332 = vpop.permute.xlu0 %2331
        %2333 = vrot.lane.b32.xlu0 %v1529, 64
        %v2334 = vpop.permute.xlu0 %2333
        %2335 = vrot.lane.b32.xlu0 %v1530, 64
        %v2336 = vpop.permute.xlu0 %2335
        %2337 = vrot.lane.b32.xlu0 %v1531, 64
        %v2338 = vpop.permute.xlu0 %2337
        %2339 = vrot.lane.b32.xlu0 %v1532, 64
        %v2340 = vpop.permute.xlu0 %2339
        %2341 = vrot.lane.b32.xlu0 %v1533, 64
        %v2342 = vpop.permute.xlu0 %2341
        %2343 = vrot.lane.b32.xlu0 %v1534, 64
        %v2344 = vpop.permute.xlu0 %2343
        %2345 = vrot.lane.b32.xlu0 %v1535, 64
        %v2346 = vpop.permute.xlu0 %2345
        %v2348 = vsel %vm1544, %v2324, 0
        %v2351 = vsel %vm1544, %v2326, 0
        %v2354 = vsel %vm1544, %v2328, 0
        %v2357 = vsel %vm1544, %v2330, 0
        %v2360 = vsel %vm1544, %v2332, 0
        %v2363 = vsel %vm1544, %v2334, 0
        %v2366 = vsel %vm1544, %v2336, 0
        %v2369 = vsel %vm1544, %v2338, 0
        %v2372 = vsel %vm1544, %v2340, 0
        %v2375 = vsel %vm1544, %v2342, 0
        %v2378 = vsel %vm1544, %v2344, 0
        %v2381 = vsel %vm1544, %v2346, 0
        %2383 = vmatprep.subr.bf16.mxu0 0
        %2384 = vmatpush1.bf16.xpose.msra.mxu0 %v2381
        %2385 = vmatprep.subr.bf16.mxu0 0
        %2386 = vmatpush1.bf16.xpose.msra.mxu0 %v2378
        %2387 = vmatprep.subr.bf16.mxu0 0
        %2388 = vmatpush1.bf16.xpose.msra.mxu0 %v2375
        %2389 = vmatprep.subr.bf16.mxu0 0
        %2390 = vmatpush1.bf16.xpose.msra.mxu0 %v2372
        %2391 = vmatprep.subr.bf16.mxu0 0
        %2392 = vmatpush1.bf16.xpose.msra.mxu0 %v2369
        %2393 = vmatprep.subr.bf16.mxu0 0
        %2394 = vmatpush1.bf16.xpose.msra.mxu0 %v2366
        %2395 = vmatprep.subr.bf16.mxu0 0
        %2396 = vmatpush1.bf16.xpose.msra.mxu0 %v2363
        %2397 = vmatprep.subr.bf16.mxu0 0
        %2398 = vmatpush1.bf16.xpose.msra.mxu0 %v2360
        %2399 = vmatprep.subr.bf16.mxu0 0
        %2400 = vmatpush2.bf16.xpose.msra.mxu0 0
        %2401 = vmatprep.subr.bf16.mxu0 0
        %2402 = vmatpush2.bf16.xpose.msra.mxu0 0
        %2403 = vmatprep.subr.bf16.mxu0 0
        %2404 = vmatpush2.bf16.xpose.msra.mxu0 0
        %2405 = vmatprep.subr.bf16.mxu0 0
        %2406 = vmatpush2.bf16.xpose.msra.mxu0 0
        %2407 = vmatprep.subr.bf16.mxu0 0
        %2408 = vmatpush2.bf16.xpose.msra.mxu0 0
        %2409 = vmatprep.subr.bf16.mxu0 0
        %2410 = vmatpush2.bf16.xpose.msra.mxu0 0
        %2411 = vmatprep.subr.bf16.mxu0 0
        %2412 = vmatpush2.bf16.xpose.msra.mxu0 0
        %2413 = vmatprep.subr.bf16.mxu0 0
        %2414 = vmatpush2.bf16.xpose.msra.mxu0 0
        %2415 = vmatprep.mubr.bf16.mxu0 0
        %2416 = vmatmul.mubr.bf16.gmra.mxu0 %v2348
        %v2417 = vpop.f32.mrf.mxu0
        %v2418 = vadd.f32 0.0, %v2417
        %v2419 = vpop.f32.mrf.mxu0
        %v2420 = vpop.f32.mrf.mxu0
        %v2421 = vadd.f32 0.0, %v2420
        %v2422 = vpop.f32.mrf.mxu0
        %2423 = vmatprep.mubr.bf16.mxu0 0
        %2424 = vmatmul.mubr.bf16.gmra.mxu0 %v2351
        %v2425 = vpop.f32.mrf.mxu0
        %v2426 = vadd.f32 0.0, %v2425
        %v2427 = vpop.f32.mrf.mxu0
        %v2428 = vpop.f32.mrf.mxu0
        %v2429 = vadd.f32 0.0, %v2428
        %v2430 = vpop.f32.mrf.mxu0
        %2431 = vmatprep.mubr.bf16.mxu0 0
        %2432 = vmatmul.mubr.bf16.gmra.mxu0 %v2354
        %v2433 = vpop.f32.mrf.mxu0
        %v2434 = vadd.f32 0.0, %v2433
        %v2435 = vpop.f32.mrf.mxu0
        %v2436 = vpop.f32.mrf.mxu0
        %v2437 = vadd.f32 0.0, %v2436
        %v2438 = vpop.f32.mrf.mxu0
        %2439 = vmatprep.mubr.bf16.mxu0 0
        %2440 = vmatmul.mubr.bf16.gmra.mxu0 %v2357
        %v2441 = vpop.f32.mrf.mxu0
        %v2442 = vadd.f32 0.0, %v2441
        %v2443 = vpop.f32.mrf.mxu0
        %v2444 = vpop.f32.mrf.mxu0
        %v2445 = vadd.f32 0.0, %v2444
        %v2446 = vpop.f32.mrf.mxu0
        %2447 = vdwg.mxu0
        %v2448 = vsel %vm1050, %v2418, -1e+20
        %v2449 = vsel %vm1051, %v2421, -1e+20
        %v2450 = vsel %vm1052, %v2426, -1e+20
        %v2451 = vsel %vm1053, %v2429, -1e+20
        %v2452 = vsel %vm1054, %v2434, -1e+20
        %v2453 = vsel %vm1055, %v2437, -1e+20
        %v2454 = vsel %vm1056, %v2442, -1e+20
        %v2455 = vsel %vm1057, %v2445, -1e+20
        %v2456 = vmul.f32 %v2448, 0.088388346
        %v2457 = vmul.f32 %v2449, 0.088388346
        %v2458 = vmul.f32 %v2450, 0.088388346
        %v2459 = vmul.f32 %v2451, 0.088388346
        %v2460 = vmul.f32 %v2452, 0.088388346
        %v2461 = vmul.f32 %v2453, 0.088388346
        %v2462 = vmul.f32 %v2454, 0.088388346
        %v2463 = vmul.f32 %v2455, 0.088388346
        %2464 = vmax.xlane.f32.xlu0 %v2456
        %v2465 = vpop.xlane.xlu0 %2464
        %2466 = vmax.xlane.f32.xlu0 %v2457
        %v2467 = vpop.xlane.xlu0 %2466
        %2468 = vmax.xlane.f32.xlu0 %v2458
        %v2469 = vpop.xlane.xlu0 %2468
        %2470 = vmax.xlane.f32.xlu0 %v2459
        %v2471 = vpop.xlane.xlu0 %2470
        %2472 = vmax.xlane.f32.xlu0 %v2460
        %v2473 = vpop.xlane.xlu0 %2472
        %2474 = vmax.xlane.f32.xlu0 %v2461
        %v2475 = vpop.xlane.xlu0 %2474
        %2476 = vmax.xlane.f32.xlu0 %v2462
        %v2477 = vpop.xlane.xlu0 %2476
        %2478 = vmax.xlane.f32.xlu0 %v2463
        %v2479 = vpop.xlane.xlu0 %2478
        %v2480 = vsub.f32 %v2456, %v2465
        %v2481 = vsub.f32 %v2457, %v2467
        %v2482 = vsub.f32 %v2458, %v2469
        %v2483 = vsub.f32 %v2459, %v2471
        %v2484 = vsub.f32 %v2460, %v2473
        %v2485 = vsub.f32 %v2461, %v2475
        %v2486 = vsub.f32 %v2462, %v2477
        %v2487 = vsub.f32 %v2463, %v2479
        %v2488 = vmul.f32 %v2480, 1.442695
        %v2489 = vpow.pop %v2488
        %v2490 = vmul.f32 %v2481, 1.442695
        %v2491 = vpow.pop %v2490
        %v2492 = vmul.f32 %v2482, 1.442695
        %v2493 = vpow.pop %v2492
        %v2494 = vmul.f32 %v2483, 1.442695
        %v2495 = vpow.pop %v2494
        %v2496 = vmul.f32 %v2484, 1.442695
        %v2497 = vpow.pop %v2496
        %v2498 = vmul.f32 %v2485, 1.442695
        %v2499 = vpow.pop %v2498
        %v2500 = vmul.f32 %v2486, 1.442695
        %v2501 = vpow.pop %v2500
        %v2502 = vmul.f32 %v2487, 1.442695
        %v2503 = vpow.pop %v2502
        %2504 = vadd.xlane.f32.xlu0 %v2489
        %v2505 = vpop.xlane.xlu0 %2504
        %2506 = vadd.xlane.f32.xlu0 %v2491
        %v2507 = vpop.xlane.xlu0 %2506
        %2508 = vadd.xlane.f32.xlu0 %v2493
        %v2509 = vpop.xlane.xlu0 %2508
        %2510 = vadd.xlane.f32.xlu0 %v2495
        %v2511 = vpop.xlane.xlu0 %2510
        %2512 = vadd.xlane.f32.xlu0 %v2497
        %v2513 = vpop.xlane.xlu0 %2512
        %2514 = vadd.xlane.f32.xlu0 %v2499
        %v2515 = vpop.xlane.xlu0 %2514
        %2516 = vadd.xlane.f32.xlu0 %v2501
        %v2517 = vpop.xlane.xlu0 %2516
        %2518 = vadd.xlane.f32.xlu0 %v2503
        %v2519 = vpop.xlane.xlu0 %2518
        %v2520 = vrcp.pop %v2505
        %v2521 = vrcp.pop %v2507
        %v2522 = vrcp.pop %v2509
        %v2523 = vrcp.pop %v2511
        %v2524 = vrcp.pop %v2513
        %v2525 = vrcp.pop %v2515
        %v2526 = vrcp.pop %v2517
        %v2527 = vrcp.pop %v2519
        %v2528 = vmul.f32 %v2489, %v2520
        %v2529 = vmul.f32 %v2491, %v2521
        %v2530 = vmul.f32 %v2493, %v2522
        %v2531 = vmul.f32 %v2495, %v2523
        %v2532 = vmul.f32 %v2497, %v2524
        %v2533 = vmul.f32 %v2499, %v2525
        %v2534 = vmul.f32 %v2501, %v2526
        %v2535 = vmul.f32 %v2503, %v2527
        %v2536 = vpack.c.bf16 %v2529, %v2528
        %v2537 = vpack.c.bf16 %v2531, %v2530
        %v2538 = vpack.c.bf16 %v2533, %v2532
        %v2539 = vpack.c.bf16 %v2535, %v2534
        %2540 = vrot.lane.b32.xlu0 %v1536, 64
        %v2541 = vpop.permute.xlu0 %2540
        %2542 = vrot.lane.b32.xlu0 %v1537, 64
        %v2543 = vpop.permute.xlu0 %2542
        %2544 = vrot.lane.b32.xlu0 %v1538, 64
        %v2545 = vpop.permute.xlu0 %2544
        %2546 = vrot.lane.b32.xlu0 %v1539, 64
        %v2547 = vpop.permute.xlu0 %2546
        %2548 = vrot.lane.b32.xlu0 %v1540, 64
        %v2549 = vpop.permute.xlu0 %2548
        %2550 = vrot.lane.b32.xlu0 %v1541, 64
        %v2551 = vpop.permute.xlu0 %2550
        %2552 = vrot.lane.b32.xlu0 %v1542, 64
        %v2553 = vpop.permute.xlu0 %2552
        %2554 = vrot.lane.b32.xlu0 %v1543, 64
        %v2555 = vpop.permute.xlu0 %2554
        %2564 = vmatprep.subr.bf16.mxu0 0
        %2565 = vmatpush1.bf16.msra.mxu0 %v2555
        %2566 = vmatprep.subr.bf16.mxu0 0
        %2567 = vmatpush1.bf16.msra.mxu0 %v2553
        %2568 = vmatprep.subr.bf16.mxu0 0
        %2569 = vmatpush1.bf16.msra.mxu0 %v2551
        %2570 = vmatprep.subr.bf16.mxu0 0
        %2571 = vmatpush1.bf16.msra.mxu0 %v2549
        %2572 = vmatprep.subr.bf16.mxu0 0
        %2573 = vmatpush1.bf16.msra.mxu0 %v2547
        %2574 = vmatprep.subr.bf16.mxu0 0
        %2575 = vmatpush1.bf16.msra.mxu0 %v2545
        %2576 = vmatprep.subr.bf16.mxu0 0
        %2577 = vmatpush1.bf16.msra.mxu0 %v2543
        %2578 = vmatprep.subr.bf16.mxu0 0
        %2579 = vmatpush1.bf16.msra.mxu0 %v2541
        %2580 = vmatprep.subr.bf16.mxu0 0
        %2581 = vmatpush2.bf16.msra.mxu0 0
        %2582 = vmatprep.subr.bf16.mxu0 0
        %2583 = vmatpush2.bf16.msra.mxu0 0
        %2584 = vmatprep.subr.bf16.mxu0 0
        %2585 = vmatpush2.bf16.msra.mxu0 0
        %2586 = vmatprep.subr.bf16.mxu0 0
        %2587 = vmatpush2.bf16.msra.mxu0 0
        %2588 = vmatprep.subr.bf16.mxu0 0
        %2589 = vmatpush2.bf16.msra.mxu0 0
        %2590 = vmatprep.subr.bf16.mxu0 0
        %2591 = vmatpush2.bf16.msra.mxu0 0
        %2592 = vmatprep.subr.bf16.mxu0 0
        %2593 = vmatpush2.bf16.msra.mxu0 0
        %2594 = vmatprep.subr.bf16.mxu0 0
        %2595 = vmatpush2.bf16.msra.mxu0 0
        %2596 = vmatprep.mubr.bf16.mxu0 0
        %2597 = vmatmul.mubr.bf16.gmra.mxu0 %v2536
        %v2598 = vpop.f32.mrf.mxu0
        %v2599 = vadd.f32 0.0, %v2598
        %v2600 = vpop.f32.mrf.mxu0
        %v2601 = vpop.f32.mrf.mxu0
        %v2602 = vadd.f32 0.0, %v2601
        %v2603 = vpop.f32.mrf.mxu0
        %2604 = vmatprep.mubr.bf16.mxu0 0
        %2605 = vmatmul.mubr.bf16.gmra.mxu0 %v2537
        %v2606 = vpop.f32.mrf.mxu0
        %v2607 = vadd.f32 0.0, %v2606
        %v2608 = vpop.f32.mrf.mxu0
        %v2609 = vpop.f32.mrf.mxu0
        %v2610 = vadd.f32 0.0, %v2609
        %v2611 = vpop.f32.mrf.mxu0
        %2612 = vmatprep.mubr.bf16.mxu0 0
        %2613 = vmatmul.mubr.bf16.gmra.mxu0 %v2538
        %v2614 = vpop.f32.mrf.mxu0
        %v2615 = vadd.f32 0.0, %v2614
        %v2616 = vpop.f32.mrf.mxu0
        %v2617 = vpop.f32.mrf.mxu0
        %v2618 = vadd.f32 0.0, %v2617
        %v2619 = vpop.f32.mrf.mxu0
        %2620 = vmatprep.mubr.bf16.mxu0 0
        %2621 = vmatmul.mubr.bf16.gmra.mxu0 %v2539
        %v2622 = vpop.f32.mrf.mxu0
        %v2623 = vadd.f32 0.0, %v2622
        %v2624 = vpop.f32.mrf.mxu0
        %v2625 = vpop.f32.mrf.mxu0
        %v2626 = vadd.f32 0.0, %v2625
        %v2627 = vpop.f32.mrf.mxu0
        %2628 = vdwg.mxu0
        %v2629 = vpack.c.bf16 %v2602, %v2599
        %v2630 = vpack.c.bf16 %v2610, %v2607
        %v2631 = vpack.c.bf16 %v2618, %v2615
        %v2632 = vpack.c.bf16 %v2626, %v2623
        %v2633 = vld [vmem:[#allocation15 + $0x20] sm:$0xf]
        %v2634 = vld [vmem:[#allocation15 + $0x24] sm:$0xf]
        %v2635 = vld [vmem:[#allocation15 + $0x28] sm:$0xf]
        %v2636 = vld [vmem:[#allocation15 + $0x2c] sm:$0xf]
        %v2641 = vunpack.c.l.b16 %v2633
        %v2642 = vunpack.c.l.b16 %v2634
        %v2643 = vunpack.c.l.b16 %v2635
        %v2644 = vunpack.c.l.b16 %v2636
        %v2645 = vpack.c.b16 %v2642, %v2641
        %v2646 = vpack.c.b16 %v2644, %v2643
        %v2650 = vsel %vm1544, %v2629, 0
        %v2653 = vsel %vm1544, %v2630, 0
        %v2656 = vsel %vm1544, %v2631, 0
        %v2659 = vsel %vm1544, %v2632, 0
        %2661 = vmatprep.subr.bf16.mxu0 0
        %2662 = vmatpush1.bf16.msra.mxu0 0
        %2663 = vmatprep.subr.bf16.mxu0 0
        %2664 = vmatpush1.bf16.msra.mxu0 0
        %2665 = vmatprep.subr.bf16.mxu0 0
        %2666 = vmatpush1.bf16.msra.mxu0 0
        %2667 = vmatprep.subr.bf16.mxu0 0
        %2668 = vmatpush1.bf16.msra.mxu0 0
        %2669 = vmatprep.subr.bf16.mxu0 0
        %2670 = vmatpush1.bf16.msra.mxu0 0
        %2671 = vmatprep.subr.bf16.mxu0 0
        %2672 = vmatpush1.bf16.msra.mxu0 0
        %2673 = vmatprep.subr.bf16.mxu0 0
        %2674 = vmatpush1.bf16.msra.mxu0 %v2646
        %2675 = vmatprep.subr.bf16.mxu0 0
        %2676 = vmatpush1.bf16.msra.mxu0 %v2645
        %2677 = vmatprep.subr.bf16.mxu0 0
        %2678 = vmatpush2.bf16.msra.mxu0 0
        %2679 = vmatprep.subr.bf16.mxu0 0
        %2680 = vmatpush2.bf16.msra.mxu0 0
        %2681 = vmatprep.subr.bf16.mxu0 0
        %2682 = vmatpush2.bf16.msra.mxu0 0
        %2683 = vmatprep.subr.bf16.mxu0 0
        %2684 = vmatpush2.bf16.msra.mxu0 0
        %2685 = vmatprep.subr.bf16.mxu0 0
        %2686 = vmatpush2.bf16.msra.mxu0 0
        %2687 = vmatprep.subr.bf16.mxu0 0
        %2688 = vmatpush2.bf16.msra.mxu0 0
        %2689 = vmatprep.subr.bf16.mxu0 0
        %2690 = vmatpush2.bf16.msra.mxu0 0
        %2691 = vmatprep.subr.bf16.mxu0 0
        %2692 = vmatpush2.bf16.msra.mxu0 0
        %2693 = vmatprep.mubr.bf16.mxu0 0
        %2694 = vmatmul.mubr.bf16.gmra.mxu0 %v2650
        %v2695 = vpop.f32.mrf.mxu0
        %v2696 = vadd.f32 0.0, %v2695
        %v2697 = vpop.f32.mrf.mxu0
        %v2698 = vpop.f32.mrf.mxu0
        %v2699 = vadd.f32 0.0, %v2698
        %v2700 = vpop.f32.mrf.mxu0
        %2701 = vmatprep.mubr.bf16.mxu0 0
        %2702 = vmatmul.mubr.bf16.gmra.mxu0 %v2653
        %v2703 = vpop.f32.mrf.mxu0
        %v2704 = vadd.f32 0.0, %v2703
        %v2705 = vpop.f32.mrf.mxu0
        %v2706 = vpop.f32.mrf.mxu0
        %v2707 = vadd.f32 0.0, %v2706
        %v2708 = vpop.f32.mrf.mxu0
        %2709 = vmatprep.mubr.bf16.mxu0 0
        %2710 = vmatmul.mubr.bf16.gmra.mxu0 %v2656
        %v2711 = vpop.f32.mrf.mxu0
        %v2712 = vadd.f32 0.0, %v2711
        %v2713 = vpop.f32.mrf.mxu0
        %v2714 = vpop.f32.mrf.mxu0
        %v2715 = vadd.f32 0.0, %v2714
        %v2716 = vpop.f32.mrf.mxu0
        %2717 = vmatprep.mubr.bf16.mxu0 0
        %2718 = vmatmul.mubr.bf16.gmra.mxu0 %v2659
        %v2719 = vpop.f32.mrf.mxu0
        %v2720 = vadd.f32 0.0, %v2719
        %v2721 = vpop.f32.mrf.mxu0
        %v2722 = vpop.f32.mrf.mxu0
        %v2723 = vadd.f32 0.0, %v2722
        %v2724 = vpop.f32.mrf.mxu0
        %2725 = vdwg.mxu0
        %v2726 = vadd.f32 %v2293, %v2696
        %v2727 = vadd.f32 %v2296, %v2699
        %v2728 = vadd.f32 %v2301, %v2704
        %v2729 = vadd.f32 %v2304, %v2707
        %v2730 = vadd.f32 %v2309, %v2712
        %v2731 = vadd.f32 %v2312, %v2715
        %v2732 = vadd.f32 %v2317, %v2720
        %v2733 = vadd.f32 %v2320, %v2723
        %2734 = vrot.lane.b32.xlu0 %v1524, 32
        %v2735 = vpop.permute.xlu0 %2734
        %2736 = vrot.lane.b32.xlu0 %v1525, 32
        %v2737 = vpop.permute.xlu0 %2736
        %2738 = vrot.lane.b32.xlu0 %v1526, 32
        %v2739 = vpop.permute.xlu0 %2738
        %2740 = vrot.lane.b32.xlu0 %v1527, 32
        %v2741 = vpop.permute.xlu0 %2740
        %2742 = vrot.lane.b32.xlu0 %v1528, 32
        %v2743 = vpop.permute.xlu0 %2742
        %2744 = vrot.lane.b32.xlu0 %v1529, 32
        %v2745 = vpop.permute.xlu0 %2744
        %2746 = vrot.lane.b32.xlu0 %v1530, 32
        %v2747 = vpop.permute.xlu0 %2746
        %2748 = vrot.lane.b32.xlu0 %v1531, 32
        %v2749 = vpop.permute.xlu0 %2748
        %2750 = vrot.lane.b32.xlu0 %v1532, 32
        %v2751 = vpop.permute.xlu0 %2750
        %2752 = vrot.lane.b32.xlu0 %v1533, 32
        %v2753 = vpop.permute.xlu0 %2752
        %2754 = vrot.lane.b32.xlu0 %v1534, 32
        %v2755 = vpop.permute.xlu0 %2754
        %2756 = vrot.lane.b32.xlu0 %v1535, 32
        %v2757 = vpop.permute.xlu0 %2756
        %v2759 = vsel %vm1544, %v2735, 0
        %v2762 = vsel %vm1544, %v2737, 0
        %v2765 = vsel %vm1544, %v2739, 0
        %v2768 = vsel %vm1544, %v2741, 0
        %v2771 = vsel %vm1544, %v2743, 0
        %v2774 = vsel %vm1544, %v2745, 0
        %v2777 = vsel %vm1544, %v2747, 0
        %v2780 = vsel %vm1544, %v2749, 0
        %v2783 = vsel %vm1544, %v2751, 0
        %v2786 = vsel %vm1544, %v2753, 0
        %v2789 = vsel %vm1544, %v2755, 0
        %v2792 = vsel %vm1544, %v2757, 0
        %2794 = vmatprep.subr.bf16.mxu0 0
        %2795 = vmatpush1.bf16.xpose.msra.mxu0 %v2792
        %2796 = vmatprep.subr.bf16.mxu0 0
        %2797 = vmatpush1.bf16.xpose.msra.mxu0 %v2789
        %2798 = vmatprep.subr.bf16.mxu0 0
        %2799 = vmatpush1.bf16.xpose.msra.mxu0 %v2786
        %2800 = vmatprep.subr.bf16.mxu0 0
        %2801 = vmatpush1.bf16.xpose.msra.mxu0 %v2783
        %2802 = vmatprep.subr.bf16.mxu0 0
        %2803 = vmatpush1.bf16.xpose.msra.mxu0 %v2780
        %2804 = vmatprep.subr.bf16.mxu0 0
        %2805 = vmatpush1.bf16.xpose.msra.mxu0 %v2777
        %2806 = vmatprep.subr.bf16.mxu0 0
        %2807 = vmatpush1.bf16.xpose.msra.mxu0 %v2774
        %2808 = vmatprep.subr.bf16.mxu0 0
        %2809 = vmatpush1.bf16.xpose.msra.mxu0 %v2771
        %2810 = vmatprep.subr.bf16.mxu0 0
        %2811 = vmatpush2.bf16.xpose.msra.mxu0 0
        %2812 = vmatprep.subr.bf16.mxu0 0
        %2813 = vmatpush2.bf16.xpose.msra.mxu0 0
        %2814 = vmatprep.subr.bf16.mxu0 0
        %2815 = vmatpush2.bf16.xpose.msra.mxu0 0
        %2816 = vmatprep.subr.bf16.mxu0 0
        %2817 = vmatpush2.bf16.xpose.msra.mxu0 0
        %2818 = vmatprep.subr.bf16.mxu0 0
        %2819 = vmatpush2.bf16.xpose.msra.mxu0 0
        %2820 = vmatprep.subr.bf16.mxu0 0
        %2821 = vmatpush2.bf16.xpose.msra.mxu0 0
        %2822 = vmatprep.subr.bf16.mxu0 0
        %2823 = vmatpush2.bf16.xpose.msra.mxu0 0
        %2824 = vmatprep.subr.bf16.mxu0 0
        %2825 = vmatpush2.bf16.xpose.msra.mxu0 0
        %2826 = vmatprep.mubr.bf16.mxu0 0
        %2827 = vmatmul.mubr.bf16.gmra.mxu0 %v2759
        %v2828 = vpop.f32.mrf.mxu0
        %v2829 = vadd.f32 0.0, %v2828
        %v2830 = vpop.f32.mrf.mxu0
        %v2831 = vpop.f32.mrf.mxu0
        %v2832 = vadd.f32 0.0, %v2831
        %v2833 = vpop.f32.mrf.mxu0
        %2834 = vmatprep.mubr.bf16.mxu0 0
        %2835 = vmatmul.mubr.bf16.gmra.mxu0 %v2762
        %v2836 = vpop.f32.mrf.mxu0
        %v2837 = vadd.f32 0.0, %v2836
        %v2838 = vpop.f32.mrf.mxu0
        %v2839 = vpop.f32.mrf.mxu0
        %v2840 = vadd.f32 0.0, %v2839
        %v2841 = vpop.f32.mrf.mxu0
        %2842 = vmatprep.mubr.bf16.mxu0 0
        %2843 = vmatmul.mubr.bf16.gmra.mxu0 %v2765
        %v2844 = vpop.f32.mrf.mxu0
        %v2845 = vadd.f32 0.0, %v2844
        %v2846 = vpop.f32.mrf.mxu0
        %v2847 = vpop.f32.mrf.mxu0
        %v2848 = vadd.f32 0.0, %v2847
        %v2849 = vpop.f32.mrf.mxu0
        %2850 = vmatprep.mubr.bf16.mxu0 0
        %2851 = vmatmul.mubr.bf16.gmra.mxu0 %v2768
        %v2852 = vpop.f32.mrf.mxu0
        %v2853 = vadd.f32 0.0, %v2852
        %v2854 = vpop.f32.mrf.mxu0
        %v2855 = vpop.f32.mrf.mxu0
        %v2856 = vadd.f32 0.0, %v2855
        %v2857 = vpop.f32.mrf.mxu0
        %2858 = vdwg.mxu0
        %v2859 = vsel %vm1050, %v2829, -1e+20
        %v2860 = vsel %vm1051, %v2832, -1e+20
        %v2861 = vsel %vm1052, %v2837, -1e+20
        %v2862 = vsel %vm1053, %v2840, -1e+20
        %v2863 = vsel %vm1054, %v2845, -1e+20
        %v2864 = vsel %vm1055, %v2848, -1e+20
        %v2865 = vsel %vm1056, %v2853, -1e+20
        %v2866 = vsel %vm1057, %v2856, -1e+20
        %v2867 = vmul.f32 %v2859, 0.088388346
        %v2868 = vmul.f32 %v2860, 0.088388346
        %v2869 = vmul.f32 %v2861, 0.088388346
        %v2870 = vmul.f32 %v2862, 0.088388346
        %v2871 = vmul.f32 %v2863, 0.088388346
        %v2872 = vmul.f32 %v2864, 0.088388346
        %v2873 = vmul.f32 %v2865, 0.088388346
        %v2874 = vmul.f32 %v2866, 0.088388346
        %2875 = vmax.xlane.f32.xlu0 %v2867
        %v2876 = vpop.xlane.xlu0 %2875
        %2877 = vmax.xlane.f32.xlu0 %v2868
        %v2878 = vpop.xlane.xlu0 %2877
        %2879 = vmax.xlane.f32.xlu0 %v2869
        %v2880 = vpop.xlane.xlu0 %2879
        %2881 = vmax.xlane.f32.xlu0 %v2870
        %v2882 = vpop.xlane.xlu0 %2881
        %2883 = vmax.xlane.f32.xlu0 %v2871
        %v2884 = vpop.xlane.xlu0 %2883
        %2885 = vmax.xlane.f32.xlu0 %v2872
        %v2886 = vpop.xlane.xlu0 %2885
        %2887 = vmax.xlane.f32.xlu0 %v2873
        %v2888 = vpop.xlane.xlu0 %2887
        %2889 = vmax.xlane.f32.xlu0 %v2874
        %v2890 = vpop.xlane.xlu0 %2889
        %v2891 = vsub.f32 %v2867, %v2876
        %v2892 = vsub.f32 %v2868, %v2878
        %v2893 = vsub.f32 %v2869, %v2880
        %v2894 = vsub.f32 %v2870, %v2882
        %v2895 = vsub.f32 %v2871, %v2884
        %v2896 = vsub.f32 %v2872, %v2886
        %v2897 = vsub.f32 %v2873, %v2888
        %v2898 = vsub.f32 %v2874, %v2890
        %v2899 = vmul.f32 %v2891, 1.442695
        %v2900 = vpow.pop %v2899
        %v2901 = vmul.f32 %v2892, 1.442695
        %v2902 = vpow.pop %v2901
        %v2903 = vmul.f32 %v2893, 1.442695
        %v2904 = vpow.pop %v2903
        %v2905 = vmul.f32 %v2894, 1.442695
        %v2906 = vpow.pop %v2905
        %v2907 = vmul.f32 %v2895, 1.442695
        %v2908 = vpow.pop %v2907
        %v2909 = vmul.f32 %v2896, 1.442695
        %v2910 = vpow.pop %v2909
        %v2911 = vmul.f32 %v2897, 1.442695
        %v2912 = vpow.pop %v2911
        %v2913 = vmul.f32 %v2898, 1.442695
        %v2914 = vpow.pop %v2913
        %2915 = vadd.xlane.f32.xlu0 %v2900
        %v2916 = vpop.xlane.xlu0 %2915
        %2917 = vadd.xlane.f32.xlu0 %v2902
        %v2918 = vpop.xlane.xlu0 %2917
        %2919 = vadd.xlane.f32.xlu0 %v2904
        %v2920 = vpop.xlane.xlu0 %2919
        %2921 = vadd.xlane.f32.xlu0 %v2906
        %v2922 = vpop.xlane.xlu0 %2921
        %2923 = vadd.xlane.f32.xlu0 %v2908
        %v2924 = vpop.xlane.xlu0 %2923
        %2925 = vadd.xlane.f32.xlu0 %v2910
        %v2926 = vpop.xlane.xlu0 %2925
        %2927 = vadd.xlane.f32.xlu0 %v2912
        %v2928 = vpop.xlane.xlu0 %2927
        %2929 = vadd.xlane.f32.xlu0 %v2914
        %v2930 = vpop.xlane.xlu0 %2929
        %v2931 = vrcp.pop %v2916
        %v2932 = vrcp.pop %v2918
        %v2933 = vrcp.pop %v2920
        %v2934 = vrcp.pop %v2922
        %v2935 = vrcp.pop %v2924
        %v2936 = vrcp.pop %v2926
        %v2937 = vrcp.pop %v2928
        %v2938 = vrcp.pop %v2930
        %v2939 = vmul.f32 %v2900, %v2931
        %v2940 = vmul.f32 %v2902, %v2932
        %v2941 = vmul.f32 %v2904, %v2933
        %v2942 = vmul.f32 %v2906, %v2934
        %v2943 = vmul.f32 %v2908, %v2935
        %v2944 = vmul.f32 %v2910, %v2936
        %v2945 = vmul.f32 %v2912, %v2937
        %v2946 = vmul.f32 %v2914, %v2938
        %v2947 = vpack.c.bf16 %v2940, %v2939
        %v2948 = vpack.c.bf16 %v2942, %v2941
        %v2949 = vpack.c.bf16 %v2944, %v2943
        %v2950 = vpack.c.bf16 %v2946, %v2945
        %2951 = vrot.lane.b32.xlu0 %v1536, 32
        %v2952 = vpop.permute.xlu0 %2951
        %2953 = vrot.lane.b32.xlu0 %v1537, 32
        %v2954 = vpop.permute.xlu0 %2953
        %2955 = vrot.lane.b32.xlu0 %v1538, 32
        %v2956 = vpop.permute.xlu0 %2955
        %2957 = vrot.lane.b32.xlu0 %v1539, 32
        %v2958 = vpop.permute.xlu0 %2957
        %2959 = vrot.lane.b32.xlu0 %v1540, 32
        %v2960 = vpop.permute.xlu0 %2959
        %2961 = vrot.lane.b32.xlu0 %v1541, 32
        %v2962 = vpop.permute.xlu0 %2961
        %2963 = vrot.lane.b32.xlu0 %v1542, 32
        %v2964 = vpop.permute.xlu0 %2963
        %2965 = vrot.lane.b32.xlu0 %v1543, 32
        %v2966 = vpop.permute.xlu0 %2965
        %2975 = vmatprep.subr.bf16.mxu0 0
        %2976 = vmatpush1.bf16.msra.mxu0 %v2966
        %2977 = vmatprep.subr.bf16.mxu0 0
        %2978 = vmatpush1.bf16.msra.mxu0 %v2964
        %2979 = vmatprep.subr.bf16.mxu0 0
        %2980 = vmatpush1.bf16.msra.mxu0 %v2962
        %2981 = vmatprep.subr.bf16.mxu0 0
        %2982 = vmatpush1.bf16.msra.mxu0 %v2960
        %2983 = vmatprep.subr.bf16.mxu0 0
        %2984 = vmatpush1.bf16.msra.mxu0 %v2958
        %2985 = vmatprep.subr.bf16.mxu0 0
        %2986 = vmatpush1.bf16.msra.mxu0 %v2956
        %2987 = vmatprep.subr.bf16.mxu0 0
        %2988 = vmatpush1.bf16.msra.mxu0 %v2954
        %2989 = vmatprep.subr.bf16.mxu0 0
        %2990 = vmatpush1.bf16.msra.mxu0 %v2952
        %2991 = vmatprep.subr.bf16.mxu0 0
        %2992 = vmatpush2.bf16.msra.mxu0 0
        %2993 = vmatprep.subr.bf16.mxu0 0
        %2994 = vmatpush2.bf16.msra.mxu0 0
        %2995 = vmatprep.subr.bf16.mxu0 0
        %2996 = vmatpush2.bf16.msra.mxu0 0
        %2997 = vmatprep.subr.bf16.mxu0 0
        %2998 = vmatpush2.bf16.msra.mxu0 0
        %2999 = vmatprep.subr.bf16.mxu0 0
        %3000 = vmatpush2.bf16.msra.mxu0 0
        %3001 = vmatprep.subr.bf16.mxu0 0
        %3002 = vmatpush2.bf16.msra.mxu0 0
        %3003 = vmatprep.subr.bf16.mxu0 0
        %3004 = vmatpush2.bf16.msra.mxu0 0
        %3005 = vmatprep.subr.bf16.mxu0 0
        %3006 = vmatpush2.bf16.msra.mxu0 0
        %3007 = vmatprep.mubr.bf16.mxu0 0
        %3008 = vmatmul.mubr.bf16.gmra.mxu0 %v2947
        %v3009 = vpop.f32.mrf.mxu0
        %v3010 = vadd.f32 0.0, %v3009
        %v3011 = vpop.f32.mrf.mxu0
        %v3012 = vpop.f32.mrf.mxu0
        %v3013 = vadd.f32 0.0, %v3012
        %v3014 = vpop.f32.mrf.mxu0
        %3015 = vmatprep.mubr.bf16.mxu0 0
        %3016 = vmatmul.mubr.bf16.gmra.mxu0 %v2948
        %v3017 = vpop.f32.mrf.mxu0
        %v3018 = vadd.f32 0.0, %v3017
        %v3019 = vpop.f32.mrf.mxu0
        %v3020 = vpop.f32.mrf.mxu0
        %v3021 = vadd.f32 0.0, %v3020
        %v3022 = vpop.f32.mrf.mxu0
        %3023 = vmatprep.mubr.bf16.mxu0 0
        %3024 = vmatmul.mubr.bf16.gmra.mxu0 %v2949
        %v3025 = vpop.f32.mrf.mxu0
        %v3026 = vadd.f32 0.0, %v3025
        %v3027 = vpop.f32.mrf.mxu0
        %v3028 = vpop.f32.mrf.mxu0
        %v3029 = vadd.f32 0.0, %v3028
        %v3030 = vpop.f32.mrf.mxu0
        %3031 = vmatprep.mubr.bf16.mxu0 0
        %3032 = vmatmul.mubr.bf16.gmra.mxu0 %v2950
        %v3033 = vpop.f32.mrf.mxu0
        %v3034 = vadd.f32 0.0, %v3033
        %v3035 = vpop.f32.mrf.mxu0
        %v3036 = vpop.f32.mrf.mxu0
        %v3037 = vadd.f32 0.0, %v3036
        %v3038 = vpop.f32.mrf.mxu0
        %3039 = vdwg.mxu0
        %v3040 = vpack.c.bf16 %v3013, %v3010
        %v3041 = vpack.c.bf16 %v3021, %v3018
        %v3042 = vpack.c.bf16 %v3029, %v3026
        %v3043 = vpack.c.bf16 %v3037, %v3034
        %v3044 = vld [vmem:[#allocation15 + $0x30] sm:$0xf]
        %v3045 = vld [vmem:[#allocation15 + $0x34] sm:$0xf]
        %v3046 = vld [vmem:[#allocation15 + $0x38] sm:$0xf]
        %v3047 = vld [vmem:[#allocation15 + $0x3c] sm:$0xf]
        %v3052 = vunpack.c.l.b16 %v3044
        %v3053 = vunpack.c.l.b16 %v3045
        %v3054 = vunpack.c.l.b16 %v3046
        %v3055 = vunpack.c.l.b16 %v3047
        %v3056 = vpack.c.b16 %v3053, %v3052
        %v3057 = vpack.c.b16 %v3055, %v3054
        %v3061 = vsel %vm1544, %v3040, 0
        %v3064 = vsel %vm1544, %v3041, 0
        %v3067 = vsel %vm1544, %v3042, 0
        %v3070 = vsel %vm1544, %v3043, 0
        %3072 = vmatprep.subr.bf16.mxu0 0
        %3073 = vmatpush1.bf16.msra.mxu0 0
        %3074 = vmatprep.subr.bf16.mxu0 0
        %3075 = vmatpush1.bf16.msra.mxu0 0
        %3076 = vmatprep.subr.bf16.mxu0 0
        %3077 = vmatpush1.bf16.msra.mxu0 0
        %3078 = vmatprep.subr.bf16.mxu0 0
        %3079 = vmatpush1.bf16.msra.mxu0 0
        %3080 = vmatprep.subr.bf16.mxu0 0
        %3081 = vmatpush1.bf16.msra.mxu0 0
        %3082 = vmatprep.subr.bf16.mxu0 0
        %3083 = vmatpush1.bf16.msra.mxu0 0
        %3084 = vmatprep.subr.bf16.mxu0 0
        %3085 = vmatpush1.bf16.msra.mxu0 %v3057
        %3086 = vmatprep.subr.bf16.mxu0 0
        %3087 = vmatpush1.bf16.msra.mxu0 %v3056
        %3088 = vmatprep.subr.bf16.mxu0 0
        %3089 = vmatpush2.bf16.msra.mxu0 0
        %3090 = vmatprep.subr.bf16.mxu0 0
        %3091 = vmatpush2.bf16.msra.mxu0 0
        %3092 = vmatprep.subr.bf16.mxu0 0
        %3093 = vmatpush2.bf16.msra.mxu0 0
        %3094 = vmatprep.subr.bf16.mxu0 0
        %3095 = vmatpush2.bf16.msra.mxu0 0
        %3096 = vmatprep.subr.bf16.mxu0 0
        %3097 = vmatpush2.bf16.msra.mxu0 0
        %3098 = vmatprep.subr.bf16.mxu0 0
        %3099 = vmatpush2.bf16.msra.mxu0 0
        %3100 = vmatprep.subr.bf16.mxu0 0
        %3101 = vmatpush2.bf16.msra.mxu0 0
        %3102 = vmatprep.subr.bf16.mxu0 0
        %3103 = vmatpush2.bf16.msra.mxu0 0
        %3104 = vmatprep.mubr.bf16.mxu0 0
        %3105 = vmatmul.mubr.bf16.gmra.mxu0 %v3061
        %v3106 = vpop.f32.mrf.mxu0
        %v3107 = vadd.f32 0.0, %v3106
        %v3108 = vpop.f32.mrf.mxu0
        %v3109 = vpop.f32.mrf.mxu0
        %v3110 = vadd.f32 0.0, %v3109
        %v3111 = vpop.f32.mrf.mxu0
        %3112 = vmatprep.mubr.bf16.mxu0 0
        %3113 = vmatmul.mubr.bf16.gmra.mxu0 %v3064
        %v3114 = vpop.f32.mrf.mxu0
        %v3115 = vadd.f32 0.0, %v3114
        %v3116 = vpop.f32.mrf.mxu0
        %v3117 = vpop.f32.mrf.mxu0
        %v3118 = vadd.f32 0.0, %v3117
        %v3119 = vpop.f32.mrf.mxu0
        %3120 = vmatprep.mubr.bf16.mxu0 0
        %3121 = vmatmul.mubr.bf16.gmra.mxu0 %v3067
        %v3122 = vpop.f32.mrf.mxu0
        %v3123 = vadd.f32 0.0, %v3122
        %v3124 = vpop.f32.mrf.mxu0
        %v3125 = vpop.f32.mrf.mxu0
        %v3126 = vadd.f32 0.0, %v3125
        %v3127 = vpop.f32.mrf.mxu0
        %3128 = vmatprep.mubr.bf16.mxu0 0
        %3129 = vmatmul.mubr.bf16.gmra.mxu0 %v3070
        %v3130 = vpop.f32.mrf.mxu0
        %v3131 = vadd.f32 0.0, %v3130
        %v3132 = vpop.f32.mrf.mxu0
        %v3133 = vpop.f32.mrf.mxu0
        %v3134 = vadd.f32 0.0, %v3133
        %v3135 = vpop.f32.mrf.mxu0
        %3136 = vdwg.mxu0
        %v3137 = vadd.f32 %v2726, %v3107
        %v3138 = vadd.f32 %v2727, %v3110
        %v3139 = vadd.f32 %v2728, %v3115
        %v3140 = vadd.f32 %v2729, %v3118
        %v3141 = vadd.f32 %v2730, %v3123
        %v3142 = vadd.f32 %v2731, %v3126
        %v3143 = vadd.f32 %v2732, %v3131
        %v3144 = vadd.f32 %v2733, %v3134
        %v3145 = vld [vmem:[%s8] sm:$0x1]
        %v3147 = vlaneseq
        %v3148 = vshrl.u32 %v3147, 7
        %v3149 = vsub.s32 0, %v3148
        %v3150 = vrot.slane %v3145, %v3149
        %v3152 = vadd.f32 %v3137, %v3150
        %v3153 = vadd.f32 %v3138, %v3150
        %v3154 = vadd.f32 %v3139, %v3150
        %v3155 = vadd.f32 %v3140, %v3150
        %v3156 = vadd.f32 %v3141, %v3150
        %v3157 = vadd.f32 %v3142, %v3150
        %v3158 = vadd.f32 %v3143, %v3150
        %v3159 = vadd.f32 %v3144, %v3150
        %v3160 = vadd.f32 %v3152, %v990
        %v3161 = vadd.f32 %v3153, %v991
        %v3162 = vadd.f32 %v3154, %v992
        %v3163 = vadd.f32 %v3155, %v993
        %v3164 = vadd.f32 %v3156, %v994
        %v3165 = vadd.f32 %v3157, %v995
        %v3166 = vadd.f32 %v3158, %v996
        %v3167 = vadd.f32 %v3159, %v997
        %3168 = vadd.xlane.f32.xlu0 %v3160
        %v3169 = vpop.xlane.xlu0 %3168
        %3170 = vadd.xlane.f32.xlu0 %v3161
        %v3171 = vpop.xlane.xlu0 %3170
        %3172 = vadd.xlane.f32.xlu0 %v3162
        %v3173 = vpop.xlane.xlu0 %3172
        %3174 = vadd.xlane.f32.xlu0 %v3163
        %v3175 = vpop.xlane.xlu0 %3174
        %3176 = vadd.xlane.f32.xlu0 %v3164
        %v3177 = vpop.xlane.xlu0 %3176
        %3178 = vadd.xlane.f32.xlu0 %v3165
        %v3179 = vpop.xlane.xlu0 %3178
        %3180 = vadd.xlane.f32.xlu0 %v3166
        %v3181 = vpop.xlane.xlu0 %3180
        %3182 = vadd.xlane.f32.xlu0 %v3167
        %v3183 = vpop.xlane.xlu0 %3182
        %v3184 = vrcp.pop 128.0
        %v3185 = vmul.f32 %v3169, %v3184
        %v3186 = vmul.f32 %v3171, %v3184
        %v3187 = vmul.f32 %v3173, %v3184
        %v3188 = vmul.f32 %v3175, %v3184
        %v3189 = vmul.f32 %v3177, %v3184
        %v3190 = vmul.f32 %v3179, %v3184
        %v3191 = vmul.f32 %v3181, %v3184
        %v3192 = vmul.f32 %v3183, %v3184
        %v3193 = vsub.f32 %v3160, %v3185
        %v3194 = vsub.f32 %v3161, %v3186
        %v3195 = vsub.f32 %v3162, %v3187
        %v3196 = vsub.f32 %v3163, %v3188
        %v3197 = vsub.f32 %v3164, %v3189
        %v3198 = vsub.f32 %v3165, %v3190
        %v3199 = vsub.f32 %v3166, %v3191
        %v3200 = vsub.f32 %v3167, %v3192
        %v3201 = vmul.f32 %v3193, %v3193
        %v3202 = vmul.f32 %v3194, %v3194
        %v3203 = vmul.f32 %v3195, %v3195
        %v3204 = vmul.f32 %v3196, %v3196
        %v3205 = vmul.f32 %v3197, %v3197
        %v3206 = vmul.f32 %v3198, %v3198
        %v3207 = vmul.f32 %v3199, %v3199
        %v3208 = vmul.f32 %v3200, %v3200
        %3209 = vadd.xlane.f32.xlu0 %v3201
        %v3210 = vpop.xlane.xlu0 %3209
        %3211 = vadd.xlane.f32.xlu0 %v3202
        %v3212 = vpop.xlane.xlu0 %3211
        %3213 = vadd.xlane.f32.xlu0 %v3203
        %v3214 = vpop.xlane.xlu0 %3213
        %3215 = vadd.xlane.f32.xlu0 %v3204
        %v3216 = vpop.xlane.xlu0 %3215
        %3217 = vadd.xlane.f32.xlu0 %v3205
        %v3218 = vpop.xlane.xlu0 %3217
        %3219 = vadd.xlane.f32.xlu0 %v3206
        %v3220 = vpop.xlane.xlu0 %3219
        %3221 = vadd.xlane.f32.xlu0 %v3207
        %v3222 = vpop.xlane.xlu0 %3221
        %3223 = vadd.xlane.f32.xlu0 %v3208
        %v3224 = vpop.xlane.xlu0 %3223
        %v3225 = vmul.f32 %v3210, %v3184
        %v3226 = vmul.f32 %v3212, %v3184
        %v3227 = vmul.f32 %v3214, %v3184
        %v3228 = vmul.f32 %v3216, %v3184
        %v3229 = vmul.f32 %v3218, %v3184
        %v3230 = vmul.f32 %v3220, %v3184
        %v3231 = vmul.f32 %v3222, %v3184
        %v3232 = vmul.f32 %v3224, %v3184
        %v3233 = vadd.f32 %v3225, 1e-05
        %v3234 = vadd.f32 %v3226, 1e-05
        %v3235 = vadd.f32 %v3227, 1e-05
        %v3236 = vadd.f32 %v3228, 1e-05
        %v3237 = vadd.f32 %v3229, 1e-05
        %v3238 = vadd.f32 %v3230, 1e-05
        %v3239 = vadd.f32 %v3231, 1e-05
        %v3240 = vadd.f32 %v3232, 1e-05
        %v3241 = vrsqrt.pop %v3233
        %v3242 = vrsqrt.pop %v3234
        %v3243 = vrsqrt.pop %v3235
        %v3244 = vrsqrt.pop %v3236
        %v3245 = vrsqrt.pop %v3237
        %v3246 = vrsqrt.pop %v3238
        %v3247 = vrsqrt.pop %v3239
        %v3248 = vrsqrt.pop %v3240
        %v3249 = vmul.f32 %v3193, %v3241
        %v3250 = vmul.f32 %v3194, %v3242
        %v3251 = vmul.f32 %v3195, %v3243
        %v3252 = vmul.f32 %v3196, %v3244
        %v3253 = vmul.f32 %v3197, %v3245
        %v3254 = vmul.f32 %v3198, %v3246
        %v3255 = vmul.f32 %v3199, %v3247
        %v3256 = vmul.f32 %v3200, %v3248
        %v3257 = vld [vmem:[%s9] sm:$0x1]
        %v3259 = vlaneseq
        %v3260 = vshrl.u32 %v3259, 7
        %v3261 = vsub.s32 0, %v3260
        %v3262 = vrot.slane %v3257, %v3261
        %v3264 = vmul.f32 %v3249, %v3262
        %v3265 = vmul.f32 %v3250, %v3262
        %v3266 = vmul.f32 %v3251, %v3262
        %v3267 = vmul.f32 %v3252, %v3262
        %v3268 = vmul.f32 %v3253, %v3262
        %v3269 = vmul.f32 %v3254, %v3262
        %v3270 = vmul.f32 %v3255, %v3262
        %v3271 = vmul.f32 %v3256, %v3262
        %v3272 = vld [vmem:[%s10] sm:$0x1]
        %v3274 = vlaneseq
        %v3275 = vshrl.u32 %v3274, 7
        %v3276 = vsub.s32 0, %v3275
        %v3277 = vrot.slane %v3272, %v3276
        %v3279 = vadd.f32 %v3264, %v3277
        %v3280 = vadd.f32 %v3265, %v3277
        %v3281 = vadd.f32 %v3266, %v3277
        %v3282 = vadd.f32 %v3267, %v3277
        %v3283 = vadd.f32 %v3268, %v3277
        %v3284 = vadd.f32 %v3269, %v3277
        %v3285 = vadd.f32 %v3270, %v3277
        %v3286 = vadd.f32 %v3271, %v3277
        %v3287 = vpack.c.bf16 %v999, %v998
        %v3288 = vpack.c.bf16 %v1001, %v1000
        %v3289 = vpack.c.bf16 %v1003, %v1002
        %v3290 = vpack.c.bf16 %v1005, %v1004
        %v3291 = vpack.c.bf16 %v1007, %v1006
        %v3292 = vpack.c.bf16 %v1009, %v1008
        %v3293 = vpack.c.bf16 %v1011, %v1010
        %v3294 = vpack.c.bf16 %v1013, %v1012
        %v3295 = vld [vmem:[#allocation19] sm:$0xf]
        %v3296 = vld [vmem:[#allocation19 + $0x4] sm:$0xf]
        %v3297 = vld [vmem:[#allocation19 + $0x8] sm:$0xf]
        %v3298 = vld [vmem:[#allocation19 + $0xc] sm:$0xf]
        %v3299 = vld [vmem:[#allocation19 + $0x10] sm:$0xf]
        %v3300 = vld [vmem:[#allocation19 + $0x14] sm:$0xf]
        %v3301 = vld [vmem:[#allocation19 + $0x18] sm:$0xf]
        %v3302 = vld [vmem:[#allocation19 + $0x1c] sm:$0xf]
        %v3303 = vld [vmem:[#allocation19 + $0x20] sm:$0xf]
        %v3304 = vld [vmem:[#allocation19 + $0x24] sm:$0xf]
        %v3305 = vld [vmem:[#allocation19 + $0x28] sm:$0xf]
        %v3306 = vld [vmem:[#allocation19 + $0x2c] sm:$0xf]
        %v3307 = vld [vmem:[#allocation19 + $0x30] sm:$0xf]
        %v3308 = vld [vmem:[#allocation19 + $0x34] sm:$0xf]
        %v3309 = vld [vmem:[#allocation19 + $0x38] sm:$0xf]
        %v3310 = vld [vmem:[#allocation19 + $0x3c] sm:$0xf]
        %v3327 = vunpack.c.l.b16 %v3295
        %v3328 = vunpack.c.l.b16 %v3296
        %v3329 = vunpack.c.l.b16 %v3297
        %v3330 = vunpack.c.l.b16 %v3298
        %v3331 = vunpack.c.l.b16 %v3299
        %v3332 = vunpack.c.l.b16 %v3300
        %v3333 = vunpack.c.l.b16 %v3301
        %v3334 = vunpack.c.l.b16 %v3302
        %v3335 = vunpack.c.l.b16 %v3303
        %v3336 = vunpack.c.l.b16 %v3304
        %v3337 = vunpack.c.l.b16 %v3305
        %v3338 = vunpack.c.l.b16 %v3306
        %v3339 = vunpack.c.l.b16 %v3307
        %v3340 = vunpack.c.l.b16 %v3308
        %v3341 = vunpack.c.l.b16 %v3309
        %v3342 = vunpack.c.l.b16 %v3310
        %v3343 = vpack.c.b16 %v3328, %v3327
        %v3344 = vpack.c.b16 %v3330, %v3329
        %v3345 = vpack.c.b16 %v3332, %v3331
        %v3346 = vpack.c.b16 %v3334, %v3333
        %v3347 = vpack.c.b16 %v3336, %v3335
        %v3348 = vpack.c.b16 %v3338, %v3337
        %v3349 = vpack.c.b16 %v3340, %v3339
        %v3350 = vpack.c.b16 %v3342, %v3341
        %3359 = vmatprep.subr.bf16.mxu0 0
        %3360 = vmatpush1.bf16.msra.mxu0 %v3350
        %3361 = vmatprep.subr.bf16.mxu0 0
        %3362 = vmatpush1.bf16.msra.mxu0 %v3349
        %3363 = vmatprep.subr.bf16.mxu0 0
        %3364 = vmatpush1.bf16.msra.mxu0 %v3348
        %3365 = vmatprep.subr.bf16.mxu0 0
        %3366 = vmatpush1.bf16.msra.mxu0 %v3347
        %3367 = vmatprep.subr.bf16.mxu0 0
        %3368 = vmatpush1.bf16.msra.mxu0 %v3346
        %3369 = vmatprep.subr.bf16.mxu0 0
        %3370 = vmatpush1.bf16.msra.mxu0 %v3345
        %3371 = vmatprep.subr.bf16.mxu0 0
        %3372 = vmatpush1.bf16.msra.mxu0 %v3344
        %3373 = vmatprep.subr.bf16.mxu0 0
        %3374 = vmatpush1.bf16.msra.mxu0 %v3343
        %3375 = vmatprep.subr.bf16.mxu0 0
        %3376 = vmatpush2.bf16.msra.mxu0 0
        %3377 = vmatprep.subr.bf16.mxu0 0
        %3378 = vmatpush2.bf16.msra.mxu0 0
        %3379 = vmatprep.subr.bf16.mxu0 0
        %3380 = vmatpush2.bf16.msra.mxu0 0
        %3381 = vmatprep.subr.bf16.mxu0 0
        %3382 = vmatpush2.bf16.msra.mxu0 0
        %3383 = vmatprep.subr.bf16.mxu0 0
        %3384 = vmatpush2.bf16.msra.mxu0 0
        %3385 = vmatprep.subr.bf16.mxu0 0
        %3386 = vmatpush2.bf16.msra.mxu0 0
        %3387 = vmatprep.subr.bf16.mxu0 0
        %3388 = vmatpush2.bf16.msra.mxu0 0
        %3389 = vmatprep.subr.bf16.mxu0 0
        %3390 = vmatpush2.bf16.msra.mxu0 0
        %3391 = vmatprep.mubr.bf16.mxu0 0
        %3392 = vmatmul.mubr.bf16.gmra.mxu0 %v3287
        %v3393 = vpop.f32.mrf.mxu0
        %v3394 = vadd.f32 0.0, %v3393
        %v3395 = vpop.f32.mrf.mxu0
        %v3396 = vpop.f32.mrf.mxu0
        %v3397 = vadd.f32 0.0, %v3396
        %v3398 = vpop.f32.mrf.mxu0
        %3399 = vmatprep.mubr.bf16.mxu0 0
        %3400 = vmatmul.mubr.bf16.gmra.mxu0 %v3288
        %v3401 = vpop.f32.mrf.mxu0
        %v3402 = vadd.f32 0.0, %v3401
        %v3403 = vpop.f32.mrf.mxu0
        %v3404 = vpop.f32.mrf.mxu0
        %v3405 = vadd.f32 0.0, %v3404
        %v3406 = vpop.f32.mrf.mxu0
        %3407 = vmatprep.mubr.bf16.mxu0 0
        %3408 = vmatmul.mubr.bf16.gmra.mxu0 %v3289
        %v3409 = vpop.f32.mrf.mxu0
        %v3410 = vadd.f32 0.0, %v3409
        %v3411 = vpop.f32.mrf.mxu0
        %v3412 = vpop.f32.mrf.mxu0
        %v3413 = vadd.f32 0.0, %v3412
        %v3414 = vpop.f32.mrf.mxu0
        %3415 = vmatprep.mubr.bf16.mxu0 0
        %3416 = vmatmul.mubr.bf16.gmra.mxu0 %v3290
        %v3417 = vpop.f32.mrf.mxu0
        %v3418 = vadd.f32 0.0, %v3417
        %v3419 = vpop.f32.mrf.mxu0
        %v3420 = vpop.f32.mrf.mxu0
        %v3421 = vadd.f32 0.0, %v3420
        %v3422 = vpop.f32.mrf.mxu0
        %3423 = vmatprep.mubr.bf16.mxu0 0
        %3424 = vmatmul.mubr.bf16.gmra.mxu0 %v3291
        %v3425 = vpop.f32.mrf.mxu0
        %v3426 = vadd.f32 0.0, %v3425
        %v3427 = vpop.f32.mrf.mxu0
        %v3428 = vpop.f32.mrf.mxu0
        %v3429 = vadd.f32 0.0, %v3428
        %v3430 = vpop.f32.mrf.mxu0
        %3431 = vmatprep.mubr.bf16.mxu0 0
        %3432 = vmatmul.mubr.bf16.gmra.mxu0 %v3292
        %v3433 = vpop.f32.mrf.mxu0
        %v3434 = vadd.f32 0.0, %v3433
        %v3435 = vpop.f32.mrf.mxu0
        %v3436 = vpop.f32.mrf.mxu0
        %v3437 = vadd.f32 0.0, %v3436
        %v3438 = vpop.f32.mrf.mxu0
        %3439 = vmatprep.mubr.bf16.mxu0 0
        %3440 = vmatmul.mubr.bf16.gmra.mxu0 %v3293
        %v3441 = vpop.f32.mrf.mxu0
        %v3442 = vadd.f32 0.0, %v3441
        %v3443 = vpop.f32.mrf.mxu0
        %v3444 = vpop.f32.mrf.mxu0
        %v3445 = vadd.f32 0.0, %v3444
        %v3446 = vpop.f32.mrf.mxu0
        %3447 = vmatprep.mubr.bf16.mxu0 0
        %3448 = vmatmul.mubr.bf16.gmra.mxu0 %v3294
        %v3449 = vpop.f32.mrf.mxu0
        %v3450 = vadd.f32 0.0, %v3449
        %v3451 = vpop.f32.mrf.mxu0
        %v3452 = vpop.f32.mrf.mxu0
        %v3453 = vadd.f32 0.0, %v3452
        %v3454 = vpop.f32.mrf.mxu0
        %3455 = vdwg.mxu0
        %v3456 = vpack.c.bf16 %v1015, %v1014
        %v3457 = vpack.c.bf16 %v1017, %v1016
        %v3458 = vpack.c.bf16 %v1019, %v1018
        %v3459 = vpack.c.bf16 %v1021, %v1020
        %v3460 = vpack.c.bf16 %v1023, %v1022
        %v3461 = vpack.c.bf16 %v1025, %v1024
        %v3462 = vpack.c.bf16 %v1027, %v1026
        %v3463 = vpack.c.bf16 %v1029, %v1028
        %v3464 = vld [vmem:[#allocation18] sm:$0xf]
        %v3465 = vld [vmem:[#allocation18 + $0x4] sm:$0xf]
        %v3466 = vld [vmem:[#allocation18 + $0x8] sm:$0xf]
        %v3467 = vld [vmem:[#allocation18 + $0xc] sm:$0xf]
        %v3468 = vld [vmem:[#allocation18 + $0x10] sm:$0xf]
        %v3469 = vld [vmem:[#allocation18 + $0x14] sm:$0xf]
        %v3470 = vld [vmem:[#allocation18 + $0x18] sm:$0xf]
        %v3471 = vld [vmem:[#allocation18 + $0x1c] sm:$0xf]
        %v3472 = vld [vmem:[#allocation18 + $0x20] sm:$0xf]
        %v3473 = vld [vmem:[#allocation18 + $0x24] sm:$0xf]
        %v3474 = vld [vmem:[#allocation18 + $0x28] sm:$0xf]
        %v3475 = vld [vmem:[#allocation18 + $0x2c] sm:$0xf]
        %v3476 = vld [vmem:[#allocation18 + $0x30] sm:$0xf]
        %v3477 = vld [vmem:[#allocation18 + $0x34] sm:$0xf]
        %v3478 = vld [vmem:[#allocation18 + $0x38] sm:$0xf]
        %v3479 = vld [vmem:[#allocation18 + $0x3c] sm:$0xf]
        %v3496 = vunpack.c.l.b16 %v3464
        %v3497 = vunpack.c.l.b16 %v3465
        %v3498 = vunpack.c.l.b16 %v3466
        %v3499 = vunpack.c.l.b16 %v3467
        %v3500 = vunpack.c.l.b16 %v3468
        %v3501 = vunpack.c.l.b16 %v3469
        %v3502 = vunpack.c.l.b16 %v3470
        %v3503 = vunpack.c.l.b16 %v3471
        %v3504 = vunpack.c.l.b16 %v3472
        %v3505 = vunpack.c.l.b16 %v3473
        %v3506 = vunpack.c.l.b16 %v3474
        %v3507 = vunpack.c.l.b16 %v3475
        %v3508 = vunpack.c.l.b16 %v3476
        %v3509 = vunpack.c.l.b16 %v3477
        %v3510 = vunpack.c.l.b16 %v3478
        %v3511 = vunpack.c.l.b16 %v3479
        %v3512 = vpack.c.b16 %v3497, %v3496
        %v3513 = vpack.c.b16 %v3499, %v3498
        %v3514 = vpack.c.b16 %v3501, %v3500
        %v3515 = vpack.c.b16 %v3503, %v3502
        %v3516 = vpack.c.b16 %v3505, %v3504
        %v3517 = vpack.c.b16 %v3507, %v3506
        %v3518 = vpack.c.b16 %v3509, %v3508
        %v3519 = vpack.c.b16 %v3511, %v3510
        %3528 = vmatprep.subr.bf16.mxu0 0
        %3529 = vmatpush1.bf16.msra.mxu0 %v3519
        %3530 = vmatprep.subr.bf16.mxu0 0
        %3531 = vmatpush1.bf16.msra.mxu0 %v3518
        %3532 = vmatprep.subr.bf16.mxu0 0
        %3533 = vmatpush1.bf16.msra.mxu0 %v3517
        %3534 = vmatprep.subr.bf16.mxu0 0
        %3535 = vmatpush1.bf16.msra.mxu0 %v3516
        %3536 = vmatprep.subr.bf16.mxu0 0
        %3537 = vmatpush1.bf16.msra.mxu0 %v3515
        %3538 = vmatprep.subr.bf16.mxu0 0
        %3539 = vmatpush1.bf16.msra.mxu0 %v3514
        %3540 = vmatprep.subr.bf16.mxu0 0
        %3541 = vmatpush1.bf16.msra.mxu0 %v3513
        %3542 = vmatprep.subr.bf16.mxu0 0
        %3543 = vmatpush1.bf16.msra.mxu0 %v3512
        %3544 = vmatprep.subr.bf16.mxu0 0
        %3545 = vmatpush2.bf16.msra.mxu0 0
        %3546 = vmatprep.subr.bf16.mxu0 0
        %3547 = vmatpush2.bf16.msra.mxu0 0
        %3548 = vmatprep.subr.bf16.mxu0 0
        %3549 = vmatpush2.bf16.msra.mxu0 0
        %3550 = vmatprep.subr.bf16.mxu0 0
        %3551 = vmatpush2.bf16.msra.mxu0 0
        %3552 = vmatprep.subr.bf16.mxu0 0
        %3553 = vmatpush2.bf16.msra.mxu0 0
        %3554 = vmatprep.subr.bf16.mxu0 0
        %3555 = vmatpush2.bf16.msra.mxu0 0
        %3556 = vmatprep.subr.bf16.mxu0 0
        %3557 = vmatpush2.bf16.msra.mxu0 0
        %3558 = vmatprep.subr.bf16.mxu0 0
        %3559 = vmatpush2.bf16.msra.mxu0 0
        %3560 = vmatprep.mubr.bf16.mxu0 0
        %3561 = vmatmul.mubr.bf16.gmra.mxu0 %v3456
        %v3562 = vpop.f32.mrf.mxu0
        %v3563 = vadd.f32 0.0, %v3562
        %v3564 = vpop.f32.mrf.mxu0
        %v3565 = vpop.f32.mrf.mxu0
        %v3566 = vadd.f32 0.0, %v3565
        %v3567 = vpop.f32.mrf.mxu0
        %3568 = vmatprep.mubr.bf16.mxu0 0
        %3569 = vmatmul.mubr.bf16.gmra.mxu0 %v3457
        %v3570 = vpop.f32.mrf.mxu0
        %v3571 = vadd.f32 0.0, %v3570
        %v3572 = vpop.f32.mrf.mxu0
        %v3573 = vpop.f32.mrf.mxu0
        %v3574 = vadd.f32 0.0, %v3573
        %v3575 = vpop.f32.mrf.mxu0
        %3576 = vmatprep.mubr.bf16.mxu0 0
        %3577 = vmatmul.mubr.bf16.gmra.mxu0 %v3458
        %v3578 = vpop.f32.mrf.mxu0
        %v3579 = vadd.f32 0.0, %v3578
        %v3580 = vpop.f32.mrf.mxu0
        %v3581 = vpop.f32.mrf.mxu0
        %v3582 = vadd.f32 0.0, %v3581
        %v3583 = vpop.f32.mrf.mxu0
        %3584 = vmatprep.mubr.bf16.mxu0 0
        %3585 = vmatmul.mubr.bf16.gmra.mxu0 %v3459
        %v3586 = vpop.f32.mrf.mxu0
        %v3587 = vadd.f32 0.0, %v3586
        %v3588 = vpop.f32.mrf.mxu0
        %v3589 = vpop.f32.mrf.mxu0
        %v3590 = vadd.f32 0.0, %v3589
        %v3591 = vpop.f32.mrf.mxu0
        %3592 = vmatprep.mubr.bf16.mxu0 0
        %3593 = vmatmul.mubr.bf16.gmra.mxu0 %v3460
        %v3594 = vpop.f32.mrf.mxu0
        %v3595 = vadd.f32 0.0, %v3594
        %v3596 = vpop.f32.mrf.mxu0
        %v3597 = vpop.f32.mrf.mxu0
        %v3598 = vadd.f32 0.0, %v3597
        %v3599 = vpop.f32.mrf.mxu0
        %3600 = vmatprep.mubr.bf16.mxu0 0
        %3601 = vmatmul.mubr.bf16.gmra.mxu0 %v3461
        %v3602 = vpop.f32.mrf.mxu0
        %v3603 = vadd.f32 0.0, %v3602
        %v3604 = vpop.f32.mrf.mxu0
        %v3605 = vpop.f32.mrf.mxu0
        %v3606 = vadd.f32 0.0, %v3605
        %v3607 = vpop.f32.mrf.mxu0
        %3608 = vmatprep.mubr.bf16.mxu0 0
        %3609 = vmatmul.mubr.bf16.gmra.mxu0 %v3462
        %v3610 = vpop.f32.mrf.mxu0
        %v3611 = vadd.f32 0.0, %v3610
        %v3612 = vpop.f32.mrf.mxu0
        %v3613 = vpop.f32.mrf.mxu0
        %v3614 = vadd.f32 0.0, %v3613
        %v3615 = vpop.f32.mrf.mxu0
        %3616 = vmatprep.mubr.bf16.mxu0 0
        %3617 = vmatmul.mubr.bf16.gmra.mxu0 %v3463
        %v3618 = vpop.f32.mrf.mxu0
        %v3619 = vadd.f32 0.0, %v3618
        %v3620 = vpop.f32.mrf.mxu0
        %v3621 = vpop.f32.mrf.mxu0
        %v3622 = vadd.f32 0.0, %v3621
        %v3623 = vpop.f32.mrf.mxu0
        %3624 = vdwg.mxu0
        %v3625 = vpack.c.bf16 %v3280, %v3279
        %v3626 = vpack.c.bf16 %v3282, %v3281
        %v3627 = vpack.c.bf16 %v3284, %v3283
        %v3628 = vpack.c.bf16 %v3286, %v3285
        %v3629 = vld [vmem:[#allocation16] sm:$0xf]
        %v3630 = vld [vmem:[#allocation16 + $0x4] sm:$0xf]
        %v3631 = vld [vmem:[#allocation16 + $0x8] sm:$0xf]
        %v3632 = vld [vmem:[#allocation16 + $0xc] sm:$0xf]
        %v3633 = vld [vmem:[#allocation16 + $0x10] sm:$0xf]
        %v3634 = vld [vmem:[#allocation16 + $0x14] sm:$0xf]
        %v3635 = vld [vmem:[#allocation16 + $0x18] sm:$0xf]
        %v3636 = vld [vmem:[#allocation16 + $0x1c] sm:$0xf]
        %v3637 = vld [vmem:[#allocation16 + $0x20] sm:$0xf]
        %v3638 = vld [vmem:[#allocation16 + $0x24] sm:$0xf]
        %v3639 = vld [vmem:[#allocation16 + $0x28] sm:$0xf]
        %v3640 = vld [vmem:[#allocation16 + $0x2c] sm:$0xf]
        %v3641 = vld [vmem:[#allocation16 + $0x30] sm:$0xf]
        %v3642 = vld [vmem:[#allocation16 + $0x34] sm:$0xf]
        %v3643 = vld [vmem:[#allocation16 + $0x38] sm:$0xf]
        %v3644 = vld [vmem:[#allocation16 + $0x3c] sm:$0xf]
        %v3661 = vunpack.c.l.b16 %v3629
        %v3662 = vunpack.c.l.b16 %v3630
        %v3663 = vunpack.c.l.b16 %v3631
        %v3664 = vunpack.c.l.b16 %v3632
        %v3665 = vunpack.c.l.b16 %v3633
        %v3666 = vunpack.c.l.b16 %v3634
        %v3667 = vunpack.c.l.b16 %v3635
        %v3668 = vunpack.c.l.b16 %v3636
        %v3669 = vunpack.c.l.b16 %v3637
        %v3670 = vunpack.c.l.b16 %v3638
        %v3671 = vunpack.c.l.b16 %v3639
        %v3672 = vunpack.c.l.b16 %v3640
        %v3673 = vunpack.c.l.b16 %v3641
        %v3674 = vunpack.c.l.b16 %v3642
        %v3675 = vunpack.c.l.b16 %v3643
        %v3676 = vunpack.c.l.b16 %v3644
        %v3677 = vpack.c.b16 %v3662, %v3661
        %v3678 = vpack.c.b16 %v3664, %v3663
        %v3679 = vpack.c.b16 %v3666, %v3665
        %v3680 = vpack.c.b16 %v3668, %v3667
        %v3681 = vpack.c.b16 %v3670, %v3669
        %v3682 = vpack.c.b16 %v3672, %v3671
        %v3683 = vpack.c.b16 %v3674, %v3673
        %v3684 = vpack.c.b16 %v3676, %v3675
        %3693 = vmatprep.subr.bf16.mxu0 0
        %3694 = vmatpush1.bf16.msra.mxu0 %v3684
        %3695 = vmatprep.subr.bf16.mxu0 0
        %3696 = vmatpush1.bf16.msra.mxu0 %v3683
        %3697 = vmatprep.subr.bf16.mxu0 0
        %3698 = vmatpush1.bf16.msra.mxu0 %v3682
        %3699 = vmatprep.subr.bf16.mxu0 0
        %3700 = vmatpush1.bf16.msra.mxu0 %v3681
        %3701 = vmatprep.subr.bf16.mxu0 0
        %3702 = vmatpush1.bf16.msra.mxu0 %v3680
        %3703 = vmatprep.subr.bf16.mxu0 0
        %3704 = vmatpush1.bf16.msra.mxu0 %v3679
        %3705 = vmatprep.subr.bf16.mxu0 0
        %3706 = vmatpush1.bf16.msra.mxu0 %v3678
        %3707 = vmatprep.subr.bf16.mxu0 0
        %3708 = vmatpush1.bf16.msra.mxu0 %v3677
        %3709 = vmatprep.subr.bf16.mxu0 0
        %3710 = vmatpush2.bf16.msra.mxu0 0
        %3711 = vmatprep.subr.bf16.mxu0 0
        %3712 = vmatpush2.bf16.msra.mxu0 0
        %3713 = vmatprep.subr.bf16.mxu0 0
        %3714 = vmatpush2.bf16.msra.mxu0 0
        %3715 = vmatprep.subr.bf16.mxu0 0
        %3716 = vmatpush2.bf16.msra.mxu0 0
        %3717 = vmatprep.subr.bf16.mxu0 0
        %3718 = vmatpush2.bf16.msra.mxu0 0
        %3719 = vmatprep.subr.bf16.mxu0 0
        %3720 = vmatpush2.bf16.msra.mxu0 0
        %3721 = vmatprep.subr.bf16.mxu0 0
        %3722 = vmatpush2.bf16.msra.mxu0 0
        %3723 = vmatprep.subr.bf16.mxu0 0
        %3724 = vmatpush2.bf16.msra.mxu0 0
        %3725 = vmatprep.mubr.bf16.mxu0 0
        %3726 = vmatmul.mubr.bf16.gmra.mxu0 %v3625
        %v3727 = vpop.f32.mrf.mxu0
        %v3728 = vadd.f32 0.0, %v3727
        %v3729 = vpop.f32.mrf.mxu0
        %v3730 = vpop.f32.mrf.mxu0
        %v3731 = vadd.f32 0.0, %v3730
        %v3732 = vpop.f32.mrf.mxu0
        %3733 = vmatprep.mubr.bf16.mxu0 0
        %3734 = vmatmul.mubr.bf16.gmra.mxu0 %v3626
        %v3735 = vpop.f32.mrf.mxu0
        %v3736 = vadd.f32 0.0, %v3735
        %v3737 = vpop.f32.mrf.mxu0
        %v3738 = vpop.f32.mrf.mxu0
        %v3739 = vadd.f32 0.0, %v3738
        %v3740 = vpop.f32.mrf.mxu0
        %3741 = vmatprep.mubr.bf16.mxu0 0
        %3742 = vmatmul.mubr.bf16.gmra.mxu0 %v3627
        %v3743 = vpop.f32.mrf.mxu0
        %v3744 = vadd.f32 0.0, %v3743
        %v3745 = vpop.f32.mrf.mxu0
        %v3746 = vpop.f32.mrf.mxu0
        %v3747 = vadd.f32 0.0, %v3746
        %v3748 = vpop.f32.mrf.mxu0
        %3749 = vmatprep.mubr.bf16.mxu0 0
        %3750 = vmatmul.mubr.bf16.gmra.mxu0 %v3628
        %v3751 = vpop.f32.mrf.mxu0
        %v3752 = vadd.f32 0.0, %v3751
        %v3753 = vpop.f32.mrf.mxu0
        %v3754 = vpop.f32.mrf.mxu0
        %v3755 = vadd.f32 0.0, %v3754
        %v3756 = vpop.f32.mrf.mxu0
        %3757 = vdwg.mxu0
        %v3758 = vpack.c.bf16 %v3731, %v3728
        %v3759 = vpack.c.bf16 %v3739, %v3736
        %v3760 = vpack.c.bf16 %v3747, %v3744
        %v3761 = vpack.c.bf16 %v3755, %v3752
        %v3762 = vpack.c.bf16 %v3566, %v3563
        %v3763 = vpack.c.bf16 %v3574, %v3571
        %v3764 = vpack.c.bf16 %v3582, %v3579
        %v3765 = vpack.c.bf16 %v3590, %v3587
        %v3766 = vpack.c.bf16 %v3598, %v3595
        %v3767 = vpack.c.bf16 %v3606, %v3603
        %v3768 = vpack.c.bf16 %v3614, %v3611
        %v3769 = vpack.c.bf16 %v3622, %v3619
        %v3770 = vpack.c.bf16 %v3397, %v3394
        %v3771 = vpack.c.bf16 %v3405, %v3402
        %v3772 = vpack.c.bf16 %v3413, %v3410
        %v3773 = vpack.c.bf16 %v3421, %v3418
        %v3774 = vpack.c.bf16 %v3429, %v3426
        %v3775 = vpack.c.bf16 %v3437, %v3434
        %v3776 = vpack.c.bf16 %v3445, %v3442
        %v3777 = vpack.c.bf16 %v3453, %v3450
        %v3779 = vsel %vm1544, %v3758, 0
        %v3782 = vsel %vm1544, %v3759, 0
        %v3785 = vsel %vm1544, %v3760, 0
        %v3788 = vsel %vm1544, %v3761, 0
        %v3791 = vsel %vm1544, %v3762, 0
        %v3794 = vsel %vm1544, %v3763, 0
        %v3797 = vsel %vm1544, %v3764, 0
        %v3800 = vsel %vm1544, %v3765, 0
        %v3803 = vsel %vm1544, %v3766, 0
        %v3806 = vsel %vm1544, %v3767, 0
        %v3809 = vsel %vm1544, %v3768, 0
        %v3812 = vsel %vm1544, %v3769, 0
        %3814 = vmatprep.subr.bf16.mxu0 0
        %3815 = vmatpush1.bf16.xpose.msra.mxu0 %v3812
        %3816 = vmatprep.subr.bf16.mxu0 0
        %3817 = vmatpush1.bf16.xpose.msra.mxu0 %v3809
        %3818 = vmatprep.subr.bf16.mxu0 0
        %3819 = vmatpush1.bf16.xpose.msra.mxu0 %v3806
        %3820 = vmatprep.subr.bf16.mxu0 0
        %3821 = vmatpush1.bf16.xpose.msra.mxu0 %v3803
        %3822 = vmatprep.subr.bf16.mxu0 0
        %3823 = vmatpush1.bf16.xpose.msra.mxu0 %v3800
        %3824 = vmatprep.subr.bf16.mxu0 0
        %3825 = vmatpush1.bf16.xpose.msra.mxu0 %v3797
        %3826 = vmatprep.subr.bf16.mxu0 0
        %3827 = vmatpush1.bf16.xpose.msra.mxu0 %v3794
        %3828 = vmatprep.subr.bf16.mxu0 0
        %3829 = vmatpush1.bf16.xpose.msra.mxu0 %v3791
        %3830 = vmatprep.subr.bf16.mxu0 0
        %3831 = vmatpush2.bf16.xpose.msra.mxu0 0
        %3832 = vmatprep.subr.bf16.mxu0 0
        %3833 = vmatpush2.bf16.xpose.msra.mxu0 0
        %3834 = vmatprep.subr.bf16.mxu0 0
        %3835 = vmatpush2.bf16.xpose.msra.mxu0 0
        %3836 = vmatprep.subr.bf16.mxu0 0
        %3837 = vmatpush2.bf16.xpose.msra.mxu0 0
        %3838 = vmatprep.subr.bf16.mxu0 0
        %3839 = vmatpush2.bf16.xpose.msra.mxu0 0
        %3840 = vmatprep.subr.bf16.mxu0 0
        %3841 = vmatpush2.bf16.xpose.msra.mxu0 0
        %3842 = vmatprep.subr.bf16.mxu0 0
        %3843 = vmatpush2.bf16.xpose.msra.mxu0 0
        %3844 = vmatprep.subr.bf16.mxu0 0
        %3845 = vmatpush2.bf16.xpose.msra.mxu0 0
        %3846 = vmatprep.mubr.bf16.mxu0 0
        %3847 = vmatmul.mubr.bf16.gmra.mxu0 %v3779
        %v3848 = vpop.f32.mrf.mxu0
        %v3849 = vadd.f32 0.0, %v3848
        %v3850 = vpop.f32.mrf.mxu0
        %v3851 = vpop.f32.mrf.mxu0
        %v3852 = vadd.f32 0.0, %v3851
        %v3853 = vpop.f32.mrf.mxu0
        %3854 = vmatprep.mubr.bf16.mxu0 0
        %3855 = vmatmul.mubr.bf16.gmra.mxu0 %v3782
        %v3856 = vpop.f32.mrf.mxu0
        %v3857 = vadd.f32 0.0, %v3856
        %v3858 = vpop.f32.mrf.mxu0
        %v3859 = vpop.f32.mrf.mxu0
        %v3860 = vadd.f32 0.0, %v3859
        %v3861 = vpop.f32.mrf.mxu0
        %3862 = vmatprep.mubr.bf16.mxu0 0
        %3863 = vmatmul.mubr.bf16.gmra.mxu0 %v3785
        %v3864 = vpop.f32.mrf.mxu0
        %v3865 = vadd.f32 0.0, %v3864
        %v3866 = vpop.f32.mrf.mxu0
        %v3867 = vpop.f32.mrf.mxu0
        %v3868 = vadd.f32 0.0, %v3867
        %v3869 = vpop.f32.mrf.mxu0
        %3870 = vmatprep.mubr.bf16.mxu0 0
        %3871 = vmatmul.mubr.bf16.gmra.mxu0 %v3788
        %v3872 = vpop.f32.mrf.mxu0
        %v3873 = vadd.f32 0.0, %v3872
        %v3874 = vpop.f32.mrf.mxu0
        %v3875 = vpop.f32.mrf.mxu0
        %v3876 = vadd.f32 0.0, %v3875
        %v3877 = vpop.f32.mrf.mxu0
        %3878 = vdwg.mxu0
        %v3879 = vsel %vm1060, %v3849, -1e+20
        %v3880 = vsel %vm1060, %v3852, -1e+20
        %v3881 = vsel %vm1060, %v3857, -1e+20
        %v3882 = vsel %vm1060, %v3860, -1e+20
        %v3883 = vsel %vm1060, %v3865, -1e+20
        %v3884 = vsel %vm1060, %v3868, -1e+20
        %v3885 = vsel %vm1060, %v3873, -1e+20
        %v3886 = vsel %vm1060, %v3876, -1e+20
        %v3887 = vmul.f32 %v3879, 0.088388346
        %v3888 = vmul.f32 %v3880, 0.088388346
        %v3889 = vmul.f32 %v3881, 0.088388346
        %v3890 = vmul.f32 %v3882, 0.088388346
        %v3891 = vmul.f32 %v3883, 0.088388346
        %v3892 = vmul.f32 %v3884, 0.088388346
        %v3893 = vmul.f32 %v3885, 0.088388346
        %v3894 = vmul.f32 %v3886, 0.088388346
        %3895 = vmax.xlane.f32.xlu0 %v3887
        %v3896 = vpop.xlane.xlu0 %3895
        %3897 = vmax.xlane.f32.xlu0 %v3888
        %v3898 = vpop.xlane.xlu0 %3897
        %3899 = vmax.xlane.f32.xlu0 %v3889
        %v3900 = vpop.xlane.xlu0 %3899
        %3901 = vmax.xlane.f32.xlu0 %v3890
        %v3902 = vpop.xlane.xlu0 %3901
        %3903 = vmax.xlane.f32.xlu0 %v3891
        %v3904 = vpop.xlane.xlu0 %3903
        %3905 = vmax.xlane.f32.xlu0 %v3892
        %v3906 = vpop.xlane.xlu0 %3905
        %3907 = vmax.xlane.f32.xlu0 %v3893
        %v3908 = vpop.xlane.xlu0 %3907
        %3909 = vmax.xlane.f32.xlu0 %v3894
        %v3910 = vpop.xlane.xlu0 %3909
        %v3911 = vsub.f32 %v3887, %v3896
        %v3912 = vsub.f32 %v3888, %v3898
        %v3913 = vsub.f32 %v3889, %v3900
        %v3914 = vsub.f32 %v3890, %v3902
        %v3915 = vsub.f32 %v3891, %v3904
        %v3916 = vsub.f32 %v3892, %v3906
        %v3917 = vsub.f32 %v3893, %v3908
        %v3918 = vsub.f32 %v3894, %v3910
        %v3919 = vmul.f32 %v3911, 1.442695
        %v3920 = vpow.pop %v3919
        %v3921 = vmul.f32 %v3912, 1.442695
        %v3922 = vpow.pop %v3921
        %v3923 = vmul.f32 %v3913, 1.442695
        %v3924 = vpow.pop %v3923
        %v3925 = vmul.f32 %v3914, 1.442695
        %v3926 = vpow.pop %v3925
        %v3927 = vmul.f32 %v3915, 1.442695
        %v3928 = vpow.pop %v3927
        %v3929 = vmul.f32 %v3916, 1.442695
        %v3930 = vpow.pop %v3929
        %v3931 = vmul.f32 %v3917, 1.442695
        %v3932 = vpow.pop %v3931
        %v3933 = vmul.f32 %v3918, 1.442695
        %v3934 = vpow.pop %v3933
        %3935 = vadd.xlane.f32.xlu0 %v3920
        %v3936 = vpop.xlane.xlu0 %3935
        %3937 = vadd.xlane.f32.xlu0 %v3922
        %v3938 = vpop.xlane.xlu0 %3937
        %3939 = vadd.xlane.f32.xlu0 %v3924
        %v3940 = vpop.xlane.xlu0 %3939
        %3941 = vadd.xlane.f32.xlu0 %v3926
        %v3942 = vpop.xlane.xlu0 %3941
        %3943 = vadd.xlane.f32.xlu0 %v3928
        %v3944 = vpop.xlane.xlu0 %3943
        %3945 = vadd.xlane.f32.xlu0 %v3930
        %v3946 = vpop.xlane.xlu0 %3945
        %3947 = vadd.xlane.f32.xlu0 %v3932
        %v3948 = vpop.xlane.xlu0 %3947
        %3949 = vadd.xlane.f32.xlu0 %v3934
        %v3950 = vpop.xlane.xlu0 %3949
        %v3951 = vrcp.pop %v3936
        %v3952 = vrcp.pop %v3938
        %v3953 = vrcp.pop %v3940
        %v3954 = vrcp.pop %v3942
        %v3955 = vrcp.pop %v3944
        %v3956 = vrcp.pop %v3946
        %v3957 = vrcp.pop %v3948
        %v3958 = vrcp.pop %v3950
        %v3959 = vmul.f32 %v3920, %v3951
        %v3960 = vmul.f32 %v3922, %v3952
        %v3961 = vmul.f32 %v3924, %v3953
        %v3962 = vmul.f32 %v3926, %v3954
        %v3963 = vmul.f32 %v3928, %v3955
        %v3964 = vmul.f32 %v3930, %v3956
        %v3965 = vmul.f32 %v3932, %v3957
        %v3966 = vmul.f32 %v3934, %v3958
        %v3967 = vpack.c.bf16 %v3960, %v3959
        %v3968 = vpack.c.bf16 %v3962, %v3961
        %v3969 = vpack.c.bf16 %v3964, %v3963
        %v3970 = vpack.c.bf16 %v3966, %v3965
        %3971 = vmatprep.subr.bf16.mxu0 0
        %3972 = vmatpush1.bf16.msra.mxu0 %v3777
        %3973 = vmatprep.subr.bf16.mxu0 0
        %3974 = vmatpush1.bf16.msra.mxu0 %v3776
        %3975 = vmatprep.subr.bf16.mxu0 0
        %3976 = vmatpush1.bf16.msra.mxu0 %v3775
        %3977 = vmatprep.subr.bf16.mxu0 0
        %3978 = vmatpush1.bf16.msra.mxu0 %v3774
        %3979 = vmatprep.subr.bf16.mxu0 0
        %3980 = vmatpush1.bf16.msra.mxu0 %v3773
        %3981 = vmatprep.subr.bf16.mxu0 0
        %3982 = vmatpush1.bf16.msra.mxu0 %v3772
        %3983 = vmatprep.subr.bf16.mxu0 0
        %3984 = vmatpush1.bf16.msra.mxu0 %v3771
        %3985 = vmatprep.subr.bf16.mxu0 0
        %3986 = vmatpush1.bf16.msra.mxu0 %v3770
        %3987 = vmatprep.subr.bf16.mxu0 0
        %3988 = vmatpush2.bf16.msra.mxu0 0
        %3989 = vmatprep.subr.bf16.mxu0 0
        %3990 = vmatpush2.bf16.msra.mxu0 0
        %3991 = vmatprep.subr.bf16.mxu0 0
        %3992 = vmatpush2.bf16.msra.mxu0 0
        %3993 = vmatprep.subr.bf16.mxu0 0
        %3994 = vmatpush2.bf16.msra.mxu0 0
        %3995 = vmatprep.subr.bf16.mxu0 0
        %3996 = vmatpush2.bf16.msra.mxu0 0
        %3997 = vmatprep.subr.bf16.mxu0 0
        %3998 = vmatpush2.bf16.msra.mxu0 0
        %3999 = vmatprep.subr.bf16.mxu0 0
        %4000 = vmatpush2.bf16.msra.mxu0 0
        %4001 = vmatprep.subr.bf16.mxu0 0
        %4002 = vmatpush2.bf16.msra.mxu0 0
        %4003 = vmatprep.mubr.bf16.mxu0 0
        %4004 = vmatmul.mubr.bf16.gmra.mxu0 %v3967
        %v4005 = vpop.f32.mrf.mxu0
        %v4006 = vadd.f32 0.0, %v4005
        %v4007 = vpop.f32.mrf.mxu0
        %v4008 = vpop.f32.mrf.mxu0
        %v4009 = vadd.f32 0.0, %v4008
        %v4010 = vpop.f32.mrf.mxu0
        %4011 = vmatprep.mubr.bf16.mxu0 0
        %4012 = vmatmul.mubr.bf16.gmra.mxu0 %v3968
        %v4013 = vpop.f32.mrf.mxu0
        %v4014 = vadd.f32 0.0, %v4013
        %v4015 = vpop.f32.mrf.mxu0
        %v4016 = vpop.f32.mrf.mxu0
        %v4017 = vadd.f32 0.0, %v4016
        %v4018 = vpop.f32.mrf.mxu0
        %4019 = vmatprep.mubr.bf16.mxu0 0
        %4020 = vmatmul.mubr.bf16.gmra.mxu0 %v3969
        %v4021 = vpop.f32.mrf.mxu0
        %v4022 = vadd.f32 0.0, %v4021
        %v4023 = vpop.f32.mrf.mxu0
        %v4024 = vpop.f32.mrf.mxu0
        %v4025 = vadd.f32 0.0, %v4024
        %v4026 = vpop.f32.mrf.mxu0
        %4027 = vmatprep.mubr.bf16.mxu0 0
        %4028 = vmatmul.mubr.bf16.gmra.mxu0 %v3970
        %v4029 = vpop.f32.mrf.mxu0
        %v4030 = vadd.f32 0.0, %v4029
        %v4031 = vpop.f32.mrf.mxu0
        %v4032 = vpop.f32.mrf.mxu0
        %v4033 = vadd.f32 0.0, %v4032
        %v4034 = vpop.f32.mrf.mxu0
        %4035 = vdwg.mxu0
        %v4036 = vpack.c.bf16 %v4009, %v4006
        %v4037 = vpack.c.bf16 %v4017, %v4014
        %v4038 = vpack.c.bf16 %v4025, %v4022
        %v4039 = vpack.c.bf16 %v4033, %v4030
        %v4040 = vld [vmem:[#allocation21] sm:$0xf]
        %v4041 = vld [vmem:[#allocation21 + $0x4] sm:$0xf]
        %v4042 = vld [vmem:[#allocation21 + $0x8] sm:$0xf]
        %v4043 = vld [vmem:[#allocation21 + $0xc] sm:$0xf]
        %4048 = vrot.lane.b32.xlu0 %v3758, 96
        %v4049 = vpop.permute.xlu0 %4048
        %4050 = vrot.lane.b32.xlu0 %v3759, 96
        %v4051 = vpop.permute.xlu0 %4050
        %4052 = vrot.lane.b32.xlu0 %v3760, 96
        %v4053 = vpop.permute.xlu0 %4052
        %4054 = vrot.lane.b32.xlu0 %v3761, 96
        %v4055 = vpop.permute.xlu0 %4054
        %4064 = vrot.lane.b32.xlu0 %v3762, 96
        %v4065 = vpop.permute.xlu0 %4064
        %4066 = vrot.lane.b32.xlu0 %v3763, 96
        %v4067 = vpop.permute.xlu0 %4066
        %4068 = vrot.lane.b32.xlu0 %v3764, 96
        %v4069 = vpop.permute.xlu0 %4068
        %4070 = vrot.lane.b32.xlu0 %v3765, 96
        %v4071 = vpop.permute.xlu0 %4070
        %4072 = vrot.lane.b32.xlu0 %v3766, 96
        %v4073 = vpop.permute.xlu0 %4072
        %4074 = vrot.lane.b32.xlu0 %v3767, 96
        %v4075 = vpop.permute.xlu0 %4074
        %4076 = vrot.lane.b32.xlu0 %v3768, 96
        %v4077 = vpop.permute.xlu0 %4076
        %4078 = vrot.lane.b32.xlu0 %v3769, 96
        %v4079 = vpop.permute.xlu0 %4078
        %v4081 = vsel %vm1544, %v4049, 0
        %v4084 = vsel %vm1544, %v4051, 0
        %v4087 = vsel %vm1544, %v4053, 0
        %v4090 = vsel %vm1544, %v4055, 0
        %v4093 = vsel %vm1544, %v4065, 0
        %v4096 = vsel %vm1544, %v4067, 0
        %v4099 = vsel %vm1544, %v4069, 0
        %v4102 = vsel %vm1544, %v4071, 0
        %v4105 = vsel %vm1544, %v4073, 0
        %v4108 = vsel %vm1544, %v4075, 0
        %v4111 = vsel %vm1544, %v4077, 0
        %v4114 = vsel %vm1544, %v4079, 0
        %4116 = vmatprep.subr.bf16.mxu0 0
        %4117 = vmatpush1.bf16.xpose.msra.mxu0 %v4114
        %4118 = vmatprep.subr.bf16.mxu0 0
        %4119 = vmatpush1.bf16.xpose.msra.mxu0 %v4111
        %4120 = vmatprep.subr.bf16.mxu0 0
        %4121 = vmatpush1.bf16.xpose.msra.mxu0 %v4108
        %4122 = vmatprep.subr.bf16.mxu0 0
        %4123 = vmatpush1.bf16.xpose.msra.mxu0 %v4105
        %4124 = vmatprep.subr.bf16.mxu0 0
        %4125 = vmatpush1.bf16.xpose.msra.mxu0 %v4102
        %4126 = vmatprep.subr.bf16.mxu0 0
        %4127 = vmatpush1.bf16.xpose.msra.mxu0 %v4099
        %4128 = vmatprep.subr.bf16.mxu0 0
        %4129 = vmatpush1.bf16.xpose.msra.mxu0 %v4096
        %4130 = vmatprep.subr.bf16.mxu0 0
        %4131 = vmatpush1.bf16.xpose.msra.mxu0 %v4093
        %4132 = vmatprep.subr.bf16.mxu0 0
        %4133 = vmatpush2.bf16.xpose.msra.mxu0 0
        %4134 = vmatprep.subr.bf16.mxu0 0
        %4135 = vmatpush2.bf16.xpose.msra.mxu0 0
        %4136 = vmatprep.subr.bf16.mxu0 0
        %4137 = vmatpush2.bf16.xpose.msra.mxu0 0
        %4138 = vmatprep.subr.bf16.mxu0 0
        %4139 = vmatpush2.bf16.xpose.msra.mxu0 0
        %4140 = vmatprep.subr.bf16.mxu0 0
        %4141 = vmatpush2.bf16.xpose.msra.mxu0 0
        %4142 = vmatprep.subr.bf16.mxu0 0
        %4143 = vmatpush2.bf16.xpose.msra.mxu0 0
        %4144 = vmatprep.subr.bf16.mxu0 0
        %4145 = vmatpush2.bf16.xpose.msra.mxu0 0
        %4146 = vmatprep.subr.bf16.mxu0 0
        %4147 = vmatpush2.bf16.xpose.msra.mxu0 0
        %4148 = vmatprep.mubr.bf16.mxu0 0
        %4149 = vmatmul.mubr.bf16.gmra.mxu0 %v4081
        %v4150 = vpop.f32.mrf.mxu0
        %v4151 = vadd.f32 0.0, %v4150
        %v4152 = vpop.f32.mrf.mxu0
        %v4153 = vpop.f32.mrf.mxu0
        %v4154 = vadd.f32 0.0, %v4153
        %v4155 = vpop.f32.mrf.mxu0
        %4156 = vmatprep.mubr.bf16.mxu0 0
        %4157 = vmatmul.mubr.bf16.gmra.mxu0 %v4084
        %v4158 = vpop.f32.mrf.mxu0
        %v4159 = vadd.f32 0.0, %v4158
        %v4160 = vpop.f32.mrf.mxu0
        %v4161 = vpop.f32.mrf.mxu0
        %v4162 = vadd.f32 0.0, %v4161
        %v4163 = vpop.f32.mrf.mxu0
        %4164 = vmatprep.mubr.bf16.mxu0 0
        %4165 = vmatmul.mubr.bf16.gmra.mxu0 %v4087
        %v4166 = vpop.f32.mrf.mxu0
        %v4167 = vadd.f32 0.0, %v4166
        %v4168 = vpop.f32.mrf.mxu0
        %v4169 = vpop.f32.mrf.mxu0
        %v4170 = vadd.f32 0.0, %v4169
        %v4171 = vpop.f32.mrf.mxu0
        %4172 = vmatprep.mubr.bf16.mxu0 0
        %4173 = vmatmul.mubr.bf16.gmra.mxu0 %v4090
        %v4174 = vpop.f32.mrf.mxu0
        %v4175 = vadd.f32 0.0, %v4174
        %v4176 = vpop.f32.mrf.mxu0
        %v4177 = vpop.f32.mrf.mxu0
        %v4178 = vadd.f32 0.0, %v4177
        %v4179 = vpop.f32.mrf.mxu0
        %4180 = vdwg.mxu0
        %v4181 = vsel %vm1060, %v4151, -1e+20
        %v4182 = vsel %vm1060, %v4154, -1e+20
        %v4183 = vsel %vm1060, %v4159, -1e+20
        %v4184 = vsel %vm1060, %v4162, -1e+20
        %v4185 = vsel %vm1060, %v4167, -1e+20
        %v4186 = vsel %vm1060, %v4170, -1e+20
        %v4187 = vsel %vm1060, %v4175, -1e+20
        %v4188 = vsel %vm1060, %v4178, -1e+20
        %v4189 = vmul.f32 %v4181, 0.088388346
        %v4190 = vmul.f32 %v4182, 0.088388346
        %v4191 = vmul.f32 %v4183, 0.088388346
        %v4192 = vmul.f32 %v4184, 0.088388346
        %v4193 = vmul.f32 %v4185, 0.088388346
        %v4194 = vmul.f32 %v4186, 0.088388346
        %v4195 = vmul.f32 %v4187, 0.088388346
        %v4196 = vmul.f32 %v4188, 0.088388346
        %4197 = vmax.xlane.f32.xlu0 %v4189
        %v4198 = vpop.xlane.xlu0 %4197
        %4199 = vmax.xlane.f32.xlu0 %v4190
        %v4200 = vpop.xlane.xlu0 %4199
        %4201 = vmax.xlane.f32.xlu0 %v4191
        %v4202 = vpop.xlane.xlu0 %4201
        %4203 = vmax.xlane.f32.xlu0 %v4192
        %v4204 = vpop.xlane.xlu0 %4203
        %4205 = vmax.xlane.f32.xlu0 %v4193
        %v4206 = vpop.xlane.xlu0 %4205
        %4207 = vmax.xlane.f32.xlu0 %v4194
        %v4208 = vpop.xlane.xlu0 %4207
        %4209 = vmax.xlane.f32.xlu0 %v4195
        %v4210 = vpop.xlane.xlu0 %4209
        %4211 = vmax.xlane.f32.xlu0 %v4196
        %v4212 = vpop.xlane.xlu0 %4211
        %v4213 = vsub.f32 %v4189, %v4198
        %v4214 = vsub.f32 %v4190, %v4200
        %v4215 = vsub.f32 %v4191, %v4202
        %v4216 = vsub.f32 %v4192, %v4204
        %v4217 = vsub.f32 %v4193, %v4206
        %v4218 = vsub.f32 %v4194, %v4208
        %v4219 = vsub.f32 %v4195, %v4210
        %v4220 = vsub.f32 %v4196, %v4212
        %v4221 = vmul.f32 %v4213, 1.442695
        %v4222 = vpow.pop %v4221
        %v4223 = vmul.f32 %v4214, 1.442695
        %v4224 = vpow.pop %v4223
        %v4225 = vmul.f32 %v4215, 1.442695
        %v4226 = vpow.pop %v4225
        %v4227 = vmul.f32 %v4216, 1.442695
        %v4228 = vpow.pop %v4227
        %v4229 = vmul.f32 %v4217, 1.442695
        %v4230 = vpow.pop %v4229
        %v4231 = vmul.f32 %v4218, 1.442695
        %v4232 = vpow.pop %v4231
        %v4233 = vmul.f32 %v4219, 1.442695
        %v4234 = vpow.pop %v4233
        %v4235 = vmul.f32 %v4220, 1.442695
        %v4236 = vpow.pop %v4235
        %4237 = vadd.xlane.f32.xlu0 %v4222
        %v4238 = vpop.xlane.xlu0 %4237
        %4239 = vadd.xlane.f32.xlu0 %v4224
        %v4240 = vpop.xlane.xlu0 %4239
        %4241 = vadd.xlane.f32.xlu0 %v4226
        %v4242 = vpop.xlane.xlu0 %4241
        %4243 = vadd.xlane.f32.xlu0 %v4228
        %v4244 = vpop.xlane.xlu0 %4243
        %4245 = vadd.xlane.f32.xlu0 %v4230
        %v4246 = vpop.xlane.xlu0 %4245
        %4247 = vadd.xlane.f32.xlu0 %v4232
        %v4248 = vpop.xlane.xlu0 %4247
        %4249 = vadd.xlane.f32.xlu0 %v4234
        %v4250 = vpop.xlane.xlu0 %4249
        %4251 = vadd.xlane.f32.xlu0 %v4236
        %v4252 = vpop.xlane.xlu0 %4251
        %v4253 = vrcp.pop %v4238
        %v4254 = vrcp.pop %v4240
        %v4255 = vrcp.pop %v4242
        %v4256 = vrcp.pop %v4244
        %v4257 = vrcp.pop %v4246
        %v4258 = vrcp.pop %v4248
        %v4259 = vrcp.pop %v4250
        %v4260 = vrcp.pop %v4252
        %v4261 = vmul.f32 %v4222, %v4253
        %v4262 = vmul.f32 %v4224, %v4254
        %v4263 = vmul.f32 %v4226, %v4255
        %v4264 = vmul.f32 %v4228, %v4256
        %v4265 = vmul.f32 %v4230, %v4257
        %v4266 = vmul.f32 %v4232, %v4258
        %v4267 = vmul.f32 %v4234, %v4259
        %v4268 = vmul.f32 %v4236, %v4260
        %v4269 = vpack.c.bf16 %v4262, %v4261
        %v4270 = vpack.c.bf16 %v4264, %v4263
        %v4271 = vpack.c.bf16 %v4266, %v4265
        %v4272 = vpack.c.bf16 %v4268, %v4267
        %4281 = vrot.lane.b32.xlu0 %v3770, 96
        %v4282 = vpop.permute.xlu0 %4281
        %4283 = vrot.lane.b32.xlu0 %v3771, 96
        %v4284 = vpop.permute.xlu0 %4283
        %4285 = vrot.lane.b32.xlu0 %v3772, 96
        %v4286 = vpop.permute.xlu0 %4285
        %4287 = vrot.lane.b32.xlu0 %v3773, 96
        %v4288 = vpop.permute.xlu0 %4287
        %4289 = vrot.lane.b32.xlu0 %v3774, 96
        %v4290 = vpop.permute.xlu0 %4289
        %4291 = vrot.lane.b32.xlu0 %v3775, 96
        %v4292 = vpop.permute.xlu0 %4291
        %4293 = vrot.lane.b32.xlu0 %v3776, 96
        %v4294 = vpop.permute.xlu0 %4293
        %4295 = vrot.lane.b32.xlu0 %v3777, 96
        %v4296 = vpop.permute.xlu0 %4295
        %4305 = vmatprep.subr.bf16.mxu0 0
        %4306 = vmatpush1.bf16.msra.mxu0 %v4296
        %4307 = vmatprep.subr.bf16.mxu0 0
        %4308 = vmatpush1.bf16.msra.mxu0 %v4294
        %4309 = vmatprep.subr.bf16.mxu0 0
        %4310 = vmatpush1.bf16.msra.mxu0 %v4292
        %4311 = vmatprep.subr.bf16.mxu0 0
        %4312 = vmatpush1.bf16.msra.mxu0 %v4290
        %4313 = vmatprep.subr.bf16.mxu0 0
        %4314 = vmatpush1.bf16.msra.mxu0 %v4288
        %4315 = vmatprep.subr.bf16.mxu0 0
        %4316 = vmatpush1.bf16.msra.mxu0 %v4286
        %4317 = vmatprep.subr.bf16.mxu0 0
        %4318 = vmatpush1.bf16.msra.mxu0 %v4284
        %4319 = vmatprep.subr.bf16.mxu0 0
        %4320 = vmatpush1.bf16.msra.mxu0 %v4282
        %4321 = vmatprep.subr.bf16.mxu0 0
        %4322 = vmatpush2.bf16.msra.mxu0 0
        %4323 = vmatprep.subr.bf16.mxu0 0
        %4324 = vmatpush2.bf16.msra.mxu0 0
        %4325 = vmatprep.subr.bf16.mxu0 0
        %4326 = vmatpush2.bf16.msra.mxu0 0
        %4327 = vmatprep.subr.bf16.mxu0 0
        %4328 = vmatpush2.bf16.msra.mxu0 0
        %4329 = vmatprep.subr.bf16.mxu0 0
        %4330 = vmatpush2.bf16.msra.mxu0 0
        %4331 = vmatprep.subr.bf16.mxu0 0
        %4332 = vmatpush2.bf16.msra.mxu0 0
        %4333 = vmatprep.subr.bf16.mxu0 0
        %4334 = vmatpush2.bf16.msra.mxu0 0
        %4335 = vmatprep.subr.bf16.mxu0 0
        %4336 = vmatpush2.bf16.msra.mxu0 0
        %4337 = vmatprep.mubr.bf16.mxu0 0
        %4338 = vmatmul.mubr.bf16.gmra.mxu0 %v4269
        %v4339 = vpop.f32.mrf.mxu0
        %v4340 = vadd.f32 0.0, %v4339
        %v4341 = vpop.f32.mrf.mxu0
        %v4342 = vpop.f32.mrf.mxu0
        %v4343 = vadd.f32 0.0, %v4342
        %v4344 = vpop.f32.mrf.mxu0
        %4345 = vmatprep.mubr.bf16.mxu0 0
        %4346 = vmatmul.mubr.bf16.gmra.mxu0 %v4270
        %v4347 = vpop.f32.mrf.mxu0
        %v4348 = vadd.f32 0.0, %v4347
        %v4349 = vpop.f32.mrf.mxu0
        %v4350 = vpop.f32.mrf.mxu0
        %v4351 = vadd.f32 0.0, %v4350
        %v4352 = vpop.f32.mrf.mxu0
        %4353 = vmatprep.mubr.bf16.mxu0 0
        %4354 = vmatmul.mubr.bf16.gmra.mxu0 %v4271
        %v4355 = vpop.f32.mrf.mxu0
        %v4356 = vadd.f32 0.0, %v4355
        %v4357 = vpop.f32.mrf.mxu0
        %v4358 = vpop.f32.mrf.mxu0
        %v4359 = vadd.f32 0.0, %v4358
        %v4360 = vpop.f32.mrf.mxu0
        %4361 = vmatprep.mubr.bf16.mxu0 0
        %4362 = vmatmul.mubr.bf16.gmra.mxu0 %v4272
        %v4363 = vpop.f32.mrf.mxu0
        %v4364 = vadd.f32 0.0, %v4363
        %v4365 = vpop.f32.mrf.mxu0
        %v4366 = vpop.f32.mrf.mxu0
        %v4367 = vadd.f32 0.0, %v4366
        %v4368 = vpop.f32.mrf.mxu0
        %4369 = vdwg.mxu0
        %v4370 = vpack.c.bf16 %v4343, %v4340
        %v4371 = vpack.c.bf16 %v4351, %v4348
        %v4372 = vpack.c.bf16 %v4359, %v4356
        %v4373 = vpack.c.bf16 %v4367, %v4364
        %v4374 = vld [vmem:[#allocation21 + $0x10] sm:$0xf]
        %v4375 = vld [vmem:[#allocation21 + $0x14] sm:$0xf]
        %v4376 = vld [vmem:[#allocation21 + $0x18] sm:$0xf]
        %v4377 = vld [vmem:[#allocation21 + $0x1c] sm:$0xf]
        %v4382 = vunpack.c.l.b16 %v4374
        %v4383 = vunpack.c.l.b16 %v4375
        %v4384 = vunpack.c.l.b16 %v4376
        %v4385 = vunpack.c.l.b16 %v4377
        %v4386 = vpack.c.b16 %v4383, %v4382
        %v4387 = vpack.c.b16 %v4385, %v4384
        %v4391 = vsel %vm1544, %v4370, 0
        %v4394 = vsel %vm1544, %v4371, 0
        %v4397 = vsel %vm1544, %v4372, 0
        %v4400 = vsel %vm1544, %v4373, 0
        %4402 = vmatprep.subr.bf16.mxu0 0
        %4403 = vmatpush1.bf16.msra.mxu0 0
        %4404 = vmatprep.subr.bf16.mxu0 0
        %4405 = vmatpush1.bf16.msra.mxu0 0
        %4406 = vmatprep.subr.bf16.mxu0 0
        %4407 = vmatpush1.bf16.msra.mxu0 0
        %4408 = vmatprep.subr.bf16.mxu0 0
        %4409 = vmatpush1.bf16.msra.mxu0 0
        %4410 = vmatprep.subr.bf16.mxu0 0
        %4411 = vmatpush1.bf16.msra.mxu0 0
        %4412 = vmatprep.subr.bf16.mxu0 0
        %4413 = vmatpush1.bf16.msra.mxu0 0
        %4414 = vmatprep.subr.bf16.mxu0 0
        %4415 = vmatpush1.bf16.msra.mxu0 %v4387
        %4416 = vmatprep.subr.bf16.mxu0 0
        %4417 = vmatpush1.bf16.msra.mxu0 %v4386
        %4418 = vmatprep.subr.bf16.mxu0 0
        %4419 = vmatpush2.bf16.msra.mxu0 0
        %4420 = vmatprep.subr.bf16.mxu0 0
        %4421 = vmatpush2.bf16.msra.mxu0 0
        %4422 = vmatprep.subr.bf16.mxu0 0
        %4423 = vmatpush2.bf16.msra.mxu0 0
        %4424 = vmatprep.subr.bf16.mxu0 0
        %4425 = vmatpush2.bf16.msra.mxu0 0
        %4426 = vmatprep.subr.bf16.mxu0 0
        %4427 = vmatpush2.bf16.msra.mxu0 0
        %4428 = vmatprep.subr.bf16.mxu0 0
        %4429 = vmatpush2.bf16.msra.mxu0 0
        %4430 = vmatprep.subr.bf16.mxu0 0
        %4431 = vmatpush2.bf16.msra.mxu0 0
        %4432 = vmatprep.subr.bf16.mxu0 0
        %4433 = vmatpush2.bf16.msra.mxu0 0
        %4434 = vmatprep.mubr.bf16.mxu0 0
        %4435 = vmatmul.mubr.bf16.gmra.mxu0 %v4391
        %v4436 = vpop.f32.mrf.mxu0
        %v4437 = vadd.f32 0.0, %v4436
        %v4438 = vpop.f32.mrf.mxu0
        %v4439 = vpop.f32.mrf.mxu0
        %v4440 = vadd.f32 0.0, %v4439
        %v4441 = vpop.f32.mrf.mxu0
        %4442 = vmatprep.mubr.bf16.mxu0 0
        %4443 = vmatmul.mubr.bf16.gmra.mxu0 %v4394
        %v4444 = vpop.f32.mrf.mxu0
        %v4445 = vadd.f32 0.0, %v4444
        %v4446 = vpop.f32.mrf.mxu0
        %v4447 = vpop.f32.mrf.mxu0
        %v4448 = vadd.f32 0.0, %v4447
        %v4449 = vpop.f32.mrf.mxu0
        %4450 = vmatprep.mubr.bf16.mxu0 0
        %4451 = vmatmul.mubr.bf16.gmra.mxu0 %v4397
        %v4452 = vpop.f32.mrf.mxu0
        %v4453 = vadd.f32 0.0, %v4452
        %v4454 = vpop.f32.mrf.mxu0
        %v4455 = vpop.f32.mrf.mxu0
        %v4456 = vadd.f32 0.0, %v4455
        %v4457 = vpop.f32.mrf.mxu0
        %4458 = vmatprep.mubr.bf16.mxu0 0
        %4459 = vmatmul.mubr.bf16.gmra.mxu0 %v4400
        %v4460 = vpop.f32.mrf.mxu0
        %v4461 = vadd.f32 0.0, %v4460
        %v4462 = vpop.f32.mrf.mxu0
        %v4463 = vpop.f32.mrf.mxu0
        %v4464 = vadd.f32 0.0, %v4463
        %v4465 = vpop.f32.mrf.mxu0
        %4466 = vdwg.mxu0
        %v4471 = vunpack.c.l.b16 %v4040
        %v4472 = vunpack.c.l.b16 %v4041
        %v4473 = vunpack.c.l.b16 %v4042
        %v4474 = vunpack.c.l.b16 %v4043
        %v4475 = vpack.c.b16 %v4472, %v4471
        %v4476 = vpack.c.b16 %v4474, %v4473
        %v4480 = vsel %vm1544, %v4036, 0
        %v4483 = vsel %vm1544, %v4037, 0
        %v4486 = vsel %vm1544, %v4038, 0
        %v4489 = vsel %vm1544, %v4039, 0
        %4491 = vmatprep.subr.bf16.mxu0 0
        %4492 = vmatpush1.bf16.msra.mxu0 0
        %4493 = vmatprep.subr.bf16.mxu0 0
        %4494 = vmatpush1.bf16.msra.mxu0 0
        %4495 = vmatprep.subr.bf16.mxu0 0
        %4496 = vmatpush1.bf16.msra.mxu0 0
        %4497 = vmatprep.subr.bf16.mxu0 0
        %4498 = vmatpush1.bf16.msra.mxu0 0
        %4499 = vmatprep.subr.bf16.mxu0 0
        %4500 = vmatpush1.bf16.msra.mxu0 0
        %4501 = vmatprep.subr.bf16.mxu0 0
        %4502 = vmatpush1.bf16.msra.mxu0 0
        %4503 = vmatprep.subr.bf16.mxu0 0
        %4504 = vmatpush1.bf16.msra.mxu0 %v4476
        %4505 = vmatprep.subr.bf16.mxu0 0
        %4506 = vmatpush1.bf16.msra.mxu0 %v4475
        %4507 = vmatprep.subr.bf16.mxu0 0
        %4508 = vmatpush2.bf16.msra.mxu0 0
        %4509 = vmatprep.subr.bf16.mxu0 0
        %4510 = vmatpush2.bf16.msra.mxu0 0
        %4511 = vmatprep.subr.bf16.mxu0 0
        %4512 = vmatpush2.bf16.msra.mxu0 0
        %4513 = vmatprep.subr.bf16.mxu0 0
        %4514 = vmatpush2.bf16.msra.mxu0 0
        %4515 = vmatprep.subr.bf16.mxu0 0
        %4516 = vmatpush2.bf16.msra.mxu0 0
        %4517 = vmatprep.subr.bf16.mxu0 0
        %4518 = vmatpush2.bf16.msra.mxu0 0
        %4519 = vmatprep.subr.bf16.mxu0 0
        %4520 = vmatpush2.bf16.msra.mxu0 0
        %4521 = vmatprep.subr.bf16.mxu0 0
        %4522 = vmatpush2.bf16.msra.mxu0 0
        %4523 = vmatprep.mubr.bf16.mxu0 0
        %4524 = vmatmul.mubr.bf16.gmra.mxu0 %v4480
        %v4525 = vpop.f32.mrf.mxu0
        %v4526 = vadd.f32 %v4437, %v4525
        %v4527 = vpop.f32.mrf.mxu0
        %v4528 = vpop.f32.mrf.mxu0
        %v4529 = vadd.f32 %v4440, %v4528
        %v4530 = vpop.f32.mrf.mxu0
        %4531 = vmatprep.mubr.bf16.mxu0 0
        %4532 = vmatmul.mubr.bf16.gmra.mxu0 %v4483
        %v4533 = vpop.f32.mrf.mxu0
        %v4534 = vadd.f32 %v4445, %v4533
        %v4535 = vpop.f32.mrf.mxu0
        %v4536 = vpop.f32.mrf.mxu0
        %v4537 = vadd.f32 %v4448, %v4536
        %v4538 = vpop.f32.mrf.mxu0
        %4539 = vmatprep.mubr.bf16.mxu0 0
        %4540 = vmatmul.mubr.bf16.gmra.mxu0 %v4486
        %v4541 = vpop.f32.mrf.mxu0
        %v4542 = vadd.f32 %v4453, %v4541
        %v4543 = vpop.f32.mrf.mxu0
        %v4544 = vpop.f32.mrf.mxu0
        %v4545 = vadd.f32 %v4456, %v4544
        %v4546 = vpop.f32.mrf.mxu0
        %4547 = vmatprep.mubr.bf16.mxu0 0
        %4548 = vmatmul.mubr.bf16.gmra.mxu0 %v4489
        %v4549 = vpop.f32.mrf.mxu0
        %v4550 = vadd.f32 %v4461, %v4549
        %v4551 = vpop.f32.mrf.mxu0
        %v4552 = vpop.f32.mrf.mxu0
        %v4553 = vadd.f32 %v4464, %v4552
        %v4554 = vpop.f32.mrf.mxu0
        %4555 = vdwg.mxu0
        %4556 = vrot.lane.b32.xlu0 %v3758, 64
        %v4557 = vpop.permute.xlu0 %4556
        %4558 = vrot.lane.b32.xlu0 %v3759, 64
        %v4559 = vpop.permute.xlu0 %4558
        %4560 = vrot.lane.b32.xlu0 %v3760, 64
        %v4561 = vpop.permute.xlu0 %4560
        %4562 = vrot.lane.b32.xlu0 %v3761, 64
        %v4563 = vpop.permute.xlu0 %4562
        %4564 = vrot.lane.b32.xlu0 %v3762, 64
        %v4565 = vpop.permute.xlu0 %4564
        %4566 = vrot.lane.b32.xlu0 %v3763, 64
        %v4567 = vpop.permute.xlu0 %4566
        %4568 = vrot.lane.b32.xlu0 %v3764, 64
        %v4569 = vpop.permute.xlu0 %4568
        %4570 = vrot.lane.b32.xlu0 %v3765, 64
        %v4571 = vpop.permute.xlu0 %4570
        %4572 = vrot.lane.b32.xlu0 %v3766, 64
        %v4573 = vpop.permute.xlu0 %4572
        %4574 = vrot.lane.b32.xlu0 %v3767, 64
        %v4575 = vpop.permute.xlu0 %4574
        %4576 = vrot.lane.b32.xlu0 %v3768, 64
        %v4577 = vpop.permute.xlu0 %4576
        %4578 = vrot.lane.b32.xlu0 %v3769, 64
        %v4579 = vpop.permute.xlu0 %4578
        %v4581 = vsel %vm1544, %v4557, 0
        %v4584 = vsel %vm1544, %v4559, 0
        %v4587 = vsel %vm1544, %v4561, 0
        %v4590 = vsel %vm1544, %v4563, 0
        %v4593 = vsel %vm1544, %v4565, 0
        %v4596 = vsel %vm1544, %v4567, 0
        %v4599 = vsel %vm1544, %v4569, 0
        %v4602 = vsel %vm1544, %v4571, 0
        %v4605 = vsel %vm1544, %v4573, 0
        %v4608 = vsel %vm1544, %v4575, 0
        %v4611 = vsel %vm1544, %v4577, 0
        %v4614 = vsel %vm1544, %v4579, 0
        %4616 = vmatprep.subr.bf16.mxu0 0
        %4617 = vmatpush1.bf16.xpose.msra.mxu0 %v4614
        %4618 = vmatprep.subr.bf16.mxu0 0
        %4619 = vmatpush1.bf16.xpose.msra.mxu0 %v4611
        %4620 = vmatprep.subr.bf16.mxu0 0
        %4621 = vmatpush1.bf16.xpose.msra.mxu0 %v4608
        %4622 = vmatprep.subr.bf16.mxu0 0
        %4623 = vmatpush1.bf16.xpose.msra.mxu0 %v4605
        %4624 = vmatprep.subr.bf16.mxu0 0
        %4625 = vmatpush1.bf16.xpose.msra.mxu0 %v4602
        %4626 = vmatprep.subr.bf16.mxu0 0
        %4627 = vmatpush1.bf16.xpose.msra.mxu0 %v4599
        %4628 = vmatprep.subr.bf16.mxu0 0
        %4629 = vmatpush1.bf16.xpose.msra.mxu0 %v4596
        %4630 = vmatprep.subr.bf16.mxu0 0
        %4631 = vmatpush1.bf16.xpose.msra.mxu0 %v4593
        %4632 = vmatprep.subr.bf16.mxu0 0
        %4633 = vmatpush2.bf16.xpose.msra.mxu0 0
        %4634 = vmatprep.subr.bf16.mxu0 0
        %4635 = vmatpush2.bf16.xpose.msra.mxu0 0
        %4636 = vmatprep.subr.bf16.mxu0 0
        %4637 = vmatpush2.bf16.xpose.msra.mxu0 0
        %4638 = vmatprep.subr.bf16.mxu0 0
        %4639 = vmatpush2.bf16.xpose.msra.mxu0 0
        %4640 = vmatprep.subr.bf16.mxu0 0
        %4641 = vmatpush2.bf16.xpose.msra.mxu0 0
        %4642 = vmatprep.subr.bf16.mxu0 0
        %4643 = vmatpush2.bf16.xpose.msra.mxu0 0
        %4644 = vmatprep.subr.bf16.mxu0 0
        %4645 = vmatpush2.bf16.xpose.msra.mxu0 0
        %4646 = vmatprep.subr.bf16.mxu0 0
        %4647 = vmatpush2.bf16.xpose.msra.mxu0 0
        %4648 = vmatprep.mubr.bf16.mxu0 0
        %4649 = vmatmul.mubr.bf16.gmra.mxu0 %v4581
        %v4650 = vpop.f32.mrf.mxu0
        %v4651 = vadd.f32 0.0, %v4650
        %v4652 = vpop.f32.mrf.mxu0
        %v4653 = vpop.f32.mrf.mxu0
        %v4654 = vadd.f32 0.0, %v4653
        %v4655 = vpop.f32.mrf.mxu0
        %4656 = vmatprep.mubr.bf16.mxu0 0
        %4657 = vmatmul.mubr.bf16.gmra.mxu0 %v4584
        %v4658 = vpop.f32.mrf.mxu0
        %v4659 = vadd.f32 0.0, %v4658
        %v4660 = vpop.f32.mrf.mxu0
        %v4661 = vpop.f32.mrf.mxu0
        %v4662 = vadd.f32 0.0, %v4661
        %v4663 = vpop.f32.mrf.mxu0
        %4664 = vmatprep.mubr.bf16.mxu0 0
        %4665 = vmatmul.mubr.bf16.gmra.mxu0 %v4587
        %v4666 = vpop.f32.mrf.mxu0
        %v4667 = vadd.f32 0.0, %v4666
        %v4668 = vpop.f32.mrf.mxu0
        %v4669 = vpop.f32.mrf.mxu0
        %v4670 = vadd.f32 0.0, %v4669
        %v4671 = vpop.f32.mrf.mxu0
        %4672 = vmatprep.mubr.bf16.mxu0 0
        %4673 = vmatmul.mubr.bf16.gmra.mxu0 %v4590
        %v4674 = vpop.f32.mrf.mxu0
        %v4675 = vadd.f32 0.0, %v4674
        %v4676 = vpop.f32.mrf.mxu0
        %v4677 = vpop.f32.mrf.mxu0
        %v4678 = vadd.f32 0.0, %v4677
        %v4679 = vpop.f32.mrf.mxu0
        %4680 = vdwg.mxu0
        %v4681 = vsel %vm1060, %v4651, -1e+20
        %v4682 = vsel %vm1060, %v4654, -1e+20
        %v4683 = vsel %vm1060, %v4659, -1e+20
        %v4684 = vsel %vm1060, %v4662, -1e+20
        %v4685 = vsel %vm1060, %v4667, -1e+20
        %v4686 = vsel %vm1060, %v4670, -1e+20
        %v4687 = vsel %vm1060, %v4675, -1e+20
        %v4688 = vsel %vm1060, %v4678, -1e+20
        %v4689 = vmul.f32 %v4681, 0.088388346
        %v4690 = vmul.f32 %v4682, 0.088388346
        %v4691 = vmul.f32 %v4683, 0.088388346
        %v4692 = vmul.f32 %v4684, 0.088388346
        %v4693 = vmul.f32 %v4685, 0.088388346
        %v4694 = vmul.f32 %v4686, 0.088388346
        %v4695 = vmul.f32 %v4687, 0.088388346
        %v4696 = vmul.f32 %v4688, 0.088388346
        %4697 = vmax.xlane.f32.xlu0 %v4689
        %v4698 = vpop.xlane.xlu0 %4697
        %4699 = vmax.xlane.f32.xlu0 %v4690
        %v4700 = vpop.xlane.xlu0 %4699
        %4701 = vmax.xlane.f32.xlu0 %v4691
        %v4702 = vpop.xlane.xlu0 %4701
        %4703 = vmax.xlane.f32.xlu0 %v4692
        %v4704 = vpop.xlane.xlu0 %4703
        %4705 = vmax.xlane.f32.xlu0 %v4693
        %v4706 = vpop.xlane.xlu0 %4705
        %4707 = vmax.xlane.f32.xlu0 %v4694
        %v4708 = vpop.xlane.xlu0 %4707
        %4709 = vmax.xlane.f32.xlu0 %v4695
        %v4710 = vpop.xlane.xlu0 %4709
        %4711 = vmax.xlane.f32.xlu0 %v4696
        %v4712 = vpop.xlane.xlu0 %4711
        %v4713 = vsub.f32 %v4689, %v4698
        %v4714 = vsub.f32 %v4690, %v4700
        %v4715 = vsub.f32 %v4691, %v4702
        %v4716 = vsub.f32 %v4692, %v4704
        %v4717 = vsub.f32 %v4693, %v4706
        %v4718 = vsub.f32 %v4694, %v4708
        %v4719 = vsub.f32 %v4695, %v4710
        %v4720 = vsub.f32 %v4696, %v4712
        %v4721 = vmul.f32 %v4713, 1.442695
        %v4722 = vpow.pop %v4721
        %v4723 = vmul.f32 %v4714, 1.442695
        %v4724 = vpow.pop %v4723
        %v4725 = vmul.f32 %v4715, 1.442695
        %v4726 = vpow.pop %v4725
        %v4727 = vmul.f32 %v4716, 1.442695
        %v4728 = vpow.pop %v4727
        %v4729 = vmul.f32 %v4717, 1.442695
        %v4730 = vpow.pop %v4729
        %v4731 = vmul.f32 %v4718, 1.442695
        %v4732 = vpow.pop %v4731
        %v4733 = vmul.f32 %v4719, 1.442695
        %v4734 = vpow.pop %v4733
        %v4735 = vmul.f32 %v4720, 1.442695
        %v4736 = vpow.pop %v4735
        %4737 = vadd.xlane.f32.xlu0 %v4722
        %v4738 = vpop.xlane.xlu0 %4737
        %4739 = vadd.xlane.f32.xlu0 %v4724
        %v4740 = vpop.xlane.xlu0 %4739
        %4741 = vadd.xlane.f32.xlu0 %v4726
        %v4742 = vpop.xlane.xlu0 %4741
        %4743 = vadd.xlane.f32.xlu0 %v4728
        %v4744 = vpop.xlane.xlu0 %4743
        %4745 = vadd.xlane.f32.xlu0 %v4730
        %v4746 = vpop.xlane.xlu0 %4745
        %4747 = vadd.xlane.f32.xlu0 %v4732
        %v4748 = vpop.xlane.xlu0 %4747
        %4749 = vadd.xlane.f32.xlu0 %v4734
        %v4750 = vpop.xlane.xlu0 %4749
        %4751 = vadd.xlane.f32.xlu0 %v4736
        %v4752 = vpop.xlane.xlu0 %4751
        %v4753 = vrcp.pop %v4738
        %v4754 = vrcp.pop %v4740
        %v4755 = vrcp.pop %v4742
        %v4756 = vrcp.pop %v4744
        %v4757 = vrcp.pop %v4746
        %v4758 = vrcp.pop %v4748
        %v4759 = vrcp.pop %v4750
        %v4760 = vrcp.pop %v4752
        %v4761 = vmul.f32 %v4722, %v4753
        %v4762 = vmul.f32 %v4724, %v4754
        %v4763 = vmul.f32 %v4726, %v4755
        %v4764 = vmul.f32 %v4728, %v4756
        %v4765 = vmul.f32 %v4730, %v4757
        %v4766 = vmul.f32 %v4732, %v4758
        %v4767 = vmul.f32 %v4734, %v4759
        %v4768 = vmul.f32 %v4736, %v4760
        %v4769 = vpack.c.bf16 %v4762, %v4761
        %v4770 = vpack.c.bf16 %v4764, %v4763
        %v4771 = vpack.c.bf16 %v4766, %v4765
        %v4772 = vpack.c.bf16 %v4768, %v4767
        %4773 = vrot.lane.b32.xlu0 %v3770, 64
        %v4774 = vpop.permute.xlu0 %4773
        %4775 = vrot.lane.b32.xlu0 %v3771, 64
        %v4776 = vpop.permute.xlu0 %4775
        %4777 = vrot.lane.b32.xlu0 %v3772, 64
        %v4778 = vpop.permute.xlu0 %4777
        %4779 = vrot.lane.b32.xlu0 %v3773, 64
        %v4780 = vpop.permute.xlu0 %4779
        %4781 = vrot.lane.b32.xlu0 %v3774, 64
        %v4782 = vpop.permute.xlu0 %4781
        %4783 = vrot.lane.b32.xlu0 %v3775, 64
        %v4784 = vpop.permute.xlu0 %4783
        %4785 = vrot.lane.b32.xlu0 %v3776, 64
        %v4786 = vpop.permute.xlu0 %4785
        %4787 = vrot.lane.b32.xlu0 %v3777, 64
        %v4788 = vpop.permute.xlu0 %4787
        %4797 = vmatprep.subr.bf16.mxu0 0
        %4798 = vmatpush1.bf16.msra.mxu0 %v4788
        %4799 = vmatprep.subr.bf16.mxu0 0
        %4800 = vmatpush1.bf16.msra.mxu0 %v4786
        %4801 = vmatprep.subr.bf16.mxu0 0
        %4802 = vmatpush1.bf16.msra.mxu0 %v4784
        %4803 = vmatprep.subr.bf16.mxu0 0
        %4804 = vmatpush1.bf16.msra.mxu0 %v4782
        %4805 = vmatprep.subr.bf16.mxu0 0
        %4806 = vmatpush1.bf16.msra.mxu0 %v4780
        %4807 = vmatprep.subr.bf16.mxu0 0
        %4808 = vmatpush1.bf16.msra.mxu0 %v4778
        %4809 = vmatprep.subr.bf16.mxu0 0
        %4810 = vmatpush1.bf16.msra.mxu0 %v4776
        %4811 = vmatprep.subr.bf16.mxu0 0
        %4812 = vmatpush1.bf16.msra.mxu0 %v4774
        %4813 = vmatprep.subr.bf16.mxu0 0
        %4814 = vmatpush2.bf16.msra.mxu0 0
        %4815 = vmatprep.subr.bf16.mxu0 0
        %4816 = vmatpush2.bf16.msra.mxu0 0
        %4817 = vmatprep.subr.bf16.mxu0 0
        %4818 = vmatpush2.bf16.msra.mxu0 0
        %4819 = vmatprep.subr.bf16.mxu0 0
        %4820 = vmatpush2.bf16.msra.mxu0 0
        %4821 = vmatprep.subr.bf16.mxu0 0
        %4822 = vmatpush2.bf16.msra.mxu0 0
        %4823 = vmatprep.subr.bf16.mxu0 0
        %4824 = vmatpush2.bf16.msra.mxu0 0
        %4825 = vmatprep.subr.bf16.mxu0 0
        %4826 = vmatpush2.bf16.msra.mxu0 0
        %4827 = vmatprep.subr.bf16.mxu0 0
        %4828 = vmatpush2.bf16.msra.mxu0 0
        %4829 = vmatprep.mubr.bf16.mxu0 0
        %4830 = vmatmul.mubr.bf16.gmra.mxu0 %v4769
        %v4831 = vpop.f32.mrf.mxu0
        %v4832 = vadd.f32 0.0, %v4831
        %v4833 = vpop.f32.mrf.mxu0
        %v4834 = vpop.f32.mrf.mxu0
        %v4835 = vadd.f32 0.0, %v4834
        %v4836 = vpop.f32.mrf.mxu0
        %4837 = vmatprep.mubr.bf16.mxu0 0
        %4838 = vmatmul.mubr.bf16.gmra.mxu0 %v4770
        %v4839 = vpop.f32.mrf.mxu0
        %v4840 = vadd.f32 0.0, %v4839
        %v4841 = vpop.f32.mrf.mxu0
        %v4842 = vpop.f32.mrf.mxu0
        %v4843 = vadd.f32 0.0, %v4842
        %v4844 = vpop.f32.mrf.mxu0
        %4845 = vmatprep.mubr.bf16.mxu0 0
        %4846 = vmatmul.mubr.bf16.gmra.mxu0 %v4771
        %v4847 = vpop.f32.mrf.mxu0
        %v4848 = vadd.f32 0.0, %v4847
        %v4849 = vpop.f32.mrf.mxu0
        %v4850 = vpop.f32.mrf.mxu0
        %v4851 = vadd.f32 0.0, %v4850
        %v4852 = vpop.f32.mrf.mxu0
        %4853 = vmatprep.mubr.bf16.mxu0 0
        %4854 = vmatmul.mubr.bf16.gmra.mxu0 %v4772
        %v4855 = vpop.f32.mrf.mxu0
        %v4856 = vadd.f32 0.0, %v4855
        %v4857 = vpop.f32.mrf.mxu0
        %v4858 = vpop.f32.mrf.mxu0
        %v4859 = vadd.f32 0.0, %v4858
        %v4860 = vpop.f32.mrf.mxu0
        %4861 = vdwg.mxu0
        %v4862 = vpack.c.bf16 %v4835, %v4832
        %v4863 = vpack.c.bf16 %v4843, %v4840
        %v4864 = vpack.c.bf16 %v4851, %v4848
        %v4865 = vpack.c.bf16 %v4859, %v4856
        %v4866 = vld [vmem:[#allocation21 + $0x20] sm:$0xf]
        %v4867 = vld [vmem:[#allocation21 + $0x24] sm:$0xf]
        %v4868 = vld [vmem:[#allocation21 + $0x28] sm:$0xf]
        %v4869 = vld [vmem:[#allocation21 + $0x2c] sm:$0xf]
        %v4874 = vunpack.c.l.b16 %v4866
        %v4875 = vunpack.c.l.b16 %v4867
        %v4876 = vunpack.c.l.b16 %v4868
        %v4877 = vunpack.c.l.b16 %v4869
        %v4878 = vpack.c.b16 %v4875, %v4874
        %v4879 = vpack.c.b16 %v4877, %v4876
        %v4883 = vsel %vm1544, %v4862, 0
        %v4886 = vsel %vm1544, %v4863, 0
        %v4889 = vsel %vm1544, %v4864, 0
        %v4892 = vsel %vm1544, %v4865, 0
        %4894 = vmatprep.subr.bf16.mxu0 0
        %4895 = vmatpush1.bf16.msra.mxu0 0
        %4896 = vmatprep.subr.bf16.mxu0 0
        %4897 = vmatpush1.bf16.msra.mxu0 0
        %4898 = vmatprep.subr.bf16.mxu0 0
        %4899 = vmatpush1.bf16.msra.mxu0 0
        %4900 = vmatprep.subr.bf16.mxu0 0
        %4901 = vmatpush1.bf16.msra.mxu0 0
        %4902 = vmatprep.subr.bf16.mxu0 0
        %4903 = vmatpush1.bf16.msra.mxu0 0
        %4904 = vmatprep.subr.bf16.mxu0 0
        %4905 = vmatpush1.bf16.msra.mxu0 0
        %4906 = vmatprep.subr.bf16.mxu0 0
        %4907 = vmatpush1.bf16.msra.mxu0 %v4879
        %4908 = vmatprep.subr.bf16.mxu0 0
        %4909 = vmatpush1.bf16.msra.mxu0 %v4878
        %4910 = vmatprep.subr.bf16.mxu0 0
        %4911 = vmatpush2.bf16.msra.mxu0 0
        %4912 = vmatprep.subr.bf16.mxu0 0
        %4913 = vmatpush2.bf16.msra.mxu0 0
        %4914 = vmatprep.subr.bf16.mxu0 0
        %4915 = vmatpush2.bf16.msra.mxu0 0
        %4916 = vmatprep.subr.bf16.mxu0 0
        %4917 = vmatpush2.bf16.msra.mxu0 0
        %4918 = vmatprep.subr.bf16.mxu0 0
        %4919 = vmatpush2.bf16.msra.mxu0 0
        %4920 = vmatprep.subr.bf16.mxu0 0
        %4921 = vmatpush2.bf16.msra.mxu0 0
        %4922 = vmatprep.subr.bf16.mxu0 0
        %4923 = vmatpush2.bf16.msra.mxu0 0
        %4924 = vmatprep.subr.bf16.mxu0 0
        %4925 = vmatpush2.bf16.msra.mxu0 0
        %4926 = vmatprep.mubr.bf16.mxu0 0
        %4927 = vmatmul.mubr.bf16.gmra.mxu0 %v4883
        %v4928 = vpop.f32.mrf.mxu0
        %v4929 = vadd.f32 0.0, %v4928
        %v4930 = vpop.f32.mrf.mxu0
        %v4931 = vpop.f32.mrf.mxu0
        %v4932 = vadd.f32 0.0, %v4931
        %v4933 = vpop.f32.mrf.mxu0
        %4934 = vmatprep.mubr.bf16.mxu0 0
        %4935 = vmatmul.mubr.bf16.gmra.mxu0 %v4886
        %v4936 = vpop.f32.mrf.mxu0
        %v4937 = vadd.f32 0.0, %v4936
        %v4938 = vpop.f32.mrf.mxu0
        %v4939 = vpop.f32.mrf.mxu0
        %v4940 = vadd.f32 0.0, %v4939
        %v4941 = vpop.f32.mrf.mxu0
        %4942 = vmatprep.mubr.bf16.mxu0 0
        %4943 = vmatmul.mubr.bf16.gmra.mxu0 %v4889
        %v4944 = vpop.f32.mrf.mxu0
        %v4945 = vadd.f32 0.0, %v4944
        %v4946 = vpop.f32.mrf.mxu0
        %v4947 = vpop.f32.mrf.mxu0
        %v4948 = vadd.f32 0.0, %v4947
        %v4949 = vpop.f32.mrf.mxu0
        %4950 = vmatprep.mubr.bf16.mxu0 0
        %4951 = vmatmul.mubr.bf16.gmra.mxu0 %v4892
        %v4952 = vpop.f32.mrf.mxu0
        %v4953 = vadd.f32 0.0, %v4952
        %v4954 = vpop.f32.mrf.mxu0
        %v4955 = vpop.f32.mrf.mxu0
        %v4956 = vadd.f32 0.0, %v4955
        %v4957 = vpop.f32.mrf.mxu0
        %4958 = vdwg.mxu0
        %v4959 = vadd.f32 %v4526, %v4929
        %v4960 = vadd.f32 %v4529, %v4932
        %v4961 = vadd.f32 %v4534, %v4937
        %v4962 = vadd.f32 %v4537, %v4940
        %v4963 = vadd.f32 %v4542, %v4945
        %v4964 = vadd.f32 %v4545, %v4948
        %v4965 = vadd.f32 %v4550, %v4953
        %v4966 = vadd.f32 %v4553, %v4956
        %4967 = vrot.lane.b32.xlu0 %v3758, 32
        %v4968 = vpop.permute.xlu0 %4967
        %4969 = vrot.lane.b32.xlu0 %v3759, 32
        %v4970 = vpop.permute.xlu0 %4969
        %4971 = vrot.lane.b32.xlu0 %v3760, 32
        %v4972 = vpop.permute.xlu0 %4971
        %4973 = vrot.lane.b32.xlu0 %v3761, 32
        %v4974 = vpop.permute.xlu0 %4973
        %4975 = vrot.lane.b32.xlu0 %v3762, 32
        %v4976 = vpop.permute.xlu0 %4975
        %4977 = vrot.lane.b32.xlu0 %v3763, 32
        %v4978 = vpop.permute.xlu0 %4977
        %4979 = vrot.lane.b32.xlu0 %v3764, 32
        %v4980 = vpop.permute.xlu0 %4979
        %4981 = vrot.lane.b32.xlu0 %v3765, 32
        %v4982 = vpop.permute.xlu0 %4981
        %4983 = vrot.lane.b32.xlu0 %v3766, 32
        %v4984 = vpop.permute.xlu0 %4983
        %4985 = vrot.lane.b32.xlu0 %v3767, 32
        %v4986 = vpop.permute.xlu0 %4985
        %4987 = vrot.lane.b32.xlu0 %v3768, 32
        %v4988 = vpop.permute.xlu0 %4987
        %4989 = vrot.lane.b32.xlu0 %v3769, 32
        %v4990 = vpop.permute.xlu0 %4989
        %v4992 = vsel %vm1544, %v4968, 0
        %v4995 = vsel %vm1544, %v4970, 0
        %v4998 = vsel %vm1544, %v4972, 0
        %v5001 = vsel %vm1544, %v4974, 0
        %v5004 = vsel %vm1544, %v4976, 0
        %v5007 = vsel %vm1544, %v4978, 0
        %v5010 = vsel %vm1544, %v4980, 0
        %v5013 = vsel %vm1544, %v4982, 0
        %v5016 = vsel %vm1544, %v4984, 0
        %v5019 = vsel %vm1544, %v4986, 0
        %v5022 = vsel %vm1544, %v4988, 0
        %v5025 = vsel %vm1544, %v4990, 0
        %5027 = vmatprep.subr.bf16.mxu0 0
        %5028 = vmatpush1.bf16.xpose.msra.mxu0 %v5025
        %5029 = vmatprep.subr.bf16.mxu0 0
        %5030 = vmatpush1.bf16.xpose.msra.mxu0 %v5022
        %5031 = vmatprep.subr.bf16.mxu0 0
        %5032 = vmatpush1.bf16.xpose.msra.mxu0 %v5019
        %5033 = vmatprep.subr.bf16.mxu0 0
        %5034 = vmatpush1.bf16.xpose.msra.mxu0 %v5016
        %5035 = vmatprep.subr.bf16.mxu0 0
        %5036 = vmatpush1.bf16.xpose.msra.mxu0 %v5013
        %5037 = vmatprep.subr.bf16.mxu0 0
        %5038 = vmatpush1.bf16.xpose.msra.mxu0 %v5010
        %5039 = vmatprep.subr.bf16.mxu0 0
        %5040 = vmatpush1.bf16.xpose.msra.mxu0 %v5007
        %5041 = vmatprep.subr.bf16.mxu0 0
        %5042 = vmatpush1.bf16.xpose.msra.mxu0 %v5004
        %5043 = vmatprep.subr.bf16.mxu0 0
        %5044 = vmatpush2.bf16.xpose.msra.mxu0 0
        %5045 = vmatprep.subr.bf16.mxu0 0
        %5046 = vmatpush2.bf16.xpose.msra.mxu0 0
        %5047 = vmatprep.subr.bf16.mxu0 0
        %5048 = vmatpush2.bf16.xpose.msra.mxu0 0
        %5049 = vmatprep.subr.bf16.mxu0 0
        %5050 = vmatpush2.bf16.xpose.msra.mxu0 0
        %5051 = vmatprep.subr.bf16.mxu0 0
        %5052 = vmatpush2.bf16.xpose.msra.mxu0 0
        %5053 = vmatprep.subr.bf16.mxu0 0
        %5054 = vmatpush2.bf16.xpose.msra.mxu0 0
        %5055 = vmatprep.subr.bf16.mxu0 0
        %5056 = vmatpush2.bf16.xpose.msra.mxu0 0
        %5057 = vmatprep.subr.bf16.mxu0 0
        %5058 = vmatpush2.bf16.xpose.msra.mxu0 0
        %5059 = vmatprep.mubr.bf16.mxu0 0
        %5060 = vmatmul.mubr.bf16.gmra.mxu0 %v4992
        %v5061 = vpop.f32.mrf.mxu0
        %v5062 = vadd.f32 0.0, %v5061
        %v5063 = vpop.f32.mrf.mxu0
        %v5064 = vpop.f32.mrf.mxu0
        %v5065 = vadd.f32 0.0, %v5064
        %v5066 = vpop.f32.mrf.mxu0
        %5067 = vmatprep.mubr.bf16.mxu0 0
        %5068 = vmatmul.mubr.bf16.gmra.mxu0 %v4995
        %v5069 = vpop.f32.mrf.mxu0
        %v5070 = vadd.f32 0.0, %v5069
        %v5071 = vpop.f32.mrf.mxu0
        %v5072 = vpop.f32.mrf.mxu0
        %v5073 = vadd.f32 0.0, %v5072
        %v5074 = vpop.f32.mrf.mxu0
        %5075 = vmatprep.mubr.bf16.mxu0 0
        %5076 = vmatmul.mubr.bf16.gmra.mxu0 %v4998
        %v5077 = vpop.f32.mrf.mxu0
        %v5078 = vadd.f32 0.0, %v5077
        %v5079 = vpop.f32.mrf.mxu0
        %v5080 = vpop.f32.mrf.mxu0
        %v5081 = vadd.f32 0.0, %v5080
        %v5082 = vpop.f32.mrf.mxu0
        %5083 = vmatprep.mubr.bf16.mxu0 0
        %5084 = vmatmul.mubr.bf16.gmra.mxu0 %v5001
        %v5085 = vpop.f32.mrf.mxu0
        %v5086 = vadd.f32 0.0, %v5085
        %v5087 = vpop.f32.mrf.mxu0
        %v5088 = vpop.f32.mrf.mxu0
        %v5089 = vadd.f32 0.0, %v5088
        %v5090 = vpop.f32.mrf.mxu0
        %5091 = vdwg.mxu0
        %v5092 = vsel %vm1060, %v5062, -1e+20
        %v5093 = vsel %vm1060, %v5065, -1e+20
        %v5094 = vsel %vm1060, %v5070, -1e+20
        %v5095 = vsel %vm1060, %v5073, -1e+20
        %v5096 = vsel %vm1060, %v5078, -1e+20
        %v5097 = vsel %vm1060, %v5081, -1e+20
        %v5098 = vsel %vm1060, %v5086, -1e+20
        %v5099 = vsel %vm1060, %v5089, -1e+20
        %v5100 = vmul.f32 %v5092, 0.088388346
        %v5101 = vmul.f32 %v5093, 0.088388346
        %v5102 = vmul.f32 %v5094, 0.088388346
        %v5103 = vmul.f32 %v5095, 0.088388346
        %v5104 = vmul.f32 %v5096, 0.088388346
        %v5105 = vmul.f32 %v5097, 0.088388346
        %v5106 = vmul.f32 %v5098, 0.088388346
        %v5107 = vmul.f32 %v5099, 0.088388346
        %5108 = vmax.xlane.f32.xlu0 %v5100
        %v5109 = vpop.xlane.xlu0 %5108
        %5110 = vmax.xlane.f32.xlu0 %v5101
        %v5111 = vpop.xlane.xlu0 %5110
        %5112 = vmax.xlane.f32.xlu0 %v5102
        %v5113 = vpop.xlane.xlu0 %5112
        %5114 = vmax.xlane.f32.xlu0 %v5103
        %v5115 = vpop.xlane.xlu0 %5114
        %5116 = vmax.xlane.f32.xlu0 %v5104
        %v5117 = vpop.xlane.xlu0 %5116
        %5118 = vmax.xlane.f32.xlu0 %v5105
        %v5119 = vpop.xlane.xlu0 %5118
        %5120 = vmax.xlane.f32.xlu0 %v5106
        %v5121 = vpop.xlane.xlu0 %5120
        %5122 = vmax.xlane.f32.xlu0 %v5107
        %v5123 = vpop.xlane.xlu0 %5122
        %v5124 = vsub.f32 %v5100, %v5109
        %v5125 = vsub.f32 %v5101, %v5111
        %v5126 = vsub.f32 %v5102, %v5113
        %v5127 = vsub.f32 %v5103, %v5115
        %v5128 = vsub.f32 %v5104, %v5117
        %v5129 = vsub.f32 %v5105, %v5119
        %v5130 = vsub.f32 %v5106, %v5121
        %v5131 = vsub.f32 %v5107, %v5123
        %v5132 = vmul.f32 %v5124, 1.442695
        %v5133 = vpow.pop %v5132
        %v5134 = vmul.f32 %v5125, 1.442695
        %v5135 = vpow.pop %v5134
        %v5136 = vmul.f32 %v5126, 1.442695
        %v5137 = vpow.pop %v5136
        %v5138 = vmul.f32 %v5127, 1.442695
        %v5139 = vpow.pop %v5138
        %v5140 = vmul.f32 %v5128, 1.442695
        %v5141 = vpow.pop %v5140
        %v5142 = vmul.f32 %v5129, 1.442695
        %v5143 = vpow.pop %v5142
        %v5144 = vmul.f32 %v5130, 1.442695
        %v5145 = vpow.pop %v5144
        %v5146 = vmul.f32 %v5131, 1.442695
        %v5147 = vpow.pop %v5146
        %5148 = vadd.xlane.f32.xlu0 %v5133
        %v5149 = vpop.xlane.xlu0 %5148
        %5150 = vadd.xlane.f32.xlu0 %v5135
        %v5151 = vpop.xlane.xlu0 %5150
        %5152 = vadd.xlane.f32.xlu0 %v5137
        %v5153 = vpop.xlane.xlu0 %5152
        %5154 = vadd.xlane.f32.xlu0 %v5139
        %v5155 = vpop.xlane.xlu0 %5154
        %5156 = vadd.xlane.f32.xlu0 %v5141
        %v5157 = vpop.xlane.xlu0 %5156
        %5158 = vadd.xlane.f32.xlu0 %v5143
        %v5159 = vpop.xlane.xlu0 %5158
        %5160 = vadd.xlane.f32.xlu0 %v5145
        %v5161 = vpop.xlane.xlu0 %5160
        %5162 = vadd.xlane.f32.xlu0 %v5147
        %v5163 = vpop.xlane.xlu0 %5162
        %v5164 = vrcp.pop %v5149
        %v5165 = vrcp.pop %v5151
        %v5166 = vrcp.pop %v5153
        %v5167 = vrcp.pop %v5155
        %v5168 = vrcp.pop %v5157
        %v5169 = vrcp.pop %v5159
        %v5170 = vrcp.pop %v5161
        %v5171 = vrcp.pop %v5163
        %v5172 = vmul.f32 %v5133, %v5164
        %v5173 = vmul.f32 %v5135, %v5165
        %v5174 = vmul.f32 %v5137, %v5166
        %v5175 = vmul.f32 %v5139, %v5167
        %v5176 = vmul.f32 %v5141, %v5168
        %v5177 = vmul.f32 %v5143, %v5169
        %v5178 = vmul.f32 %v5145, %v5170
        %v5179 = vmul.f32 %v5147, %v5171
        %v5180 = vpack.c.bf16 %v5173, %v5172
        %v5181 = vpack.c.bf16 %v5175, %v5174
        %v5182 = vpack.c.bf16 %v5177, %v5176
        %v5183 = vpack.c.bf16 %v5179, %v5178
        %5184 = vrot.lane.b32.xlu0 %v3770, 32
        %v5185 = vpop.permute.xlu0 %5184
        %5186 = vrot.lane.b32.xlu0 %v3771, 32
        %v5187 = vpop.permute.xlu0 %5186
        %5188 = vrot.lane.b32.xlu0 %v3772, 32
        %v5189 = vpop.permute.xlu0 %5188
        %5190 = vrot.lane.b32.xlu0 %v3773, 32
        %v5191 = vpop.permute.xlu0 %5190
        %5192 = vrot.lane.b32.xlu0 %v3774, 32
        %v5193 = vpop.permute.xlu0 %5192
        %5194 = vrot.lane.b32.xlu0 %v3775, 32
        %v5195 = vpop.permute.xlu0 %5194
        %5196 = vrot.lane.b32.xlu0 %v3776, 32
        %v5197 = vpop.permute.xlu0 %5196
        %5198 = vrot.lane.b32.xlu0 %v3777, 32
        %v5199 = vpop.permute.xlu0 %5198
        %5208 = vmatprep.subr.bf16.mxu0 0
        %5209 = vmatpush1.bf16.msra.mxu0 %v5199
        %5210 = vmatprep.subr.bf16.mxu0 0
        %5211 = vmatpush1.bf16.msra.mxu0 %v5197
        %5212 = vmatprep.subr.bf16.mxu0 0
        %5213 = vmatpush1.bf16.msra.mxu0 %v5195
        %5214 = vmatprep.subr.bf16.mxu0 0
        %5215 = vmatpush1.bf16.msra.mxu0 %v5193
        %5216 = vmatprep.subr.bf16.mxu0 0
        %5217 = vmatpush1.bf16.msra.mxu0 %v5191
        %5218 = vmatprep.subr.bf16.mxu0 0
        %5219 = vmatpush1.bf16.msra.mxu0 %v5189
        %5220 = vmatprep.subr.bf16.mxu0 0
        %5221 = vmatpush1.bf16.msra.mxu0 %v5187
        %5222 = vmatprep.subr.bf16.mxu0 0
        %5223 = vmatpush1.bf16.msra.mxu0 %v5185
        %5224 = vmatprep.subr.bf16.mxu0 0
        %5225 = vmatpush2.bf16.msra.mxu0 0
        %5226 = vmatprep.subr.bf16.mxu0 0
        %5227 = vmatpush2.bf16.msra.mxu0 0
        %5228 = vmatprep.subr.bf16.mxu0 0
        %5229 = vmatpush2.bf16.msra.mxu0 0
        %5230 = vmatprep.subr.bf16.mxu0 0
        %5231 = vmatpush2.bf16.msra.mxu0 0
        %5232 = vmatprep.subr.bf16.mxu0 0
        %5233 = vmatpush2.bf16.msra.mxu0 0
        %5234 = vmatprep.subr.bf16.mxu0 0
        %5235 = vmatpush2.bf16.msra.mxu0 0
        %5236 = vmatprep.subr.bf16.mxu0 0
        %5237 = vmatpush2.bf16.msra.mxu0 0
        %5238 = vmatprep.subr.bf16.mxu0 0
        %5239 = vmatpush2.bf16.msra.mxu0 0
        %5240 = vmatprep.mubr.bf16.mxu0 0
        %5241 = vmatmul.mubr.bf16.gmra.mxu0 %v5180
        %v5242 = vpop.f32.mrf.mxu0
        %v5243 = vadd.f32 0.0, %v5242
        %v5244 = vpop.f32.mrf.mxu0
        %v5245 = vpop.f32.mrf.mxu0
        %v5246 = vadd.f32 0.0, %v5245
        %v5247 = vpop.f32.mrf.mxu0
        %5248 = vmatprep.mubr.bf16.mxu0 0
        %5249 = vmatmul.mubr.bf16.gmra.mxu0 %v5181
        %v5250 = vpop.f32.mrf.mxu0
        %v5251 = vadd.f32 0.0, %v5250
        %v5252 = vpop.f32.mrf.mxu0
        %v5253 = vpop.f32.mrf.mxu0
        %v5254 = vadd.f32 0.0, %v5253
        %v5255 = vpop.f32.mrf.mxu0
        %5256 = vmatprep.mubr.bf16.mxu0 0
        %5257 = vmatmul.mubr.bf16.gmra.mxu0 %v5182
        %v5258 = vpop.f32.mrf.mxu0
        %v5259 = vadd.f32 0.0, %v5258
        %v5260 = vpop.f32.mrf.mxu0
        %v5261 = vpop.f32.mrf.mxu0
        %v5262 = vadd.f32 0.0, %v5261
        %v5263 = vpop.f32.mrf.mxu0
        %5264 = vmatprep.mubr.bf16.mxu0 0
        %5265 = vmatmul.mubr.bf16.gmra.mxu0 %v5183
        %v5266 = vpop.f32.mrf.mxu0
        %v5267 = vadd.f32 0.0, %v5266
        %v5268 = vpop.f32.mrf.mxu0
        %v5269 = vpop.f32.mrf.mxu0
        %v5270 = vadd.f32 0.0, %v5269
        %v5271 = vpop.f32.mrf.mxu0
        %5272 = vdwg.mxu0
        %v5273 = vpack.c.bf16 %v5246, %v5243
        %v5274 = vpack.c.bf16 %v5254, %v5251
        %v5275 = vpack.c.bf16 %v5262, %v5259
        %v5276 = vpack.c.bf16 %v5270, %v5267
        %v5277 = vld [vmem:[#allocation21 + $0x30] sm:$0xf]
        %v5278 = vld [vmem:[#allocation21 + $0x34] sm:$0xf]
        %v5279 = vld [vmem:[#allocation21 + $0x38] sm:$0xf]
        %v5280 = vld [vmem:[#allocation21 + $0x3c] sm:$0xf]
        %v5285 = vunpack.c.l.b16 %v5277
        %v5286 = vunpack.c.l.b16 %v5278
        %v5287 = vunpack.c.l.b16 %v5279
        %v5288 = vunpack.c.l.b16 %v5280
        %v5289 = vpack.c.b16 %v5286, %v5285
        %v5290 = vpack.c.b16 %v5288, %v5287
        %v5294 = vsel %vm1544, %v5273, 0
        %v5297 = vsel %vm1544, %v5274, 0
        %v5300 = vsel %vm1544, %v5275, 0
        %v5303 = vsel %vm1544, %v5276, 0
        %5305 = vmatprep.subr.bf16.mxu0 0
        %5306 = vmatpush1.bf16.msra.mxu0 0
        %5307 = vmatprep.subr.bf16.mxu0 0
        %5308 = vmatpush1.bf16.msra.mxu0 0
        %5309 = vmatprep.subr.bf16.mxu0 0
        %5310 = vmatpush1.bf16.msra.mxu0 0
        %5311 = vmatprep.subr.bf16.mxu0 0
        %5312 = vmatpush1.bf16.msra.mxu0 0
        %5313 = vmatprep.subr.bf16.mxu0 0
        %5314 = vmatpush1.bf16.msra.mxu0 0
        %5315 = vmatprep.subr.bf16.mxu0 0
        %5316 = vmatpush1.bf16.msra.mxu0 0
        %5317 = vmatprep.subr.bf16.mxu0 0
        %5318 = vmatpush1.bf16.msra.mxu0 %v5290
        %5319 = vmatprep.subr.bf16.mxu0 0
        %5320 = vmatpush1.bf16.msra.mxu0 %v5289
        %5321 = vmatprep.subr.bf16.mxu0 0
        %5322 = vmatpush2.bf16.msra.mxu0 0
        %5323 = vmatprep.subr.bf16.mxu0 0
        %5324 = vmatpush2.bf16.msra.mxu0 0
        %5325 = vmatprep.subr.bf16.mxu0 0
        %5326 = vmatpush2.bf16.msra.mxu0 0
        %5327 = vmatprep.subr.bf16.mxu0 0
        %5328 = vmatpush2.bf16.msra.mxu0 0
        %5329 = vmatprep.subr.bf16.mxu0 0
        %5330 = vmatpush2.bf16.msra.mxu0 0
        %5331 = vmatprep.subr.bf16.mxu0 0
        %5332 = vmatpush2.bf16.msra.mxu0 0
        %5333 = vmatprep.subr.bf16.mxu0 0
        %5334 = vmatpush2.bf16.msra.mxu0 0
        %5335 = vmatprep.subr.bf16.mxu0 0
        %5336 = vmatpush2.bf16.msra.mxu0 0
        %5337 = vmatprep.mubr.bf16.mxu0 0
        %5338 = vmatmul.mubr.bf16.gmra.mxu0 %v5294
        %v5339 = vpop.f32.mrf.mxu0
        %v5340 = vadd.f32 0.0, %v5339
        %v5341 = vpop.f32.mrf.mxu0
        %v5342 = vpop.f32.mrf.mxu0
        %v5343 = vadd.f32 0.0, %v5342
        %v5344 = vpop.f32.mrf.mxu0
        %5345 = vmatprep.mubr.bf16.mxu0 0
        %5346 = vmatmul.mubr.bf16.gmra.mxu0 %v5297
        %v5347 = vpop.f32.mrf.mxu0
        %v5348 = vadd.f32 0.0, %v5347
        %v5349 = vpop.f32.mrf.mxu0
        %v5350 = vpop.f32.mrf.mxu0
        %v5351 = vadd.f32 0.0, %v5350
        %v5352 = vpop.f32.mrf.mxu0
        %5353 = vmatprep.mubr.bf16.mxu0 0
        %5354 = vmatmul.mubr.bf16.gmra.mxu0 %v5300
        %v5355 = vpop.f32.mrf.mxu0
        %v5356 = vadd.f32 0.0, %v5355
        %v5357 = vpop.f32.mrf.mxu0
        %v5358 = vpop.f32.mrf.mxu0
        %v5359 = vadd.f32 0.0, %v5358
        %v5360 = vpop.f32.mrf.mxu0
        %5361 = vmatprep.mubr.bf16.mxu0 0
        %5362 = vmatmul.mubr.bf16.gmra.mxu0 %v5303
        %v5363 = vpop.f32.mrf.mxu0
        %v5364 = vadd.f32 0.0, %v5363
        %v5365 = vpop.f32.mrf.mxu0
        %v5366 = vpop.f32.mrf.mxu0
        %v5367 = vadd.f32 0.0, %v5366
        %v5368 = vpop.f32.mrf.mxu0
        %5369 = vdwg.mxu0
        %v5370 = vadd.f32 %v4959, %v5340
        %v5371 = vadd.f32 %v4960, %v5343
        %v5372 = vadd.f32 %v4961, %v5348
        %v5373 = vadd.f32 %v4962, %v5351
        %v5374 = vadd.f32 %v4963, %v5356
        %v5375 = vadd.f32 %v4964, %v5359
        %v5376 = vadd.f32 %v4965, %v5364
        %v5377 = vadd.f32 %v4966, %v5367
        %v5378 = vld [vmem:[%s15] sm:$0x1]
        %v5380 = vlaneseq
        %v5381 = vshrl.u32 %v5380, 7
        %v5382 = vsub.s32 0, %v5381
        %v5383 = vrot.slane %v5378, %v5382
        %v5385 = vadd.f32 %v5370, %v5383
        %v5386 = vadd.f32 %v5371, %v5383
        %v5387 = vadd.f32 %v5372, %v5383
        %v5388 = vadd.f32 %v5373, %v5383
        %v5389 = vadd.f32 %v5374, %v5383
        %v5390 = vadd.f32 %v5375, %v5383
        %v5391 = vadd.f32 %v5376, %v5383
        %v5392 = vadd.f32 %v5377, %v5383
        %v5393 = vadd.f32 %v5385, %v3279
        %v5394 = vadd.f32 %v5386, %v3280
        %v5395 = vadd.f32 %v5387, %v3281
        %v5396 = vadd.f32 %v5388, %v3282
        %v5397 = vadd.f32 %v5389, %v3283
        %v5398 = vadd.f32 %v5390, %v3284
        %v5399 = vadd.f32 %v5391, %v3285
        %v5400 = vadd.f32 %v5392, %v3286
        %5401 = vadd.xlane.f32.xlu0 %v5393
        %v5402 = vpop.xlane.xlu0 %5401
        %5403 = vadd.xlane.f32.xlu0 %v5394
        %v5404 = vpop.xlane.xlu0 %5403
        %5405 = vadd.xlane.f32.xlu0 %v5395
        %v5406 = vpop.xlane.xlu0 %5405
        %5407 = vadd.xlane.f32.xlu0 %v5396
        %v5408 = vpop.xlane.xlu0 %5407
        %5409 = vadd.xlane.f32.xlu0 %v5397
        %v5410 = vpop.xlane.xlu0 %5409
        %5411 = vadd.xlane.f32.xlu0 %v5398
        %v5412 = vpop.xlane.xlu0 %5411
        %5413 = vadd.xlane.f32.xlu0 %v5399
        %v5414 = vpop.xlane.xlu0 %5413
        %5415 = vadd.xlane.f32.xlu0 %v5400
        %v5416 = vpop.xlane.xlu0 %5415
        %v5417 = vmul.f32 %v5402, %v3184
        %v5418 = vmul.f32 %v5404, %v3184
        %v5419 = vmul.f32 %v5406, %v3184
        %v5420 = vmul.f32 %v5408, %v3184
        %v5421 = vmul.f32 %v5410, %v3184
        %v5422 = vmul.f32 %v5412, %v3184
        %v5423 = vmul.f32 %v5414, %v3184
        %v5424 = vmul.f32 %v5416, %v3184
        %v5425 = vsub.f32 %v5393, %v5417
        %v5426 = vsub.f32 %v5394, %v5418
        %v5427 = vsub.f32 %v5395, %v5419
        %v5428 = vsub.f32 %v5396, %v5420
        %v5429 = vsub.f32 %v5397, %v5421
        %v5430 = vsub.f32 %v5398, %v5422
        %v5431 = vsub.f32 %v5399, %v5423
        %v5432 = vsub.f32 %v5400, %v5424
        %v5433 = vmul.f32 %v5425, %v5425
        %v5434 = vmul.f32 %v5426, %v5426
        %v5435 = vmul.f32 %v5427, %v5427
        %v5436 = vmul.f32 %v5428, %v5428
        %v5437 = vmul.f32 %v5429, %v5429
        %v5438 = vmul.f32 %v5430, %v5430
        %v5439 = vmul.f32 %v5431, %v5431
        %v5440 = vmul.f32 %v5432, %v5432
        %5441 = vadd.xlane.f32.xlu0 %v5433
        %v5442 = vpop.xlane.xlu0 %5441
        %5443 = vadd.xlane.f32.xlu0 %v5434
        %v5444 = vpop.xlane.xlu0 %5443
        %5445 = vadd.xlane.f32.xlu0 %v5435
        %v5446 = vpop.xlane.xlu0 %5445
        %5447 = vadd.xlane.f32.xlu0 %v5436
        %v5448 = vpop.xlane.xlu0 %5447
        %5449 = vadd.xlane.f32.xlu0 %v5437
        %v5450 = vpop.xlane.xlu0 %5449
        %5451 = vadd.xlane.f32.xlu0 %v5438
        %v5452 = vpop.xlane.xlu0 %5451
        %5453 = vadd.xlane.f32.xlu0 %v5439
        %v5454 = vpop.xlane.xlu0 %5453
        %5455 = vadd.xlane.f32.xlu0 %v5440
        %v5456 = vpop.xlane.xlu0 %5455
        %v5457 = vmul.f32 %v5442, %v3184
        %v5458 = vmul.f32 %v5444, %v3184
        %v5459 = vmul.f32 %v5446, %v3184
        %v5460 = vmul.f32 %v5448, %v3184
        %v5461 = vmul.f32 %v5450, %v3184
        %v5462 = vmul.f32 %v5452, %v3184
        %v5463 = vmul.f32 %v5454, %v3184
        %v5464 = vmul.f32 %v5456, %v3184
        %v5465 = vadd.f32 %v5457, 1e-05
        %v5466 = vadd.f32 %v5458, 1e-05
        %v5467 = vadd.f32 %v5459, 1e-05
        %v5468 = vadd.f32 %v5460, 1e-05
        %v5469 = vadd.f32 %v5461, 1e-05
        %v5470 = vadd.f32 %v5462, 1e-05
        %v5471 = vadd.f32 %v5463, 1e-05
        %v5472 = vadd.f32 %v5464, 1e-05
        %v5473 = vrsqrt.pop %v5465
        %v5474 = vrsqrt.pop %v5466
        %v5475 = vrsqrt.pop %v5467
        %v5476 = vrsqrt.pop %v5468
        %v5477 = vrsqrt.pop %v5469
        %v5478 = vrsqrt.pop %v5470
        %v5479 = vrsqrt.pop %v5471
        %v5480 = vrsqrt.pop %v5472
        %v5481 = vmul.f32 %v5425, %v5473
        %v5482 = vmul.f32 %v5426, %v5474
        %v5483 = vmul.f32 %v5427, %v5475
        %v5484 = vmul.f32 %v5428, %v5476
        %v5485 = vmul.f32 %v5429, %v5477
        %v5486 = vmul.f32 %v5430, %v5478
        %v5487 = vmul.f32 %v5431, %v5479
        %v5488 = vmul.f32 %v5432, %v5480
        %v5489 = vld [vmem:[%s16] sm:$0x1]
        %v5491 = vlaneseq
        %v5492 = vshrl.u32 %v5491, 7
        %v5493 = vsub.s32 0, %v5492
        %v5494 = vrot.slane %v5489, %v5493
        %v5496 = vmul.f32 %v5481, %v5494
        %v5497 = vmul.f32 %v5482, %v5494
        %v5498 = vmul.f32 %v5483, %v5494
        %v5499 = vmul.f32 %v5484, %v5494
        %v5500 = vmul.f32 %v5485, %v5494
        %v5501 = vmul.f32 %v5486, %v5494
        %v5502 = vmul.f32 %v5487, %v5494
        %v5503 = vmul.f32 %v5488, %v5494
        %v5504 = vld [vmem:[%s17] sm:$0x1]
        %v5506 = vlaneseq
        %v5507 = vshrl.u32 %v5506, 7
        %v5508 = vsub.s32 0, %v5507
        %v5509 = vrot.slane %v5504, %v5508
        %v5511 = vadd.f32 %v5496, %v5509
        %v5512 = vadd.f32 %v5497, %v5509
        %v5513 = vadd.f32 %v5498, %v5509
        %v5514 = vadd.f32 %v5499, %v5509
        %v5515 = vadd.f32 %v5500, %v5509
        %v5516 = vadd.f32 %v5501, %v5509
        %v5517 = vadd.f32 %v5502, %v5509
        %v5518 = vadd.f32 %v5503, %v5509
        %v5519 = vpack.c.bf16 %v5512, %v5511
        %v5520 = vpack.c.bf16 %v5514, %v5513
        %v5521 = vpack.c.bf16 %v5516, %v5515
        %v5522 = vpack.c.bf16 %v5518, %v5517
        %v5523 = vld [vmem:[#allocation22] sm:$0xff]
        %v5524 = vld [vmem:[#allocation22 + $0x8] sm:$0xff]
        %v5525 = vld [vmem:[#allocation22 + $0x10] sm:$0xff]
        %v5526 = vld [vmem:[#allocation22 + $0x18] sm:$0xff]
        %v5527 = vld [vmem:[#allocation22 + $0x20] sm:$0xff]
        %v5528 = vld [vmem:[#allocation22 + $0x28] sm:$0xff]
        %v5529 = vld [vmem:[#allocation22 + $0x30] sm:$0xff]
        %v5530 = vld [vmem:[#allocation22 + $0x38] sm:$0xff]
        %v5531 = vld [vmem:[#allocation22 + $0x40] sm:$0xff]
        %v5532 = vld [vmem:[#allocation22 + $0x48] sm:$0xff]
        %v5533 = vld [vmem:[#allocation22 + $0x50] sm:$0xff]
        %v5534 = vld [vmem:[#allocation22 + $0x58] sm:$0xff]
        %v5535 = vld [vmem:[#allocation22 + $0x60] sm:$0xff]
        %v5536 = vld [vmem:[#allocation22 + $0x68] sm:$0xff]
        %v5537 = vld [vmem:[#allocation22 + $0x70] sm:$0xff]
        %v5538 = vld [vmem:[#allocation22 + $0x78] sm:$0xff]
        %v5539 = vld [vmem:[#allocation22 + $0x80] sm:$0xff]
        %v5540 = vld [vmem:[#allocation22 + $0x88] sm:$0xff]
        %v5541 = vld [vmem:[#allocation22 + $0x90] sm:$0xff]
        %v5542 = vld [vmem:[#allocation22 + $0x98] sm:$0xff]
        %v5543 = vld [vmem:[#allocation22 + $0xa0] sm:$0xff]
        %v5544 = vld [vmem:[#allocation22 + $0xa8] sm:$0xff]
        %v5545 = vld [vmem:[#allocation22 + $0xb0] sm:$0xff]
        %v5546 = vld [vmem:[#allocation22 + $0xb8] sm:$0xff]
        %v5547 = vld [vmem:[#allocation22 + $0xc0] sm:$0xff]
        %v5548 = vld [vmem:[#allocation22 + $0xc8] sm:$0xff]
        %v5549 = vld [vmem:[#allocation22 + $0xd0] sm:$0xff]
        %v5550 = vld [vmem:[#allocation22 + $0xd8] sm:$0xff]
        %v5551 = vld [vmem:[#allocation22 + $0xe0] sm:$0xff]
        %v5552 = vld [vmem:[#allocation22 + $0xe8] sm:$0xff]
        %v5553 = vld [vmem:[#allocation22 + $0xf0] sm:$0xff]
        %v5554 = vld [vmem:[#allocation22 + $0xf8] sm:$0xff]
        %v5555 = vld [vmem:[%s19] sm:$0xf]
        %v5557 = vlaneseq
        %v5558 = vshrl.u32 %v5557, 7
        %v5559 = vsub.s32 0, %v5558
        %v5560 = vrot.slane %v5555, %v5559
        %v5561 = vlaneseq
        %v5562 = vshrl.u32 %v5561, 7
        %v5563 = vsub.s32 1, %v5562
        %v5564 = vrot.slane %v5555, %v5563
        %v5565 = vlaneseq
        %v5566 = vshrl.u32 %v5565, 7
        %v5567 = vsub.s32 2, %v5566
        %v5568 = vrot.slane %v5555, %v5567
        %v5569 = vlaneseq
        %v5570 = vshrl.u32 %v5569, 7
        %v5571 = vsub.s32 3, %v5570
        %v5572 = vrot.slane %v5555, %v5571
        %v5609 = vunpack.c.l.b16 %v5523
        %v5610 = vunpack.c.h.b16 %v5523
        %v5611 = vunpack.c.l.b16 %v5524
        %v5612 = vunpack.c.h.b16 %v5524
        %v5613 = vunpack.c.l.b16 %v5525
        %v5614 = vunpack.c.h.b16 %v5525
        %v5615 = vunpack.c.l.b16 %v5526
        %v5616 = vunpack.c.h.b16 %v5526
        %v5617 = vunpack.c.l.b16 %v5527
        %v5618 = vunpack.c.h.b16 %v5527
        %v5619 = vunpack.c.l.b16 %v5528
        %v5620 = vunpack.c.h.b16 %v5528
        %v5621 = vunpack.c.l.b16 %v5529
        %v5622 = vunpack.c.h.b16 %v5529
        %v5623 = vunpack.c.l.b16 %v5530
        %v5624 = vunpack.c.h.b16 %v5530
        %v5625 = vunpack.c.l.b16 %v5531
        %v5626 = vunpack.c.h.b16 %v5531
        %v5627 = vunpack.c.l.b16 %v5532
        %v5628 = vunpack.c.h.b16 %v5532
        %v5629 = vunpack.c.l.b16 %v5533
        %v5630 = vunpack.c.h.b16 %v5533
        %v5631 = vunpack.c.l.b16 %v5534
        %v5632 = vunpack.c.h.b16 %v5534
        %v5633 = vunpack.c.l.b16 %v5535
        %v5634 = vunpack.c.h.b16 %v5535
        %v5635 = vunpack.c.l.b16 %v5536
        %v5636 = vunpack.c.h.b16 %v5536
        %v5637 = vunpack.c.l.b16 %v5537
        %v5638 = vunpack.c.h.b16 %v5537
        %v5639 = vunpack.c.l.b16 %v5538
        %v5640 = vunpack.c.h.b16 %v5538
        %v5641 = vunpack.c.l.b16 %v5539
        %v5642 = vunpack.c.h.b16 %v5539
        %v5643 = vunpack.c.l.b16 %v5540
        %v5644 = vunpack.c.h.b16 %v5540
        %v5645 = vunpack.c.l.b16 %v5541
        %v5646 = vunpack.c.h.b16 %v5541
        %v5647 = vunpack.c.l.b16 %v5542
        %v5648 = vunpack.c.h.b16 %v5542
        %v5649 = vunpack.c.l.b16 %v5543
        %v5650 = vunpack.c.h.b16 %v5543
        %v5651 = vunpack.c.l.b16 %v5544
        %v5652 = vunpack.c.h.b16 %v5544
        %v5653 = vunpack.c.l.b16 %v5545
        %v5654 = vunpack.c.h.b16 %v5545
        %v5655 = vunpack.c.l.b16 %v5546
        %v5656 = vunpack.c.h.b16 %v5546
        %v5657 = vunpack.c.l.b16 %v5547
        %v5658 = vunpack.c.h.b16 %v5547
        %v5659 = vunpack.c.l.b16 %v5548
        %v5660 = vunpack.c.h.b16 %v5548
        %v5661 = vunpack.c.l.b16 %v5549
        %v5662 = vunpack.c.h.b16 %v5549
        %v5663 = vunpack.c.l.b16 %v5550
        %v5664 = vunpack.c.h.b16 %v5550
        %v5665 = vunpack.c.l.b16 %v5551
        %v5666 = vunpack.c.h.b16 %v5551
        %v5667 = vunpack.c.l.b16 %v5552
        %v5668 = vunpack.c.h.b16 %v5552
        %v5669 = vunpack.c.l.b16 %v5553
        %v5670 = vunpack.c.h.b16 %v5553
        %v5671 = vunpack.c.l.b16 %v5554
        %v5672 = vunpack.c.h.b16 %v5554
        %v5673 = vpack.c.b16 %v5613, %v5609
        %v5674 = vpack.c.b16 %v5614, %v5610
        %v5675 = vpack.c.b16 %v5615, %v5611
        %v5676 = vpack.c.b16 %v5616, %v5612
        %v5677 = vpack.c.b16 %v5621, %v5617
        %v5678 = vpack.c.b16 %v5622, %v5618
        %v5679 = vpack.c.b16 %v5623, %v5619
        %v5680 = vpack.c.b16 %v5624, %v5620
        %v5681 = vpack.c.b16 %v5629, %v5625
        %v5682 = vpack.c.b16 %v5630, %v5626
        %v5683 = vpack.c.b16 %v5631, %v5627
        %v5684 = vpack.c.b16 %v5632, %v5628
        %v5685 = vpack.c.b16 %v5637, %v5633
        %v5686 = vpack.c.b16 %v5638, %v5634
        %v5687 = vpack.c.b16 %v5639, %v5635
        %v5688 = vpack.c.b16 %v5640, %v5636
        %v5689 = vpack.c.b16 %v5645, %v5641
        %v5690 = vpack.c.b16 %v5646, %v5642
        %v5691 = vpack.c.b16 %v5647, %v5643
        %v5692 = vpack.c.b16 %v5648, %v5644
        %v5693 = vpack.c.b16 %v5653, %v5649
        %v5694 = vpack.c.b16 %v5654, %v5650
        %v5695 = vpack.c.b16 %v5655, %v5651
        %v5696 = vpack.c.b16 %v5656, %v5652
        %v5697 = vpack.c.b16 %v5661, %v5657
        %v5698 = vpack.c.b16 %v5662, %v5658
        %v5699 = vpack.c.b16 %v5663, %v5659
        %v5700 = vpack.c.b16 %v5664, %v5660
        %v5701 = vpack.c.b16 %v5669, %v5665
        %v5702 = vpack.c.b16 %v5670, %v5666
        %v5703 = vpack.c.b16 %v5671, %v5667
        %v5704 = vpack.c.b16 %v5672, %v5668
        %5737 = vmatprep.subr.bf16.mxu0 %v5702
        %5738 = vmatpush1.bf16.msra.mxu0 %v5701
        %5739 = vmatprep.subr.bf16.mxu0 %v5698
        %5740 = vmatpush1.bf16.msra.mxu0 %v5697
        %5741 = vmatprep.subr.bf16.mxu0 %v5694
        %5742 = vmatpush1.bf16.msra.mxu0 %v5693
        %5743 = vmatprep.subr.bf16.mxu0 %v5690
        %5744 = vmatpush1.bf16.msra.mxu0 %v5689
        %5745 = vmatprep.subr.bf16.mxu0 %v5686
        %5746 = vmatpush1.bf16.msra.mxu0 %v5685
        %5747 = vmatprep.subr.bf16.mxu0 %v5682
        %5748 = vmatpush1.bf16.msra.mxu0 %v5681
        %5749 = vmatprep.subr.bf16.mxu0 %v5678
        %5750 = vmatpush1.bf16.msra.mxu0 %v5677
        %5751 = vmatprep.subr.bf16.mxu0 %v5674
        %5752 = vmatpush1.bf16.msra.mxu0 %v5673
        %5753 = vmatprep.subr.bf16.mxu0 0
        %5754 = vmatpush2.bf16.msra.mxu0 0
        %5755 = vmatprep.subr.bf16.mxu0 0
        %5756 = vmatpush2.bf16.msra.mxu0 0
        %5757 = vmatprep.subr.bf16.mxu0 0
        %5758 = vmatpush2.bf16.msra.mxu0 0
        %5759 = vmatprep.subr.bf16.mxu0 0
        %5760 = vmatpush2.bf16.msra.mxu0 0
        %5761 = vmatprep.subr.bf16.mxu0 0
        %5762 = vmatpush2.bf16.msra.mxu0 0
        %5763 = vmatprep.subr.bf16.mxu0 0
        %5764 = vmatpush2.bf16.msra.mxu0 0
        %5765 = vmatprep.subr.bf16.mxu0 0
        %5766 = vmatpush2.bf16.msra.mxu0 0
        %5767 = vmatprep.subr.bf16.mxu0 0
        %5768 = vmatpush2.bf16.msra.mxu0 0
        %5769 = vmatprep.mubr.bf16.mxu0 0
        %5770 = vmatmul.mubr.bf16.gmra.mxu0 %v5519
        %v5771 = vpop.f32.mrf.mxu0
        %v5772 = vadd.f32 %v5560, %v5771
        %v5773 = vpop.f32.mrf.mxu0
        %v5774 = vadd.f32 %v5564, %v5773
        %v5775 = vpop.f32.mrf.mxu0
        %v5776 = vadd.f32 %v5560, %v5775
        %v5777 = vpop.f32.mrf.mxu0
        %v5778 = vadd.f32 %v5564, %v5777
        %5779 = vmatprep.mubr.bf16.mxu0 0
        %5780 = vmatmul.mubr.bf16.gmra.mxu0 %v5520
        %v5781 = vpop.f32.mrf.mxu0
        %v5782 = vadd.f32 %v5560, %v5781
        %v5783 = vpop.f32.mrf.mxu0
        %v5784 = vadd.f32 %v5564, %v5783
        %v5785 = vpop.f32.mrf.mxu0
        %v5786 = vadd.f32 %v5560, %v5785
        %v5787 = vpop.f32.mrf.mxu0
        %v5788 = vadd.f32 %v5564, %v5787
        %5789 = vmatprep.mubr.bf16.mxu0 0
        %5790 = vmatmul.mubr.bf16.gmra.mxu0 %v5521
        %v5791 = vpop.f32.mrf.mxu0
        %v5792 = vadd.f32 %v5560, %v5791
        %v5793 = vpop.f32.mrf.mxu0
        %v5794 = vadd.f32 %v5564, %v5793
        %v5795 = vpop.f32.mrf.mxu0
        %v5796 = vadd.f32 %v5560, %v5795
        %v5797 = vpop.f32.mrf.mxu0
        %v5798 = vadd.f32 %v5564, %v5797
        %5799 = vmatprep.mubr.bf16.mxu0 0
        %5800 = vmatmul.mubr.bf16.gmra.mxu0 %v5522
        %v5801 = vpop.f32.mrf.mxu0
        %v5802 = vadd.f32 %v5560, %v5801
        %v5803 = vpop.f32.mrf.mxu0
        %v5804 = vadd.f32 %v5564, %v5803
        %v5805 = vpop.f32.mrf.mxu0
        %v5806 = vadd.f32 %v5560, %v5805
        %v5807 = vpop.f32.mrf.mxu0
        %v5808 = vadd.f32 %v5564, %v5807
        %5809 = vdwg.mxu0
        %5810 = vmatprep.subr.bf16.mxu0 %v5704
        %5811 = vmatpush1.bf16.msra.mxu0 %v5703
        %5812 = vmatprep.subr.bf16.mxu0 %v5700
        %5813 = vmatpush1.bf16.msra.mxu0 %v5699
        %5814 = vmatprep.subr.bf16.mxu0 %v5696
        %5815 = vmatpush1.bf16.msra.mxu0 %v5695
        %5816 = vmatprep.subr.bf16.mxu0 %v5692
        %5817 = vmatpush1.bf16.msra.mxu0 %v5691
        %5818 = vmatprep.subr.bf16.mxu0 %v5688
        %5819 = vmatpush1.bf16.msra.mxu0 %v5687
        %5820 = vmatprep.subr.bf16.mxu0 %v5684
        %5821 = vmatpush1.bf16.msra.mxu0 %v5683
        %5822 = vmatprep.subr.bf16.mxu0 %v5680
        %5823 = vmatpush1.bf16.msra.mxu0 %v5679
        %5824 = vmatprep.subr.bf16.mxu0 %v5676
        %5825 = vmatpush1.bf16.msra.mxu0 %v5675
        %5826 = vmatprep.subr.bf16.mxu0 0
        %5827 = vmatpush2.bf16.msra.mxu0 0
        %5828 = vmatprep.subr.bf16.mxu0 0
        %5829 = vmatpush2.bf16.msra.mxu0 0
        %5830 = vmatprep.subr.bf16.mxu0 0
        %5831 = vmatpush2.bf16.msra.mxu0 0
        %5832 = vmatprep.subr.bf16.mxu0 0
        %5833 = vmatpush2.bf16.msra.mxu0 0
        %5834 = vmatprep.subr.bf16.mxu0 0
        %5835 = vmatpush2.bf16.msra.mxu0 0
        %5836 = vmatprep.subr.bf16.mxu0 0
        %5837 = vmatpush2.bf16.msra.mxu0 0
        %5838 = vmatprep.subr.bf16.mxu0 0
        %5839 = vmatpush2.bf16.msra.mxu0 0
        %5840 = vmatprep.subr.bf16.mxu0 0
        %5841 = vmatpush2.bf16.msra.mxu0 0
        %5842 = vmatprep.mubr.bf16.mxu0 0
        %5843 = vmatmul.mubr.bf16.gmra.mxu0 %v5519
        %v5844 = vpop.f32.mrf.mxu0
        %v5845 = vadd.f32 %v5568, %v5844
        %v5846 = vpop.f32.mrf.mxu0
        %v5847 = vadd.f32 %v5572, %v5846
        %v5848 = vpop.f32.mrf.mxu0
        %v5849 = vadd.f32 %v5568, %v5848
        %v5850 = vpop.f32.mrf.mxu0
        %v5851 = vadd.f32 %v5572, %v5850
        %5852 = vmatprep.mubr.bf16.mxu0 0
        %5853 = vmatmul.mubr.bf16.gmra.mxu0 %v5520
        %v5854 = vpop.f32.mrf.mxu0
        %v5855 = vadd.f32 %v5568, %v5854
        %v5856 = vpop.f32.mrf.mxu0
        %v5857 = vadd.f32 %v5572, %v5856
        %v5858 = vpop.f32.mrf.mxu0
        %v5859 = vadd.f32 %v5568, %v5858
        %v5860 = vpop.f32.mrf.mxu0
        %v5861 = vadd.f32 %v5572, %v5860
        %5862 = vmatprep.mubr.bf16.mxu0 0
        %5863 = vmatmul.mubr.bf16.gmra.mxu0 %v5521
        %v5864 = vpop.f32.mrf.mxu0
        %v5865 = vadd.f32 %v5568, %v5864
        %v5866 = vpop.f32.mrf.mxu0
        %v5867 = vadd.f32 %v5572, %v5866
        %v5868 = vpop.f32.mrf.mxu0
        %v5869 = vadd.f32 %v5568, %v5868
        %v5870 = vpop.f32.mrf.mxu0
        %v5871 = vadd.f32 %v5572, %v5870
        %5872 = vmatprep.mubr.bf16.mxu0 0
        %5873 = vmatmul.mubr.bf16.gmra.mxu0 %v5522
        %v5874 = vpop.f32.mrf.mxu0
        %v5875 = vadd.f32 %v5568, %v5874
        %v5876 = vpop.f32.mrf.mxu0
        %v5877 = vadd.f32 %v5572, %v5876
        %v5878 = vpop.f32.mrf.mxu0
        %v5879 = vadd.f32 %v5568, %v5878
        %v5880 = vpop.f32.mrf.mxu0
        %v5881 = vadd.f32 %v5572, %v5880
        %5882 = vdwg.mxu0
        %v5883 = vmax.f32 %v5772, 0.0
        %v5884 = vmax.f32 %v5774, 0.0
        %v5885 = vmax.f32 %v5845, 0.0
        %v5886 = vmax.f32 %v5847, 0.0
        %v5887 = vmax.f32 %v5776, 0.0
        %v5888 = vmax.f32 %v5778, 0.0
        %v5889 = vmax.f32 %v5849, 0.0
        %v5890 = vmax.f32 %v5851, 0.0
        %v5891 = vmax.f32 %v5782, 0.0
        %v5892 = vmax.f32 %v5784, 0.0
        %v5893 = vmax.f32 %v5855, 0.0
        %v5894 = vmax.f32 %v5857, 0.0
        %v5895 = vmax.f32 %v5786, 0.0
        %v5896 = vmax.f32 %v5788, 0.0
        %v5897 = vmax.f32 %v5859, 0.0
        %v5898 = vmax.f32 %v5861, 0.0
        %v5899 = vmax.f32 %v5792, 0.0
        %v5900 = vmax.f32 %v5794, 0.0
        %v5901 = vmax.f32 %v5865, 0.0
        %v5902 = vmax.f32 %v5867, 0.0
        %v5903 = vmax.f32 %v5796, 0.0
        %v5904 = vmax.f32 %v5798, 0.0
        %v5905 = vmax.f32 %v5869, 0.0
        %v5906 = vmax.f32 %v5871, 0.0
        %v5907 = vmax.f32 %v5802, 0.0
        %v5908 = vmax.f32 %v5804, 0.0
        %v5909 = vmax.f32 %v5875, 0.0
        %v5910 = vmax.f32 %v5877, 0.0
        %v5911 = vmax.f32 %v5806, 0.0
        %v5912 = vmax.f32 %v5808, 0.0
        %v5913 = vmax.f32 %v5879, 0.0
        %v5914 = vmax.f32 %v5881, 0.0
        %v5915 = vpack.c.bf16 %v5887, %v5883
        %v5916 = vpack.c.bf16 %v5888, %v5884
        %v5917 = vpack.c.bf16 %v5889, %v5885
        %v5918 = vpack.c.bf16 %v5890, %v5886
        %v5919 = vpack.c.bf16 %v5895, %v5891
        %v5920 = vpack.c.bf16 %v5896, %v5892
        %v5921 = vpack.c.bf16 %v5897, %v5893
        %v5922 = vpack.c.bf16 %v5898, %v5894
        %v5923 = vpack.c.bf16 %v5903, %v5899
        %v5924 = vpack.c.bf16 %v5904, %v5900
        %v5925 = vpack.c.bf16 %v5905, %v5901
        %v5926 = vpack.c.bf16 %v5906, %v5902
        %v5927 = vpack.c.bf16 %v5911, %v5907
        %v5928 = vpack.c.bf16 %v5912, %v5908
        %v5929 = vpack.c.bf16 %v5913, %v5909
        %v5930 = vpack.c.bf16 %v5914, %v5910
        %v5931 = vld [vmem:[#allocation24] sm:$0xf]
        %v5932 = vld [vmem:[#allocation24 + $0x4] sm:$0xf]
        %v5933 = vld [vmem:[#allocation24 + $0x8] sm:$0xf]
        %v5934 = vld [vmem:[#allocation24 + $0xc] sm:$0xf]
        %v5935 = vld [vmem:[#allocation24 + $0x10] sm:$0xf]
        %v5936 = vld [vmem:[#allocation24 + $0x14] sm:$0xf]
        %v5937 = vld [vmem:[#allocation24 + $0x18] sm:$0xf]
        %v5938 = vld [vmem:[#allocation24 + $0x1c] sm:$0xf]
        %v5939 = vld [vmem:[#allocation24 + $0x20] sm:$0xf]
        %v5940 = vld [vmem:[#allocation24 + $0x24] sm:$0xf]
        %v5941 = vld [vmem:[#allocation24 + $0x28] sm:$0xf]
        %v5942 = vld [vmem:[#allocation24 + $0x2c] sm:$0xf]
        %v5943 = vld [vmem:[#allocation24 + $0x30] sm:$0xf]
        %v5944 = vld [vmem:[#allocation24 + $0x34] sm:$0xf]
        %v5945 = vld [vmem:[#allocation24 + $0x38] sm:$0xf]
        %v5946 = vld [vmem:[#allocation24 + $0x3c] sm:$0xf]
        %v5947 = vld [vmem:[#allocation24 + $0x40] sm:$0xf]
        %v5948 = vld [vmem:[#allocation24 + $0x44] sm:$0xf]
        %v5949 = vld [vmem:[#allocation24 + $0x48] sm:$0xf]
        %v5950 = vld [vmem:[#allocation24 + $0x4c] sm:$0xf]
        %v5951 = vld [vmem:[#allocation24 + $0x50] sm:$0xf]
        %v5952 = vld [vmem:[#allocation24 + $0x54] sm:$0xf]
        %v5953 = vld [vmem:[#allocation24 + $0x58] sm:$0xf]
        %v5954 = vld [vmem:[#allocation24 + $0x5c] sm:$0xf]
        %v5955 = vld [vmem:[#allocation24 + $0x60] sm:$0xf]
        %v5956 = vld [vmem:[#allocation24 + $0x64] sm:$0xf]
        %v5957 = vld [vmem:[#allocation24 + $0x68] sm:$0xf]
        %v5958 = vld [vmem:[#allocation24 + $0x6c] sm:$0xf]
        %v5959 = vld [vmem:[#allocation24 + $0x70] sm:$0xf]
        %v5960 = vld [vmem:[#allocation24 + $0x74] sm:$0xf]
        %v5961 = vld [vmem:[#allocation24 + $0x78] sm:$0xf]
        %v5962 = vld [vmem:[#allocation24 + $0x7c] sm:$0xf]
        %v5963 = vld [vmem:[#allocation24 + $0x80] sm:$0xf]
        %v5964 = vld [vmem:[#allocation24 + $0x84] sm:$0xf]
        %v5965 = vld [vmem:[#allocation24 + $0x88] sm:$0xf]
        %v5966 = vld [vmem:[#allocation24 + $0x8c] sm:$0xf]
        %v5967 = vld [vmem:[#allocation24 + $0x90] sm:$0xf]
        %v5968 = vld [vmem:[#allocation24 + $0x94] sm:$0xf]
        %v5969 = vld [vmem:[#allocation24 + $0x98] sm:$0xf]
        %v5970 = vld [vmem:[#allocation24 + $0x9c] sm:$0xf]
        %v5971 = vld [vmem:[#allocation24 + $0xa0] sm:$0xf]
        %v5972 = vld [vmem:[#allocation24 + $0xa4] sm:$0xf]
        %v5973 = vld [vmem:[#allocation24 + $0xa8] sm:$0xf]
        %v5974 = vld [vmem:[#allocation24 + $0xac] sm:$0xf]
        %v5975 = vld [vmem:[#allocation24 + $0xb0] sm:$0xf]
        %v5976 = vld [vmem:[#allocation24 + $0xb4] sm:$0xf]
        %v5977 = vld [vmem:[#allocation24 + $0xb8] sm:$0xf]
        %v5978 = vld [vmem:[#allocation24 + $0xbc] sm:$0xf]
        %v5979 = vld [vmem:[#allocation24 + $0xc0] sm:$0xf]
        %v5980 = vld [vmem:[#allocation24 + $0xc4] sm:$0xf]
        %v5981 = vld [vmem:[#allocation24 + $0xc8] sm:$0xf]
        %v5982 = vld [vmem:[#allocation24 + $0xcc] sm:$0xf]
        %v5983 = vld [vmem:[#allocation24 + $0xd0] sm:$0xf]
        %v5984 = vld [vmem:[#allocation24 + $0xd4] sm:$0xf]
        %v5985 = vld [vmem:[#allocation24 + $0xd8] sm:$0xf]
        %v5986 = vld [vmem:[#allocation24 + $0xdc] sm:$0xf]
        %v5987 = vld [vmem:[#allocation24 + $0xe0] sm:$0xf]
        %v5988 = vld [vmem:[#allocation24 + $0xe4] sm:$0xf]
        %v5989 = vld [vmem:[#allocation24 + $0xe8] sm:$0xf]
        %v5990 = vld [vmem:[#allocation24 + $0xec] sm:$0xf]
        %v5991 = vld [vmem:[#allocation24 + $0xf0] sm:$0xf]
        %v5992 = vld [vmem:[#allocation24 + $0xf4] sm:$0xf]
        %v5993 = vld [vmem:[#allocation24 + $0xf8] sm:$0xf]
        %v5994 = vld [vmem:[#allocation24 + $0xfc] sm:$0xf]
        %v5995 = vld [vmem:[%s21] sm:$0x1]
        %v5997 = vlaneseq
        %v5998 = vshrl.u32 %v5997, 7
        %v5999 = vsub.s32 0, %v5998
        %v6000 = vrot.slane %v5995, %v5999
        %v6066 = vunpack.c.l.b16 %v5931
        %v6067 = vunpack.c.l.b16 %v5932
        %v6068 = vunpack.c.l.b16 %v5933
        %v6069 = vunpack.c.l.b16 %v5934
        %v6070 = vunpack.c.l.b16 %v5935
        %v6071 = vunpack.c.l.b16 %v5936
        %v6072 = vunpack.c.l.b16 %v5937
        %v6073 = vunpack.c.l.b16 %v5938
        %v6074 = vunpack.c.l.b16 %v5939
        %v6075 = vunpack.c.l.b16 %v5940
        %v6076 = vunpack.c.l.b16 %v5941
        %v6077 = vunpack.c.l.b16 %v5942
        %v6078 = vunpack.c.l.b16 %v5943
        %v6079 = vunpack.c.l.b16 %v5944
        %v6080 = vunpack.c.l.b16 %v5945
        %v6081 = vunpack.c.l.b16 %v5946
        %v6082 = vunpack.c.l.b16 %v5947
        %v6083 = vunpack.c.l.b16 %v5948
        %v6084 = vunpack.c.l.b16 %v5949
        %v6085 = vunpack.c.l.b16 %v5950
        %v6086 = vunpack.c.l.b16 %v5951
        %v6087 = vunpack.c.l.b16 %v5952
        %v6088 = vunpack.c.l.b16 %v5953
        %v6089 = vunpack.c.l.b16 %v5954
        %v6090 = vunpack.c.l.b16 %v5955
        %v6091 = vunpack.c.l.b16 %v5956
        %v6092 = vunpack.c.l.b16 %v5957
        %v6093 = vunpack.c.l.b16 %v5958
        %v6094 = vunpack.c.l.b16 %v5959
        %v6095 = vunpack.c.l.b16 %v5960
        %v6096 = vunpack.c.l.b16 %v5961
        %v6097 = vunpack.c.l.b16 %v5962
        %v6098 = vunpack.c.l.b16 %v5963
        %v6099 = vunpack.c.l.b16 %v5964
        %v6100 = vunpack.c.l.b16 %v5965
        %v6101 = vunpack.c.l.b16 %v5966
        %v6102 = vunpack.c.l.b16 %v5967
        %v6103 = vunpack.c.l.b16 %v5968
        %v6104 = vunpack.c.l.b16 %v5969
        %v6105 = vunpack.c.l.b16 %v5970
        %v6106 = vunpack.c.l.b16 %v5971
        %v6107 = vunpack.c.l.b16 %v5972
        %v6108 = vunpack.c.l.b16 %v5973
        %v6109 = vunpack.c.l.b16 %v5974
        %v6110 = vunpack.c.l.b16 %v5975
        %v6111 = vunpack.c.l.b16 %v5976
        %v6112 = vunpack.c.l.b16 %v5977
        %v6113 = vunpack.c.l.b16 %v5978
        %v6114 = vunpack.c.l.b16 %v5979
        %v6115 = vunpack.c.l.b16 %v5980
        %v6116 = vunpack.c.l.b16 %v5981
        %v6117 = vunpack.c.l.b16 %v5982
        %v6118 = vunpack.c.l.b16 %v5983
        %v6119 = vunpack.c.l.b16 %v5984
        %v6120 = vunpack.c.l.b16 %v5985
        %v6121 = vunpack.c.l.b16 %v5986
        %v6122 = vunpack.c.l.b16 %v5987
        %v6123 = vunpack.c.l.b16 %v5988
        %v6124 = vunpack.c.l.b16 %v5989
        %v6125 = vunpack.c.l.b16 %v5990
        %v6126 = vunpack.c.l.b16 %v5991
        %v6127 = vunpack.c.l.b16 %v5992
        %v6128 = vunpack.c.l.b16 %v5993
        %v6129 = vunpack.c.l.b16 %v5994
        %v6130 = vpack.c.b16 %v6067, %v6066
        %v6131 = vpack.c.b16 %v6069, %v6068
        %v6132 = vpack.c.b16 %v6071, %v6070
        %v6133 = vpack.c.b16 %v6073, %v6072
        %v6134 = vpack.c.b16 %v6075, %v6074
        %v6135 = vpack.c.b16 %v6077, %v6076
        %v6136 = vpack.c.b16 %v6079, %v6078
        %v6137 = vpack.c.b16 %v6081, %v6080
        %v6138 = vpack.c.b16 %v6083, %v6082
        %v6139 = vpack.c.b16 %v6085, %v6084
        %v6140 = vpack.c.b16 %v6087, %v6086
        %v6141 = vpack.c.b16 %v6089, %v6088
        %v6142 = vpack.c.b16 %v6091, %v6090
        %v6143 = vpack.c.b16 %v6093, %v6092
        %v6144 = vpack.c.b16 %v6095, %v6094
        %v6145 = vpack.c.b16 %v6097, %v6096
        %v6146 = vpack.c.b16 %v6099, %v6098
        %v6147 = vpack.c.b16 %v6101, %v6100
        %v6148 = vpack.c.b16 %v6103, %v6102
        %v6149 = vpack.c.b16 %v6105, %v6104
        %v6150 = vpack.c.b16 %v6107, %v6106
        %v6151 = vpack.c.b16 %v6109, %v6108
        %v6152 = vpack.c.b16 %v6111, %v6110
        %v6153 = vpack.c.b16 %v6113, %v6112
        %v6154 = vpack.c.b16 %v6115, %v6114
        %v6155 = vpack.c.b16 %v6117, %v6116
        %v6156 = vpack.c.b16 %v6119, %v6118
        %v6157 = vpack.c.b16 %v6121, %v6120
        %v6158 = vpack.c.b16 %v6123, %v6122
        %v6159 = vpack.c.b16 %v6125, %v6124
        %v6160 = vpack.c.b16 %v6127, %v6126
        %v6161 = vpack.c.b16 %v6129, %v6128
        %6194 = vmatprep.subr.bf16.mxu0 0
        %6195 = vmatpush1.bf16.msra.mxu0 %v6137
        %6196 = vmatprep.subr.bf16.mxu0 0
        %6197 = vmatpush1.bf16.msra.mxu0 %v6136
        %6198 = vmatprep.subr.bf16.mxu0 0
        %6199 = vmatpush1.bf16.msra.mxu0 %v6135
        %6200 = vmatprep.subr.bf16.mxu0 0
        %6201 = vmatpush1.bf16.msra.mxu0 %v6134
        %6202 = vmatprep.subr.bf16.mxu0 0
        %6203 = vmatpush1.bf16.msra.mxu0 %v6133
        %6204 = vmatprep.subr.bf16.mxu0 0
        %6205 = vmatpush1.bf16.msra.mxu0 %v6132
        %6206 = vmatprep.subr.bf16.mxu0 0
        %6207 = vmatpush1.bf16.msra.mxu0 %v6131
        %6208 = vmatprep.subr.bf16.mxu0 0
        %6209 = vmatpush1.bf16.msra.mxu0 %v6130
        %6210 = vmatprep.subr.bf16.mxu0 0
        %6211 = vmatpush2.bf16.msra.mxu0 %v6145
        %6212 = vmatprep.subr.bf16.mxu0 0
        %6213 = vmatpush2.bf16.msra.mxu0 %v6144
        %6214 = vmatprep.subr.bf16.mxu0 0
        %6215 = vmatpush2.bf16.msra.mxu0 %v6143
        %6216 = vmatprep.subr.bf16.mxu0 0
        %6217 = vmatpush2.bf16.msra.mxu0 %v6142
        %6218 = vmatprep.subr.bf16.mxu0 0
        %6219 = vmatpush2.bf16.msra.mxu0 %v6141
        %6220 = vmatprep.subr.bf16.mxu0 0
        %6221 = vmatpush2.bf16.msra.mxu0 %v6140
        %6222 = vmatprep.subr.bf16.mxu0 0
        %6223 = vmatpush2.bf16.msra.mxu0 %v6139
        %6224 = vmatprep.subr.bf16.mxu0 0
        %6225 = vmatpush2.bf16.msra.mxu0 %v6138
        %6226 = vmatprep.mubr.bf16.mxu0 %v5916
        %6227 = vmatmul.mubr.bf16.gmra.mxu0 %v5915
        %v6228 = vpop.f32.mrf.mxu0
        %v6229 = vadd.f32 %v6000, %v6228
        %v6230 = vpop.f32.mrf.mxu0
        %v6231 = vpop.f32.mrf.mxu0
        %v6232 = vadd.f32 %v6000, %v6231
        %v6233 = vpop.f32.mrf.mxu0
        %6234 = vmatprep.mubr.bf16.mxu0 %v5920
        %6235 = vmatmul.mubr.bf16.gmra.mxu0 %v5919
        %v6236 = vpop.f32.mrf.mxu0
        %v6237 = vadd.f32 %v6000, %v6236
        %v6238 = vpop.f32.mrf.mxu0
        %v6239 = vpop.f32.mrf.mxu0
        %v6240 = vadd.f32 %v6000, %v6239
        %v6241 = vpop.f32.mrf.mxu0
        %6242 = vmatprep.mubr.bf16.mxu0 %v5924
        %6243 = vmatmul.mubr.bf16.gmra.mxu0 %v5923
        %v6244 = vpop.f32.mrf.mxu0
        %v6245 = vadd.f32 %v6000, %v6244
        %v6246 = vpop.f32.mrf.mxu0
        %v6247 = vpop.f32.mrf.mxu0
        %v6248 = vadd.f32 %v6000, %v6247
        %v6249 = vpop.f32.mrf.mxu0
        %6250 = vmatprep.mubr.bf16.mxu0 %v5928
        %6251 = vmatmul.mubr.bf16.gmra.mxu0 %v5927
        %v6252 = vpop.f32.mrf.mxu0
        %v6253 = vadd.f32 %v6000, %v6252
        %v6254 = vpop.f32.mrf.mxu0
        %v6255 = vpop.f32.mrf.mxu0
        %v6256 = vadd.f32 %v6000, %v6255
        %v6257 = vpop.f32.mrf.mxu0
        %6258 = vdwg.mxu0
        %6259 = vmatprep.subr.bf16.mxu0 0
        %6260 = vmatpush1.bf16.msra.mxu0 %v6153
        %6261 = vmatprep.subr.bf16.mxu0 0
        %6262 = vmatpush1.bf16.msra.mxu0 %v6152
        %6263 = vmatprep.subr.bf16.mxu0 0
        %6264 = vmatpush1.bf16.msra.mxu0 %v6151
        %6265 = vmatprep.subr.bf16.mxu0 0
        %6266 = vmatpush1.bf16.msra.mxu0 %v6150
        %6267 = vmatprep.subr.bf16.mxu0 0
        %6268 = vmatpush1.bf16.msra.mxu0 %v6149
        %6269 = vmatprep.subr.bf16.mxu0 0
        %6270 = vmatpush1.bf16.msra.mxu0 %v6148
        %6271 = vmatprep.subr.bf16.mxu0 0
        %6272 = vmatpush1.bf16.msra.mxu0 %v6147
        %6273 = vmatprep.subr.bf16.mxu0 0
        %6274 = vmatpush1.bf16.msra.mxu0 %v6146
        %6275 = vmatprep.subr.bf16.mxu0 0
        %6276 = vmatpush2.bf16.msra.mxu0 %v6161
        %6277 = vmatprep.subr.bf16.mxu0 0
        %6278 = vmatpush2.bf16.msra.mxu0 %v6160
        %6279 = vmatprep.subr.bf16.mxu0 0
        %6280 = vmatpush2.bf16.msra.mxu0 %v6159
        %6281 = vmatprep.subr.bf16.mxu0 0
        %6282 = vmatpush2.bf16.msra.mxu0 %v6158
        %6283 = vmatprep.subr.bf16.mxu0 0
        %6284 = vmatpush2.bf16.msra.mxu0 %v6157
        %6285 = vmatprep.subr.bf16.mxu0 0
        %6286 = vmatpush2.bf16.msra.mxu0 %v6156
        %6287 = vmatprep.subr.bf16.mxu0 0
        %6288 = vmatpush2.bf16.msra.mxu0 %v6155
        %6289 = vmatprep.subr.bf16.mxu0 0
        %6290 = vmatpush2.bf16.msra.mxu0 %v6154
        %6291 = vmatprep.mubr.bf16.mxu0 %v5918
        %6292 = vmatmul.mubr.bf16.gmra.mxu0 %v5917
        %v6293 = vpop.f32.mrf.mxu0
        %v6294 = vadd.f32 %v6229, %v6293
        %v6295 = vpop.f32.mrf.mxu0
        %v6296 = vpop.f32.mrf.mxu0
        %v6297 = vadd.f32 %v6232, %v6296
        %v6298 = vpop.f32.mrf.mxu0
        %6299 = vmatprep.mubr.bf16.mxu0 %v5922
        %6300 = vmatmul.mubr.bf16.gmra.mxu0 %v5921
        %v6301 = vpop.f32.mrf.mxu0
        %v6302 = vadd.f32 %v6237, %v6301
        %v6303 = vpop.f32.mrf.mxu0
        %v6304 = vpop.f32.mrf.mxu0
        %v6305 = vadd.f32 %v6240, %v6304
        %v6306 = vpop.f32.mrf.mxu0
        %6307 = vmatprep.mubr.bf16.mxu0 %v5926
        %6308 = vmatmul.mubr.bf16.gmra.mxu0 %v5925
        %v6309 = vpop.f32.mrf.mxu0
        %v6310 = vadd.f32 %v6245, %v6309
        %v6311 = vpop.f32.mrf.mxu0
        %v6312 = vpop.f32.mrf.mxu0
        %v6313 = vadd.f32 %v6248, %v6312
        %v6314 = vpop.f32.mrf.mxu0
        %6315 = vmatprep.mubr.bf16.mxu0 %v5930
        %6316 = vmatmul.mubr.bf16.gmra.mxu0 %v5929
        %v6317 = vpop.f32.mrf.mxu0
        %v6318 = vadd.f32 %v6253, %v6317
        %v6319 = vpop.f32.mrf.mxu0
        %v6320 = vpop.f32.mrf.mxu0
        %v6321 = vadd.f32 %v6256, %v6320
        %v6322 = vpop.f32.mrf.mxu0
        %6323 = vdwg.mxu0
        %v6324 = vadd.f32 %v6294, %v5511
        %v6325 = vadd.f32 %v6297, %v5512
        %v6326 = vadd.f32 %v6302, %v5513
        %v6327 = vadd.f32 %v6305, %v5514
        %v6328 = vadd.f32 %v6310, %v5515
        %v6329 = vadd.f32 %v6313, %v5516
        %v6330 = vadd.f32 %v6318, %v5517
        %v6331 = vadd.f32 %v6321, %v5518
        %6332 = vadd.xlane.f32.xlu0 %v6324
        %v6333 = vpop.xlane.xlu0 %6332
        %6334 = vadd.xlane.f32.xlu0 %v6325
        %v6335 = vpop.xlane.xlu0 %6334
        %6336 = vadd.xlane.f32.xlu0 %v6326
        %v6337 = vpop.xlane.xlu0 %6336
        %6338 = vadd.xlane.f32.xlu0 %v6327
        %v6339 = vpop.xlane.xlu0 %6338
        %6340 = vadd.xlane.f32.xlu0 %v6328
        %v6341 = vpop.xlane.xlu0 %6340
        %6342 = vadd.xlane.f32.xlu0 %v6329
        %v6343 = vpop.xlane.xlu0 %6342
        %6344 = vadd.xlane.f32.xlu0 %v6330
        %v6345 = vpop.xlane.xlu0 %6344
        %6346 = vadd.xlane.f32.xlu0 %v6331
        %v6347 = vpop.xlane.xlu0 %6346
        %v6348 = vmul.f32 %v6333, %v3184
        %v6349 = vmul.f32 %v6335, %v3184
        %v6350 = vmul.f32 %v6337, %v3184
        %v6351 = vmul.f32 %v6339, %v3184
        %v6352 = vmul.f32 %v6341, %v3184
        %v6353 = vmul.f32 %v6343, %v3184
        %v6354 = vmul.f32 %v6345, %v3184
        %v6355 = vmul.f32 %v6347, %v3184
        %v6356 = vsub.f32 %v6324, %v6348
        %v6357 = vsub.f32 %v6325, %v6349
        %v6358 = vsub.f32 %v6326, %v6350
        %v6359 = vsub.f32 %v6327, %v6351
        %v6360 = vsub.f32 %v6328, %v6352
        %v6361 = vsub.f32 %v6329, %v6353
        %v6362 = vsub.f32 %v6330, %v6354
        %v6363 = vsub.f32 %v6331, %v6355
        %v6364 = vmul.f32 %v6356, %v6356
        %v6365 = vmul.f32 %v6357, %v6357
        %v6366 = vmul.f32 %v6358, %v6358
        %v6367 = vmul.f32 %v6359, %v6359
        %v6368 = vmul.f32 %v6360, %v6360
        %v6369 = vmul.f32 %v6361, %v6361
        %v6370 = vmul.f32 %v6362, %v6362
        %v6371 = vmul.f32 %v6363, %v6363
        %6372 = vadd.xlane.f32.xlu0 %v6364
        %v6373 = vpop.xlane.xlu0 %6372
        %6374 = vadd.xlane.f32.xlu0 %v6365
        %v6375 = vpop.xlane.xlu0 %6374
        %6376 = vadd.xlane.f32.xlu0 %v6366
        %v6377 = vpop.xlane.xlu0 %6376
        %6378 = vadd.xlane.f32.xlu0 %v6367
        %v6379 = vpop.xlane.xlu0 %6378
        %6380 = vadd.xlane.f32.xlu0 %v6368
        %v6381 = vpop.xlane.xlu0 %6380
        %6382 = vadd.xlane.f32.xlu0 %v6369
        %v6383 = vpop.xlane.xlu0 %6382
        %6384 = vadd.xlane.f32.xlu0 %v6370
        %v6385 = vpop.xlane.xlu0 %6384
        %6386 = vadd.xlane.f32.xlu0 %v6371
        %v6387 = vpop.xlane.xlu0 %6386
        %v6388 = vmul.f32 %v6373, %v3184
        %v6389 = vmul.f32 %v6375, %v3184
        %v6390 = vmul.f32 %v6377, %v3184
        %v6391 = vmul.f32 %v6379, %v3184
        %v6392 = vmul.f32 %v6381, %v3184
        %v6393 = vmul.f32 %v6383, %v3184
        %v6394 = vmul.f32 %v6385, %v3184
        %v6395 = vmul.f32 %v6387, %v3184
        %v6396 = vadd.f32 %v6388, 1e-05
        %v6397 = vadd.f32 %v6389, 1e-05
        %v6398 = vadd.f32 %v6390, 1e-05
        %v6399 = vadd.f32 %v6391, 1e-05
        %v6400 = vadd.f32 %v6392, 1e-05
        %v6401 = vadd.f32 %v6393, 1e-05
        %v6402 = vadd.f32 %v6394, 1e-05
        %v6403 = vadd.f32 %v6395, 1e-05
        %v6404 = vrsqrt.pop %v6396
        %v6405 = vrsqrt.pop %v6397
        %v6406 = vrsqrt.pop %v6398
        %v6407 = vrsqrt.pop %v6399
        %v6408 = vrsqrt.pop %v6400
        %v6409 = vrsqrt.pop %v6401
        %v6410 = vrsqrt.pop %v6402
        %v6411 = vrsqrt.pop %v6403
        %v6412 = vmul.f32 %v6356, %v6404
        %v6413 = vmul.f32 %v6357, %v6405
        %v6414 = vmul.f32 %v6358, %v6406
        %v6415 = vmul.f32 %v6359, %v6407
        %v6416 = vmul.f32 %v6360, %v6408
        %v6417 = vmul.f32 %v6361, %v6409
        %v6418 = vmul.f32 %v6362, %v6410
        %v6419 = vmul.f32 %v6363, %v6411
        %v6420 = vld [vmem:[%s22] sm:$0x1]
        %v6422 = vlaneseq
        %v6423 = vshrl.u32 %v6422, 7
        %v6424 = vsub.s32 0, %v6423
        %v6425 = vrot.slane %v6420, %v6424
        %v6427 = vmul.f32 %v6412, %v6425
        %v6428 = vmul.f32 %v6413, %v6425
        %v6429 = vmul.f32 %v6414, %v6425
        %v6430 = vmul.f32 %v6415, %v6425
        %v6431 = vmul.f32 %v6416, %v6425
        %v6432 = vmul.f32 %v6417, %v6425
        %v6433 = vmul.f32 %v6418, %v6425
        %v6434 = vmul.f32 %v6419, %v6425
        %v6435 = vld [vmem:[%s23] sm:$0x1]
        %v6437 = vlaneseq
        %v6438 = vshrl.u32 %v6437, 7
        %v6439 = vsub.s32 0, %v6438
        %v6440 = vrot.slane %v6435, %v6439
        %v6442 = vadd.f32 %v6427, %v6440
        %v6443 = vadd.f32 %v6428, %v6440
        %v6444 = vadd.f32 %v6429, %v6440
        %v6445 = vadd.f32 %v6430, %v6440
        %v6446 = vadd.f32 %v6431, %v6440
        %v6447 = vadd.f32 %v6432, %v6440
        %v6448 = vadd.f32 %v6433, %v6440
        %v6449 = vadd.f32 %v6434, %v6440
        %6450 = vst [vmem:[%s969] sm:$0xff] %v6442
        %6451 = vst [vmem:[%s969 + $0x8] sm:$0xff] %v6443
        %6452 = vst [vmem:[%s969 + $0x10] sm:$0xff] %v6444
        %6453 = vst [vmem:[%s969 + $0x18] sm:$0xff] %v6445
        %6454 = vst [vmem:[%s969 + $0x20] sm:$0xff] %v6446
        %6455 = vst [vmem:[%s969 + $0x28] sm:$0xff] %v6447
        %6456 = vst [vmem:[%s969 + $0x30] sm:$0xff] %v6448
        %6457 = vst [vmem:[%s969 + $0x38] sm:$0xff] %v6449
        %s6458 = sand.u32 %s573, 1
        %s6459 = scalar_lea.sflag [#allocation6], %s6458
        %s6460 = sand.u32 %s573, 1
        %s6461 = smul.addr %s6460, 64
        %s6462 = scalar_lea.vmem [#allocation25], %s6461
        // Predicated region
        $region165: #{tpu_custom_call.1} parent=111 // pred_check
          %p6463 = pneg %p583
        $region166: #{tpu_custom_call.1} parent=111 // pred_check_branch
          %6465 = sbr.rel (%p6463) target = $region168
        $region167: #{tpu_custom_call.1} parent=111 // pred_region
          %s6466 = smul.u32 8, %s58
          %s6468 = ssub.s32 1024, 1024
          %6469 = vsyncadd %s6459, %s6468
          %s6470 = smul.addr %s57, 16
          %s6471 = sadd.s32 %s6466, %s6470
          %s6472 = smul.addr %s6471, 128
          %s6473 = scalar_lea.hbm %s24, %s6472
          %s6474 = sshll.u32 %s6462, 4
          %s6475 = int_to_ptr.vmem [resolvable:$true] %s6474
          %6480 = dma.vmem_to_hbm [thread:$0]  %s6475, 1024, %s6473, %s6459, 128, 128, 8
        $region168: #{tpu_custom_call.1} parent=111 // pred_fallthru
          _
      $region112: #{tpu_custom_call.1} parent=5 // pred_fallthru
        _
      %p6481 = scmp.le.s32.totalorder 2, %s48
      // Predicated region
      $region169: #{tpu_custom_call.1} parent=5 // pred_check
        %p6482 = pneg %p6481
      $region170: #{tpu_custom_call.1} parent=5 // pred_check_branch
        %6484 = sbr.rel (%p6482) target = $region172
      $region171: #{tpu_custom_call.1} parent=5 // pred_region
        %s6485 = ssub.s32 %s48, 2
        // Predicated region
        $region173: #{tpu_custom_call.1} parent=171 // pred_check
          %p6486 = pneg %p589
        $region174: #{tpu_custom_call.1} parent=171 // pred_check_branch
          %6488 = sbr.rel (%p6486) target = $region176
        $region175: #{tpu_custom_call.1} parent=171 // pred_region
          %s6489 = sand.u32 %s574, 1
          %s6490 = scalar_lea.sflag [#allocation6], %s6489
          %s6491 = sand.u32 %s574, 1
          %s6492 = smul.addr %s6491, 64
          %s6493 = scalar_lea.vmem [#allocation25], %s6492
          %6494 = dma.done %s6490, 1024
        $region176: #{tpu_custom_call.1} parent=171 // pred_fallthru
          _
      $region172: #{tpu_custom_call.1} parent=5 // pred_fallthru
        _
    $region6: #{tpu_custom_call.1} parent=1 // loop_footer
      %s52 = sadd.s32 1, %s48
    $region7: #{tpu_custom_call.1} parent=1 // loop_footer_branch
      %47 = sbr.rel target = $region3
    $region8: #{tpu_custom_call.1} parent=1 // loop_exit
      _
    %6495 = vsyncpa [#allocation5], 1
    %s6496 = scalar_lea.sflag [#allocation5], 1
    %6497 = vsyncpa %s6496, 1
    %6498 = vsyncpa [#allocation8], 1
    %s6499 = scalar_lea.sflag [#allocation8], 1
    %6500 = vsyncpa %s6499, 1
    %6501 = vsyncpa [#allocation11], 1
    %6502 = vsyncpa [#allocation14], 1
    %6503 = vsyncpa [#allocation17], 1
    %6504 = vsyncpa [#allocation20], 1
    %6505 = vsyncpa [#allocation23], 1
    %6506 = vsyncpa [#allocation6], 1
    %s6507 = scalar_lea.sflag [#allocation6], 1
    %6508 = vsyncpa %s6507, 1

</llo_original>
